<compile_context>
chip_gen: v7x
topology: tpu7x:2x2x1
jax: 0.10.0
libtpu: 0.0.40
codegen_flags: <defaults>
</compile_context>

<pallas_src>
import functools
import math

import jax
import jax.numpy as jnp
from jax.experimental import pallas as pl
from jax.experimental.pallas import tpu as pltpu


# --------------------------------------------------------------------------- #
# Fused branch kernel: Conv1DEncoder + 2x TransformerEncoderLayer + time-mean
# --------------------------------------------------------------------------- #
def _branch_kernel(x_ref, slab_ref, o_ref, pada, padb, *,
                   offs, chan, f1, f2, ksize, pad, l0, t1, t2, chunk,
                   n_layers, alpha):
    """One batch element per grid step.  All parameters live in a single packed
    slab (slab_ref) and are sliced with static offsets."""

    def param(name):
        r0, nr, nc = offs[name]
        return slab_ref[r0:r0 + nr, 0:nc]

    def bdot(a, b):
        # bf16 MXU matmul with f32 accumulation (bf16-native on v6e/v7x).
        return jnp.dot(a.astype(jnp.bfloat16), b.astype(jnp.bfloat16),
                       preferred_element_type=jnp.float32)

    def elu(y):
        # exp() only sees the clamped non-positive branch (no spurious inf).
        return jnp.where(y > 0, y, alpha * (jnp.exp(jnp.minimum(y, 0.0)) - 1.0))

    def ln_cols(x, g, b, eps=1e-5):
        # LayerNorm over the feature axis (axis 0) of a (d, T) lane-dense tile.
        mu = jnp.mean(x, axis=0, keepdims=True)
        var = jnp.mean((x - mu) ** 2, axis=0, keepdims=True)
        return (x - mu) * jax.lax.rsqrt(var + eps) * g + b

    # ---- shared banded AvgPool1d(4,2) chunk matrix (tiny, built in VMEM) -----
    rows = 2 * chunk + 2
    li_ = jax.lax.broadcasted_iota(jnp.int32, (rows, chunk), 0)
    ti_ = jax.lax.broadcasted_iota(jnp.int32, (rows, chunk), 1)
    dlt = li_ - 2 * ti_
    pm = jnp.where((dlt >= 0) & (dlt < 4), 0.25, 0.0).astype(jnp.float32)

    def pool_into(y, dst_ref, t_out):
        """AvgPool1d(4,2) of y (C, L) written into the centre of a 'same'-padded
        scratch ref (edges are zeroed = conv 'same' zero padding for the next block)."""
        dst_ref[...] = jnp.zeros(dst_ref.shape, jnp.float32)
        for j0 in range(0, t_out, chunk):
            tc = min(chunk, t_out - j0)
            dst_ref[:, pad + j0: pad + j0 + tc] = jnp.dot(
                y[:, 2 * j0: 2 * j0 + 2 * tc + 2], pm[: 2 * tc + 2, :tc],
                preferred_element_type=jnp.float32)

    x0 = x_ref[0]                                            # (chan, l0 + 2*pad)

    # ---- blck1: grouped conv (depth mult.) as K small dense matmuls + BN + ELU
    acc = jnp.zeros((f1, l0), jnp.float32)
    for kk in range(ksize):
        acc = acc + jnp.dot(param(f'w1_{kk}'), x0[:, kk:kk + l0],
                            preferred_element_type=jnp.float32)
    y1 = elu(acc + param('s1'))                              # (f1, l0)

    # ---- pool1 -> pada ('same'-padded layout for blck2) ----------------------
    pool_into(y1, pada, t1)
    xp1 = pada[...]
    x1 = xp1[:, pad:pad + t1]                                # (f1, t1)

    # ---- blck2 (depthwise) + residual -----------------------------------------
    w2 = param('w2')
    acc = xp1[:, 0:t1] * w2[:, 0:1]
    for kk in range(1, ksize):
        acc = acc + xp1[:, kk:kk + t1] * w2[:, kk:kk + 1]
    x2 = x1 + elu(acc + param('s2'))                         # (f1, t1)

    # ---- blck3 (depth-expanding) on 'same'-padded x2 (edges in pada stay zero)
    pada[:, pad:pad + t1] = x2
    xp2 = pada[...]
    acc = jnp.zeros((f2, t1), jnp.float32)
    for kk in range(ksize):
        acc = acc + jnp.dot(param(f'w3_{kk}'), xp2[:, kk:kk + t1],
                            preferred_element_type=jnp.float32)
    y3 = elu(acc + param('s3'))                              # (f2, t1)

    # ---- pool2 -> padb --------------------------------------------------------
    pool_into(y3, padb, t2)
    xp3 = padb[...]
    x3 = xp3[:, pad:pad + t2]                                # (f2, t2)

    # ---- blck4 (depthwise) + residual -> channel-major tokens (d, T) ----------
    w4 = param('w4')
    acc = xp3[:, 0:t2] * w4[:, 0:1]
    for kk in range(1, ksize):
        acc = acc + xp3[:, kk:kk + t2] * w4[:, kk:kk + 1]
    xc = x3 + elu(acc + param('s4'))                         # (d, T) lane-dense

    # ---- transformer encoder in (d, T) column layout --------------------------
    d = f2
    inv_sqrt_d = 1.0 / math.sqrt(d)
    for li in range(n_layers):
        p_ = f'l{li}_'
        qkv = bdot(param(p_ + 'wqkv'), xc) + param(p_ + 'bqkv')    # (3d, T)
        q = qkv[0:d, :]
        k_ = qkv[d:2 * d, :]
        v = qkv[2 * d:3 * d, :]
        st = bdot(k_.T, q) * inv_sqrt_d                            # (T_k, T_q)
        st = st - jnp.max(st, axis=0, keepdims=True)
        e = jnp.exp(st)
        p = e * pl.reciprocal(jnp.sum(e, axis=0, keepdims=True), approx=True)
        attn = bdot(v, p)                                          # (d, T)
        a = bdot(param(p_ + 'wo'), attn) + param(p_ + 'bo')
        y = ln_cols(xc + a, param(p_ + 'g1'), param(p_ + 'b1'))
        h = bdot(param(p_ + 'wf1'), y) + param(p_ + 'bf1')
        h = h * jnp.clip(h + 3.0, 0.0, 6.0) * (1.0 / 6.0)          # hardswish
        xc = ln_cols(y + bdot(param(p_ + 'wf2'), h) + param(p_ + 'bf2'),
                     param(p_ + 'g2'), param(p_ + 'b2'))

    # AdaptiveAvgPool1d(1) over tokens -> (d, 1) slab (no transpose needed).
    o_ref[0] = jnp.mean(xc, axis=1, keepdims=True)


# --------------------------------------------------------------------------- #
# Pallas wrapper
# --------------------------------------------------------------------------- #
def branch_forward(xb, slab, offs, *, f1, f2, ksize=5, pool=4, stride=2,
                   alpha=0.1, n_layers=2):
    """xb: (B, Chan, L) raw branch input -> (B, D) pooled transformer features."""
    b, chan, l0 = xb.shape
    pad = (ksize - 1) // 2
    t1 = (l0 - pool) // stride + 1
    t2 = (t1 - pool) // stride + 1
    chunk = min(256, t1)
    xp = jnp.pad(xb, ((0, 0), (0, 0), (pad, pad)))       # 'same' pad of raw input

    kernel = functools.partial(
        _branch_kernel, offs=offs, chan=chan, f1=f1, f2=f2, ksize=ksize,
        pad=pad, l0=l0, t1=t1, t2=t2, chunk=chunk, n_layers=n_layers, alpha=alpha)

    out = pl.pallas_call(
        kernel,
        out_shape=jax.ShapeDtypeStruct((b, f2, 1), jnp.float32),
        grid=(b,),
        in_specs=[pl.BlockSpec((1, chan, l0 + 2 * pad), lambda i: (i, 0, 0)),
                  pl.BlockSpec(slab.shape, lambda i: (0, 0))],   # packed params
        out_specs=pl.BlockSpec((1, f2, 1), lambda i: (i, 0, 0)),
        scratch_shapes=[pltpu.VMEM((f1, t1 + 2 * pad), jnp.float32),
                        pltpu.VMEM((f2, t2 + 2 * pad), jnp.float32)],
        compiler_params=pltpu.CompilerParams(
            dimension_semantics=("parallel",),            # batch across TCs on v7x
            vmem_limit_bytes=48 * 1024 * 1024),
    )(xp, slab)
    return out[:, :, 0]                                   # (B, f2)


def psdnet_forward(x, params, *, temporal, static):
    offs = static['offs']
    f1, f2 = static['f1'], static['f2']
    ks, nl = static['ksize'], static['n_layers']
    xt = x[:, :, :temporal]                               # EEG part
    xf = x[:, :, temporal:]                               # PSD part
    f_eeg = branch_forward(xt, params['eeg_slab'], offs, f1=f1, f2=f2,
                           ksize=ks, n_layers=nl)
    f_psd = branch_forward(xf, params['psd_slab'], offs, f1=f1, f2=f2,
                           ksize=ks, n_layers=nl)
    feats = jnp.concatenate([f_eeg, f_psd], axis=-1)      # torch.cat((xt, xf), -1)
    # Classifier head in plain XLA (a few kFLOPs -> not worth a kernel launch).
    h = feats @ params['head']['w1'] + params['head']['b1']
    h = jnp.where(h > 0.0, h, 0.01 * h)                   # LeakyReLU(0.01)
    return h @ params['head']['w2'] + params['head']['b2']


# --------------------------------------------------------------------------- #
# Deterministic parameter init + host-side folding / packing
# --------------------------------------------------------------------------- #
def _conv_block_params(key, cout, ksize):
    k1, k2, k3, k4 = jax.random.split(key, 4)
    w = (jax.random.normal(k1, (cout, ksize)) * 0.3).astype(jnp.float32)
    bias = (jax.random.normal(k2, (cout,)) * 0.1).astype(jnp.float32)
    gamma = (1.0 + 0.1 * jax.random.normal(k3, (cout,))).astype(jnp.float32)
    beta = (0.1 * jax.random.normal(k4, (cout,))).astype(jnp.float32)
    mean = jnp.zeros((cout,), jnp.float32)
    var = jnp.ones((cout,), jnp.float32)
    scale = gamma / jnp.sqrt(var + 1e-5)                  # eval-mode BN fold
    shift = (bias - mean) * scale + beta                  # conv bias folded in
    return w, scale, shift


def _branch_param_list(key, chan, ksize=5, d1=2, d2=2, n_layers=2):
    """All parameters pre-folded and stored in the orientation the kernel uses."""
    f1, f2 = chan * d1, chan * d1 * d2
    d = f2
    kc1, kc2, kc3, kc4, *kls = jax.random.split(key, 4 + n_layers)
    entries = []

    # blck1: grouped conv (depth mult. d1) folded into K dense (f1, chan) mats.
    w, sc, sh = _conv_block_params(kc1, f1, ksize)
    e1 = (jnp.arange(f1)[:, None] // d1 == jnp.arange(chan)[None, :]).astype(jnp.float32)
    for kk in range(ksize):
        entries.append((f'w1_{kk}', e1 * (w[:, kk] * sc)[:, None]))
    entries.append(('s1', sh[:, None]))
    # blck2: depthwise (f1 -> f1), BN scale folded into taps.
    w, sc, sh = _conv_block_params(kc2, f1, ksize)
    entries += [('w2', w * sc[:, None]), ('s2', sh[:, None])]
    # blck3: grouped conv (depth mult. d2) folded into K dense (f2, f1) mats.
    w, sc, sh = _conv_block_params(kc3, f2, ksize)
    e2 = (jnp.arange(f2)[:, None] // d2 == jnp.arange(f1)[None, :]).astype(jnp.float32)
    for kk in range(ksize):
        entries.append((f'w3_{kk}', e2 * (w[:, kk] * sc)[:, None]))
    entries.append(('s3', sh[:, None]))
    # blck4: depthwise (f2 -> f2)
    w, sc, sh = _conv_block_params(kc4, f2, ksize)
    entries += [('w4', w * sc[:, None]), ('s4', sh[:, None])]

    # transformer layers: weights stored transposed for the (d, T) column layout
    std = 1.0 / math.sqrt(d)
    for li, kl in enumerate(kls):
        ks = jax.random.split(kl, 8)

        def wmat(k_, m, n):
            return (jax.random.normal(k_, (m, n)) * std).astype(jnp.float32)

        def bcol(k_, n):
            return (0.05 * jax.random.normal(k_, (n, 1))).astype(jnp.float32)

        p_ = f'l{li}_'
        entries += [
            (p_ + 'wqkv', wmat(ks[0], 3 * d, d)), (p_ + 'bqkv', bcol(ks[1], 3 * d)),
            (p_ + 'wo', wmat(ks[2], d, d)), (p_ + 'bo', bcol(ks[3], d)),
            (p_ + 'g1', jnp.ones((d, 1), jnp.float32)),
            (p_ + 'b1', jnp.zeros((d, 1), jnp.float32)),
            (p_ + 'wf1', wmat(ks[4], d, d)), (p_ + 'bf1', bcol(ks[5], d)),
            (p_ + 'wf2', wmat(ks[6], d, d)), (p_ + 'bf2', bcol(ks[7], d)),
            (p_ + 'g2', jnp.ones((d, 1), jnp.float32)),
            (p_ + 'b2', jnp.zeros((d, 1), jnp.float32)),
        ]
    return entries


def _pack_params(entries, width):
    """Pack all 2-D params into one (rows, width) slab; 8-row aligned entries."""
    offs, row = {}, 0
    for name, a in entries:
        assert a.ndim == 2 and a.shape[1] <= width, (name, a.shape)
        offs[name] = (row, a.shape[0], a.shape[1])
        row += ((a.shape[0] + 7) // 8) * 8
    slab = jnp.zeros((max(row, 8), width), jnp.float32)
    for name, a in entries:
        r0, nr, nc = offs[name]
        slab = slab.at[r0:r0 + nr, :nc].set(a.astype(jnp.float32))
    return slab, offs


def init_params(key, chan, features, nb_classes, ksize=5, n_layers=2):
    assert features == chan * 4, "encoder output channels must equal d_model"
    f1, d = chan * 2, features
    hidden = features // 2 if features // 2 > 64 else 64
    out_dim = 1 if nb_classes <= 2 else nb_classes
    k_eeg, k_psd, k_h1, k_h2 = jax.random.split(key, 4)

    slab_eeg, offs = _pack_params(_branch_param_list(k_eeg, chan, ksize, n_layers=n_layers), d)
    slab_psd, _ = _pack_params(_branch_param_list(k_psd, chan, ksize, n_layers=n_layers), d)

    params = {
        'eeg_slab': slab_eeg,
        'psd_slab': slab_psd,
        'head': {
            'w1': (jax.random.normal(k_h1, (2 * d, hidden)) /
                   math.sqrt(2 * d)).astype(jnp.float32),
            'b1': jnp.zeros((hidden,), jnp.float32),
            'w2': (jax.random.normal(k_h2, (hidden, out_dim)) /
                   math.sqrt(hidden)).astype(jnp.float32),
            'b2': jnp.zeros((out_dim,), jnp.float32),
        },
    }
    static = {'offs': offs, 'f1': f1, 'f2': d, 'ksize': ksize, 'n_layers': n_layers}
    return params, static


# --------------------------------------------------------------------------- #
if __name__ == "__main__":
    B, Chan = 2, 4
    temporal, spectral = 40, 24          # small stand-ins for 2000 / 180
    Features = Chan * 2 * 2              # encoder output channels == d_model
    nb_classes = 3

    key = jax.random.PRNGKey(0)
    kx, kp = jax.random.split(key)
    x = jax.random.normal(kx, (B, Chan, temporal + spectral), jnp.float32)
    params, static = init_params(kp, Chan, Features, nb_classes)

    fwd = jax.jit(functools.partial(psdnet_forward, temporal=temporal, static=static))
    out = jax.block_until_ready(fwd(x, params))

    assert out.shape == (B, nb_classes), out.shape
    assert bool(jnp.all(jnp.isfinite(out)))
    print("KERNEL_OK")
</pallas_src>

<mosaic_0001>
module attributes {stable_mosaic.version = 11 : i64} {
  func.func @_branch_kernel(%arg0: i32, %arg1: memref<1x4x28xf32, #tpu.memory_space<vmem>>, %arg2: memref<704x16xf32, #tpu.memory_space<vmem>>, %arg3: memref<1x16x1xf32, #tpu.memory_space<vmem>>, %arg4: memref<8x15xf32, #tpu.memory_space<vmem>>, %arg5: memref<16x8xf32, #tpu.memory_space<vmem>>) attributes {dimension_semantics = [#tpu.dimension_semantics<parallel>], iteration_bounds = array<i64: 2>, scalar_prefetch = 0 : i64, scratch_operands = 2 : i64, tpu.core_type = #tpu.core_type<tc>, window_params = [{transform_indices = @transform_0, window_bounds = array<i64: 1, 4, 28>}, {pipeline_mode = #tpu.pipeline_mode<synchronous>, transform_indices = @transform_1, window_bounds = array<i64: 704, 16>}, {transform_indices = @transform_2, window_bounds = array<i64: 1, 16, 1>}]} {
    %0 = tpu.iota {dimensions = array<i32: 0>} : vector<24x11xi32>
    %1 = tpu.iota {dimensions = array<i32: 1>} : vector<24x11xi32>
    %c2_i32 = arith.constant 2 : i32
    %2 = vector.broadcast %c2_i32 : i32 to vector<24x11xi32>
    %3 = arith.muli %2, %1 : vector<24x11xi32>
    %4 = arith.subi %0, %3 : vector<24x11xi32>
    %c0_i32 = arith.constant 0 : i32
    %5 = vector.broadcast %c0_i32 : i32 to vector<24x11xi32>
    %6 = arith.cmpi sge, %4, %5 : vector<24x11xi32>
    %c4_i32 = arith.constant 4 : i32
    %7 = vector.broadcast %c4_i32 : i32 to vector<24x11xi32>
    %8 = arith.cmpi slt, %4, %7 : vector<24x11xi32>
    %9 = arith.andi %6, %8 : vector<24x11xi1>
    %cst = arith.constant 2.500000e-01 : f32
    %cst_0 = arith.constant 0.000000e+00 : f32
    %10 = vector.broadcast %cst : f32 to vector<24x11xf32>
    %11 = vector.broadcast %cst_0 : f32 to vector<24x11xf32>
    %12 = arith.select %9, %10, %11 : vector<24x11xi1>, vector<24x11xf32>
    %c0 = arith.constant 0 : index
    %c0_1 = arith.constant 0 : index
    %c0_2 = arith.constant 0 : index
    %13 = vector.load %arg1[%c0, %c0_1, %c0_2] : memref<1x4x28xf32, #tpu.memory_space<vmem>>, vector<1x4x28xf32>
    %14 = vector.shape_cast %13 : vector<1x4x28xf32> to vector<4x28xf32>
    %cst_3 = arith.constant 0.000000e+00 : f32
    %15 = vector.broadcast %cst_3 : f32 to vector<8x24xf32>
    %c0_4 = arith.constant 0 : index
    %c0_5 = arith.constant 0 : index
    %16 = vector.load %arg2[%c0_4, %c0_5] : memref<704x16xf32, #tpu.memory_space<vmem>>, vector<8x4xf32>
    %17 = vector.extract_strided_slice %14 {offsets = [0, 0], sizes = [4, 24], strides = [1, 1]} : vector<4x28xf32> to vector<4x24xf32>
    %cst_6 = arith.constant dense<0.000000e+00> : vector<8x24xf32>
    %18 = tpu.matmul %16, %17, %cst_6 {dimension_numbers = #tpu.dot_dimension_numbers<[1], [0], [0], [1], [0, 0, 1, 1], [], []>} : vector<8x4xf32>, vector<4x24xf32>, vector<8x24xf32> -> vector<8x24xf32>
    %19 = arith.addf %15, %18 : vector<8x24xf32>
    %c8 = arith.constant 8 : index
    %c0_7 = arith.constant 0 : index
    %20 = vector.load %arg2[%c8, %c0_7] : memref<704x16xf32, #tpu.memory_space<vmem>>, vector<8x4xf32>
    %21 = vector.extract_strided_slice %14 {offsets = [0, 1], sizes = [4, 24], strides = [1, 1]} : vector<4x28xf32> to vector<4x24xf32>
    %cst_8 = arith.constant dense<0.000000e+00> : vector<8x24xf32>
    %22 = tpu.matmul %20, %21, %cst_8 {dimension_numbers = #tpu.dot_dimension_numbers<[1], [0], [0], [1], [0, 0, 1, 1], [], []>} : vector<8x4xf32>, vector<4x24xf32>, vector<8x24xf32> -> vector<8x24xf32>
    %23 = arith.addf %19, %22 : vector<8x24xf32>
    %c16 = arith.constant 16 : index
    %c0_9 = arith.constant 0 : index
    %24 = vector.load %arg2[%c16, %c0_9] : memref<704x16xf32, #tpu.memory_space<vmem>>, vector<8x4xf32>
    %25 = vector.extract_strided_slice %14 {offsets = [0, 2], sizes = [4, 24], strides = [1, 1]} : vector<4x28xf32> to vector<4x24xf32>
    %cst_10 = arith.constant dense<0.000000e+00> : vector<8x24xf32>
    %26 = tpu.matmul %24, %25, %cst_10 {dimension_numbers = #tpu.dot_dimension_numbers<[1], [0], [0], [1], [0, 0, 1, 1], [], []>} : vector<8x4xf32>, vector<4x24xf32>, vector<8x24xf32> -> vector<8x24xf32>
    %27 = arith.addf %23, %26 : vector<8x24xf32>
    %c24 = arith.constant 24 : index
    %c0_11 = arith.constant 0 : index
    %28 = vector.load %arg2[%c24, %c0_11] : memref<704x16xf32, #tpu.memory_space<vmem>>, vector<8x4xf32>
    %29 = vector.extract_strided_slice %14 {offsets = [0, 3], sizes = [4, 24], strides = [1, 1]} : vector<4x28xf32> to vector<4x24xf32>
    %cst_12 = arith.constant dense<0.000000e+00> : vector<8x24xf32>
    %30 = tpu.matmul %28, %29, %cst_12 {dimension_numbers = #tpu.dot_dimension_numbers<[1], [0], [0], [1], [0, 0, 1, 1], [], []>} : vector<8x4xf32>, vector<4x24xf32>, vector<8x24xf32> -> vector<8x24xf32>
    %31 = arith.addf %27, %30 : vector<8x24xf32>
    %c32 = arith.constant 32 : index
    %c0_13 = arith.constant 0 : index
    %32 = vector.load %arg2[%c32, %c0_13] : memref<704x16xf32, #tpu.memory_space<vmem>>, vector<8x4xf32>
    %33 = vector.extract_strided_slice %14 {offsets = [0, 4], sizes = [4, 24], strides = [1, 1]} : vector<4x28xf32> to vector<4x24xf32>
    %cst_14 = arith.constant dense<0.000000e+00> : vector<8x24xf32>
    %34 = tpu.matmul %32, %33, %cst_14 {dimension_numbers = #tpu.dot_dimension_numbers<[1], [0], [0], [1], [0, 0, 1, 1], [], []>} : vector<8x4xf32>, vector<4x24xf32>, vector<8x24xf32> -> vector<8x24xf32>
    %35 = arith.addf %31, %34 : vector<8x24xf32>
    %c40 = arith.constant 40 : index
    %c0_15 = arith.constant 0 : index
    %36 = vector.load %arg2[%c40, %c0_15] : memref<704x16xf32, #tpu.memory_space<vmem>>, vector<8x1xf32>
    %37 = vector.broadcast %36 : vector<8x1xf32> to vector<8x24xf32>
    %38 = arith.addf %35, %37 : vector<8x24xf32>
    %cst_16 = arith.constant 0.000000e+00 : f32
    %39 = vector.broadcast %cst_16 : f32 to vector<8x24xf32>
    %40 = arith.cmpf ogt, %38, %39 : vector<8x24xf32>
    %cst_17 = arith.constant 0.000000e+00 : f32
    %41 = vector.broadcast %cst_17 : f32 to vector<8x24xf32>
    %42 = arith.minimumf %38, %41 : vector<8x24xf32>
    %43 = math.exp %42 : vector<8x24xf32>
    %cst_18 = arith.constant 1.000000e+00 : f32
    %44 = vector.broadcast %cst_18 : f32 to vector<8x24xf32>
    %45 = arith.subf %43, %44 : vector<8x24xf32>
    %cst_19 = arith.constant 1.000000e-01 : f32
    %46 = vector.broadcast %cst_19 : f32 to vector<8x24xf32>
    %47 = arith.mulf %46, %45 : vector<8x24xf32>
    %48 = arith.select %40, %38, %47 : vector<8x24xi1>, vector<8x24xf32>
    %cst_20 = arith.constant 0.000000e+00 : f32
    %49 = vector.broadcast %cst_20 : f32 to vector<8x15xf32>
    %c0_21 = arith.constant 0 : index
    %c0_22 = arith.constant 0 : index
    %50 = vector.load %arg4[%c0_21, %c0_22] : memref<8x15xf32, #tpu.memory_space<vmem>>, vector<8x15xf32>
    tpu.vector_store %arg4[%c0_21, %c0_22], %49 {strides = array<i32>} : memref<8x15xf32, #tpu.memory_space<vmem>>, vector<8x15xf32>,
    %cst_23 = arith.constant dense<0.000000e+00> : vector<8x11xf32>
    %51 = tpu.matmul %48, %12, %cst_23 {dimension_numbers = #tpu.dot_dimension_numbers<[1], [0], [0], [1], [0, 0, 1, 1], [], []>} : vector<8x24xf32>, vector<24x11xf32>, vector<8x11xf32> -> vector<8x11xf32>
    %c0_24 = arith.constant 0 : index
    %c2 = arith.constant 2 : index
    %52 = vector.load %arg4[%c0_24, %c2] : memref<8x15xf32, #tpu.memory_space<vmem>>, vector<8x11xf32>
    tpu.vector_store %arg4[%c0_24, %c2], %51 {strides = array<i32>} : memref<8x15xf32, #tpu.memory_space<vmem>>, vector<8x11xf32>,
    %c0_25 = arith.constant 0 : index
    %c0_26 = arith.constant 0 : index
    %53 = vector.load %arg4[%c0_25, %c0_26] : memref<8x15xf32, #tpu.memory_space<vmem>>, vector<8x15xf32>
    %54 = vector.extract_strided_slice %53 {offsets = [0, 2], sizes = [8, 11], strides = [1, 1]} : vector<8x15xf32> to vector<8x11xf32>
    %c48 = arith.constant 48 : index
    %c0_27 = arith.constant 0 : index
    %55 = vector.load %arg2[%c48, %c0_27] : memref<704x16xf32, #tpu.memory_space<vmem>>, vector<8x5xf32>
    %56 = vector.extract_strided_slice %53 {offsets = [0, 0], sizes = [8, 11], strides = [1, 1]} : vector<8x15xf32> to vector<8x11xf32>
    %57 = vector.extract_strided_slice %55 {offsets = [0, 0], sizes = [8, 1], strides = [1, 1]} : vector<8x5xf32> to vector<8x1xf32>
    %58 = vector.broadcast %57 : vector<8x1xf32> to vector<8x11xf32>
    %59 = arith.mulf %56, %58 : vector<8x11xf32>
    %60 = vector.extract_strided_slice %53 {offsets = [0, 1], sizes = [8, 11], strides = [1, 1]} : vector<8x15xf32> to vector<8x11xf32>
    %61 = vector.extract_strided_slice %55 {offsets = [0, 1], sizes = [8, 1], strides = [1, 1]} : vector<8x5xf32> to vector<8x1xf32>
    %62 = vector.broadcast %61 : vector<8x1xf32> to vector<8x11xf32>
    %63 = arith.mulf %60, %62 : vector<8x11xf32>
    %64 = arith.addf %59, %63 : vector<8x11xf32>
    %65 = vector.extract_strided_slice %53 {offsets = [0, 2], sizes = [8, 11], strides = [1, 1]} : vector<8x15xf32> to vector<8x11xf32>
    %66 = vector.extract_strided_slice %55 {offsets = [0, 2], sizes = [8, 1], strides = [1, 1]} : vector<8x5xf32> to vector<8x1xf32>
    %67 = vector.broadcast %66 : vector<8x1xf32> to vector<8x11xf32>
    %68 = arith.mulf %65, %67 : vector<8x11xf32>
    %69 = arith.addf %64, %68 : vector<8x11xf32>
    %70 = vector.extract_strided_slice %53 {offsets = [0, 3], sizes = [8, 11], strides = [1, 1]} : vector<8x15xf32> to vector<8x11xf32>
    %71 = vector.extract_strided_slice %55 {offsets = [0, 3], sizes = [8, 1], strides = [1, 1]} : vector<8x5xf32> to vector<8x1xf32>
    %72 = vector.broadcast %71 : vector<8x1xf32> to vector<8x11xf32>
    %73 = arith.mulf %70, %72 : vector<8x11xf32>
    %74 = arith.addf %69, %73 : vector<8x11xf32>
    %75 = vector.extract_strided_slice %53 {offsets = [0, 4], sizes = [8, 11], strides = [1, 1]} : vector<8x15xf32> to vector<8x11xf32>
    %76 = vector.extract_strided_slice %55 {offsets = [0, 4], sizes = [8, 1], strides = [1, 1]} : vector<8x5xf32> to vector<8x1xf32>
    %77 = vector.broadcast %76 : vector<8x1xf32> to vector<8x11xf32>
    %78 = arith.mulf %75, %77 : vector<8x11xf32>
    %79 = arith.addf %74, %78 : vector<8x11xf32>
    %c56 = arith.constant 56 : index
    %c0_28 = arith.constant 0 : index
    %80 = vector.load %arg2[%c56, %c0_28] : memref<704x16xf32, #tpu.memory_space<vmem>>, vector<8x1xf32>
    %81 = vector.broadcast %80 : vector<8x1xf32> to vector<8x11xf32>
    %82 = arith.addf %79, %81 : vector<8x11xf32>
    %cst_29 = arith.constant 0.000000e+00 : f32
    %83 = vector.broadcast %cst_29 : f32 to vector<8x11xf32>
    %84 = arith.cmpf ogt, %82, %83 : vector<8x11xf32>
    %cst_30 = arith.constant 0.000000e+00 : f32
    %85 = vector.broadcast %cst_30 : f32 to vector<8x11xf32>
    %86 = arith.minimumf %82, %85 : vector<8x11xf32>
    %87 = math.exp %86 : vector<8x11xf32>
    %cst_31 = arith.constant 1.000000e+00 : f32
    %88 = vector.broadcast %cst_31 : f32 to vector<8x11xf32>
    %89 = arith.subf %87, %88 : vector<8x11xf32>
    %cst_32 = arith.constant 1.000000e-01 : f32
    %90 = vector.broadcast %cst_32 : f32 to vector<8x11xf32>
    %91 = arith.mulf %90, %89 : vector<8x11xf32>
    %92 = arith.select %84, %82, %91 : vector<8x11xi1>, vector<8x11xf32>
    %93 = arith.addf %54, %92 : vector<8x11xf32>
    %c0_33 = arith.constant 0 : index
    %c2_34 = arith.constant 2 : index
    %94 = vector.load %arg4[%c0_33, %c2_34] : memref<8x15xf32, #tpu.memory_space<vmem>>, vector<8x11xf32>
    tpu.vector_store %arg4[%c0_33, %c2_34], %93 {strides = array<i32>} : memref<8x15xf32, #tpu.memory_space<vmem>>, vector<8x11xf32>,
    %c0_35 = arith.constant 0 : index
    %c0_36 = arith.constant 0 : index
    %95 = vector.load %arg4[%c0_35, %c0_36] : memref<8x15xf32, #tpu.memory_space<vmem>>, vector<8x15xf32>
    %cst_37 = arith.constant 0.000000e+00 : f32
    %96 = vector.broadcast %cst_37 : f32 to vector<16x11xf32>
    %c64 = arith.constant 64 : index
    %c0_38 = arith.constant 0 : index
    %97 = vector.load %arg2[%c64, %c0_38] : memref<704x16xf32, #tpu.memory_space<vmem>>, vector<16x8xf32>
    %98 = vector.extract_strided_slice %95 {offsets = [0, 0], sizes = [8, 11], strides = [1, 1]} : vector<8x15xf32> to vector<8x11xf32>
    %cst_39 = arith.constant dense<0.000000e+00> : vector<16x11xf32>
    %99 = tpu.matmul %97, %98, %cst_39 {dimension_numbers = #tpu.dot_dimension_numbers<[1], [0], [0], [1], [0, 0, 1, 1], [], []>} : vector<16x8xf32>, vector<8x11xf32>, vector<16x11xf32> -> vector<16x11xf32>
    %100 = arith.addf %96, %99 : vector<16x11xf32>
    %c80 = arith.constant 80 : index
    %c0_40 = arith.constant 0 : index
    %101 = vector.load %arg2[%c80, %c0_40] : memref<704x16xf32, #tpu.memory_space<vmem>>, vector<16x8xf32>
    %102 = vector.extract_strided_slice %95 {offsets = [0, 1], sizes = [8, 11], strides = [1, 1]} : vector<8x15xf32> to vector<8x11xf32>
    %cst_41 = arith.constant dense<0.000000e+00> : vector<16x11xf32>
    %103 = tpu.matmul %101, %102, %cst_41 {dimension_numbers = #tpu.dot_dimension_numbers<[1], [0], [0], [1], [0, 0, 1, 1], [], []>} : vector<16x8xf32>, vector<8x11xf32>, vector<16x11xf32> -> vector<16x11xf32>
    %104 = arith.addf %100, %103 : vector<16x11xf32>
    %c96 = arith.constant 96 : index
    %c0_42 = arith.constant 0 : index
    %105 = vector.load %arg2[%c96, %c0_42] : memref<704x16xf32, #tpu.memory_space<vmem>>, vector<16x8xf32>
    %106 = vector.extract_strided_slice %95 {offsets = [0, 2], sizes = [8, 11], strides = [1, 1]} : vector<8x15xf32> to vector<8x11xf32>
    %cst_43 = arith.constant dense<0.000000e+00> : vector<16x11xf32>
    %107 = tpu.matmul %105, %106, %cst_43 {dimension_numbers = #tpu.dot_dimension_numbers<[1], [0], [0], [1], [0, 0, 1, 1], [], []>} : vector<16x8xf32>, vector<8x11xf32>, vector<16x11xf32> -> vector<16x11xf32>
    %108 = arith.addf %104, %107 : vector<16x11xf32>
    %c112 = arith.constant 112 : index
    %c0_44 = arith.constant 0 : index
    %109 = vector.load %arg2[%c112, %c0_44] : memref<704x16xf32, #tpu.memory_space<vmem>>, vector<16x8xf32>
    %110 = vector.extract_strided_slice %95 {offsets = [0, 3], sizes = [8, 11], strides = [1, 1]} : vector<8x15xf32> to vector<8x11xf32>
    %cst_45 = arith.constant dense<0.000000e+00> : vector<16x11xf32>
    %111 = tpu.matmul %109, %110, %cst_45 {dimension_numbers = #tpu.dot_dimension_numbers<[1], [0], [0], [1], [0, 0, 1, 1], [], []>} : vector<16x8xf32>, vector<8x11xf32>, vector<16x11xf32> -> vector<16x11xf32>
    %112 = arith.addf %108, %111 : vector<16x11xf32>
    %c128 = arith.constant 128 : index
    %c0_46 = arith.constant 0 : index
    %113 = vector.load %arg2[%c128, %c0_46] : memref<704x16xf32, #tpu.memory_space<vmem>>, vector<16x8xf32>
    %114 = vector.extract_strided_slice %95 {offsets = [0, 4], sizes = [8, 11], strides = [1, 1]} : vector<8x15xf32> to vector<8x11xf32>
    %cst_47 = arith.constant dense<0.000000e+00> : vector<16x11xf32>
    %115 = tpu.matmul %113, %114, %cst_47 {dimension_numbers = #tpu.dot_dimension_numbers<[1], [0], [0], [1], [0, 0, 1, 1], [], []>} : vector<16x8xf32>, vector<8x11xf32>, vector<16x11xf32> -> vector<16x11xf32>
    %116 = arith.addf %112, %115 : vector<16x11xf32>
    %c144 = arith.constant 144 : index
    %c0_48 = arith.constant 0 : index
    %117 = vector.load %arg2[%c144, %c0_48] : memref<704x16xf32, #tpu.memory_space<vmem>>, vector<16x1xf32>
    %118 = vector.broadcast %117 : vector<16x1xf32> to vector<16x11xf32>
    %119 = arith.addf %116, %118 : vector<16x11xf32>
    %cst_49 = arith.constant 0.000000e+00 : f32
    %120 = vector.broadcast %cst_49 : f32 to vector<16x11xf32>
    %121 = arith.cmpf ogt, %119, %120 : vector<16x11xf32>
    %cst_50 = arith.constant 0.000000e+00 : f32
    %122 = vector.broadcast %cst_50 : f32 to vector<16x11xf32>
    %123 = arith.minimumf %119, %122 : vector<16x11xf32>
    %124 = math.exp %123 : vector<16x11xf32>
    %cst_51 = arith.constant 1.000000e+00 : f32
    %125 = vector.broadcast %cst_51 : f32 to vector<16x11xf32>
    %126 = arith.subf %124, %125 : vector<16x11xf32>
    %cst_52 = arith.constant 1.000000e-01 : f32
    %127 = vector.broadcast %cst_52 : f32 to vector<16x11xf32>
    %128 = arith.mulf %127, %126 : vector<16x11xf32>
    %129 = arith.select %121, %119, %128 : vector<16x11xi1>, vector<16x11xf32>
    %cst_53 = arith.constant 0.000000e+00 : f32
    %130 = vector.broadcast %cst_53 : f32 to vector<16x8xf32>
    %c0_54 = arith.constant 0 : index
    %c0_55 = arith.constant 0 : index
    %131 = vector.load %arg5[%c0_54, %c0_55] : memref<16x8xf32, #tpu.memory_space<vmem>>, vector<16x8xf32>
    tpu.vector_store %arg5[%c0_54, %c0_55], %130 {strides = array<i32>} : memref<16x8xf32, #tpu.memory_space<vmem>>, vector<16x8xf32>,
    %132 = vector.extract_strided_slice %129 {offsets = [0, 0], sizes = [16, 10], strides = [1, 1]} : vector<16x11xf32> to vector<16x10xf32>
    %133 = vector.extract_strided_slice %12 {offsets = [0, 0], sizes = [10, 4], strides = [1, 1]} : vector<24x11xf32> to vector<10x4xf32>
    %cst_56 = arith.constant dense<0.000000e+00> : vector<16x4xf32>
    %134 = tpu.matmul %132, %133, %cst_56 {dimension_numbers = #tpu.dot_dimension_numbers<[1], [0], [0], [1], [0, 0, 1, 1], [], []>} : vector<16x10xf32>, vector<10x4xf32>, vector<16x4xf32> -> vector<16x4xf32>
    %c0_57 = arith.constant 0 : index
    %c2_58 = arith.constant 2 : index
    %135 = vector.load %arg5[%c0_57, %c2_58] : memref<16x8xf32, #tpu.memory_space<vmem>>, vector<16x4xf32>
    tpu.vector_store %arg5[%c0_57, %c2_58], %134 {strides = array<i32>} : memref<16x8xf32, #tpu.memory_space<vmem>>, vector<16x4xf32>,
    %c0_59 = arith.constant 0 : index
    %c0_60 = arith.constant 0 : index
    %136 = vector.load %arg5[%c0_59, %c0_60] : memref<16x8xf32, #tpu.memory_space<vmem>>, vector<16x8xf32>
    %137 = vector.extract_strided_slice %136 {offsets = [0, 2], sizes = [16, 4], strides = [1, 1]} : vector<16x8xf32> to vector<16x4xf32>
    %c160 = arith.constant 160 : index
    %c0_61 = arith.constant 0 : index
    %138 = vector.load %arg2[%c160, %c0_61] : memref<704x16xf32, #tpu.memory_space<vmem>>, vector<16x5xf32>
    %139 = vector.extract_strided_slice %136 {offsets = [0, 0], sizes = [16, 4], strides = [1, 1]} : vector<16x8xf32> to vector<16x4xf32>
    %140 = vector.extract_strided_slice %138 {offsets = [0, 0], sizes = [16, 1], strides = [1, 1]} : vector<16x5xf32> to vector<16x1xf32>
    %141 = vector.broadcast %140 : vector<16x1xf32> to vector<16x4xf32>
    %142 = arith.mulf %139, %141 : vector<16x4xf32>
    %143 = vector.extract_strided_slice %136 {offsets = [0, 1], sizes = [16, 4], strides = [1, 1]} : vector<16x8xf32> to vector<16x4xf32>
    %144 = vector.extract_strided_slice %138 {offsets = [0, 1], sizes = [16, 1], strides = [1, 1]} : vector<16x5xf32> to vector<16x1xf32>
    %145 = vector.broadcast %144 : vector<16x1xf32> to vector<16x4xf32>
    %146 = arith.mulf %143, %145 : vector<16x4xf32>
    %147 = arith.addf %142, %146 : vector<16x4xf32>
    %148 = vector.extract_strided_slice %136 {offsets = [0, 2], sizes = [16, 4], strides = [1, 1]} : vector<16x8xf32> to vector<16x4xf32>
    %149 = vector.extract_strided_slice %138 {offsets = [0, 2], sizes = [16, 1], strides = [1, 1]} : vector<16x5xf32> to vector<16x1xf32>
    %150 = vector.broadcast %149 : vector<16x1xf32> to vector<16x4xf32>
    %151 = arith.mulf %148, %150 : vector<16x4xf32>
    %152 = arith.addf %147, %151 : vector<16x4xf32>
    %153 = vector.extract_strided_slice %136 {offsets = [0, 3], sizes = [16, 4], strides = [1, 1]} : vector<16x8xf32> to vector<16x4xf32>
    %154 = vector.extract_strided_slice %138 {offsets = [0, 3], sizes = [16, 1], strides = [1, 1]} : vector<16x5xf32> to vector<16x1xf32>
    %155 = vector.broadcast %154 : vector<16x1xf32> to vector<16x4xf32>
    %156 = arith.mulf %153, %155 : vector<16x4xf32>
    %157 = arith.addf %152, %156 : vector<16x4xf32>
    %158 = vector.extract_strided_slice %136 {offsets = [0, 4], sizes = [16, 4], strides = [1, 1]} : vector<16x8xf32> to vector<16x4xf32>
    %159 = vector.extract_strided_slice %138 {offsets = [0, 4], sizes = [16, 1], strides = [1, 1]} : vector<16x5xf32> to vector<16x1xf32>
    %160 = vector.broadcast %159 : vector<16x1xf32> to vector<16x4xf32>
    %161 = arith.mulf %158, %160 : vector<16x4xf32>
    %162 = arith.addf %157, %161 : vector<16x4xf32>
    %c176 = arith.constant 176 : index
    %c0_62 = arith.constant 0 : index
    %163 = vector.load %arg2[%c176, %c0_62] : memref<704x16xf32, #tpu.memory_space<vmem>>, vector<16x1xf32>
    %164 = vector.broadcast %163 : vector<16x1xf32> to vector<16x4xf32>
    %165 = arith.addf %162, %164 : vector<16x4xf32>
    %cst_63 = arith.constant 0.000000e+00 : f32
    %166 = vector.broadcast %cst_63 : f32 to vector<16x4xf32>
    %167 = arith.cmpf ogt, %165, %166 : vector<16x4xf32>
    %cst_64 = arith.constant 0.000000e+00 : f32
    %168 = vector.broadcast %cst_64 : f32 to vector<16x4xf32>
    %169 = arith.minimumf %165, %168 : vector<16x4xf32>
    %170 = math.exp %169 : vector<16x4xf32>
    %cst_65 = arith.constant 1.000000e+00 : f32
    %171 = vector.broadcast %cst_65 : f32 to vector<16x4xf32>
    %172 = arith.subf %170, %171 : vector<16x4xf32>
    %cst_66 = arith.constant 1.000000e-01 : f32
    %173 = vector.broadcast %cst_66 : f32 to vector<16x4xf32>
    %174 = arith.mulf %173, %172 : vector<16x4xf32>
    %175 = arith.select %167, %165, %174 : vector<16x4xi1>, vector<16x4xf32>
    %176 = arith.addf %137, %175 : vector<16x4xf32>
    %c192 = arith.constant 192 : index
    %c0_67 = arith.constant 0 : index
    %177 = vector.load %arg2[%c192, %c0_67] : memref<704x16xf32, #tpu.memory_space<vmem>>, vector<48x16xf32>
    %178 = arith.truncf %177 : vector<48x16xf32> to vector<48x16xbf16>
    %179 = arith.truncf %176 : vector<16x4xf32> to vector<16x4xbf16>
    %cst_68 = arith.constant dense<0.000000e+00> : vector<48x4xf32>
    %180 = tpu.matmul %178, %179, %cst_68 {dimension_numbers = #tpu.dot_dimension_numbers<[1], [0], [0], [1], [0, 0, 1, 1], [], []>} : vector<48x16xbf16>, vector<16x4xbf16>, vector<48x4xf32> -> vector<48x4xf32>
    %c240 = arith.constant 240 : index
    %c0_69 = arith.constant 0 : index
    %181 = vector.load %arg2[%c240, %c0_69] : memref<704x16xf32, #tpu.memory_space<vmem>>, vector<48x1xf32>
    %182 = vector.broadcast %181 : vector<48x1xf32> to vector<48x4xf32>
    %183 = arith.addf %180, %182 : vector<48x4xf32>
    %184 = vector.extract_strided_slice %183 {offsets = [0, 0], sizes = [16, 4], strides = [1, 1]} : vector<48x4xf32> to vector<16x4xf32>
    %185 = vector.extract_strided_slice %183 {offsets = [16, 0], sizes = [16, 4], strides = [1, 1]} : vector<48x4xf32> to vector<16x4xf32>
    %186 = vector.extract_strided_slice %183 {offsets = [32, 0], sizes = [16, 4], strides = [1, 1]} : vector<48x4xf32> to vector<16x4xf32>
    %187 = tpu.transpose %185, [1, 0] : vector<16x4xf32> -> vector<4x16xf32>
    %188 = arith.truncf %187 : vector<4x16xf32> to vector<4x16xbf16>
    %189 = arith.truncf %184 : vector<16x4xf32> to vector<16x4xbf16>
    %cst_70 = arith.constant dense<0.000000e+00> : vector<4x4xf32>
    %190 = tpu.matmul %188, %189, %cst_70 {dimension_numbers = #tpu.dot_dimension_numbers<[1], [0], [0], [1], [0, 0, 1, 1], [], []>} : vector<4x16xbf16>, vector<16x4xbf16>, vector<4x4xf32> -> vector<4x4xf32>
    %cst_71 = arith.constant 2.500000e-01 : f32
    %191 = vector.broadcast %cst_71 : f32 to vector<4x4xf32>
    %192 = arith.mulf %190, %191 : vector<4x4xf32>
    %cst_72 = arith.constant dense<0xFF800000> : vector<4xf32>
    %193 = vector.multi_reduction <maximumf>, %192, %cst_72 [0] : vector<4x4xf32> to vector<4xf32>
    %194 = vector.shape_cast %193 : vector<4xf32> to vector<1x4xf32>
    %195 = vector.broadcast %194 : vector<1x4xf32> to vector<4x4xf32>
    %196 = arith.subf %192, %195 : vector<4x4xf32>
    %197 = math.exp %196 : vector<4x4xf32>
    %cst_73 = arith.constant dense<0.000000e+00> : vector<4xf32>
    %198 = vector.multi_reduction <add>, %197, %cst_73 [0] : vector<4x4xf32> to vector<4xf32>
    %199 = vector.shape_cast %198 : vector<4xf32> to vector<1x4xf32>
    %200 = tpu.reciprocal %199 {approx = true} : vector<1x4xf32> -> vector<1x4xf32>
    %201 = vector.broadcast %200 : vector<1x4xf32> to vector<4x4xf32>
    %202 = arith.mulf %197, %201 : vector<4x4xf32>
    %203 = arith.truncf %186 : vector<16x4xf32> to vector<16x4xbf16>
    %204 = arith.truncf %202 : vector<4x4xf32> to vector<4x4xbf16>
    %cst_74 = arith.constant dense<0.000000e+00> : vector<16x4xf32>
    %205 = tpu.matmul %203, %204, %cst_74 {dimension_numbers = #tpu.dot_dimension_numbers<[1], [0], [0], [1], [0, 0, 1, 1], [], []>} : vector<16x4xbf16>, vector<4x4xbf16>, vector<16x4xf32> -> vector<16x4xf32>
    %c288 = arith.constant 288 : index
    %c0_75 = arith.constant 0 : index
    %206 = vector.load %arg2[%c288, %c0_75] : memref<704x16xf32, #tpu.memory_space<vmem>>, vector<16x16xf32>
    %207 = arith.truncf %206 : vector<16x16xf32> to vector<16x16xbf16>
    %208 = arith.truncf %205 : vector<16x4xf32> to vector<16x4xbf16>
    %cst_76 = arith.constant dense<0.000000e+00> : vector<16x4xf32>
    %209 = tpu.matmul %207, %208, %cst_76 {dimension_numbers = #tpu.dot_dimension_numbers<[1], [0], [0], [1], [0, 0, 1, 1], [], []>} : vector<16x16xbf16>, vector<16x4xbf16>, vector<16x4xf32> -> vector<16x4xf32>
    %c304 = arith.constant 304 : index
    %c0_77 = arith.constant 0 : index
    %210 = vector.load %arg2[%c304, %c0_77] : memref<704x16xf32, #tpu.memory_space<vmem>>, vector<16x1xf32>
    %211 = vector.broadcast %210 : vector<16x1xf32> to vector<16x4xf32>
    %212 = arith.addf %209, %211 : vector<16x4xf32>
    %213 = arith.addf %176, %212 : vector<16x4xf32>
    %c320 = arith.constant 320 : index
    %c0_78 = arith.constant 0 : index
    %214 = vector.load %arg2[%c320, %c0_78] : memref<704x16xf32, #tpu.memory_space<vmem>>, vector<16x1xf32>
    %c336 = arith.constant 336 : index
    %c0_79 = arith.constant 0 : index
    %215 = vector.load %arg2[%c336, %c0_79] : memref<704x16xf32, #tpu.memory_space<vmem>>, vector<16x1xf32>
    %cst_80 = arith.constant dense<0.000000e+00> : vector<4xf32>
    %216 = vector.multi_reduction <add>, %213, %cst_80 [0] : vector<16x4xf32> to vector<4xf32>
    %217 = vector.shape_cast %216 : vector<4xf32> to vector<1x4xf32>
    %cst_81 = arith.constant 1.600000e+01 : f32
    %218 = vector.broadcast %cst_81 : f32 to vector<1x4xf32>
    %219 = arith.divf %217, %218 : vector<1x4xf32>
    %220 = vector.broadcast %219 : vector<1x4xf32> to vector<16x4xf32>
    %221 = arith.subf %213, %220 : vector<16x4xf32>
    %222 = arith.mulf %221, %221 : vector<16x4xf32>
    %cst_82 = arith.constant dense<0.000000e+00> : vector<4xf32>
    %223 = vector.multi_reduction <add>, %222, %cst_82 [0] : vector<16x4xf32> to vector<4xf32>
    %224 = vector.shape_cast %223 : vector<4xf32> to vector<1x4xf32>
    %cst_83 = arith.constant 1.600000e+01 : f32
    %225 = vector.broadcast %cst_83 : f32 to vector<1x4xf32>
    %226 = arith.divf %224, %225 : vector<1x4xf32>
    %227 = vector.broadcast %219 : vector<1x4xf32> to vector<16x4xf32>
    %228 = arith.subf %213, %227 : vector<16x4xf32>
    %cst_84 = arith.constant 9.99999974E-6 : f32
    %229 = vector.broadcast %cst_84 : f32 to vector<1x4xf32>
    %230 = arith.addf %226, %229 : vector<1x4xf32>
    %231 = math.rsqrt %230 : vector<1x4xf32>
    %232 = vector.broadcast %231 : vector<1x4xf32> to vector<16x4xf32>
    %233 = arith.mulf %228, %232 : vector<16x4xf32>
    %234 = vector.broadcast %214 : vector<16x1xf32> to vector<16x4xf32>
    %235 = arith.mulf %233, %234 : vector<16x4xf32>
    %236 = vector.broadcast %215 : vector<16x1xf32> to vector<16x4xf32>
    %237 = arith.addf %235, %236 : vector<16x4xf32>
    %c352 = arith.constant 352 : index
    %c0_85 = arith.constant 0 : index
    %238 = vector.load %arg2[%c352, %c0_85] : memref<704x16xf32, #tpu.memory_space<vmem>>, vector<16x16xf32>
    %239 = arith.truncf %238 : vector<16x16xf32> to vector<16x16xbf16>
    %240 = arith.truncf %237 : vector<16x4xf32> to vector<16x4xbf16>
    %cst_86 = arith.constant dense<0.000000e+00> : vector<16x4xf32>
    %241 = tpu.matmul %239, %240, %cst_86 {dimension_numbers = #tpu.dot_dimension_numbers<[1], [0], [0], [1], [0, 0, 1, 1], [], []>} : vector<16x16xbf16>, vector<16x4xbf16>, vector<16x4xf32> -> vector<16x4xf32>
    %c368 = arith.constant 368 : index
    %c0_87 = arith.constant 0 : index
    %242 = vector.load %arg2[%c368, %c0_87] : memref<704x16xf32, #tpu.memory_space<vmem>>, vector<16x1xf32>
    %243 = vector.broadcast %242 : vector<16x1xf32> to vector<16x4xf32>
    %244 = arith.addf %241, %243 : vector<16x4xf32>
    %cst_88 = arith.constant 3.000000e+00 : f32
    %245 = vector.broadcast %cst_88 : f32 to vector<16x4xf32>
    %246 = arith.addf %244, %245 : vector<16x4xf32>
    %cst_89 = arith.constant 0.000000e+00 : f32
    %cst_90 = arith.constant 6.000000e+00 : f32
    %247 = vector.broadcast %cst_89 : f32 to vector<16x4xf32>
    %248 = arith.maximumf %247, %246 : vector<16x4xf32>
    %249 = vector.broadcast %cst_90 : f32 to vector<16x4xf32>
    %250 = arith.minimumf %249, %248 : vector<16x4xf32>
    %251 = arith.mulf %244, %250 : vector<16x4xf32>
    %cst_91 = arith.constant 0.166666672 : f32
    %252 = vector.broadcast %cst_91 : f32 to vector<16x4xf32>
    %253 = arith.mulf %251, %252 : vector<16x4xf32>
    %c384 = arith.constant 384 : index
    %c0_92 = arith.constant 0 : index
    %254 = vector.load %arg2[%c384, %c0_92] : memref<704x16xf32, #tpu.memory_space<vmem>>, vector<16x16xf32>
    %255 = arith.truncf %254 : vector<16x16xf32> to vector<16x16xbf16>
    %256 = arith.truncf %253 : vector<16x4xf32> to vector<16x4xbf16>
    %cst_93 = arith.constant dense<0.000000e+00> : vector<16x4xf32>
    %257 = tpu.matmul %255, %256, %cst_93 {dimension_numbers = #tpu.dot_dimension_numbers<[1], [0], [0], [1], [0, 0, 1, 1], [], []>} : vector<16x16xbf16>, vector<16x4xbf16>, vector<16x4xf32> -> vector<16x4xf32>
    %258 = arith.addf %237, %257 : vector<16x4xf32>
    %c400 = arith.constant 400 : index
    %c0_94 = arith.constant 0 : index
    %259 = vector.load %arg2[%c400, %c0_94] : memref<704x16xf32, #tpu.memory_space<vmem>>, vector<16x1xf32>
    %260 = vector.broadcast %259 : vector<16x1xf32> to vector<16x4xf32>
    %261 = arith.addf %258, %260 : vector<16x4xf32>
    %c416 = arith.constant 416 : index
    %c0_95 = arith.constant 0 : index
    %262 = vector.load %arg2[%c416, %c0_95] : memref<704x16xf32, #tpu.memory_space<vmem>>, vector<16x1xf32>
    %c432 = arith.constant 432 : index
    %c0_96 = arith.constant 0 : index
    %263 = vector.load %arg2[%c432, %c0_96] : memref<704x16xf32, #tpu.memory_space<vmem>>, vector<16x1xf32>
    %cst_97 = arith.constant dense<0.000000e+00> : vector<4xf32>
    %264 = vector.multi_reduction <add>, %261, %cst_97 [0] : vector<16x4xf32> to vector<4xf32>
    %265 = vector.shape_cast %264 : vector<4xf32> to vector<1x4xf32>
    %cst_98 = arith.constant 1.600000e+01 : f32
    %266 = vector.broadcast %cst_98 : f32 to vector<1x4xf32>
    %267 = arith.divf %265, %266 : vector<1x4xf32>
    %268 = vector.broadcast %267 : vector<1x4xf32> to vector<16x4xf32>
    %269 = arith.subf %261, %268 : vector<16x4xf32>
    %270 = arith.mulf %269, %269 : vector<16x4xf32>
    %cst_99 = arith.constant dense<0.000000e+00> : vector<4xf32>
    %271 = vector.multi_reduction <add>, %270, %cst_99 [0] : vector<16x4xf32> to vector<4xf32>
    %272 = vector.shape_cast %271 : vector<4xf32> to vector<1x4xf32>
    %cst_100 = arith.constant 1.600000e+01 : f32
    %273 = vector.broadcast %cst_100 : f32 to vector<1x4xf32>
    %274 = arith.divf %272, %273 : vector<1x4xf32>
    %275 = vector.broadcast %267 : vector<1x4xf32> to vector<16x4xf32>
    %276 = arith.subf %261, %275 : vector<16x4xf32>
    %cst_101 = arith.constant 9.99999974E-6 : f32
    %277 = vector.broadcast %cst_101 : f32 to vector<1x4xf32>
    %278 = arith.addf %274, %277 : vector<1x4xf32>
    %279 = math.rsqrt %278 : vector<1x4xf32>
    %280 = vector.broadcast %279 : vector<1x4xf32> to vector<16x4xf32>
    %281 = arith.mulf %276, %280 : vector<16x4xf32>
    %282 = vector.broadcast %262 : vector<16x1xf32> to vector<16x4xf32>
    %283 = arith.mulf %281, %282 : vector<16x4xf32>
    %284 = vector.broadcast %263 : vector<16x1xf32> to vector<16x4xf32>
    %285 = arith.addf %283, %284 : vector<16x4xf32>
    %c448 = arith.constant 448 : index
    %c0_102 = arith.constant 0 : index
    %286 = vector.load %arg2[%c448, %c0_102] : memref<704x16xf32, #tpu.memory_space<vmem>>, vector<48x16xf32>
    %287 = arith.truncf %286 : vector<48x16xf32> to vector<48x16xbf16>
    %288 = arith.truncf %285 : vector<16x4xf32> to vector<16x4xbf16>
    %cst_103 = arith.constant dense<0.000000e+00> : vector<48x4xf32>
    %289 = tpu.matmul %287, %288, %cst_103 {dimension_numbers = #tpu.dot_dimension_numbers<[1], [0], [0], [1], [0, 0, 1, 1], [], []>} : vector<48x16xbf16>, vector<16x4xbf16>, vector<48x4xf32> -> vector<48x4xf32>
    %c496 = arith.constant 496 : index
    %c0_104 = arith.constant 0 : index
    %290 = vector.load %arg2[%c496, %c0_104] : memref<704x16xf32, #tpu.memory_space<vmem>>, vector<48x1xf32>
    %291 = vector.broadcast %290 : vector<48x1xf32> to vector<48x4xf32>
    %292 = arith.addf %289, %291 : vector<48x4xf32>
    %293 = vector.extract_strided_slice %292 {offsets = [0, 0], sizes = [16, 4], strides = [1, 1]} : vector<48x4xf32> to vector<16x4xf32>
    %294 = vector.extract_strided_slice %292 {offsets = [16, 0], sizes = [16, 4], strides = [1, 1]} : vector<48x4xf32> to vector<16x4xf32>
    %295 = vector.extract_strided_slice %292 {offsets = [32, 0], sizes = [16, 4], strides = [1, 1]} : vector<48x4xf32> to vector<16x4xf32>
    %296 = tpu.transpose %294, [1, 0] : vector<16x4xf32> -> vector<4x16xf32>
    %297 = arith.truncf %296 : vector<4x16xf32> to vector<4x16xbf16>
    %298 = arith.truncf %293 : vector<16x4xf32> to vector<16x4xbf16>
    %cst_105 = arith.constant dense<0.000000e+00> : vector<4x4xf32>
    %299 = tpu.matmul %297, %298, %cst_105 {dimension_numbers = #tpu.dot_dimension_numbers<[1], [0], [0], [1], [0, 0, 1, 1], [], []>} : vector<4x16xbf16>, vector<16x4xbf16>, vector<4x4xf32> -> vector<4x4xf32>
    %cst_106 = arith.constant 2.500000e-01 : f32
    %300 = vector.broadcast %cst_106 : f32 to vector<4x4xf32>
    %301 = arith.mulf %299, %300 : vector<4x4xf32>
    %cst_107 = arith.constant dense<0xFF800000> : vector<4xf32>
    %302 = vector.multi_reduction <maximumf>, %301, %cst_107 [0] : vector<4x4xf32> to vector<4xf32>
    %303 = vector.shape_cast %302 : vector<4xf32> to vector<1x4xf32>
    %304 = vector.broadcast %303 : vector<1x4xf32> to vector<4x4xf32>
    %305 = arith.subf %301, %304 : vector<4x4xf32>
    %306 = math.exp %305 : vector<4x4xf32>
    %cst_108 = arith.constant dense<0.000000e+00> : vector<4xf32>
    %307 = vector.multi_reduction <add>, %306, %cst_108 [0] : vector<4x4xf32> to vector<4xf32>
    %308 = vector.shape_cast %307 : vector<4xf32> to vector<1x4xf32>
    %309 = tpu.reciprocal %308 {approx = true} : vector<1x4xf32> -> vector<1x4xf32>
    %310 = vector.broadcast %309 : vector<1x4xf32> to vector<4x4xf32>
    %311 = arith.mulf %306, %310 : vector<4x4xf32>
    %312 = arith.truncf %295 : vector<16x4xf32> to vector<16x4xbf16>
    %313 = arith.truncf %311 : vector<4x4xf32> to vector<4x4xbf16>
    %cst_109 = arith.constant dense<0.000000e+00> : vector<16x4xf32>
    %314 = tpu.matmul %312, %313, %cst_109 {dimension_numbers = #tpu.dot_dimension_numbers<[1], [0], [0], [1], [0, 0, 1, 1], [], []>} : vector<16x4xbf16>, vector<4x4xbf16>, vector<16x4xf32> -> vector<16x4xf32>
    %c544 = arith.constant 544 : index
    %c0_110 = arith.constant 0 : index
    %315 = vector.load %arg2[%c544, %c0_110] : memref<704x16xf32, #tpu.memory_space<vmem>>, vector<16x16xf32>
    %316 = arith.truncf %315 : vector<16x16xf32> to vector<16x16xbf16>
    %317 = arith.truncf %314 : vector<16x4xf32> to vector<16x4xbf16>
    %cst_111 = arith.constant dense<0.000000e+00> : vector<16x4xf32>
    %318 = tpu.matmul %316, %317, %cst_111 {dimension_numbers = #tpu.dot_dimension_numbers<[1], [0], [0], [1], [0, 0, 1, 1], [], []>} : vector<16x16xbf16>, vector<16x4xbf16>, vector<16x4xf32> -> vector<16x4xf32>
    %c560 = arith.constant 560 : index
    %c0_112 = arith.constant 0 : index
    %319 = vector.load %arg2[%c560, %c0_112] : memref<704x16xf32, #tpu.memory_space<vmem>>, vector<16x1xf32>
    %320 = vector.broadcast %319 : vector<16x1xf32> to vector<16x4xf32>
    %321 = arith.addf %318, %320 : vector<16x4xf32>
    %322 = arith.addf %285, %321 : vector<16x4xf32>
    %c576 = arith.constant 576 : index
    %c0_113 = arith.constant 0 : index
    %323 = vector.load %arg2[%c576, %c0_113] : memref<704x16xf32, #tpu.memory_space<vmem>>, vector<16x1xf32>
    %c592 = arith.constant 592 : index
    %c0_114 = arith.constant 0 : index
    %324 = vector.load %arg2[%c592, %c0_114] : memref<704x16xf32, #tpu.memory_space<vmem>>, vector<16x1xf32>
    %cst_115 = arith.constant dense<0.000000e+00> : vector<4xf32>
    %325 = vector.multi_reduction <add>, %322, %cst_115 [0] : vector<16x4xf32> to vector<4xf32>
    %326 = vector.shape_cast %325 : vector<4xf32> to vector<1x4xf32>
    %cst_116 = arith.constant 1.600000e+01 : f32
    %327 = vector.broadcast %cst_116 : f32 to vector<1x4xf32>
    %328 = arith.divf %326, %327 : vector<1x4xf32>
    %329 = vector.broadcast %328 : vector<1x4xf32> to vector<16x4xf32>
    %330 = arith.subf %322, %329 : vector<16x4xf32>
    %331 = arith.mulf %330, %330 : vector<16x4xf32>
    %cst_117 = arith.constant dense<0.000000e+00> : vector<4xf32>
    %332 = vector.multi_reduction <add>, %331, %cst_117 [0] : vector<16x4xf32> to vector<4xf32>
    %333 = vector.shape_cast %332 : vector<4xf32> to vector<1x4xf32>
    %cst_118 = arith.constant 1.600000e+01 : f32
    %334 = vector.broadcast %cst_118 : f32 to vector<1x4xf32>
    %335 = arith.divf %333, %334 : vector<1x4xf32>
    %336 = vector.broadcast %328 : vector<1x4xf32> to vector<16x4xf32>
    %337 = arith.subf %322, %336 : vector<16x4xf32>
    %cst_119 = arith.constant 9.99999974E-6 : f32
    %338 = vector.broadcast %cst_119 : f32 to vector<1x4xf32>
    %339 = arith.addf %335, %338 : vector<1x4xf32>
    %340 = math.rsqrt %339 : vector<1x4xf32>
    %341 = vector.broadcast %340 : vector<1x4xf32> to vector<16x4xf32>
    %342 = arith.mulf %337, %341 : vector<16x4xf32>
    %343 = vector.broadcast %323 : vector<16x1xf32> to vector<16x4xf32>
    %344 = arith.mulf %342, %343 : vector<16x4xf32>
    %345 = vector.broadcast %324 : vector<16x1xf32> to vector<16x4xf32>
    %346 = arith.addf %344, %345 : vector<16x4xf32>
    %c608 = arith.constant 608 : index
    %c0_120 = arith.constant 0 : index
    %347 = vector.load %arg2[%c608, %c0_120] : memref<704x16xf32, #tpu.memory_space<vmem>>, vector<16x16xf32>
    %348 = arith.truncf %347 : vector<16x16xf32> to vector<16x16xbf16>
    %349 = arith.truncf %346 : vector<16x4xf32> to vector<16x4xbf16>
    %cst_121 = arith.constant dense<0.000000e+00> : vector<16x4xf32>
    %350 = tpu.matmul %348, %349, %cst_121 {dimension_numbers = #tpu.dot_dimension_numbers<[1], [0], [0], [1], [0, 0, 1, 1], [], []>} : vector<16x16xbf16>, vector<16x4xbf16>, vector<16x4xf32> -> vector<16x4xf32>
    %c624 = arith.constant 624 : index
    %c0_122 = arith.constant 0 : index
    %351 = vector.load %arg2[%c624, %c0_122] : memref<704x16xf32, #tpu.memory_space<vmem>>, vector<16x1xf32>
    %352 = vector.broadcast %351 : vector<16x1xf32> to vector<16x4xf32>
    %353 = arith.addf %350, %352 : vector<16x4xf32>
    %cst_123 = arith.constant 3.000000e+00 : f32
    %354 = vector.broadcast %cst_123 : f32 to vector<16x4xf32>
    %355 = arith.addf %353, %354 : vector<16x4xf32>
    %cst_124 = arith.constant 0.000000e+00 : f32
    %cst_125 = arith.constant 6.000000e+00 : f32
    %356 = vector.broadcast %cst_124 : f32 to vector<16x4xf32>
    %357 = arith.maximumf %356, %355 : vector<16x4xf32>
    %358 = vector.broadcast %cst_125 : f32 to vector<16x4xf32>
    %359 = arith.minimumf %358, %357 : vector<16x4xf32>
    %360 = arith.mulf %353, %359 : vector<16x4xf32>
    %cst_126 = arith.constant 0.166666672 : f32
    %361 = vector.broadcast %cst_126 : f32 to vector<16x4xf32>
    %362 = arith.mulf %360, %361 : vector<16x4xf32>
    %c640 = arith.constant 640 : index
    %c0_127 = arith.constant 0 : index
    %363 = vector.load %arg2[%c640, %c0_127] : memref<704x16xf32, #tpu.memory_space<vmem>>, vector<16x16xf32>
    %364 = arith.truncf %363 : vector<16x16xf32> to vector<16x16xbf16>
    %365 = arith.truncf %362 : vector<16x4xf32> to vector<16x4xbf16>
    %cst_128 = arith.constant dense<0.000000e+00> : vector<16x4xf32>
    %366 = tpu.matmul %364, %365, %cst_128 {dimension_numbers = #tpu.dot_dimension_numbers<[1], [0], [0], [1], [0, 0, 1, 1], [], []>} : vector<16x16xbf16>, vector<16x4xbf16>, vector<16x4xf32> -> vector<16x4xf32>
    %367 = arith.addf %346, %366 : vector<16x4xf32>
    %c656 = arith.constant 656 : index
    %c0_129 = arith.constant 0 : index
    %368 = vector.load %arg2[%c656, %c0_129] : memref<704x16xf32, #tpu.memory_space<vmem>>, vector<16x1xf32>
    %369 = vector.broadcast %368 : vector<16x1xf32> to vector<16x4xf32>
    %370 = arith.addf %367, %369 : vector<16x4xf32>
    %c672 = arith.constant 672 : index
    %c0_130 = arith.constant 0 : index
    %371 = vector.load %arg2[%c672, %c0_130] : memref<704x16xf32, #tpu.memory_space<vmem>>, vector<16x1xf32>
    %c688 = arith.constant 688 : index
    %c0_131 = arith.constant 0 : index
    %372 = vector.load %arg2[%c688, %c0_131] : memref<704x16xf32, #tpu.memory_space<vmem>>, vector<16x1xf32>
    %cst_132 = arith.constant dense<0.000000e+00> : vector<4xf32>
    %373 = vector.multi_reduction <add>, %370, %cst_132 [0] : vector<16x4xf32> to vector<4xf32>
    %374 = vector.shape_cast %373 : vector<4xf32> to vector<1x4xf32>
    %cst_133 = arith.constant 1.600000e+01 : f32
    %375 = vector.broadcast %cst_133 : f32 to vector<1x4xf32>
    %376 = arith.divf %374, %375 : vector<1x4xf32>
    %377 = vector.broadcast %376 : vector<1x4xf32> to vector<16x4xf32>
    %378 = arith.subf %370, %377 : vector<16x4xf32>
    %379 = arith.mulf %378, %378 : vector<16x4xf32>
    %cst_134 = arith.constant dense<0.000000e+00> : vector<4xf32>
    %380 = vector.multi_reduction <add>, %379, %cst_134 [0] : vector<16x4xf32> to vector<4xf32>
    %381 = vector.shape_cast %380 : vector<4xf32> to vector<1x4xf32>
    %cst_135 = arith.constant 1.600000e+01 : f32
    %382 = vector.broadcast %cst_135 : f32 to vector<1x4xf32>
    %383 = arith.divf %381, %382 : vector<1x4xf32>
    %384 = vector.broadcast %376 : vector<1x4xf32> to vector<16x4xf32>
    %385 = arith.subf %370, %384 : vector<16x4xf32>
    %cst_136 = arith.constant 9.99999974E-6 : f32
    %386 = vector.broadcast %cst_136 : f32 to vector<1x4xf32>
    %387 = arith.addf %383, %386 : vector<1x4xf32>
    %388 = math.rsqrt %387 : vector<1x4xf32>
    %389 = vector.broadcast %388 : vector<1x4xf32> to vector<16x4xf32>
    %390 = arith.mulf %385, %389 : vector<16x4xf32>
    %391 = vector.broadcast %371 : vector<16x1xf32> to vector<16x4xf32>
    %392 = arith.mulf %390, %391 : vector<16x4xf32>
    %393 = vector.broadcast %372 : vector<16x1xf32> to vector<16x4xf32>
    %394 = arith.addf %392, %393 : vector<16x4xf32>
    %cst_137 = arith.constant dense<0.000000e+00> : vector<16xf32>
    %395 = vector.multi_reduction <add>, %394, %cst_137 [1] : vector<16x4xf32> to vector<16xf32>
    %396 = vector.shape_cast %395 : vector<16xf32> to vector<16x1xf32>
    %cst_138 = arith.constant 4.000000e+00 : f32
    %397 = vector.broadcast %cst_138 : f32 to vector<16x1xf32>
    %398 = arith.divf %396, %397 : vector<16x1xf32>
    %c0_139 = arith.constant 0 : index
    %c0_140 = arith.constant 0 : index
    %c0_141 = arith.constant 0 : index
    %399 = vector.load %arg3[%c0_139, %c0_140, %c0_141] : memref<1x16x1xf32, #tpu.memory_space<vmem>>, vector<1x16x1xf32>
    %400 = vector.shape_cast %399 : vector<1x16x1xf32> to vector<16x1xf32>
    %401 = vector.shape_cast %398 : vector<16x1xf32> to vector<1x16x1xf32>
    tpu.vector_store %arg3[%c0_139, %c0_140, %c0_141], %401 {strides = array<i32>} : memref<1x16x1xf32, #tpu.memory_space<vmem>>, vector<1x16x1xf32>,
    return
  }
  func.func @transform_0(%arg0: i32) -> (i32, i32, i32) {
    %c0_i32 = arith.constant 0 : i32
    %c0_i32_0 = arith.constant 0 : i32
    %c0_i32_1 = arith.constant 0 : i32
    return %arg0, %c0_i32, %c0_i32_0 : i32, i32, i32
  }
  func.func @transform_1(%arg0: i32) -> (i32, i32) {
    %c0_i32 = arith.constant 0 : i32
    %c0_i32_0 = arith.constant 0 : i32
    %c0_i32_1 = arith.constant 0 : i32
    return %c0_i32, %c0_i32_0 : i32, i32
  }
  func.func @transform_2(%arg0: i32) -> (i32, i32, i32) {
    %c0_i32 = arith.constant 0 : i32
    %c0_i32_0 = arith.constant 0 : i32
    %c0_i32_1 = arith.constant 0 : i32
    return %arg0, %c0_i32, %c0_i32_0 : i32, i32, i32
  }
}

module attributes {stable_mosaic.version = 11 : i64} {
  func.func @_branch_kernel(%arg0: i32, %arg1: memref<1x4x44xf32, #tpu.memory_space<vmem>>, %arg2: memref<704x16xf32, #tpu.memory_space<vmem>>, %arg3: memref<1x16x1xf32, #tpu.memory_space<vmem>>, %arg4: memref<8x23xf32, #tpu.memory_space<vmem>>, %arg5: memref<16x12xf32, #tpu.memory_space<vmem>>) attributes {dimension_semantics = [#tpu.dimension_semantics<parallel>], iteration_bounds = array<i64: 2>, scalar_prefetch = 0 : i64, scratch_operands = 2 : i64, tpu.core_type = #tpu.core_type<tc>, window_params = [{transform_indices = @transform_0, window_bounds = array<i64: 1, 4, 44>}, {pipeline_mode = #tpu.pipeline_mode<synchronous>, transform_indices = @transform_1, window_bounds = array<i64: 704, 16>}, {transform_indices = @transform_2, window_bounds = array<i64: 1, 16, 1>}]} {
    %0 = tpu.iota {dimensions = array<i32: 0>} : vector<40x19xi32>
    %1 = tpu.iota {dimensions = array<i32: 1>} : vector<40x19xi32>
    %c2_i32 = arith.constant 2 : i32
    %2 = vector.broadcast %c2_i32 : i32 to vector<40x19xi32>
    %3 = arith.muli %2, %1 : vector<40x19xi32>
    %4 = arith.subi %0, %3 : vector<40x19xi32>
    %c0_i32 = arith.constant 0 : i32
    %5 = vector.broadcast %c0_i32 : i32 to vector<40x19xi32>
    %6 = arith.cmpi sge, %4, %5 : vector<40x19xi32>
    %c4_i32 = arith.constant 4 : i32
    %7 = vector.broadcast %c4_i32 : i32 to vector<40x19xi32>
    %8 = arith.cmpi slt, %4, %7 : vector<40x19xi32>
    %9 = arith.andi %6, %8 : vector<40x19xi1>
    %cst = arith.constant 2.500000e-01 : f32
    %cst_0 = arith.constant 0.000000e+00 : f32
    %10 = vector.broadcast %cst : f32 to vector<40x19xf32>
    %11 = vector.broadcast %cst_0 : f32 to vector<40x19xf32>
    %12 = arith.select %9, %10, %11 : vector<40x19xi1>, vector<40x19xf32>
    %c0 = arith.constant 0 : index
    %c0_1 = arith.constant 0 : index
    %c0_2 = arith.constant 0 : index
    %13 = vector.load %arg1[%c0, %c0_1, %c0_2] : memref<1x4x44xf32, #tpu.memory_space<vmem>>, vector<1x4x44xf32>
    %14 = vector.shape_cast %13 : vector<1x4x44xf32> to vector<4x44xf32>
    %cst_3 = arith.constant 0.000000e+00 : f32
    %15 = vector.broadcast %cst_3 : f32 to vector<8x40xf32>
    %c0_4 = arith.constant 0 : index
    %c0_5 = arith.constant 0 : index
    %16 = vector.load %arg2[%c0_4, %c0_5] : memref<704x16xf32, #tpu.memory_space<vmem>>, vector<8x4xf32>
    %17 = vector.extract_strided_slice %14 {offsets = [0, 0], sizes = [4, 40], strides = [1, 1]} : vector<4x44xf32> to vector<4x40xf32>
    %cst_6 = arith.constant dense<0.000000e+00> : vector<8x40xf32>
    %18 = tpu.matmul %16, %17, %cst_6 {dimension_numbers = #tpu.dot_dimension_numbers<[1], [0], [0], [1], [0, 0, 1, 1], [], []>} : vector<8x4xf32>, vector<4x40xf32>, vector<8x40xf32> -> vector<8x40xf32>
    %19 = arith.addf %15, %18 : vector<8x40xf32>
    %c8 = arith.constant 8 : index
    %c0_7 = arith.constant 0 : index
    %20 = vector.load %arg2[%c8, %c0_7] : memref<704x16xf32, #tpu.memory_space<vmem>>, vector<8x4xf32>
    %21 = vector.extract_strided_slice %14 {offsets = [0, 1], sizes = [4, 40], strides = [1, 1]} : vector<4x44xf32> to vector<4x40xf32>
    %cst_8 = arith.constant dense<0.000000e+00> : vector<8x40xf32>
    %22 = tpu.matmul %20, %21, %cst_8 {dimension_numbers = #tpu.dot_dimension_numbers<[1], [0], [0], [1], [0, 0, 1, 1], [], []>} : vector<8x4xf32>, vector<4x40xf32>, vector<8x40xf32> -> vector<8x40xf32>
    %23 = arith.addf %19, %22 : vector<8x40xf32>
    %c16 = arith.constant 16 : index
    %c0_9 = arith.constant 0 : index
    %24 = vector.load %arg2[%c16, %c0_9] : memref<704x16xf32, #tpu.memory_space<vmem>>, vector<8x4xf32>
    %25 = vector.extract_strided_slice %14 {offsets = [0, 2], sizes = [4, 40], strides = [1, 1]} : vector<4x44xf32> to vector<4x40xf32>
    %cst_10 = arith.constant dense<0.000000e+00> : vector<8x40xf32>
    %26 = tpu.matmul %24, %25, %cst_10 {dimension_numbers = #tpu.dot_dimension_numbers<[1], [0], [0], [1], [0, 0, 1, 1], [], []>} : vector<8x4xf32>, vector<4x40xf32>, vector<8x40xf32> -> vector<8x40xf32>
    %27 = arith.addf %23, %26 : vector<8x40xf32>
    %c24 = arith.constant 24 : index
    %c0_11 = arith.constant 0 : index
    %28 = vector.load %arg2[%c24, %c0_11] : memref<704x16xf32, #tpu.memory_space<vmem>>, vector<8x4xf32>
    %29 = vector.extract_strided_slice %14 {offsets = [0, 3], sizes = [4, 40], strides = [1, 1]} : vector<4x44xf32> to vector<4x40xf32>
    %cst_12 = arith.constant dense<0.000000e+00> : vector<8x40xf32>
    %30 = tpu.matmul %28, %29, %cst_12 {dimension_numbers = #tpu.dot_dimension_numbers<[1], [0], [0], [1], [0, 0, 1, 1], [], []>} : vector<8x4xf32>, vector<4x40xf32>, vector<8x40xf32> -> vector<8x40xf32>
    %31 = arith.addf %27, %30 : vector<8x40xf32>
    %c32 = arith.constant 32 : index
    %c0_13 = arith.constant 0 : index
    %32 = vector.load %arg2[%c32, %c0_13] : memref<704x16xf32, #tpu.memory_space<vmem>>, vector<8x4xf32>
    %33 = vector.extract_strided_slice %14 {offsets = [0, 4], sizes = [4, 40], strides = [1, 1]} : vector<4x44xf32> to vector<4x40xf32>
    %cst_14 = arith.constant dense<0.000000e+00> : vector<8x40xf32>
    %34 = tpu.matmul %32, %33, %cst_14 {dimension_numbers = #tpu.dot_dimension_numbers<[1], [0], [0], [1], [0, 0, 1, 1], [], []>} : vector<8x4xf32>, vector<4x40xf32>, vector<8x40xf32> -> vector<8x40xf32>
    %35 = arith.addf %31, %34 : vector<8x40xf32>
    %c40 = arith.constant 40 : index
    %c0_15 = arith.constant 0 : index
    %36 = vector.load %arg2[%c40, %c0_15] : memref<704x16xf32, #tpu.memory_space<vmem>>, vector<8x1xf32>
    %37 = vector.broadcast %36 : vector<8x1xf32> to vector<8x40xf32>
    %38 = arith.addf %35, %37 : vector<8x40xf32>
    %cst_16 = arith.constant 0.000000e+00 : f32
    %39 = vector.broadcast %cst_16 : f32 to vector<8x40xf32>
    %40 = arith.cmpf ogt, %38, %39 : vector<8x40xf32>
    %cst_17 = arith.constant 0.000000e+00 : f32
    %41 = vector.broadcast %cst_17 : f32 to vector<8x40xf32>
    %42 = arith.minimumf %38, %41 : vector<8x40xf32>
    %43 = math.exp %42 : vector<8x40xf32>
    %cst_18 = arith.constant 1.000000e+00 : f32
    %44 = vector.broadcast %cst_18 : f32 to vector<8x40xf32>
    %45 = arith.subf %43, %44 : vector<8x40xf32>
    %cst_19 = arith.constant 1.000000e-01 : f32
    %46 = vector.broadcast %cst_19 : f32 to vector<8x40xf32>
    %47 = arith.mulf %46, %45 : vector<8x40xf32>
    %48 = arith.select %40, %38, %47 : vector<8x40xi1>, vector<8x40xf32>
    %cst_20 = arith.constant 0.000000e+00 : f32
    %49 = vector.broadcast %cst_20 : f32 to vector<8x23xf32>
    %c0_21 = arith.constant 0 : index
    %c0_22 = arith.constant 0 : index
    %50 = vector.load %arg4[%c0_21, %c0_22] : memref<8x23xf32, #tpu.memory_space<vmem>>, vector<8x23xf32>
    tpu.vector_store %arg4[%c0_21, %c0_22], %49 {strides = array<i32>} : memref<8x23xf32, #tpu.memory_space<vmem>>, vector<8x23xf32>,
    %cst_23 = arith.constant dense<0.000000e+00> : vector<8x19xf32>
    %51 = tpu.matmul %48, %12, %cst_23 {dimension_numbers = #tpu.dot_dimension_numbers<[1], [0], [0], [1], [0, 0, 1, 1], [], []>} : vector<8x40xf32>, vector<40x19xf32>, vector<8x19xf32> -> vector<8x19xf32>
    %c0_24 = arith.constant 0 : index
    %c2 = arith.constant 2 : index
    %52 = vector.load %arg4[%c0_24, %c2] : memref<8x23xf32, #tpu.memory_space<vmem>>, vector<8x19xf32>
    tpu.vector_store %arg4[%c0_24, %c2], %51 {strides = array<i32>} : memref<8x23xf32, #tpu.memory_space<vmem>>, vector<8x19xf32>,
    %c0_25 = arith.constant 0 : index
    %c0_26 = arith.constant 0 : index
    %53 = vector.load %arg4[%c0_25, %c0_26] : memref<8x23xf32, #tpu.memory_space<vmem>>, vector<8x23xf32>
    %54 = vector.extract_strided_slice %53 {offsets = [0, 2], sizes = [8, 19], strides = [1, 1]} : vector<8x23xf32> to vector<8x19xf32>
    %c48 = arith.constant 48 : index
    %c0_27 = arith.constant 0 : index
    %55 = vector.load %arg2[%c48, %c0_27] : memref<704x16xf32, #tpu.memory_space<vmem>>, vector<8x5xf32>
    %56 = vector.extract_strided_slice %53 {offsets = [0, 0], sizes = [8, 19], strides = [1, 1]} : vector<8x23xf32> to vector<8x19xf32>
    %57 = vector.extract_strided_slice %55 {offsets = [0, 0], sizes = [8, 1], strides = [1, 1]} : vector<8x5xf32> to vector<8x1xf32>
    %58 = vector.broadcast %57 : vector<8x1xf32> to vector<8x19xf32>
    %59 = arith.mulf %56, %58 : vector<8x19xf32>
    %60 = vector.extract_strided_slice %53 {offsets = [0, 1], sizes = [8, 19], strides = [1, 1]} : vector<8x23xf32> to vector<8x19xf32>
    %61 = vector.extract_strided_slice %55 {offsets = [0, 1], sizes = [8, 1], strides = [1, 1]} : vector<8x5xf32> to vector<8x1xf32>
    %62 = vector.broadcast %61 : vector<8x1xf32> to vector<8x19xf32>
    %63 = arith.mulf %60, %62 : vector<8x19xf32>
    %64 = arith.addf %59, %63 : vector<8x19xf32>
    %65 = vector.extract_strided_slice %53 {offsets = [0, 2], sizes = [8, 19], strides = [1, 1]} : vector<8x23xf32> to vector<8x19xf32>
    %66 = vector.extract_strided_slice %55 {offsets = [0, 2], sizes = [8, 1], strides = [1, 1]} : vector<8x5xf32> to vector<8x1xf32>
    %67 = vector.broadcast %66 : vector<8x1xf32> to vector<8x19xf32>
    %68 = arith.mulf %65, %67 : vector<8x19xf32>
    %69 = arith.addf %64, %68 : vector<8x19xf32>
    %70 = vector.extract_strided_slice %53 {offsets = [0, 3], sizes = [8, 19], strides = [1, 1]} : vector<8x23xf32> to vector<8x19xf32>
    %71 = vector.extract_strided_slice %55 {offsets = [0, 3], sizes = [8, 1], strides = [1, 1]} : vector<8x5xf32> to vector<8x1xf32>
    %72 = vector.broadcast %71 : vector<8x1xf32> to vector<8x19xf32>
    %73 = arith.mulf %70, %72 : vector<8x19xf32>
    %74 = arith.addf %69, %73 : vector<8x19xf32>
    %75 = vector.extract_strided_slice %53 {offsets = [0, 4], sizes = [8, 19], strides = [1, 1]} : vector<8x23xf32> to vector<8x19xf32>
    %76 = vector.extract_strided_slice %55 {offsets = [0, 4], sizes = [8, 1], strides = [1, 1]} : vector<8x5xf32> to vector<8x1xf32>
    %77 = vector.broadcast %76 : vector<8x1xf32> to vector<8x19xf32>
    %78 = arith.mulf %75, %77 : vector<8x19xf32>
    %79 = arith.addf %74, %78 : vector<8x19xf32>
    %c56 = arith.constant 56 : index
    %c0_28 = arith.constant 0 : index
    %80 = vector.load %arg2[%c56, %c0_28] : memref<704x16xf32, #tpu.memory_space<vmem>>, vector<8x1xf32>
    %81 = vector.broadcast %80 : vector<8x1xf32> to vector<8x19xf32>
    %82 = arith.addf %79, %81 : vector<8x19xf32>
    %cst_29 = arith.constant 0.000000e+00 : f32
    %83 = vector.broadcast %cst_29 : f32 to vector<8x19xf32>
    %84 = arith.cmpf ogt, %82, %83 : vector<8x19xf32>
    %cst_30 = arith.constant 0.000000e+00 : f32
    %85 = vector.broadcast %cst_30 : f32 to vector<8x19xf32>
    %86 = arith.minimumf %82, %85 : vector<8x19xf32>
    %87 = math.exp %86 : vector<8x19xf32>
    %cst_31 = arith.constant 1.000000e+00 : f32
    %88 = vector.broadcast %cst_31 : f32 to vector<8x19xf32>
    %89 = arith.subf %87, %88 : vector<8x19xf32>
    %cst_32 = arith.constant 1.000000e-01 : f32
    %90 = vector.broadcast %cst_32 : f32 to vector<8x19xf32>
    %91 = arith.mulf %90, %89 : vector<8x19xf32>
    %92 = arith.select %84, %82, %91 : vector<8x19xi1>, vector<8x19xf32>
    %93 = arith.addf %54, %92 : vector<8x19xf32>
    %c0_33 = arith.constant 0 : index
    %c2_34 = arith.constant 2 : index
    %94 = vector.load %arg4[%c0_33, %c2_34] : memref<8x23xf32, #tpu.memory_space<vmem>>, vector<8x19xf32>
    tpu.vector_store %arg4[%c0_33, %c2_34], %93 {strides = array<i32>} : memref<8x23xf32, #tpu.memory_space<vmem>>, vector<8x19xf32>,
    %c0_35 = arith.constant 0 : index
    %c0_36 = arith.constant 0 : index
    %95 = vector.load %arg4[%c0_35, %c0_36] : memref<8x23xf32, #tpu.memory_space<vmem>>, vector<8x23xf32>
    %cst_37 = arith.constant 0.000000e+00 : f32
    %96 = vector.broadcast %cst_37 : f32 to vector<16x19xf32>
    %c64 = arith.constant 64 : index
    %c0_38 = arith.constant 0 : index
    %97 = vector.load %arg2[%c64, %c0_38] : memref<704x16xf32, #tpu.memory_space<vmem>>, vector<16x8xf32>
    %98 = vector.extract_strided_slice %95 {offsets = [0, 0], sizes = [8, 19], strides = [1, 1]} : vector<8x23xf32> to vector<8x19xf32>
    %cst_39 = arith.constant dense<0.000000e+00> : vector<16x19xf32>
    %99 = tpu.matmul %97, %98, %cst_39 {dimension_numbers = #tpu.dot_dimension_numbers<[1], [0], [0], [1], [0, 0, 1, 1], [], []>} : vector<16x8xf32>, vector<8x19xf32>, vector<16x19xf32> -> vector<16x19xf32>
    %100 = arith.addf %96, %99 : vector<16x19xf32>
    %c80 = arith.constant 80 : index
    %c0_40 = arith.constant 0 : index
    %101 = vector.load %arg2[%c80, %c0_40] : memref<704x16xf32, #tpu.memory_space<vmem>>, vector<16x8xf32>
    %102 = vector.extract_strided_slice %95 {offsets = [0, 1], sizes = [8, 19], strides = [1, 1]} : vector<8x23xf32> to vector<8x19xf32>
    %cst_41 = arith.constant dense<0.000000e+00> : vector<16x19xf32>
    %103 = tpu.matmul %101, %102, %cst_41 {dimension_numbers = #tpu.dot_dimension_numbers<[1], [0], [0], [1], [0, 0, 1, 1], [], []>} : vector<16x8xf32>, vector<8x19xf32>, vector<16x19xf32> -> vector<16x19xf32>
    %104 = arith.addf %100, %103 : vector<16x19xf32>
    %c96 = arith.constant 96 : index
    %c0_42 = arith.constant 0 : index
    %105 = vector.load %arg2[%c96, %c0_42] : memref<704x16xf32, #tpu.memory_space<vmem>>, vector<16x8xf32>
    %106 = vector.extract_strided_slice %95 {offsets = [0, 2], sizes = [8, 19], strides = [1, 1]} : vector<8x23xf32> to vector<8x19xf32>
    %cst_43 = arith.constant dense<0.000000e+00> : vector<16x19xf32>
    %107 = tpu.matmul %105, %106, %cst_43 {dimension_numbers = #tpu.dot_dimension_numbers<[1], [0], [0], [1], [0, 0, 1, 1], [], []>} : vector<16x8xf32>, vector<8x19xf32>, vector<16x19xf32> -> vector<16x19xf32>
    %108 = arith.addf %104, %107 : vector<16x19xf32>
    %c112 = arith.constant 112 : index
    %c0_44 = arith.constant 0 : index
    %109 = vector.load %arg2[%c112, %c0_44] : memref<704x16xf32, #tpu.memory_space<vmem>>, vector<16x8xf32>
    %110 = vector.extract_strided_slice %95 {offsets = [0, 3], sizes = [8, 19], strides = [1, 1]} : vector<8x23xf32> to vector<8x19xf32>
    %cst_45 = arith.constant dense<0.000000e+00> : vector<16x19xf32>
    %111 = tpu.matmul %109, %110, %cst_45 {dimension_numbers = #tpu.dot_dimension_numbers<[1], [0], [0], [1], [0, 0, 1, 1], [], []>} : vector<16x8xf32>, vector<8x19xf32>, vector<16x19xf32> -> vector<16x19xf32>
    %112 = arith.addf %108, %111 : vector<16x19xf32>
    %c128 = arith.constant 128 : index
    %c0_46 = arith.constant 0 : index
    %113 = vector.load %arg2[%c128, %c0_46] : memref<704x16xf32, #tpu.memory_space<vmem>>, vector<16x8xf32>
    %114 = vector.extract_strided_slice %95 {offsets = [0, 4], sizes = [8, 19], strides = [1, 1]} : vector<8x23xf32> to vector<8x19xf32>
    %cst_47 = arith.constant dense<0.000000e+00> : vector<16x19xf32>
    %115 = tpu.matmul %113, %114, %cst_47 {dimension_numbers = #tpu.dot_dimension_numbers<[1], [0], [0], [1], [0, 0, 1, 1], [], []>} : vector<16x8xf32>, vector<8x19xf32>, vector<16x19xf32> -> vector<16x19xf32>
    %116 = arith.addf %112, %115 : vector<16x19xf32>
    %c144 = arith.constant 144 : index
    %c0_48 = arith.constant 0 : index
    %117 = vector.load %arg2[%c144, %c0_48] : memref<704x16xf32, #tpu.memory_space<vmem>>, vector<16x1xf32>
    %118 = vector.broadcast %117 : vector<16x1xf32> to vector<16x19xf32>
    %119 = arith.addf %116, %118 : vector<16x19xf32>
    %cst_49 = arith.constant 0.000000e+00 : f32
    %120 = vector.broadcast %cst_49 : f32 to vector<16x19xf32>
    %121 = arith.cmpf ogt, %119, %120 : vector<16x19xf32>
    %cst_50 = arith.constant 0.000000e+00 : f32
    %122 = vector.broadcast %cst_50 : f32 to vector<16x19xf32>
    %123 = arith.minimumf %119, %122 : vector<16x19xf32>
    %124 = math.exp %123 : vector<16x19xf32>
    %cst_51 = arith.constant 1.000000e+00 : f32
    %125 = vector.broadcast %cst_51 : f32 to vector<16x19xf32>
    %126 = arith.subf %124, %125 : vector<16x19xf32>
    %cst_52 = arith.constant 1.000000e-01 : f32
    %127 = vector.broadcast %cst_52 : f32 to vector<16x19xf32>
    %128 = arith.mulf %127, %126 : vector<16x19xf32>
    %129 = arith.select %121, %119, %128 : vector<16x19xi1>, vector<16x19xf32>
    %cst_53 = arith.constant 0.000000e+00 : f32
    %130 = vector.broadcast %cst_53 : f32 to vector<16x12xf32>
    %c0_54 = arith.constant 0 : index
    %c0_55 = arith.constant 0 : index
    %131 = vector.load %arg5[%c0_54, %c0_55] : memref<16x12xf32, #tpu.memory_space<vmem>>, vector<16x12xf32>
    tpu.vector_store %arg5[%c0_54, %c0_55], %130 {strides = array<i32>} : memref<16x12xf32, #tpu.memory_space<vmem>>, vector<16x12xf32>,
    %132 = vector.extract_strided_slice %129 {offsets = [0, 0], sizes = [16, 18], strides = [1, 1]} : vector<16x19xf32> to vector<16x18xf32>
    %133 = vector.extract_strided_slice %12 {offsets = [0, 0], sizes = [18, 8], strides = [1, 1]} : vector<40x19xf32> to vector<18x8xf32>
    %cst_56 = arith.constant dense<0.000000e+00> : vector<16x8xf32>
    %134 = tpu.matmul %132, %133, %cst_56 {dimension_numbers = #tpu.dot_dimension_numbers<[1], [0], [0], [1], [0, 0, 1, 1], [], []>} : vector<16x18xf32>, vector<18x8xf32>, vector<16x8xf32> -> vector<16x8xf32>
    %c0_57 = arith.constant 0 : index
    %c2_58 = arith.constant 2 : index
    %135 = vector.load %arg5[%c0_57, %c2_58] : memref<16x12xf32, #tpu.memory_space<vmem>>, vector<16x8xf32>
    tpu.vector_store %arg5[%c0_57, %c2_58], %134 {strides = array<i32>} : memref<16x12xf32, #tpu.memory_space<vmem>>, vector<16x8xf32>,
    %c0_59 = arith.constant 0 : index
    %c0_60 = arith.constant 0 : index
    %136 = vector.load %arg5[%c0_59, %c0_60] : memref<16x12xf32, #tpu.memory_space<vmem>>, vector<16x12xf32>
    %137 = vector.extract_strided_slice %136 {offsets = [0, 2], sizes = [16, 8], strides = [1, 1]} : vector<16x12xf32> to vector<16x8xf32>
    %c160 = arith.constant 160 : index
    %c0_61 = arith.constant 0 : index
    %138 = vector.load %arg2[%c160, %c0_61] : memref<704x16xf32, #tpu.memory_space<vmem>>, vector<16x5xf32>
    %139 = vector.extract_strided_slice %136 {offsets = [0, 0], sizes = [16, 8], strides = [1, 1]} : vector<16x12xf32> to vector<16x8xf32>
    %140 = vector.extract_strided_slice %138 {offsets = [0, 0], sizes = [16, 1], strides = [1, 1]} : vector<16x5xf32> to vector<16x1xf32>
    %141 = vector.broadcast %140 : vector<16x1xf32> to vector<16x8xf32>
    %142 = arith.mulf %139, %141 : vector<16x8xf32>
    %143 = vector.extract_strided_slice %136 {offsets = [0, 1], sizes = [16, 8], strides = [1, 1]} : vector<16x12xf32> to vector<16x8xf32>
    %144 = vector.extract_strided_slice %138 {offsets = [0, 1], sizes = [16, 1], strides = [1, 1]} : vector<16x5xf32> to vector<16x1xf32>
    %145 = vector.broadcast %144 : vector<16x1xf32> to vector<16x8xf32>
    %146 = arith.mulf %143, %145 : vector<16x8xf32>
    %147 = arith.addf %142, %146 : vector<16x8xf32>
    %148 = vector.extract_strided_slice %136 {offsets = [0, 2], sizes = [16, 8], strides = [1, 1]} : vector<16x12xf32> to vector<16x8xf32>
    %149 = vector.extract_strided_slice %138 {offsets = [0, 2], sizes = [16, 1], strides = [1, 1]} : vector<16x5xf32> to vector<16x1xf32>
    %150 = vector.broadcast %149 : vector<16x1xf32> to vector<16x8xf32>
    %151 = arith.mulf %148, %150 : vector<16x8xf32>
    %152 = arith.addf %147, %151 : vector<16x8xf32>
    %153 = vector.extract_strided_slice %136 {offsets = [0, 3], sizes = [16, 8], strides = [1, 1]} : vector<16x12xf32> to vector<16x8xf32>
    %154 = vector.extract_strided_slice %138 {offsets = [0, 3], sizes = [16, 1], strides = [1, 1]} : vector<16x5xf32> to vector<16x1xf32>
    %155 = vector.broadcast %154 : vector<16x1xf32> to vector<16x8xf32>
    %156 = arith.mulf %153, %155 : vector<16x8xf32>
    %157 = arith.addf %152, %156 : vector<16x8xf32>
    %158 = vector.extract_strided_slice %136 {offsets = [0, 4], sizes = [16, 8], strides = [1, 1]} : vector<16x12xf32> to vector<16x8xf32>
    %159 = vector.extract_strided_slice %138 {offsets = [0, 4], sizes = [16, 1], strides = [1, 1]} : vector<16x5xf32> to vector<16x1xf32>
    %160 = vector.broadcast %159 : vector<16x1xf32> to vector<16x8xf32>
    %161 = arith.mulf %158, %160 : vector<16x8xf32>
    %162 = arith.addf %157, %161 : vector<16x8xf32>
    %c176 = arith.constant 176 : index
    %c0_62 = arith.constant 0 : index
    %163 = vector.load %arg2[%c176, %c0_62] : memref<704x16xf32, #tpu.memory_space<vmem>>, vector<16x1xf32>
    %164 = vector.broadcast %163 : vector<16x1xf32> to vector<16x8xf32>
    %165 = arith.addf %162, %164 : vector<16x8xf32>
    %cst_63 = arith.constant 0.000000e+00 : f32
    %166 = vector.broadcast %cst_63 : f32 to vector<16x8xf32>
    %167 = arith.cmpf ogt, %165, %166 : vector<16x8xf32>
    %cst_64 = arith.constant 0.000000e+00 : f32
    %168 = vector.broadcast %cst_64 : f32 to vector<16x8xf32>
    %169 = arith.minimumf %165, %168 : vector<16x8xf32>
    %170 = math.exp %169 : vector<16x8xf32>
    %cst_65 = arith.constant 1.000000e+00 : f32
    %171 = vector.broadcast %cst_65 : f32 to vector<16x8xf32>
    %172 = arith.subf %170, %171 : vector<16x8xf32>
    %cst_66 = arith.constant 1.000000e-01 : f32
    %173 = vector.broadcast %cst_66 : f32 to vector<16x8xf32>
    %174 = arith.mulf %173, %172 : vector<16x8xf32>
    %175 = arith.select %167, %165, %174 : vector<16x8xi1>, vector<16x8xf32>
    %176 = arith.addf %137, %175 : vector<16x8xf32>
    %c192 = arith.constant 192 : index
    %c0_67 = arith.constant 0 : index
    %177 = vector.load %arg2[%c192, %c0_67] : memref<704x16xf32, #tpu.memory_space<vmem>>, vector<48x16xf32>
    %178 = arith.truncf %177 : vector<48x16xf32> to vector<48x16xbf16>
    %179 = arith.truncf %176 : vector<16x8xf32> to vector<16x8xbf16>
    %cst_68 = arith.constant dense<0.000000e+00> : vector<48x8xf32>
    %180 = tpu.matmul %178, %179, %cst_68 {dimension_numbers = #tpu.dot_dimension_numbers<[1], [0], [0], [1], [0, 0, 1, 1], [], []>} : vector<48x16xbf16>, vector<16x8xbf16>, vector<48x8xf32> -> vector<48x8xf32>
    %c240 = arith.constant 240 : index
    %c0_69 = arith.constant 0 : index
    %181 = vector.load %arg2[%c240, %c0_69] : memref<704x16xf32, #tpu.memory_space<vmem>>, vector<48x1xf32>
    %182 = vector.broadcast %181 : vector<48x1xf32> to vector<48x8xf32>
    %183 = arith.addf %180, %182 : vector<48x8xf32>
    %184 = vector.extract_strided_slice %183 {offsets = [0, 0], sizes = [16, 8], strides = [1, 1]} : vector<48x8xf32> to vector<16x8xf32>
    %185 = vector.extract_strided_slice %183 {offsets = [16, 0], sizes = [16, 8], strides = [1, 1]} : vector<48x8xf32> to vector<16x8xf32>
    %186 = vector.extract_strided_slice %183 {offsets = [32, 0], sizes = [16, 8], strides = [1, 1]} : vector<48x8xf32> to vector<16x8xf32>
    %187 = tpu.transpose %185, [1, 0] : vector<16x8xf32> -> vector<8x16xf32>
    %188 = arith.truncf %187 : vector<8x16xf32> to vector<8x16xbf16>
    %189 = arith.truncf %184 : vector<16x8xf32> to vector<16x8xbf16>
    %cst_70 = arith.constant dense<0.000000e+00> : vector<8x8xf32>
    %190 = tpu.matmul %188, %189, %cst_70 {dimension_numbers = #tpu.dot_dimension_numbers<[1], [0], [0], [1], [0, 0, 1, 1], [], []>} : vector<8x16xbf16>, vector<16x8xbf16>, vector<8x8xf32> -> vector<8x8xf32>
    %cst_71 = arith.constant 2.500000e-01 : f32
    %191 = vector.broadcast %cst_71 : f32 to vector<8x8xf32>
    %192 = arith.mulf %190, %191 : vector<8x8xf32>
    %cst_72 = arith.constant dense<0xFF800000> : vector<8xf32>
    %193 = vector.multi_reduction <maximumf>, %192, %cst_72 [0] : vector<8x8xf32> to vector<8xf32>
    %194 = vector.shape_cast %193 : vector<8xf32> to vector<1x8xf32>
    %195 = vector.broadcast %194 : vector<1x8xf32> to vector<8x8xf32>
    %196 = arith.subf %192, %195 : vector<8x8xf32>
    %197 = math.exp %196 : vector<8x8xf32>
    %cst_73 = arith.constant dense<0.000000e+00> : vector<8xf32>
    %198 = vector.multi_reduction <add>, %197, %cst_73 [0] : vector<8x8xf32> to vector<8xf32>
    %199 = vector.shape_cast %198 : vector<8xf32> to vector<1x8xf32>
    %200 = tpu.reciprocal %199 {approx = true} : vector<1x8xf32> -> vector<1x8xf32>
    %201 = vector.broadcast %200 : vector<1x8xf32> to vector<8x8xf32>
    %202 = arith.mulf %197, %201 : vector<8x8xf32>
    %203 = arith.truncf %186 : vector<16x8xf32> to vector<16x8xbf16>
    %204 = arith.truncf %202 : vector<8x8xf32> to vector<8x8xbf16>
    %cst_74 = arith.constant dense<0.000000e+00> : vector<16x8xf32>
    %205 = tpu.matmul %203, %204, %cst_74 {dimension_numbers = #tpu.dot_dimension_numbers<[1], [0], [0], [1], [0, 0, 1, 1], [], []>} : vector<16x8xbf16>, vector<8x8xbf16>, vector<16x8xf32> -> vector<16x8xf32>
    %c288 = arith.constant 288 : index
    %c0_75 = arith.constant 0 : index
    %206 = vector.load %arg2[%c288, %c0_75] : memref<704x16xf32, #tpu.memory_space<vmem>>, vector<16x16xf32>
    %207 = arith.truncf %206 : vector<16x16xf32> to vector<16x16xbf16>
    %208 = arith.truncf %205 : vector<16x8xf32> to vector<16x8xbf16>
    %cst_76 = arith.constant dense<0.000000e+00> : vector<16x8xf32>
    %209 = tpu.matmul %207, %208, %cst_76 {dimension_numbers = #tpu.dot_dimension_numbers<[1], [0], [0], [1], [0, 0, 1, 1], [], []>} : vector<16x16xbf16>, vector<16x8xbf16>, vector<16x8xf32> -> vector<16x8xf32>
    %c304 = arith.constant 304 : index
    %c0_77 = arith.constant 0 : index
    %210 = vector.load %arg2[%c304, %c0_77] : memref<704x16xf32, #tpu.memory_space<vmem>>, vector<16x1xf32>
    %211 = vector.broadcast %210 : vector<16x1xf32> to vector<16x8xf32>
    %212 = arith.addf %209, %211 : vector<16x8xf32>
    %213 = arith.addf %176, %212 : vector<16x8xf32>
    %c320 = arith.constant 320 : index
    %c0_78 = arith.constant 0 : index
    %214 = vector.load %arg2[%c320, %c0_78] : memref<704x16xf32, #tpu.memory_space<vmem>>, vector<16x1xf32>
    %c336 = arith.constant 336 : index
    %c0_79 = arith.constant 0 : index
    %215 = vector.load %arg2[%c336, %c0_79] : memref<704x16xf32, #tpu.memory_space<vmem>>, vector<16x1xf32>
    %cst_80 = arith.constant dense<0.000000e+00> : vector<8xf32>
    %216 = vector.multi_reduction <add>, %213, %cst_80 [0] : vector<16x8xf32> to vector<8xf32>
    %217 = vector.shape_cast %216 : vector<8xf32> to vector<1x8xf32>
    %cst_81 = arith.constant 1.600000e+01 : f32
    %218 = vector.broadcast %cst_81 : f32 to vector<1x8xf32>
    %219 = arith.divf %217, %218 : vector<1x8xf32>
    %220 = vector.broadcast %219 : vector<1x8xf32> to vector<16x8xf32>
    %221 = arith.subf %213, %220 : vector<16x8xf32>
    %222 = arith.mulf %221, %221 : vector<16x8xf32>
    %cst_82 = arith.constant dense<0.000000e+00> : vector<8xf32>
    %223 = vector.multi_reduction <add>, %222, %cst_82 [0] : vector<16x8xf32> to vector<8xf32>
    %224 = vector.shape_cast %223 : vector<8xf32> to vector<1x8xf32>
    %cst_83 = arith.constant 1.600000e+01 : f32
    %225 = vector.broadcast %cst_83 : f32 to vector<1x8xf32>
    %226 = arith.divf %224, %225 : vector<1x8xf32>
    %227 = vector.broadcast %219 : vector<1x8xf32> to vector<16x8xf32>
    %228 = arith.subf %213, %227 : vector<16x8xf32>
    %cst_84 = arith.constant 9.99999974E-6 : f32
    %229 = vector.broadcast %cst_84 : f32 to vector<1x8xf32>
    %230 = arith.addf %226, %229 : vector<1x8xf32>
    %231 = math.rsqrt %230 : vector<1x8xf32>
    %232 = vector.broadcast %231 : vector<1x8xf32> to vector<16x8xf32>
    %233 = arith.mulf %228, %232 : vector<16x8xf32>
    %234 = vector.broadcast %214 : vector<16x1xf32> to vector<16x8xf32>
    %235 = arith.mulf %233, %234 : vector<16x8xf32>
    %236 = vector.broadcast %215 : vector<16x1xf32> to vector<16x8xf32>
    %237 = arith.addf %235, %236 : vector<16x8xf32>
    %c352 = arith.constant 352 : index
    %c0_85 = arith.constant 0 : index
    %238 = vector.load %arg2[%c352, %c0_85] : memref<704x16xf32, #tpu.memory_space<vmem>>, vector<16x16xf32>
    %239 = arith.truncf %238 : vector<16x16xf32> to vector<16x16xbf16>
    %240 = arith.truncf %237 : vector<16x8xf32> to vector<16x8xbf16>
    %cst_86 = arith.constant dense<0.000000e+00> : vector<16x8xf32>
    %241 = tpu.matmul %239, %240, %cst_86 {dimension_numbers = #tpu.dot_dimension_numbers<[1], [0], [0], [1], [0, 0, 1, 1], [], []>} : vector<16x16xbf16>, vector<16x8xbf16>, vector<16x8xf32> -> vector<16x8xf32>
    %c368 = arith.constant 368 : index
    %c0_87 = arith.constant 0 : index
    %242 = vector.load %arg2[%c368, %c0_87] : memref<704x16xf32, #tpu.memory_space<vmem>>, vector<16x1xf32>
    %243 = vector.broadcast %242 : vector<16x1xf32> to vector<16x8xf32>
    %244 = arith.addf %241, %243 : vector<16x8xf32>
    %cst_88 = arith.constant 3.000000e+00 : f32
    %245 = vector.broadcast %cst_88 : f32 to vector<16x8xf32>
    %246 = arith.addf %244, %245 : vector<16x8xf32>
    %cst_89 = arith.constant 0.000000e+00 : f32
    %cst_90 = arith.constant 6.000000e+00 : f32
    %247 = vector.broadcast %cst_89 : f32 to vector<16x8xf32>
    %248 = arith.maximumf %247, %246 : vector<16x8xf32>
    %249 = vector.broadcast %cst_90 : f32 to vector<16x8xf32>
    %250 = arith.minimumf %249, %248 : vector<16x8xf32>
    %251 = arith.mulf %244, %250 : vector<16x8xf32>
    %cst_91 = arith.constant 0.166666672 : f32
    %252 = vector.broadcast %cst_91 : f32 to vector<16x8xf32>
    %253 = arith.mulf %251, %252 : vector<16x8xf32>
    %c384 = arith.constant 384 : index
    %c0_92 = arith.constant 0 : index
    %254 = vector.load %arg2[%c384, %c0_92] : memref<704x16xf32, #tpu.memory_space<vmem>>, vector<16x16xf32>
    %255 = arith.truncf %254 : vector<16x16xf32> to vector<16x16xbf16>
    %256 = arith.truncf %253 : vector<16x8xf32> to vector<16x8xbf16>
    %cst_93 = arith.constant dense<0.000000e+00> : vector<16x8xf32>
    %257 = tpu.matmul %255, %256, %cst_93 {dimension_numbers = #tpu.dot_dimension_numbers<[1], [0], [0], [1], [0, 0, 1, 1], [], []>} : vector<16x16xbf16>, vector<16x8xbf16>, vector<16x8xf32> -> vector<16x8xf32>
    %258 = arith.addf %237, %257 : vector<16x8xf32>
    %c400 = arith.constant 400 : index
    %c0_94 = arith.constant 0 : index
    %259 = vector.load %arg2[%c400, %c0_94] : memref<704x16xf32, #tpu.memory_space<vmem>>, vector<16x1xf32>
    %260 = vector.broadcast %259 : vector<16x1xf32> to vector<16x8xf32>
    %261 = arith.addf %258, %260 : vector<16x8xf32>
    %c416 = arith.constant 416 : index
    %c0_95 = arith.constant 0 : index
    %262 = vector.load %arg2[%c416, %c0_95] : memref<704x16xf32, #tpu.memory_space<vmem>>, vector<16x1xf32>
    %c432 = arith.constant 432 : index
    %c0_96 = arith.constant 0 : index
    %263 = vector.load %arg2[%c432, %c0_96] : memref<704x16xf32, #tpu.memory_space<vmem>>, vector<16x1xf32>
    %cst_97 = arith.constant dense<0.000000e+00> : vector<8xf32>
    %264 = vector.multi_reduction <add>, %261, %cst_97 [0] : vector<16x8xf32> to vector<8xf32>
    %265 = vector.shape_cast %264 : vector<8xf32> to vector<1x8xf32>
    %cst_98 = arith.constant 1.600000e+01 : f32
    %266 = vector.broadcast %cst_98 : f32 to vector<1x8xf32>
    %267 = arith.divf %265, %266 : vector<1x8xf32>
    %268 = vector.broadcast %267 : vector<1x8xf32> to vector<16x8xf32>
    %269 = arith.subf %261, %268 : vector<16x8xf32>
    %270 = arith.mulf %269, %269 : vector<16x8xf32>
    %cst_99 = arith.constant dense<0.000000e+00> : vector<8xf32>
    %271 = vector.multi_reduction <add>, %270, %cst_99 [0] : vector<16x8xf32> to vector<8xf32>
    %272 = vector.shape_cast %271 : vector<8xf32> to vector<1x8xf32>
    %cst_100 = arith.constant 1.600000e+01 : f32
    %273 = vector.broadcast %cst_100 : f32 to vector<1x8xf32>
    %274 = arith.divf %272, %273 : vector<1x8xf32>
    %275 = vector.broadcast %267 : vector<1x8xf32> to vector<16x8xf32>
    %276 = arith.subf %261, %275 : vector<16x8xf32>
    %cst_101 = arith.constant 9.99999974E-6 : f32
    %277 = vector.broadcast %cst_101 : f32 to vector<1x8xf32>
    %278 = arith.addf %274, %277 : vector<1x8xf32>
    %279 = math.rsqrt %278 : vector<1x8xf32>
    %280 = vector.broadcast %279 : vector<1x8xf32> to vector<16x8xf32>
    %281 = arith.mulf %276, %280 : vector<16x8xf32>
    %282 = vector.broadcast %262 : vector<16x1xf32> to vector<16x8xf32>
    %283 = arith.mulf %281, %282 : vector<16x8xf32>
    %284 = vector.broadcast %263 : vector<16x1xf32> to vector<16x8xf32>
    %285 = arith.addf %283, %284 : vector<16x8xf32>
    %c448 = arith.constant 448 : index
    %c0_102 = arith.constant 0 : index
    %286 = vector.load %arg2[%c448, %c0_102] : memref<704x16xf32, #tpu.memory_space<vmem>>, vector<48x16xf32>
    %287 = arith.truncf %286 : vector<48x16xf32> to vector<48x16xbf16>
    %288 = arith.truncf %285 : vector<16x8xf32> to vector<16x8xbf16>
    %cst_103 = arith.constant dense<0.000000e+00> : vector<48x8xf32>
    %289 = tpu.matmul %287, %288, %cst_103 {dimension_numbers = #tpu.dot_dimension_numbers<[1], [0], [0], [1], [0, 0, 1, 1], [], []>} : vector<48x16xbf16>, vector<16x8xbf16>, vector<48x8xf32> -> vector<48x8xf32>
    %c496 = arith.constant 496 : index
    %c0_104 = arith.constant 0 : index
    %290 = vector.load %arg2[%c496, %c0_104] : memref<704x16xf32, #tpu.memory_space<vmem>>, vector<48x1xf32>
    %291 = vector.broadcast %290 : vector<48x1xf32> to vector<48x8xf32>
    %292 = arith.addf %289, %291 : vector<48x8xf32>
    %293 = vector.extract_strided_slice %292 {offsets = [0, 0], sizes = [16, 8], strides = [1, 1]} : vector<48x8xf32> to vector<16x8xf32>
    %294 = vector.extract_strided_slice %292 {offsets = [16, 0], sizes = [16, 8], strides = [1, 1]} : vector<48x8xf32> to vector<16x8xf32>
    %295 = vector.extract_strided_slice %292 {offsets = [32, 0], sizes = [16, 8], strides = [1, 1]} : vector<48x8xf32> to vector<16x8xf32>
    %296 = tpu.transpose %294, [1, 0] : vector<16x8xf32> -> vector<8x16xf32>
    %297 = arith.truncf %296 : vector<8x16xf32> to vector<8x16xbf16>
    %298 = arith.truncf %293 : vector<16x8xf32> to vector<16x8xbf16>
    %cst_105 = arith.constant dense<0.000000e+00> : vector<8x8xf32>
    %299 = tpu.matmul %297, %298, %cst_105 {dimension_numbers = #tpu.dot_dimension_numbers<[1], [0], [0], [1], [0, 0, 1, 1], [], []>} : vector<8x16xbf16>, vector<16x8xbf16>, vector<8x8xf32> -> vector<8x8xf32>
    %cst_106 = arith.constant 2.500000e-01 : f32
    %300 = vector.broadcast %cst_106 : f32 to vector<8x8xf32>
    %301 = arith.mulf %299, %300 : vector<8x8xf32>
    %cst_107 = arith.constant dense<0xFF800000> : vector<8xf32>
    %302 = vector.multi_reduction <maximumf>, %301, %cst_107 [0] : vector<8x8xf32> to vector<8xf32>
    %303 = vector.shape_cast %302 : vector<8xf32> to vector<1x8xf32>
    %304 = vector.broadcast %303 : vector<1x8xf32> to vector<8x8xf32>
    %305 = arith.subf %301, %304 : vector<8x8xf32>
    %306 = math.exp %305 : vector<8x8xf32>
    %cst_108 = arith.constant dense<0.000000e+00> : vector<8xf32>
    %307 = vector.multi_reduction <add>, %306, %cst_108 [0] : vector<8x8xf32> to vector<8xf32>
    %308 = vector.shape_cast %307 : vector<8xf32> to vector<1x8xf32>
    %309 = tpu.reciprocal %308 {approx = true} : vector<1x8xf32> -> vector<1x8xf32>
    %310 = vector.broadcast %309 : vector<1x8xf32> to vector<8x8xf32>
    %311 = arith.mulf %306, %310 : vector<8x8xf32>
    %312 = arith.truncf %295 : vector<16x8xf32> to vector<16x8xbf16>
    %313 = arith.truncf %311 : vector<8x8xf32> to vector<8x8xbf16>
    %cst_109 = arith.constant dense<0.000000e+00> : vector<16x8xf32>
    %314 = tpu.matmul %312, %313, %cst_109 {dimension_numbers = #tpu.dot_dimension_numbers<[1], [0], [0], [1], [0, 0, 1, 1], [], []>} : vector<16x8xbf16>, vector<8x8xbf16>, vector<16x8xf32> -> vector<16x8xf32>
    %c544 = arith.constant 544 : index
    %c0_110 = arith.constant 0 : index
    %315 = vector.load %arg2[%c544, %c0_110] : memref<704x16xf32, #tpu.memory_space<vmem>>, vector<16x16xf32>
    %316 = arith.truncf %315 : vector<16x16xf32> to vector<16x16xbf16>
    %317 = arith.truncf %314 : vector<16x8xf32> to vector<16x8xbf16>
    %cst_111 = arith.constant dense<0.000000e+00> : vector<16x8xf32>
    %318 = tpu.matmul %316, %317, %cst_111 {dimension_numbers = #tpu.dot_dimension_numbers<[1], [0], [0], [1], [0, 0, 1, 1], [], []>} : vector<16x16xbf16>, vector<16x8xbf16>, vector<16x8xf32> -> vector<16x8xf32>
    %c560 = arith.constant 560 : index
    %c0_112 = arith.constant 0 : index
    %319 = vector.load %arg2[%c560, %c0_112] : memref<704x16xf32, #tpu.memory_space<vmem>>, vector<16x1xf32>
    %320 = vector.broadcast %319 : vector<16x1xf32> to vector<16x8xf32>
    %321 = arith.addf %318, %320 : vector<16x8xf32>
    %322 = arith.addf %285, %321 : vector<16x8xf32>
    %c576 = arith.constant 576 : index
    %c0_113 = arith.constant 0 : index
    %323 = vector.load %arg2[%c576, %c0_113] : memref<704x16xf32, #tpu.memory_space<vmem>>, vector<16x1xf32>
    %c592 = arith.constant 592 : index
    %c0_114 = arith.constant 0 : index
    %324 = vector.load %arg2[%c592, %c0_114] : memref<704x16xf32, #tpu.memory_space<vmem>>, vector<16x1xf32>
    %cst_115 = arith.constant dense<0.000000e+00> : vector<8xf32>
    %325 = vector.multi_reduction <add>, %322, %cst_115 [0] : vector<16x8xf32> to vector<8xf32>
    %326 = vector.shape_cast %325 : vector<8xf32> to vector<1x8xf32>
    %cst_116 = arith.constant 1.600000e+01 : f32
    %327 = vector.broadcast %cst_116 : f32 to vector<1x8xf32>
    %328 = arith.divf %326, %327 : vector<1x8xf32>
    %329 = vector.broadcast %328 : vector<1x8xf32> to vector<16x8xf32>
    %330 = arith.subf %322, %329 : vector<16x8xf32>
    %331 = arith.mulf %330, %330 : vector<16x8xf32>
    %cst_117 = arith.constant dense<0.000000e+00> : vector<8xf32>
    %332 = vector.multi_reduction <add>, %331, %cst_117 [0] : vector<16x8xf32> to vector<8xf32>
    %333 = vector.shape_cast %332 : vector<8xf32> to vector<1x8xf32>
    %cst_118 = arith.constant 1.600000e+01 : f32
    %334 = vector.broadcast %cst_118 : f32 to vector<1x8xf32>
    %335 = arith.divf %333, %334 : vector<1x8xf32>
    %336 = vector.broadcast %328 : vector<1x8xf32> to vector<16x8xf32>
    %337 = arith.subf %322, %336 : vector<16x8xf32>
    %cst_119 = arith.constant 9.99999974E-6 : f32
    %338 = vector.broadcast %cst_119 : f32 to vector<1x8xf32>
    %339 = arith.addf %335, %338 : vector<1x8xf32>
    %340 = math.rsqrt %339 : vector<1x8xf32>
    %341 = vector.broadcast %340 : vector<1x8xf32> to vector<16x8xf32>
    %342 = arith.mulf %337, %341 : vector<16x8xf32>
    %343 = vector.broadcast %323 : vector<16x1xf32> to vector<16x8xf32>
    %344 = arith.mulf %342, %343 : vector<16x8xf32>
    %345 = vector.broadcast %324 : vector<16x1xf32> to vector<16x8xf32>
    %346 = arith.addf %344, %345 : vector<16x8xf32>
    %c608 = arith.constant 608 : index
    %c0_120 = arith.constant 0 : index
    %347 = vector.load %arg2[%c608, %c0_120] : memref<704x16xf32, #tpu.memory_space<vmem>>, vector<16x16xf32>
    %348 = arith.truncf %347 : vector<16x16xf32> to vector<16x16xbf16>
    %349 = arith.truncf %346 : vector<16x8xf32> to vector<16x8xbf16>
    %cst_121 = arith.constant dense<0.000000e+00> : vector<16x8xf32>
    %350 = tpu.matmul %348, %349, %cst_121 {dimension_numbers = #tpu.dot_dimension_numbers<[1], [0], [0], [1], [0, 0, 1, 1], [], []>} : vector<16x16xbf16>, vector<16x8xbf16>, vector<16x8xf32> -> vector<16x8xf32>
    %c624 = arith.constant 624 : index
    %c0_122 = arith.constant 0 : index
    %351 = vector.load %arg2[%c624, %c0_122] : memref<704x16xf32, #tpu.memory_space<vmem>>, vector<16x1xf32>
    %352 = vector.broadcast %351 : vector<16x1xf32> to vector<16x8xf32>
    %353 = arith.addf %350, %352 : vector<16x8xf32>
    %cst_123 = arith.constant 3.000000e+00 : f32
    %354 = vector.broadcast %cst_123 : f32 to vector<16x8xf32>
    %355 = arith.addf %353, %354 : vector<16x8xf32>
    %cst_124 = arith.constant 0.000000e+00 : f32
    %cst_125 = arith.constant 6.000000e+00 : f32
    %356 = vector.broadcast %cst_124 : f32 to vector<16x8xf32>
    %357 = arith.maximumf %356, %355 : vector<16x8xf32>
    %358 = vector.broadcast %cst_125 : f32 to vector<16x8xf32>
    %359 = arith.minimumf %358, %357 : vector<16x8xf32>
    %360 = arith.mulf %353, %359 : vector<16x8xf32>
    %cst_126 = arith.constant 0.166666672 : f32
    %361 = vector.broadcast %cst_126 : f32 to vector<16x8xf32>
    %362 = arith.mulf %360, %361 : vector<16x8xf32>
    %c640 = arith.constant 640 : index
    %c0_127 = arith.constant 0 : index
    %363 = vector.load %arg2[%c640, %c0_127] : memref<704x16xf32, #tpu.memory_space<vmem>>, vector<16x16xf32>
    %364 = arith.truncf %363 : vector<16x16xf32> to vector<16x16xbf16>
    %365 = arith.truncf %362 : vector<16x8xf32> to vector<16x8xbf16>
    %cst_128 = arith.constant dense<0.000000e+00> : vector<16x8xf32>
    %366 = tpu.matmul %364, %365, %cst_128 {dimension_numbers = #tpu.dot_dimension_numbers<[1], [0], [0], [1], [0, 0, 1, 1], [], []>} : vector<16x16xbf16>, vector<16x8xbf16>, vector<16x8xf32> -> vector<16x8xf32>
    %367 = arith.addf %346, %366 : vector<16x8xf32>
    %c656 = arith.constant 656 : index
    %c0_129 = arith.constant 0 : index
    %368 = vector.load %arg2[%c656, %c0_129] : memref<704x16xf32, #tpu.memory_space<vmem>>, vector<16x1xf32>
    %369 = vector.broadcast %368 : vector<16x1xf32> to vector<16x8xf32>
    %370 = arith.addf %367, %369 : vector<16x8xf32>
    %c672 = arith.constant 672 : index
    %c0_130 = arith.constant 0 : index
    %371 = vector.load %arg2[%c672, %c0_130] : memref<704x16xf32, #tpu.memory_space<vmem>>, vector<16x1xf32>
    %c688 = arith.constant 688 : index
    %c0_131 = arith.constant 0 : index
    %372 = vector.load %arg2[%c688, %c0_131] : memref<704x16xf32, #tpu.memory_space<vmem>>, vector<16x1xf32>
    %cst_132 = arith.constant dense<0.000000e+00> : vector<8xf32>
    %373 = vector.multi_reduction <add>, %370, %cst_132 [0] : vector<16x8xf32> to vector<8xf32>
    %374 = vector.shape_cast %373 : vector<8xf32> to vector<1x8xf32>
    %cst_133 = arith.constant 1.600000e+01 : f32
    %375 = vector.broadcast %cst_133 : f32 to vector<1x8xf32>
    %376 = arith.divf %374, %375 : vector<1x8xf32>
    %377 = vector.broadcast %376 : vector<1x8xf32> to vector<16x8xf32>
    %378 = arith.subf %370, %377 : vector<16x8xf32>
    %379 = arith.mulf %378, %378 : vector<16x8xf32>
    %cst_134 = arith.constant dense<0.000000e+00> : vector<8xf32>
    %380 = vector.multi_reduction <add>, %379, %cst_134 [0] : vector<16x8xf32> to vector<8xf32>
    %381 = vector.shape_cast %380 : vector<8xf32> to vector<1x8xf32>
    %cst_135 = arith.constant 1.600000e+01 : f32
    %382 = vector.broadcast %cst_135 : f32 to vector<1x8xf32>
    %383 = arith.divf %381, %382 : vector<1x8xf32>
    %384 = vector.broadcast %376 : vector<1x8xf32> to vector<16x8xf32>
    %385 = arith.subf %370, %384 : vector<16x8xf32>
    %cst_136 = arith.constant 9.99999974E-6 : f32
    %386 = vector.broadcast %cst_136 : f32 to vector<1x8xf32>
    %387 = arith.addf %383, %386 : vector<1x8xf32>
    %388 = math.rsqrt %387 : vector<1x8xf32>
    %389 = vector.broadcast %388 : vector<1x8xf32> to vector<16x8xf32>
    %390 = arith.mulf %385, %389 : vector<16x8xf32>
    %391 = vector.broadcast %371 : vector<16x1xf32> to vector<16x8xf32>
    %392 = arith.mulf %390, %391 : vector<16x8xf32>
    %393 = vector.broadcast %372 : vector<16x1xf32> to vector<16x8xf32>
    %394 = arith.addf %392, %393 : vector<16x8xf32>
    %cst_137 = arith.constant dense<0.000000e+00> : vector<16xf32>
    %395 = vector.multi_reduction <add>, %394, %cst_137 [1] : vector<16x8xf32> to vector<16xf32>
    %396 = vector.shape_cast %395 : vector<16xf32> to vector<16x1xf32>
    %cst_138 = arith.constant 8.000000e+00 : f32
    %397 = vector.broadcast %cst_138 : f32 to vector<16x1xf32>
    %398 = arith.divf %396, %397 : vector<16x1xf32>
    %c0_139 = arith.constant 0 : index
    %c0_140 = arith.constant 0 : index
    %c0_141 = arith.constant 0 : index
    %399 = vector.load %arg3[%c0_139, %c0_140, %c0_141] : memref<1x16x1xf32, #tpu.memory_space<vmem>>, vector<1x16x1xf32>
    %400 = vector.shape_cast %399 : vector<1x16x1xf32> to vector<16x1xf32>
    %401 = vector.shape_cast %398 : vector<16x1xf32> to vector<1x16x1xf32>
    tpu.vector_store %arg3[%c0_139, %c0_140, %c0_141], %401 {strides = array<i32>} : memref<1x16x1xf32, #tpu.memory_space<vmem>>, vector<1x16x1xf32>,
    return
  }
  func.func @transform_0(%arg0: i32) -> (i32, i32, i32) {
    %c0_i32 = arith.constant 0 : i32
    %c0_i32_0 = arith.constant 0 : i32
    %c0_i32_1 = arith.constant 0 : i32
    return %arg0, %c0_i32, %c0_i32_0 : i32, i32, i32
  }
  func.func @transform_1(%arg0: i32) -> (i32, i32) {
    %c0_i32 = arith.constant 0 : i32
    %c0_i32_0 = arith.constant 0 : i32
    %c0_i32_1 = arith.constant 0 : i32
    return %c0_i32, %c0_i32_0 : i32, i32
  }
  func.func @transform_2(%arg0: i32) -> (i32, i32, i32) {
    %c0_i32 = arith.constant 0 : i32
    %c0_i32_0 = arith.constant 0 : i32
    %c0_i32_1 = arith.constant 0 : i32
    return %arg0, %c0_i32, %c0_i32_0 : i32, i32, i32
  }
}

</mosaic_0001>

<llo_original>
// kernel: psdnet_forward.3
$region0: #{psdnet_forward.3}
  #allocation0 [shape = 'u32[]', space=smem, size = 0x4, offset = 0x4, fixed_abs, tag = 'smem constant byte address 0x4 - core index']
  #allocation1 [shape = 'u32[144,128]{1,0:T(1,128)}', space=vmem, size = 0x12000, scoped, tag = 'internal scratch']
  #allocation2 [shape = 'f32[8,15]{1,0:T(8,128)}', space=vmem, size = 0x1000, scoped, tag = 'scratch operand']
  #allocation3 [shape = 'f32[16,8]{1,0:T(8,128)}', space=vmem, size = 0x2000, scoped, tag = 'scratch operand']
  %s0 = inlined_call_operand.vmem [shape: f32[2,4,28], index: 0, kind: input, shape index: {}]
  %s1 = inlined_call_operand.vmem [shape: f32[704,16], index: 1, kind: input, shape index: {}]
  %s2 = inlined_call_operand.vmem [shape: f32[2,16,1], index: 2, kind: output, shape index: {}]
  %s3 = sld [smem:[#allocation0]]
  $region41: #{psdnet_forward.3} parent=0
    _
  %s5 = ssub.s32 1, %s3
  %s6 = scalar_select 0, %s5, %s3
  loop: start=0, step=1, limit=4
  $region2: #{psdnet_forward.3} parent=0 // loop_pre_header
    _
  $region3: #{psdnet_forward.3} parent=0 // loop_header
    %s8 = sphi 0, %s12
    %p9 = scmp.ge.s32.totalorder %s8, 4
    %s18 = sphi 0, %s20
    %s21 = sphi 0, %s18
    %s22 = sphi 0, %s21
    %s38 = sphi 0, %s22
    %s42 = sphi 0, %s42
    %s44 = sphi 0, %s42
    %s45 = sphi 0, %s44
    %s59 = sphi 0, %s45
    %s65 = sphi 0, %s67
    %s68 = sphi 0, %s65
    %s69 = sphi 0, %s68
    %s85 = sphi 0, %s69
  $region4: #{psdnet_forward.3} parent=0 // loop_header_branch
    %11 = sbr.rel (%p9) target = $region8
  $region5: #{psdnet_forward.3} parent=0 // loop_body
    %s13 = ssub.s32 %s8, 1
    %s14 = ssub.s32 %s8, 2
    %s15 = sadd.s32 %s8, 1
    %s16 = ssub.s32 %s8, %s15
    %p17 = scmp.eq.s32.totalorder %s16, 0
    %s19 = sadd.s32 %s18, 1
    %s20 = scalar_select %p17, %s18, %s19
    %p23 = pneg %p17
    %p24 = scmp.eq.s32.totalorder %s8, 1
    %p25 = por %p23, %p24
    %p26 = scmp.ne.s32.totalorder %s18, %s21
    %p27 = scmp.eq.s32.totalorder %s8, 0
    %p28 = por %p26, %p27
    %p29 = scmp.ne.s32.totalorder %s18, %s21
    %p30 = scmp.eq.s32.totalorder %s13, 1
    %p31 = por %p29, %p30
    %p32 = scmp.ne.s32.totalorder %s21, %s22
    %p33 = scmp.eq.s32.totalorder %s13, 0
    %p34 = por %p32, %p33
    %p35 = scmp.ne.s32.totalorder %s21, %s22
    %p36 = scmp.eq.s32.totalorder %s14, 1
    %p37 = por %p35, %p36
    %p39 = scmp.ne.s32.totalorder %s22, %s38
    %p40 = scmp.eq.s32.totalorder %s14, 0
    %p41 = por %p39, %p40
    %s43 = sadd.s32 %s42, 1
    %p46 = scmp.eq.s32.totalorder %s8, 1
    %p47 = scmp.ne.s32.totalorder %s42, %s44
    %p48 = scmp.eq.s32.totalorder %s8, 0
    %p49 = por %p47, %p48
    %p50 = scmp.ne.s32.totalorder %s42, %s44
    %p51 = scmp.eq.s32.totalorder %s13, 1
    %p52 = por %p50, %p51
    %p53 = scmp.ne.s32.totalorder %s44, %s45
    %p54 = scmp.eq.s32.totalorder %s13, 0
    %p55 = por %p53, %p54
    %p56 = scmp.ne.s32.totalorder %s44, %s45
    %p57 = scmp.eq.s32.totalorder %s14, 1
    %p58 = por %p56, %p57
    %p60 = scmp.ne.s32.totalorder %s45, %s59
    %p61 = scmp.eq.s32.totalorder %s14, 0
    %p62 = por %p60, %p61
    %s63 = ssub.s32 %s8, %s15
    %p64 = scmp.eq.s32.totalorder %s63, 0
    %s66 = sadd.s32 %s65, 1
    %s67 = scalar_select %p64, %s65, %s66
    %p70 = pneg %p64
    %p71 = scmp.eq.s32.totalorder %s8, 1
    %p72 = por %p70, %p71
    %p73 = scmp.ne.s32.totalorder %s65, %s68
    %p74 = scmp.eq.s32.totalorder %s8, 0
    %p75 = por %p73, %p74
    %p76 = scmp.ne.s32.totalorder %s65, %s68
    %p77 = scmp.eq.s32.totalorder %s13, 1
    %p78 = por %p76, %p77
    %p79 = scmp.ne.s32.totalorder %s68, %s69
    %p80 = scmp.eq.s32.totalorder %s13, 0
    %p81 = por %p79, %p80
    %p82 = scmp.ne.s32.totalorder %s68, %s69
    %p83 = scmp.eq.s32.totalorder %s14, 1
    %p84 = por %p82, %p83
    %p86 = scmp.ne.s32.totalorder %s69, %s85
    %p87 = scmp.eq.s32.totalorder %s14, 0
    %p88 = por %p86, %p87
    %p89 = scmp.le.s32.totalorder 1, %s8
    %p90 = scmp.lt.s32.totalorder %s8, 3
    %p91 = pnand %p89, %p90
    %p92 = pneg %p91
    // Predicated region
    $region9: #{psdnet_forward.3} parent=5 // pred_check
      _
    $region10: #{psdnet_forward.3} parent=5 // pred_check_branch
      %94 = sbr.rel (%p91) target = $region12
    $region11: #{psdnet_forward.3} parent=5 // pred_region
      %s95 = ssub.s32 %s8, 1
      // Predicated region
      $region13: #{psdnet_forward.3} parent=11 // pred_check
        %p96 = pneg %p55
      $region14: #{psdnet_forward.3} parent=11 // pred_check_branch
        %98 = sbr.rel (%p96) target = $region16
      $region15: #{psdnet_forward.3} parent=11 // pred_region
        _
      $region16: #{psdnet_forward.3} parent=11 // pred_fallthru
        _
    $region12: #{psdnet_forward.3} parent=5 // pred_fallthru
      _
    %p99 = scmp.lt.s32.totalorder %s8, 2
    // Predicated region
    $region17: #{psdnet_forward.3} parent=5 // pred_check
      %p100 = pneg %p99
    $region18: #{psdnet_forward.3} parent=5 // pred_check_branch
      %102 = sbr.rel (%p100) target = $region20
    $region19: #{psdnet_forward.3} parent=5 // pred_region
      // Predicated region
      $region21: #{psdnet_forward.3} parent=19 // pred_check
        %p103 = pneg %p28
      $region22: #{psdnet_forward.3} parent=19 // pred_check_branch
        %105 = sbr.rel (%p103) target = $region24
      $region23: #{psdnet_forward.3} parent=19 // pred_region
        %p106 = scmp.lt.s32.totalorder %s8, 1
        %s107 = scalar_select %p106, %s8, 1
        %s108 = smul.addr %s107, 4
        %s109 = scalar_lea.vmem %s0, %s108
      $region24: #{psdnet_forward.3} parent=19 // pred_fallthru
        _
    $region20: #{psdnet_forward.3} parent=5 // pred_fallthru
      _
    %p110 = scmp.le.s32.totalorder 1, %s8
    %p111 = scmp.lt.s32.totalorder %s8, 3
    %p112 = pnand %p110, %p111
    %p113 = pneg %p112
    // Predicated region
    $region25: #{psdnet_forward.3} parent=5 // pred_check
      _
    $region26: #{psdnet_forward.3} parent=5 // pred_check_branch
      %115 = sbr.rel (%p112) target = $region28
    $region27: #{psdnet_forward.3} parent=5 // pred_region
      %s116 = ssub.s32 %s8, 1
      %p117 = scmp.lt.s32.totalorder %s13, 1
      %s118 = scalar_select %p117, %s13, 1
      %s119 = smul.addr %s118, 4
      %s120 = scalar_lea.vmem %s0, %s119
      %p121 = pneg %p34
      %p122 = pneg %p31
      %p123 = pneg %p55
      %p124 = pneg %p52
      %p125 = pneg %p81
      %p126 = pneg %p78
      %p127 = scmp.lt.s32.totalorder %s13, 1
      %s128 = scalar_select %p127, %s13, 1
      %s129 = smul.addr %s128, 2
      %s130 = smul.addr %s129, 8
      %s131 = scalar_lea.vmem %s2, %s130
      %p132 = scmp.lt.s32.totalorder %s13, 1
      %s133 = scalar_select %p132, %s13, 1
      %s134 = smul.addr %s133, 4
      %s135 = scalar_lea.vmem %s0, %s134
      %p136 = scmp.lt.s32.totalorder %s13, 1
      %s137 = scalar_select %p136, %s13, 1
      %s138 = smul.addr %s137, 2
      %s139 = smul.addr %s138, 8
      %s140 = scalar_lea.vmem %s2, %s139
      %v142 = vlaneseq
      %v143 = vshrl.u32 %v142, 7
      %v144 = vadd.s32 %v143, 8
      %v145 = vadd.s32 %v143, 16
      %v146 = vlaneseq
      %v147 = vand.u32 %v146, 127
      %v148 = vmul.u32 %v147, 2
      %v149 = vsub.s32 %v143, %v148
      %v150 = vsub.s32 %v144, %v148
      %v151 = vsub.s32 %v145, %v148
      %vm152 = vcmp.ge.s32.totalorder %v149, 0
      %vm153 = vcmp.ge.s32.totalorder %v150, 0
      %vm154 = vcmp.ge.s32.totalorder %v151, 0
      %vm155 = vcmp.lt.s32.totalorder %v149, 4
      %vm156 = vcmp.lt.s32.totalorder %v150, 4
      %vm157 = vcmp.lt.s32.totalorder %v151, 4
      %vm158 = vmand %vm152, %vm155
      %vm159 = vmand %vm153, %vm156
      %vm160 = vmand %vm154, %vm157
      %v161 = vsel %vm158, 0.25, 0.0
      %v162 = vsel %vm159, 0.25, 0.0
      %v163 = vsel %vm160, 0.25, 0.0
      %v164 = vld [vmem:[%s135] sm:$0xf]
      %v165 = vld [vmem:[%s1] sm:$0xff]
      %v166 = vld [vmem:[%s1 + $0x8] sm:$0xff]
      %168 = vrot.lane.b32.xlu0 %v164, 127
      %v169 = vpop.permute.xlu0 %168
      %vm170 = vcmask 31744
      %v172 = vsel %vm170, %v166, 0
      %vm174 = vcmask 1043456
      %v175 = vsel %vm174, %v169, 0
      %177 = vmatprep.subr.mxu0 0.0
      %178 = vmatpush1.msra.mxu0 %v175
      %179 = vmatprep.subr.mxu0 0.0
      %180 = vmatpush1.msra.mxu0 0.0
      %181 = vmatprep.subr.mxu0 0.0
      %182 = vmatpush1.msra.mxu0 0.0
      %183 = vmatprep.subr.mxu0 0.0
      %184 = vmatpush1.msra.mxu0 0.0
      %185 = vmatprep.subr.mxu0 0.0
      %186 = vmatpush1.msra.mxu0 0.0
      %187 = vmatprep.subr.mxu0 0.0
      %188 = vmatpush1.msra.mxu0 0.0
      %189 = vmatprep.subr.mxu0 0.0
      %190 = vmatpush1.msra.mxu0 0.0
      %191 = vmatprep.subr.mxu0 0.0
      %192 = vmatpush1.msra.mxu0 0.0
      %193 = vmatprep.subr.mxu0 0.0
      %194 = vmatpush1.msra.mxu0 0.0
      %195 = vmatprep.subr.mxu0 0.0
      %196 = vmatpush1.msra.mxu0 0.0
      %197 = vmatprep.subr.mxu0 0.0
      %198 = vmatpush1.msra.mxu0 0.0
      %199 = vmatprep.subr.mxu0 0.0
      %200 = vmatpush1.msra.mxu0 0.0
      %201 = vmatprep.subr.mxu0 0.0
      %202 = vmatpush1.msra.mxu0 0.0
      %203 = vmatprep.subr.mxu0 0.0
      %204 = vmatpush1.msra.mxu0 0.0
      %205 = vmatprep.subr.mxu0 0.0
      %206 = vmatpush1.msra.mxu0 0.0
      %207 = vmatprep.subr.mxu0 0.0
      %208 = vmatpush1.msra.mxu0 0.0
      %209 = vmatprep.subr.mxu0 0.0
      %210 = vmatpush1.msra.mxu0 0.0
      %211 = vmatprep.subr.mxu0 0.0
      %212 = vmatpush1.msra.mxu0 0.0
      %213 = vmatprep.subr.mxu0 0.0
      %214 = vmatpush1.msra.mxu0 0.0
      %215 = vmatprep.subr.mxu0 0.0
      %216 = vmatpush1.msra.mxu0 0.0
      %217 = vmatprep.subr.mxu0 0.0
      %218 = vmatpush1.msra.mxu0 0.0
      %219 = vmatprep.subr.mxu0 0.0
      %220 = vmatpush1.msra.mxu0 0.0
      %221 = vmatprep.subr.mxu0 0.0
      %222 = vmatpush1.msra.mxu0 0.0
      %223 = vmatprep.subr.mxu0 0.0
      %224 = vmatpush1.msra.mxu0 0.0
      %225 = vmatprep.subr.mxu0 0.0
      %226 = vmatpush1.msra.mxu0 0.0
      %227 = vmatprep.subr.mxu0 0.0
      %228 = vmatpush1.msra.mxu0 0.0
      %229 = vmatprep.subr.mxu0 0.0
      %230 = vmatpush1.msra.mxu0 0.0
      %231 = vmatprep.subr.mxu0 0.0
      %232 = vmatpush1.msra.mxu0 0.0
      %233 = vmatprep.subr.mxu0 0.0
      %234 = vmatpush1.msra.mxu0 0.0
      %235 = vmatprep.subr.mxu0 0.0
      %236 = vmatpush1.msra.mxu0 0.0
      %237 = vmatprep.subr.mxu0 0.0
      %238 = vmatpush1.msra.mxu0 0.0
      %239 = vmatprep.subr.mxu0 0.0
      %240 = vmatpush1.msra.mxu0 0.0
      %241 = vmatprep.mubr.f32.mxu0 0.0
      %242 = vmatmul.mubr.f32.gmra.mrb[0].mxu0 %v172
      %v243 = vpop.f32.mrb[0].mxu0
      %v244 = vadd.f32 0.0, %v243
      %v245 = vpop.f32.mrb[0].mxu0
      %246 = vdwg.mxu0
      %v248 = vsel %vm170, %v165, 0
      %v250 = vsel %vm174, %v164, 0
      %252 = vmatprep.subr.mxu0 0.0
      %253 = vmatpush1.msra.mxu0 %v250
      %254 = vmatprep.subr.mxu0 0.0
      %255 = vmatpush1.msra.mxu0 0.0
      %256 = vmatprep.subr.mxu0 0.0
      %257 = vmatpush1.msra.mxu0 0.0
      %258 = vmatprep.subr.mxu0 0.0
      %259 = vmatpush1.msra.mxu0 0.0
      %260 = vmatprep.subr.mxu0 0.0
      %261 = vmatpush1.msra.mxu0 0.0
      %262 = vmatprep.subr.mxu0 0.0
      %263 = vmatpush1.msra.mxu0 0.0
      %264 = vmatprep.subr.mxu0 0.0
      %265 = vmatpush1.msra.mxu0 0.0
      %266 = vmatprep.subr.mxu0 0.0
      %267 = vmatpush1.msra.mxu0 0.0
      %268 = vmatprep.subr.mxu0 0.0
      %269 = vmatpush1.msra.mxu0 0.0
      %270 = vmatprep.subr.mxu0 0.0
      %271 = vmatpush1.msra.mxu0 0.0
      %272 = vmatprep.subr.mxu0 0.0
      %273 = vmatpush1.msra.mxu0 0.0
      %274 = vmatprep.subr.mxu0 0.0
      %275 = vmatpush1.msra.mxu0 0.0
      %276 = vmatprep.subr.mxu0 0.0
      %277 = vmatpush1.msra.mxu0 0.0
      %278 = vmatprep.subr.mxu0 0.0
      %279 = vmatpush1.msra.mxu0 0.0
      %280 = vmatprep.subr.mxu0 0.0
      %281 = vmatpush1.msra.mxu0 0.0
      %282 = vmatprep.subr.mxu0 0.0
      %283 = vmatpush1.msra.mxu0 0.0
      %284 = vmatprep.subr.mxu0 0.0
      %285 = vmatpush1.msra.mxu0 0.0
      %286 = vmatprep.subr.mxu0 0.0
      %287 = vmatpush1.msra.mxu0 0.0
      %288 = vmatprep.subr.mxu0 0.0
      %289 = vmatpush1.msra.mxu0 0.0
      %290 = vmatprep.subr.mxu0 0.0
      %291 = vmatpush1.msra.mxu0 0.0
      %292 = vmatprep.subr.mxu0 0.0
      %293 = vmatpush1.msra.mxu0 0.0
      %294 = vmatprep.subr.mxu0 0.0
      %295 = vmatpush1.msra.mxu0 0.0
      %296 = vmatprep.subr.mxu0 0.0
      %297 = vmatpush1.msra.mxu0 0.0
      %298 = vmatprep.subr.mxu0 0.0
      %299 = vmatpush1.msra.mxu0 0.0
      %300 = vmatprep.subr.mxu0 0.0
      %301 = vmatpush1.msra.mxu0 0.0
      %302 = vmatprep.subr.mxu0 0.0
      %303 = vmatpush1.msra.mxu0 0.0
      %304 = vmatprep.subr.mxu0 0.0
      %305 = vmatpush1.msra.mxu0 0.0
      %306 = vmatprep.subr.mxu0 0.0
      %307 = vmatpush1.msra.mxu0 0.0
      %308 = vmatprep.subr.mxu0 0.0
      %309 = vmatpush1.msra.mxu0 0.0
      %310 = vmatprep.subr.mxu0 0.0
      %311 = vmatpush1.msra.mxu0 0.0
      %312 = vmatprep.subr.mxu0 0.0
      %313 = vmatpush1.msra.mxu0 0.0
      %314 = vmatprep.subr.mxu0 0.0
      %315 = vmatpush1.msra.mxu0 0.0
      %316 = vmatprep.mubr.f32.mxu0 0.0
      %317 = vmatmul.mubr.f32.gmra.mrb[0].mxu0 %v248
      %v318 = vpop.f32.mrb[0].mxu0
      %v319 = vadd.f32 %v244, %v318
      %v320 = vpop.f32.mrb[0].mxu0
      %321 = vdwg.mxu0
      %v322 = vld [vmem:[%s1 + $0x10] sm:$0xff]
      %323 = vrot.lane.b32.xlu0 %v164, 126
      %v324 = vpop.permute.xlu0 %323
      %v326 = vsel %vm170, %v322, 0
      %v328 = vsel %vm174, %v324, 0
      %330 = vmatprep.subr.mxu0 0.0
      %331 = vmatpush1.msra.mxu0 %v328
      %332 = vmatprep.subr.mxu0 0.0
      %333 = vmatpush1.msra.mxu0 0.0
      %334 = vmatprep.subr.mxu0 0.0
      %335 = vmatpush1.msra.mxu0 0.0
      %336 = vmatprep.subr.mxu0 0.0
      %337 = vmatpush1.msra.mxu0 0.0
      %338 = vmatprep.subr.mxu0 0.0
      %339 = vmatpush1.msra.mxu0 0.0
      %340 = vmatprep.subr.mxu0 0.0
      %341 = vmatpush1.msra.mxu0 0.0
      %342 = vmatprep.subr.mxu0 0.0
      %343 = vmatpush1.msra.mxu0 0.0
      %344 = vmatprep.subr.mxu0 0.0
      %345 = vmatpush1.msra.mxu0 0.0
      %346 = vmatprep.subr.mxu0 0.0
      %347 = vmatpush1.msra.mxu0 0.0
      %348 = vmatprep.subr.mxu0 0.0
      %349 = vmatpush1.msra.mxu0 0.0
      %350 = vmatprep.subr.mxu0 0.0
      %351 = vmatpush1.msra.mxu0 0.0
      %352 = vmatprep.subr.mxu0 0.0
      %353 = vmatpush1.msra.mxu0 0.0
      %354 = vmatprep.subr.mxu0 0.0
      %355 = vmatpush1.msra.mxu0 0.0
      %356 = vmatprep.subr.mxu0 0.0
      %357 = vmatpush1.msra.mxu0 0.0
      %358 = vmatprep.subr.mxu0 0.0
      %359 = vmatpush1.msra.mxu0 0.0
      %360 = vmatprep.subr.mxu0 0.0
      %361 = vmatpush1.msra.mxu0 0.0
      %362 = vmatprep.subr.mxu0 0.0
      %363 = vmatpush1.msra.mxu0 0.0
      %364 = vmatprep.subr.mxu0 0.0
      %365 = vmatpush1.msra.mxu0 0.0
      %366 = vmatprep.subr.mxu0 0.0
      %367 = vmatpush1.msra.mxu0 0.0
      %368 = vmatprep.subr.mxu0 0.0
      %369 = vmatpush1.msra.mxu0 0.0
      %370 = vmatprep.subr.mxu0 0.0
      %371 = vmatpush1.msra.mxu0 0.0
      %372 = vmatprep.subr.mxu0 0.0
      %373 = vmatpush1.msra.mxu0 0.0
      %374 = vmatprep.subr.mxu0 0.0
      %375 = vmatpush1.msra.mxu0 0.0
      %376 = vmatprep.subr.mxu0 0.0
      %377 = vmatpush1.msra.mxu0 0.0
      %378 = vmatprep.subr.mxu0 0.0
      %379 = vmatpush1.msra.mxu0 0.0
      %380 = vmatprep.subr.mxu0 0.0
      %381 = vmatpush1.msra.mxu0 0.0
      %382 = vmatprep.subr.mxu0 0.0
      %383 = vmatpush1.msra.mxu0 0.0
      %384 = vmatprep.subr.mxu0 0.0
      %385 = vmatpush1.msra.mxu0 0.0
      %386 = vmatprep.subr.mxu0 0.0
      %387 = vmatpush1.msra.mxu0 0.0
      %388 = vmatprep.subr.mxu0 0.0
      %389 = vmatpush1.msra.mxu0 0.0
      %390 = vmatprep.subr.mxu0 0.0
      %391 = vmatpush1.msra.mxu0 0.0
      %392 = vmatprep.subr.mxu0 0.0
      %393 = vmatpush1.msra.mxu0 0.0
      %394 = vmatprep.mubr.f32.mxu0 0.0
      %395 = vmatmul.mubr.f32.gmra.mrb[0].mxu0 %v326
      %v396 = vpop.f32.mrb[0].mxu0
      %v397 = vadd.f32 0.0, %v396
      %v398 = vpop.f32.mrb[0].mxu0
      %399 = vdwg.mxu0
      %v400 = vadd.f32 %v319, %v397
      %v401 = vld [vmem:[%s1 + $0x18] sm:$0xff]
      %402 = vrot.lane.b32.xlu0 %v164, 125
      %v403 = vpop.permute.xlu0 %402
      %v405 = vsel %vm170, %v401, 0
      %v407 = vsel %vm174, %v403, 0
      %409 = vmatprep.subr.mxu0 0.0
      %410 = vmatpush1.msra.mxu0 %v407
      %411 = vmatprep.subr.mxu0 0.0
      %412 = vmatpush1.msra.mxu0 0.0
      %413 = vmatprep.subr.mxu0 0.0
      %414 = vmatpush1.msra.mxu0 0.0
      %415 = vmatprep.subr.mxu0 0.0
      %416 = vmatpush1.msra.mxu0 0.0
      %417 = vmatprep.subr.mxu0 0.0
      %418 = vmatpush1.msra.mxu0 0.0
      %419 = vmatprep.subr.mxu0 0.0
      %420 = vmatpush1.msra.mxu0 0.0
      %421 = vmatprep.subr.mxu0 0.0
      %422 = vmatpush1.msra.mxu0 0.0
      %423 = vmatprep.subr.mxu0 0.0
      %424 = vmatpush1.msra.mxu0 0.0
      %425 = vmatprep.subr.mxu0 0.0
      %426 = vmatpush1.msra.mxu0 0.0
      %427 = vmatprep.subr.mxu0 0.0
      %428 = vmatpush1.msra.mxu0 0.0
      %429 = vmatprep.subr.mxu0 0.0
      %430 = vmatpush1.msra.mxu0 0.0
      %431 = vmatprep.subr.mxu0 0.0
      %432 = vmatpush1.msra.mxu0 0.0
      %433 = vmatprep.subr.mxu0 0.0
      %434 = vmatpush1.msra.mxu0 0.0
      %435 = vmatprep.subr.mxu0 0.0
      %436 = vmatpush1.msra.mxu0 0.0
      %437 = vmatprep.subr.mxu0 0.0
      %438 = vmatpush1.msra.mxu0 0.0
      %439 = vmatprep.subr.mxu0 0.0
      %440 = vmatpush1.msra.mxu0 0.0
      %441 = vmatprep.subr.mxu0 0.0
      %442 = vmatpush1.msra.mxu0 0.0
      %443 = vmatprep.subr.mxu0 0.0
      %444 = vmatpush1.msra.mxu0 0.0
      %445 = vmatprep.subr.mxu0 0.0
      %446 = vmatpush1.msra.mxu0 0.0
      %447 = vmatprep.subr.mxu0 0.0
      %448 = vmatpush1.msra.mxu0 0.0
      %449 = vmatprep.subr.mxu0 0.0
      %450 = vmatpush1.msra.mxu0 0.0
      %451 = vmatprep.subr.mxu0 0.0
      %452 = vmatpush1.msra.mxu0 0.0
      %453 = vmatprep.subr.mxu0 0.0
      %454 = vmatpush1.msra.mxu0 0.0
      %455 = vmatprep.subr.mxu0 0.0
      %456 = vmatpush1.msra.mxu0 0.0
      %457 = vmatprep.subr.mxu0 0.0
      %458 = vmatpush1.msra.mxu0 0.0
      %459 = vmatprep.subr.mxu0 0.0
      %460 = vmatpush1.msra.mxu0 0.0
      %461 = vmatprep.subr.mxu0 0.0
      %462 = vmatpush1.msra.mxu0 0.0
      %463 = vmatprep.subr.mxu0 0.0
      %464 = vmatpush1.msra.mxu0 0.0
      %465 = vmatprep.subr.mxu0 0.0
      %466 = vmatpush1.msra.mxu0 0.0
      %467 = vmatprep.subr.mxu0 0.0
      %468 = vmatpush1.msra.mxu0 0.0
      %469 = vmatprep.subr.mxu0 0.0
      %470 = vmatpush1.msra.mxu0 0.0
      %471 = vmatprep.subr.mxu0 0.0
      %472 = vmatpush1.msra.mxu0 0.0
      %473 = vmatprep.mubr.f32.mxu0 0.0
      %474 = vmatmul.mubr.f32.gmra.mrb[0].mxu0 %v405
      %v475 = vpop.f32.mrb[0].mxu0
      %v476 = vadd.f32 0.0, %v475
      %v477 = vpop.f32.mrb[0].mxu0
      %478 = vdwg.mxu0
      %v479 = vadd.f32 %v400, %v476
      %v480 = vld [vmem:[%s1 + $0x20] sm:$0xff]
      %481 = vrot.lane.b32.xlu0 %v164, 124
      %v482 = vpop.permute.xlu0 %481
      %v484 = vsel %vm170, %v480, 0
      %v486 = vsel %vm174, %v482, 0
      %488 = vmatprep.subr.mxu0 0.0
      %489 = vmatpush1.msra.mxu0 %v486
      %490 = vmatprep.subr.mxu0 0.0
      %491 = vmatpush1.msra.mxu0 0.0
      %492 = vmatprep.subr.mxu0 0.0
      %493 = vmatpush1.msra.mxu0 0.0
      %494 = vmatprep.subr.mxu0 0.0
      %495 = vmatpush1.msra.mxu0 0.0
      %496 = vmatprep.subr.mxu0 0.0
      %497 = vmatpush1.msra.mxu0 0.0
      %498 = vmatprep.subr.mxu0 0.0
      %499 = vmatpush1.msra.mxu0 0.0
      %500 = vmatprep.subr.mxu0 0.0
      %501 = vmatpush1.msra.mxu0 0.0
      %502 = vmatprep.subr.mxu0 0.0
      %503 = vmatpush1.msra.mxu0 0.0
      %504 = vmatprep.subr.mxu0 0.0
      %505 = vmatpush1.msra.mxu0 0.0
      %506 = vmatprep.subr.mxu0 0.0
      %507 = vmatpush1.msra.mxu0 0.0
      %508 = vmatprep.subr.mxu0 0.0
      %509 = vmatpush1.msra.mxu0 0.0
      %510 = vmatprep.subr.mxu0 0.0
      %511 = vmatpush1.msra.mxu0 0.0
      %512 = vmatprep.subr.mxu0 0.0
      %513 = vmatpush1.msra.mxu0 0.0
      %514 = vmatprep.subr.mxu0 0.0
      %515 = vmatpush1.msra.mxu0 0.0
      %516 = vmatprep.subr.mxu0 0.0
      %517 = vmatpush1.msra.mxu0 0.0
      %518 = vmatprep.subr.mxu0 0.0
      %519 = vmatpush1.msra.mxu0 0.0
      %520 = vmatprep.subr.mxu0 0.0
      %521 = vmatpush1.msra.mxu0 0.0
      %522 = vmatprep.subr.mxu0 0.0
      %523 = vmatpush1.msra.mxu0 0.0
      %524 = vmatprep.subr.mxu0 0.0
      %525 = vmatpush1.msra.mxu0 0.0
      %526 = vmatprep.subr.mxu0 0.0
      %527 = vmatpush1.msra.mxu0 0.0
      %528 = vmatprep.subr.mxu0 0.0
      %529 = vmatpush1.msra.mxu0 0.0
      %530 = vmatprep.subr.mxu0 0.0
      %531 = vmatpush1.msra.mxu0 0.0
      %532 = vmatprep.subr.mxu0 0.0
      %533 = vmatpush1.msra.mxu0 0.0
      %534 = vmatprep.subr.mxu0 0.0
      %535 = vmatpush1.msra.mxu0 0.0
      %536 = vmatprep.subr.mxu0 0.0
      %537 = vmatpush1.msra.mxu0 0.0
      %538 = vmatprep.subr.mxu0 0.0
      %539 = vmatpush1.msra.mxu0 0.0
      %540 = vmatprep.subr.mxu0 0.0
      %541 = vmatpush1.msra.mxu0 0.0
      %542 = vmatprep.subr.mxu0 0.0
      %543 = vmatpush1.msra.mxu0 0.0
      %544 = vmatprep.subr.mxu0 0.0
      %545 = vmatpush1.msra.mxu0 0.0
      %546 = vmatprep.subr.mxu0 0.0
      %547 = vmatpush1.msra.mxu0 0.0
      %548 = vmatprep.subr.mxu0 0.0
      %549 = vmatpush1.msra.mxu0 0.0
      %550 = vmatprep.subr.mxu0 0.0
      %551 = vmatpush1.msra.mxu0 0.0
      %552 = vmatprep.mubr.f32.mxu0 0.0
      %553 = vmatmul.mubr.f32.gmra.mrb[0].mxu0 %v484
      %v554 = vpop.f32.mrb[0].mxu0
      %v555 = vadd.f32 0.0, %v554
      %v556 = vpop.f32.mrb[0].mxu0
      %557 = vdwg.mxu0
      %v558 = vadd.f32 %v479, %v555
      %v559 = vld [vmem:[%s1 + $0x28] sm:$0xff]
      %561 = vset.pattern.permute.xlu0 0
      %562 = vperm.xlu0 %561, %v559
      %v563 = vpop.permute.xlu0 %562
      %v565 = vadd.f32 %v558, %v563
      %vm566 = vcmp.gt.f32.partialorder %v565, 0.0
      %v567 = vmin.f32 %v565, 0.0
      %v568 = vmul.f32 %v567, 1.442695
      %v569 = vpow.pop %v568
      %v570 = vsub.f32 %v569, 1.0
      %v571 = vmul.f32 %v570, 0.1
      %v572 = vsel %vm566, %v565, %v571
      %vm573 = vcmask 121856
      %574 = vst.msk [vmem:[#allocation2] sm:$0xff] %vm573, 0.0
      %vm575 = vcmask 195584
      %v577 = vsel %vm575, %v572, 0
      %579 = vmatprep.subr.mxu0 0.0
      %580 = vmatpush1.msra.mxu0 %v161
      %581 = vmatprep.subr.mxu0 0.0
      %582 = vmatpush1.msra.mxu0 %v162
      %583 = vmatprep.subr.mxu0 0.0
      %584 = vmatpush1.msra.mxu0 %v163
      %585 = vmatprep.subr.mxu0 0.0
      %586 = vmatpush1.msra.mxu0 0.0
      %587 = vmatprep.subr.mxu0 0.0
      %588 = vmatpush1.msra.mxu0 0.0
      %589 = vmatprep.subr.mxu0 0.0
      %590 = vmatpush1.msra.mxu0 0.0
      %591 = vmatprep.subr.mxu0 0.0
      %592 = vmatpush1.msra.mxu0 0.0
      %593 = vmatprep.subr.mxu0 0.0
      %594 = vmatpush1.msra.mxu0 0.0
      %595 = vmatprep.subr.mxu0 0.0
      %596 = vmatpush1.msra.mxu0 0.0
      %597 = vmatprep.subr.mxu0 0.0
      %598 = vmatpush1.msra.mxu0 0.0
      %599 = vmatprep.subr.mxu0 0.0
      %600 = vmatpush1.msra.mxu0 0.0
      %601 = vmatprep.subr.mxu0 0.0
      %602 = vmatpush1.msra.mxu0 0.0
      %603 = vmatprep.subr.mxu0 0.0
      %604 = vmatpush1.msra.mxu0 0.0
      %605 = vmatprep.subr.mxu0 0.0
      %606 = vmatpush1.msra.mxu0 0.0
      %607 = vmatprep.subr.mxu0 0.0
      %608 = vmatpush1.msra.mxu0 0.0
      %609 = vmatprep.subr.mxu0 0.0
      %610 = vmatpush1.msra.mxu0 0.0
      %611 = vmatprep.subr.mxu0 0.0
      %612 = vmatpush1.msra.mxu0 0.0
      %613 = vmatprep.subr.mxu0 0.0
      %614 = vmatpush1.msra.mxu0 0.0
      %615 = vmatprep.subr.mxu0 0.0
      %616 = vmatpush1.msra.mxu0 0.0
      %617 = vmatprep.subr.mxu0 0.0
      %618 = vmatpush1.msra.mxu0 0.0
      %619 = vmatprep.subr.mxu0 0.0
      %620 = vmatpush1.msra.mxu0 0.0
      %621 = vmatprep.subr.mxu0 0.0
      %622 = vmatpush1.msra.mxu0 0.0
      %623 = vmatprep.subr.mxu0 0.0
      %624 = vmatpush1.msra.mxu0 0.0
      %625 = vmatprep.subr.mxu0 0.0
      %626 = vmatpush1.msra.mxu0 0.0
      %627 = vmatprep.subr.mxu0 0.0
      %628 = vmatpush1.msra.mxu0 0.0
      %629 = vmatprep.subr.mxu0 0.0
      %630 = vmatpush1.msra.mxu0 0.0
      %631 = vmatprep.subr.mxu0 0.0
      %632 = vmatpush1.msra.mxu0 0.0
      %633 = vmatprep.subr.mxu0 0.0
      %634 = vmatpush1.msra.mxu0 0.0
      %635 = vmatprep.subr.mxu0 0.0
      %636 = vmatpush1.msra.mxu0 0.0
      %637 = vmatprep.subr.mxu0 0.0
      %638 = vmatpush1.msra.mxu0 0.0
      %639 = vmatprep.subr.mxu0 0.0
      %640 = vmatpush1.msra.mxu0 0.0
      %641 = vmatprep.subr.mxu0 0.0
      %642 = vmatpush1.msra.mxu0 0.0
      %643 = vmatprep.mubr.f32.mxu0 0.0
      %644 = vmatmul.mubr.f32.gmra.mrb[0].mxu0 %v577
      %v645 = vpop.f32.mrb[0].mxu0
      %v646 = vadd.f32 0.0, %v645
      %v647 = vpop.f32.mrb[0].mxu0
      %648 = vdwg.mxu0
      %650 = vrot.lane.b32.xlu0 %v646, 2
      %v651 = vpop.permute.xlu0 %650
      %vm653 = vcmask 105488
      %654 = vst.msk [vmem:[#allocation2] sm:$0xff] %vm653, %v651
      %v655 = vld [vmem:[#allocation2] sm:$0xff]
      %v656 = vld [vmem:[%s1 + $0x30] sm:$0xff]
      %658 = vset.pattern.permute.xlu0 0
      %659 = vperm.xlu0 %658, %v656
      %v660 = vpop.permute.xlu0 %659
      %v662 = vmul.f32 %v655, %v660
      %663 = vset.pattern.permute.xlu0 1
      %664 = vperm.xlu0 %663, %v656
      %v665 = vpop.permute.xlu0 %664
      %v667 = vmul.f32 %v655, %v665
      %669 = vrot.lane.b32.xlu0 %v667, 127
      %v670 = vpop.permute.xlu0 %669
      %v672 = vadd.f32 %v662, %v670
      %673 = vset.pattern.permute.xlu0 2
      %674 = vperm.xlu0 %673, %v656
      %v675 = vpop.permute.xlu0 %674
      %v677 = vmul.f32 %v655, %v675
      %679 = vrot.lane.b32.xlu0 %v677, 126
      %v680 = vpop.permute.xlu0 %679
      %v682 = vadd.f32 %v672, %v680
      %683 = vset.pattern.permute.xlu0 3
      %684 = vperm.xlu0 %683, %v656
      %v685 = vpop.permute.xlu0 %684
      %v687 = vmul.f32 %v655, %v685
      %689 = vrot.lane.b32.xlu0 %v687, 125
      %v690 = vpop.permute.xlu0 %689
      %v692 = vadd.f32 %v682, %v690
      %693 = vset.pattern.permute.xlu0 4
      %694 = vperm.xlu0 %693, %v656
      %v695 = vpop.permute.xlu0 %694
      %v697 = vmul.f32 %v655, %v695
      %699 = vrot.lane.b32.xlu0 %v697, 124
      %v700 = vpop.permute.xlu0 %699
      %v702 = vadd.f32 %v692, %v700
      %v703 = vld [vmem:[%s1 + $0x38] sm:$0xff]
      %705 = vset.pattern.permute.xlu0 0
      %706 = vperm.xlu0 %705, %v703
      %v707 = vpop.permute.xlu0 %706
      %v709 = vadd.f32 %v702, %v707
      %vm710 = vcmp.gt.f32.partialorder %v709, 0.0
      %v711 = vmin.f32 %v709, 0.0
      %v712 = vmul.f32 %v711, 1.442695
      %v713 = vpow.pop %v712
      %v714 = vsub.f32 %v713, 1.0
      %v715 = vmul.f32 %v714, 0.1
      %v716 = vsel %vm710, %v709, %v715
      %718 = vrot.lane.b32.xlu0 %v716, 2
      %v719 = vpop.permute.xlu0 %718
      %v721 = vadd.f32 %v655, %v719
      %722 = vst.msk [vmem:[#allocation2] sm:$0xff] %vm653, %v721
      %v723 = vld [vmem:[#allocation2] sm:$0xff]
      %v724 = vld [vmem:[%s1 + $0x40] sm:$0xff]
      %v725 = vld [vmem:[%s1 + $0x48] sm:$0xff]
      %v726 = vld [vmem:[%s1 + $0x50] sm:$0xff]
      %v727 = vld [vmem:[%s1 + $0x58] sm:$0xff]
      %729 = vrot.lane.b32.xlu0 %v723, 127
      %v730 = vpop.permute.xlu0 %729
      %vm732 = vcmask 64512
      %v734 = vsel %vm732, %v726, 0
      %v737 = vsel %vm732, %v727, 0
      %739 = vmatprep.subr.mxu0 0.0
      %740 = vmatpush1.msra.mxu0 %v730
      %741 = vmatprep.subr.mxu0 0.0
      %742 = vmatpush1.msra.mxu0 0.0
      %743 = vmatprep.subr.mxu0 0.0
      %744 = vmatpush1.msra.mxu0 0.0
      %745 = vmatprep.subr.mxu0 0.0
      %746 = vmatpush1.msra.mxu0 0.0
      %747 = vmatprep.subr.mxu0 0.0
      %748 = vmatpush1.msra.mxu0 0.0
      %749 = vmatprep.subr.mxu0 0.0
      %750 = vmatpush1.msra.mxu0 0.0
      %751 = vmatprep.subr.mxu0 0.0
      %752 = vmatpush1.msra.mxu0 0.0
      %753 = vmatprep.subr.mxu0 0.0
      %754 = vmatpush1.msra.mxu0 0.0
      %755 = vmatprep.subr.mxu0 0.0
      %756 = vmatpush1.msra.mxu0 0.0
      %757 = vmatprep.subr.mxu0 0.0
      %758 = vmatpush1.msra.mxu0 0.0
      %759 = vmatprep.subr.mxu0 0.0
      %760 = vmatpush1.msra.mxu0 0.0
      %761 = vmatprep.subr.mxu0 0.0
      %762 = vmatpush1.msra.mxu0 0.0
      %763 = vmatprep.subr.mxu0 0.0
      %764 = vmatpush1.msra.mxu0 0.0
      %765 = vmatprep.subr.mxu0 0.0
      %766 = vmatpush1.msra.mxu0 0.0
      %767 = vmatprep.subr.mxu0 0.0
      %768 = vmatpush1.msra.mxu0 0.0
      %769 = vmatprep.subr.mxu0 0.0
      %770 = vmatpush1.msra.mxu0 0.0
      %771 = vmatprep.subr.mxu0 0.0
      %772 = vmatpush1.msra.mxu0 0.0
      %773 = vmatprep.subr.mxu0 0.0
      %774 = vmatpush1.msra.mxu0 0.0
      %775 = vmatprep.subr.mxu0 0.0
      %776 = vmatpush1.msra.mxu0 0.0
      %777 = vmatprep.subr.mxu0 0.0
      %778 = vmatpush1.msra.mxu0 0.0
      %779 = vmatprep.subr.mxu0 0.0
      %780 = vmatpush1.msra.mxu0 0.0
      %781 = vmatprep.subr.mxu0 0.0
      %782 = vmatpush1.msra.mxu0 0.0
      %783 = vmatprep.subr.mxu0 0.0
      %784 = vmatpush1.msra.mxu0 0.0
      %785 = vmatprep.subr.mxu0 0.0
      %786 = vmatpush1.msra.mxu0 0.0
      %787 = vmatprep.subr.mxu0 0.0
      %788 = vmatpush1.msra.mxu0 0.0
      %789 = vmatprep.subr.mxu0 0.0
      %790 = vmatpush1.msra.mxu0 0.0
      %791 = vmatprep.subr.mxu0 0.0
      %792 = vmatpush1.msra.mxu0 0.0
      %793 = vmatprep.subr.mxu0 0.0
      %794 = vmatpush1.msra.mxu0 0.0
      %795 = vmatprep.subr.mxu0 0.0
      %796 = vmatpush1.msra.mxu0 0.0
      %797 = vmatprep.subr.mxu0 0.0
      %798 = vmatpush1.msra.mxu0 0.0
      %799 = vmatprep.subr.mxu0 0.0
      %800 = vmatpush1.msra.mxu0 0.0
      %801 = vmatprep.subr.mxu0 0.0
      %802 = vmatpush1.msra.mxu0 0.0
      %803 = vmatprep.mubr.f32.mxu0 0.0
      %804 = vmatmul.mubr.f32.gmra.mrb[0].mxu0 %v734
      %v805 = vpop.f32.mrb[0].mxu0
      %v806 = vadd.f32 0.0, %v805
      %v807 = vpop.f32.mrb[0].mxu0
      %808 = vmatprep.mubr.f32.mxu0 0.0
      %809 = vmatmul.mubr.f32.gmra.mrb[0].mxu0 %v737
      %v810 = vpop.f32.mrb[0].mxu0
      %v811 = vadd.f32 0.0, %v810
      %v812 = vpop.f32.mrb[0].mxu0
      %813 = vdwg.mxu0
      %v815 = vsel %vm732, %v724, 0
      %v818 = vsel %vm732, %v725, 0
      %820 = vmatprep.subr.mxu0 0.0
      %821 = vmatpush1.msra.mxu0 %v723
      %822 = vmatprep.subr.mxu0 0.0
      %823 = vmatpush1.msra.mxu0 0.0
      %824 = vmatprep.subr.mxu0 0.0
      %825 = vmatpush1.msra.mxu0 0.0
      %826 = vmatprep.subr.mxu0 0.0
      %827 = vmatpush1.msra.mxu0 0.0
      %828 = vmatprep.subr.mxu0 0.0
      %829 = vmatpush1.msra.mxu0 0.0
      %830 = vmatprep.subr.mxu0 0.0
      %831 = vmatpush1.msra.mxu0 0.0
      %832 = vmatprep.subr.mxu0 0.0
      %833 = vmatpush1.msra.mxu0 0.0
      %834 = vmatprep.subr.mxu0 0.0
      %835 = vmatpush1.msra.mxu0 0.0
      %836 = vmatprep.subr.mxu0 0.0
      %837 = vmatpush1.msra.mxu0 0.0
      %838 = vmatprep.subr.mxu0 0.0
      %839 = vmatpush1.msra.mxu0 0.0
      %840 = vmatprep.subr.mxu0 0.0
      %841 = vmatpush1.msra.mxu0 0.0
      %842 = vmatprep.subr.mxu0 0.0
      %843 = vmatpush1.msra.mxu0 0.0
      %844 = vmatprep.subr.mxu0 0.0
      %845 = vmatpush1.msra.mxu0 0.0
      %846 = vmatprep.subr.mxu0 0.0
      %847 = vmatpush1.msra.mxu0 0.0
      %848 = vmatprep.subr.mxu0 0.0
      %849 = vmatpush1.msra.mxu0 0.0
      %850 = vmatprep.subr.mxu0 0.0
      %851 = vmatpush1.msra.mxu0 0.0
      %852 = vmatprep.subr.mxu0 0.0
      %853 = vmatpush1.msra.mxu0 0.0
      %854 = vmatprep.subr.mxu0 0.0
      %855 = vmatpush1.msra.mxu0 0.0
      %856 = vmatprep.subr.mxu0 0.0
      %857 = vmatpush1.msra.mxu0 0.0
      %858 = vmatprep.subr.mxu0 0.0
      %859 = vmatpush1.msra.mxu0 0.0
      %860 = vmatprep.subr.mxu0 0.0
      %861 = vmatpush1.msra.mxu0 0.0
      %862 = vmatprep.subr.mxu0 0.0
      %863 = vmatpush1.msra.mxu0 0.0
      %864 = vmatprep.subr.mxu0 0.0
      %865 = vmatpush1.msra.mxu0 0.0
      %866 = vmatprep.subr.mxu0 0.0
      %867 = vmatpush1.msra.mxu0 0.0
      %868 = vmatprep.subr.mxu0 0.0
      %869 = vmatpush1.msra.mxu0 0.0
      %870 = vmatprep.subr.mxu0 0.0
      %871 = vmatpush1.msra.mxu0 0.0
      %872 = vmatprep.subr.mxu0 0.0
      %873 = vmatpush1.msra.mxu0 0.0
      %874 = vmatprep.subr.mxu0 0.0
      %875 = vmatpush1.msra.mxu0 0.0
      %876 = vmatprep.subr.mxu0 0.0
      %877 = vmatpush1.msra.mxu0 0.0
      %878 = vmatprep.subr.mxu0 0.0
      %879 = vmatpush1.msra.mxu0 0.0
      %880 = vmatprep.subr.mxu0 0.0
      %881 = vmatpush1.msra.mxu0 0.0
      %882 = vmatprep.subr.mxu0 0.0
      %883 = vmatpush1.msra.mxu0 0.0
      %884 = vmatprep.mubr.f32.mxu0 0.0
      %885 = vmatmul.mubr.f32.gmra.mrb[0].mxu0 %v815
      %v886 = vpop.f32.mrb[0].mxu0
      %v887 = vadd.f32 %v806, %v886
      %v888 = vpop.f32.mrb[0].mxu0
      %889 = vmatprep.mubr.f32.mxu0 0.0
      %890 = vmatmul.mubr.f32.gmra.mrb[0].mxu0 %v818
      %v891 = vpop.f32.mrb[0].mxu0
      %v892 = vadd.f32 %v811, %v891
      %v893 = vpop.f32.mrb[0].mxu0
      %894 = vdwg.mxu0
      %v895 = vld [vmem:[%s1 + $0x60] sm:$0xff]
      %v896 = vld [vmem:[%s1 + $0x68] sm:$0xff]
      %897 = vrot.lane.b32.xlu0 %v723, 126
      %v898 = vpop.permute.xlu0 %897
      %v901 = vsel %vm732, %v895, 0
      %v904 = vsel %vm732, %v896, 0
      %906 = vmatprep.subr.mxu0 0.0
      %907 = vmatpush1.msra.mxu0 %v898
      %908 = vmatprep.subr.mxu0 0.0
      %909 = vmatpush1.msra.mxu0 0.0
      %910 = vmatprep.subr.mxu0 0.0
      %911 = vmatpush1.msra.mxu0 0.0
      %912 = vmatprep.subr.mxu0 0.0
      %913 = vmatpush1.msra.mxu0 0.0
      %914 = vmatprep.subr.mxu0 0.0
      %915 = vmatpush1.msra.mxu0 0.0
      %916 = vmatprep.subr.mxu0 0.0
      %917 = vmatpush1.msra.mxu0 0.0
      %918 = vmatprep.subr.mxu0 0.0
      %919 = vmatpush1.msra.mxu0 0.0
      %920 = vmatprep.subr.mxu0 0.0
      %921 = vmatpush1.msra.mxu0 0.0
      %922 = vmatprep.subr.mxu0 0.0
      %923 = vmatpush1.msra.mxu0 0.0
      %924 = vmatprep.subr.mxu0 0.0
      %925 = vmatpush1.msra.mxu0 0.0
      %926 = vmatprep.subr.mxu0 0.0
      %927 = vmatpush1.msra.mxu0 0.0
      %928 = vmatprep.subr.mxu0 0.0
      %929 = vmatpush1.msra.mxu0 0.0
      %930 = vmatprep.subr.mxu0 0.0
      %931 = vmatpush1.msra.mxu0 0.0
      %932 = vmatprep.subr.mxu0 0.0
      %933 = vmatpush1.msra.mxu0 0.0
      %934 = vmatprep.subr.mxu0 0.0
      %935 = vmatpush1.msra.mxu0 0.0
      %936 = vmatprep.subr.mxu0 0.0
      %937 = vmatpush1.msra.mxu0 0.0
      %938 = vmatprep.subr.mxu0 0.0
      %939 = vmatpush1.msra.mxu0 0.0
      %940 = vmatprep.subr.mxu0 0.0
      %941 = vmatpush1.msra.mxu0 0.0
      %942 = vmatprep.subr.mxu0 0.0
      %943 = vmatpush1.msra.mxu0 0.0
      %944 = vmatprep.subr.mxu0 0.0
      %945 = vmatpush1.msra.mxu0 0.0
      %946 = vmatprep.subr.mxu0 0.0
      %947 = vmatpush1.msra.mxu0 0.0
      %948 = vmatprep.subr.mxu0 0.0
      %949 = vmatpush1.msra.mxu0 0.0
      %950 = vmatprep.subr.mxu0 0.0
      %951 = vmatpush1.msra.mxu0 0.0
      %952 = vmatprep.subr.mxu0 0.0
      %953 = vmatpush1.msra.mxu0 0.0
      %954 = vmatprep.subr.mxu0 0.0
      %955 = vmatpush1.msra.mxu0 0.0
      %956 = vmatprep.subr.mxu0 0.0
      %957 = vmatpush1.msra.mxu0 0.0
      %958 = vmatprep.subr.mxu0 0.0
      %959 = vmatpush1.msra.mxu0 0.0
      %960 = vmatprep.subr.mxu0 0.0
      %961 = vmatpush1.msra.mxu0 0.0
      %962 = vmatprep.subr.mxu0 0.0
      %963 = vmatpush1.msra.mxu0 0.0
      %964 = vmatprep.subr.mxu0 0.0
      %965 = vmatpush1.msra.mxu0 0.0
      %966 = vmatprep.subr.mxu0 0.0
      %967 = vmatpush1.msra.mxu0 0.0
      %968 = vmatprep.subr.mxu0 0.0
      %969 = vmatpush1.msra.mxu0 0.0
      %970 = vmatprep.mubr.f32.mxu0 0.0
      %971 = vmatmul.mubr.f32.gmra.mrb[0].mxu0 %v901
      %v972 = vpop.f32.mrb[0].mxu0
      %v973 = vadd.f32 0.0, %v972
      %v974 = vpop.f32.mrb[0].mxu0
      %975 = vmatprep.mubr.f32.mxu0 0.0
      %976 = vmatmul.mubr.f32.gmra.mrb[0].mxu0 %v904
      %v977 = vpop.f32.mrb[0].mxu0
      %v978 = vadd.f32 0.0, %v977
      %v979 = vpop.f32.mrb[0].mxu0
      %980 = vdwg.mxu0
      %v981 = vadd.f32 %v887, %v973
      %v982 = vadd.f32 %v892, %v978
      %v983 = vld [vmem:[%s1 + $0x70] sm:$0xff]
      %v984 = vld [vmem:[%s1 + $0x78] sm:$0xff]
      %985 = vrot.lane.b32.xlu0 %v723, 125
      %v986 = vpop.permute.xlu0 %985
      %v989 = vsel %vm732, %v983, 0
      %v992 = vsel %vm732, %v984, 0
      %994 = vmatprep.subr.mxu0 0.0
      %995 = vmatpush1.msra.mxu0 %v986
      %996 = vmatprep.subr.mxu0 0.0
      %997 = vmatpush1.msra.mxu0 0.0
      %998 = vmatprep.subr.mxu0 0.0
      %999 = vmatpush1.msra.mxu0 0.0
      %1000 = vmatprep.subr.mxu0 0.0
      %1001 = vmatpush1.msra.mxu0 0.0
      %1002 = vmatprep.subr.mxu0 0.0
      %1003 = vmatpush1.msra.mxu0 0.0
      %1004 = vmatprep.subr.mxu0 0.0
      %1005 = vmatpush1.msra.mxu0 0.0
      %1006 = vmatprep.subr.mxu0 0.0
      %1007 = vmatpush1.msra.mxu0 0.0
      %1008 = vmatprep.subr.mxu0 0.0
      %1009 = vmatpush1.msra.mxu0 0.0
      %1010 = vmatprep.subr.mxu0 0.0
      %1011 = vmatpush1.msra.mxu0 0.0
      %1012 = vmatprep.subr.mxu0 0.0
      %1013 = vmatpush1.msra.mxu0 0.0
      %1014 = vmatprep.subr.mxu0 0.0
      %1015 = vmatpush1.msra.mxu0 0.0
      %1016 = vmatprep.subr.mxu0 0.0
      %1017 = vmatpush1.msra.mxu0 0.0
      %1018 = vmatprep.subr.mxu0 0.0
      %1019 = vmatpush1.msra.mxu0 0.0
      %1020 = vmatprep.subr.mxu0 0.0
      %1021 = vmatpush1.msra.mxu0 0.0
      %1022 = vmatprep.subr.mxu0 0.0
      %1023 = vmatpush1.msra.mxu0 0.0
      %1024 = vmatprep.subr.mxu0 0.0
      %1025 = vmatpush1.msra.mxu0 0.0
      %1026 = vmatprep.subr.mxu0 0.0
      %1027 = vmatpush1.msra.mxu0 0.0
      %1028 = vmatprep.subr.mxu0 0.0
      %1029 = vmatpush1.msra.mxu0 0.0
      %1030 = vmatprep.subr.mxu0 0.0
      %1031 = vmatpush1.msra.mxu0 0.0
      %1032 = vmatprep.subr.mxu0 0.0
      %1033 = vmatpush1.msra.mxu0 0.0
      %1034 = vmatprep.subr.mxu0 0.0
      %1035 = vmatpush1.msra.mxu0 0.0
      %1036 = vmatprep.subr.mxu0 0.0
      %1037 = vmatpush1.msra.mxu0 0.0
      %1038 = vmatprep.subr.mxu0 0.0
      %1039 = vmatpush1.msra.mxu0 0.0
      %1040 = vmatprep.subr.mxu0 0.0
      %1041 = vmatpush1.msra.mxu0 0.0
      %1042 = vmatprep.subr.mxu0 0.0
      %1043 = vmatpush1.msra.mxu0 0.0
      %1044 = vmatprep.subr.mxu0 0.0
      %1045 = vmatpush1.msra.mxu0 0.0
      %1046 = vmatprep.subr.mxu0 0.0
      %1047 = vmatpush1.msra.mxu0 0.0
      %1048 = vmatprep.subr.mxu0 0.0
      %1049 = vmatpush1.msra.mxu0 0.0
      %1050 = vmatprep.subr.mxu0 0.0
      %1051 = vmatpush1.msra.mxu0 0.0
      %1052 = vmatprep.subr.mxu0 0.0
      %1053 = vmatpush1.msra.mxu0 0.0
      %1054 = vmatprep.subr.mxu0 0.0
      %1055 = vmatpush1.msra.mxu0 0.0
      %1056 = vmatprep.subr.mxu0 0.0
      %1057 = vmatpush1.msra.mxu0 0.0
      %1058 = vmatprep.mubr.f32.mxu0 0.0
      %1059 = vmatmul.mubr.f32.gmra.mrb[0].mxu0 %v989
      %v1060 = vpop.f32.mrb[0].mxu0
      %v1061 = vadd.f32 0.0, %v1060
      %v1062 = vpop.f32.mrb[0].mxu0
      %1063 = vmatprep.mubr.f32.mxu0 0.0
      %1064 = vmatmul.mubr.f32.gmra.mrb[0].mxu0 %v992
      %v1065 = vpop.f32.mrb[0].mxu0
      %v1066 = vadd.f32 0.0, %v1065
      %v1067 = vpop.f32.mrb[0].mxu0
      %1068 = vdwg.mxu0
      %v1069 = vadd.f32 %v981, %v1061
      %v1070 = vadd.f32 %v982, %v1066
      %v1071 = vld [vmem:[%s1 + $0x80] sm:$0xff]
      %v1072 = vld [vmem:[%s1 + $0x88] sm:$0xff]
      %1073 = vrot.lane.b32.xlu0 %v723, 124
      %v1074 = vpop.permute.xlu0 %1073
      %v1077 = vsel %vm732, %v1071, 0
      %v1080 = vsel %vm732, %v1072, 0
      %1082 = vmatprep.subr.mxu0 0.0
      %1083 = vmatpush1.msra.mxu0 %v1074
      %1084 = vmatprep.subr.mxu0 0.0
      %1085 = vmatpush1.msra.mxu0 0.0
      %1086 = vmatprep.subr.mxu0 0.0
      %1087 = vmatpush1.msra.mxu0 0.0
      %1088 = vmatprep.subr.mxu0 0.0
      %1089 = vmatpush1.msra.mxu0 0.0
      %1090 = vmatprep.subr.mxu0 0.0
      %1091 = vmatpush1.msra.mxu0 0.0
      %1092 = vmatprep.subr.mxu0 0.0
      %1093 = vmatpush1.msra.mxu0 0.0
      %1094 = vmatprep.subr.mxu0 0.0
      %1095 = vmatpush1.msra.mxu0 0.0
      %1096 = vmatprep.subr.mxu0 0.0
      %1097 = vmatpush1.msra.mxu0 0.0
      %1098 = vmatprep.subr.mxu0 0.0
      %1099 = vmatpush1.msra.mxu0 0.0
      %1100 = vmatprep.subr.mxu0 0.0
      %1101 = vmatpush1.msra.mxu0 0.0
      %1102 = vmatprep.subr.mxu0 0.0
      %1103 = vmatpush1.msra.mxu0 0.0
      %1104 = vmatprep.subr.mxu0 0.0
      %1105 = vmatpush1.msra.mxu0 0.0
      %1106 = vmatprep.subr.mxu0 0.0
      %1107 = vmatpush1.msra.mxu0 0.0
      %1108 = vmatprep.subr.mxu0 0.0
      %1109 = vmatpush1.msra.mxu0 0.0
      %1110 = vmatprep.subr.mxu0 0.0
      %1111 = vmatpush1.msra.mxu0 0.0
      %1112 = vmatprep.subr.mxu0 0.0
      %1113 = vmatpush1.msra.mxu0 0.0
      %1114 = vmatprep.subr.mxu0 0.0
      %1115 = vmatpush1.msra.mxu0 0.0
      %1116 = vmatprep.subr.mxu0 0.0
      %1117 = vmatpush1.msra.mxu0 0.0
      %1118 = vmatprep.subr.mxu0 0.0
      %1119 = vmatpush1.msra.mxu0 0.0
      %1120 = vmatprep.subr.mxu0 0.0
      %1121 = vmatpush1.msra.mxu0 0.0
      %1122 = vmatprep.subr.mxu0 0.0
      %1123 = vmatpush1.msra.mxu0 0.0
      %1124 = vmatprep.subr.mxu0 0.0
      %1125 = vmatpush1.msra.mxu0 0.0
      %1126 = vmatprep.subr.mxu0 0.0
      %1127 = vmatpush1.msra.mxu0 0.0
      %1128 = vmatprep.subr.mxu0 0.0
      %1129 = vmatpush1.msra.mxu0 0.0
      %1130 = vmatprep.subr.mxu0 0.0
      %1131 = vmatpush1.msra.mxu0 0.0
      %1132 = vmatprep.subr.mxu0 0.0
      %1133 = vmatpush1.msra.mxu0 0.0
      %1134 = vmatprep.subr.mxu0 0.0
      %1135 = vmatpush1.msra.mxu0 0.0
      %1136 = vmatprep.subr.mxu0 0.0
      %1137 = vmatpush1.msra.mxu0 0.0
      %1138 = vmatprep.subr.mxu0 0.0
      %1139 = vmatpush1.msra.mxu0 0.0
      %1140 = vmatprep.subr.mxu0 0.0
      %1141 = vmatpush1.msra.mxu0 0.0
      %1142 = vmatprep.subr.mxu0 0.0
      %1143 = vmatpush1.msra.mxu0 0.0
      %1144 = vmatprep.subr.mxu0 0.0
      %1145 = vmatpush1.msra.mxu0 0.0
      %1146 = vmatprep.mubr.f32.mxu0 0.0
      %1147 = vmatmul.mubr.f32.gmra.mrb[0].mxu0 %v1077
      %v1148 = vpop.f32.mrb[0].mxu0
      %v1149 = vadd.f32 0.0, %v1148
      %v1150 = vpop.f32.mrb[0].mxu0
      %1151 = vmatprep.mubr.f32.mxu0 0.0
      %1152 = vmatmul.mubr.f32.gmra.mrb[0].mxu0 %v1080
      %v1153 = vpop.f32.mrb[0].mxu0
      %v1154 = vadd.f32 0.0, %v1153
      %v1155 = vpop.f32.mrb[0].mxu0
      %1156 = vdwg.mxu0
      %v1157 = vadd.f32 %v1069, %v1149
      %v1158 = vadd.f32 %v1070, %v1154
      %v1159 = vld [vmem:[%s1 + $0x90] sm:$0xff]
      %v1160 = vld [vmem:[%s1 + $0x98] sm:$0xff]
      %1162 = vset.pattern.permute.xlu0 0
      %1163 = vperm.xlu0 %1162, %v1159
      %v1164 = vpop.permute.xlu0 %1163
      %1167 = vset.pattern.permute.xlu0 0
      %1168 = vperm.xlu0 %1167, %v1160
      %v1169 = vpop.permute.xlu0 %1168
      %v1171 = vadd.f32 %v1157, %v1164
      %v1172 = vadd.f32 %v1158, %v1169
      %vm1173 = vcmp.gt.f32.partialorder %v1171, 0.0
      %vm1174 = vcmp.gt.f32.partialorder %v1172, 0.0
      %v1175 = vmin.f32 %v1171, 0.0
      %v1176 = vmin.f32 %v1172, 0.0
      %v1177 = vmul.f32 %v1175, 1.442695
      %v1178 = vpow.pop %v1177
      %v1179 = vmul.f32 %v1176, 1.442695
      %v1180 = vpow.pop %v1179
      %v1181 = vsub.f32 %v1178, 1.0
      %v1182 = vsub.f32 %v1180, 1.0
      %v1183 = vmul.f32 %v1181, 0.1
      %v1184 = vmul.f32 %v1182, 0.1
      %v1185 = vsel %vm1173, %v1171, %v1183
      %v1186 = vsel %vm1174, %v1172, %v1184
      %1187 = vst.msk [vmem:[#allocation3] sm:$0xff] %vm732, 0.0
      %1188 = vst.msk [vmem:[#allocation3 + $0x8] sm:$0xff] %vm732, 0.0
      %vm1189 = vcmask 80896
      %v1191 = vsel %vm1189, %v1185, 0
      %v1194 = vsel %vm1189, %v1186, 0
      %vm1196 = vcmask 1041408
      %v1198 = vsel %vm1196, %v162, 0
      %1200 = vmatprep.subr.mxu0 0.0
      %1201 = vmatpush1.msra.mxu0 %v161
      %1202 = vmatprep.subr.mxu0 0.0
      %1203 = vmatpush1.msra.mxu0 %v1198
      %1204 = vmatprep.subr.mxu0 0.0
      %1205 = vmatpush1.msra.mxu0 0.0
      %1206 = vmatprep.subr.mxu0 0.0
      %1207 = vmatpush1.msra.mxu0 0.0
      %1208 = vmatprep.subr.mxu0 0.0
      %1209 = vmatpush1.msra.mxu0 0.0
      %1210 = vmatprep.subr.mxu0 0.0
      %1211 = vmatpush1.msra.mxu0 0.0
      %1212 = vmatprep.subr.mxu0 0.0
      %1213 = vmatpush1.msra.mxu0 0.0
      %1214 = vmatprep.subr.mxu0 0.0
      %1215 = vmatpush1.msra.mxu0 0.0
      %1216 = vmatprep.subr.mxu0 0.0
      %1217 = vmatpush1.msra.mxu0 0.0
      %1218 = vmatprep.subr.mxu0 0.0
      %1219 = vmatpush1.msra.mxu0 0.0
      %1220 = vmatprep.subr.mxu0 0.0
      %1221 = vmatpush1.msra.mxu0 0.0
      %1222 = vmatprep.subr.mxu0 0.0
      %1223 = vmatpush1.msra.mxu0 0.0
      %1224 = vmatprep.subr.mxu0 0.0
      %1225 = vmatpush1.msra.mxu0 0.0
      %1226 = vmatprep.subr.mxu0 0.0
      %1227 = vmatpush1.msra.mxu0 0.0
      %1228 = vmatprep.subr.mxu0 0.0
      %1229 = vmatpush1.msra.mxu0 0.0
      %1230 = vmatprep.subr.mxu0 0.0
      %1231 = vmatpush1.msra.mxu0 0.0
      %1232 = vmatprep.subr.mxu0 0.0
      %1233 = vmatpush1.msra.mxu0 0.0
      %1234 = vmatprep.subr.mxu0 0.0
      %1235 = vmatpush1.msra.mxu0 0.0
      %1236 = vmatprep.subr.mxu0 0.0
      %1237 = vmatpush1.msra.mxu0 0.0
      %1238 = vmatprep.subr.mxu0 0.0
      %1239 = vmatpush1.msra.mxu0 0.0
      %1240 = vmatprep.subr.mxu0 0.0
      %1241 = vmatpush1.msra.mxu0 0.0
      %1242 = vmatprep.subr.mxu0 0.0
      %1243 = vmatpush1.msra.mxu0 0.0
      %1244 = vmatprep.subr.mxu0 0.0
      %1245 = vmatpush1.msra.mxu0 0.0
      %1246 = vmatprep.subr.mxu0 0.0
      %1247 = vmatpush1.msra.mxu0 0.0
      %1248 = vmatprep.subr.mxu0 0.0
      %1249 = vmatpush1.msra.mxu0 0.0
      %1250 = vmatprep.subr.mxu0 0.0
      %1251 = vmatpush1.msra.mxu0 0.0
      %1252 = vmatprep.subr.mxu0 0.0
      %1253 = vmatpush1.msra.mxu0 0.0
      %1254 = vmatprep.subr.mxu0 0.0
      %1255 = vmatpush1.msra.mxu0 0.0
      %1256 = vmatprep.subr.mxu0 0.0
      %1257 = vmatpush1.msra.mxu0 0.0
      %1258 = vmatprep.subr.mxu0 0.0
      %1259 = vmatpush1.msra.mxu0 0.0
      %1260 = vmatprep.subr.mxu0 0.0
      %1261 = vmatpush1.msra.mxu0 0.0
      %1262 = vmatprep.subr.mxu0 0.0
      %1263 = vmatpush1.msra.mxu0 0.0
      %1264 = vmatprep.mubr.f32.mxu0 0.0
      %1265 = vmatmul.mubr.f32.gmra.mrb[0].mxu0 %v1191
      %v1266 = vpop.f32.mrb[0].mxu0
      %v1267 = vadd.f32 0.0, %v1266
      %v1268 = vpop.f32.mrb[0].mxu0
      %1269 = vmatprep.mubr.f32.mxu0 0.0
      %1270 = vmatmul.mubr.f32.gmra.mrb[0].mxu0 %v1194
      %v1271 = vpop.f32.mrb[0].mxu0
      %v1272 = vadd.f32 0.0, %v1271
      %v1273 = vpop.f32.mrb[0].mxu0
      %1274 = vdwg.mxu0
      %1277 = vrot.lane.b32.xlu0 %v1267, 2
      %v1278 = vpop.permute.xlu0 %1277
      %1279 = vrot.lane.b32.xlu0 %v1272, 2
      %v1280 = vpop.permute.xlu0 %1279
      %vm1283 = vcmask 48144
      %1284 = vst.msk [vmem:[#allocation3] sm:$0xff] %vm1283, %v1278
      %1285 = vst.msk [vmem:[#allocation3 + $0x8] sm:$0xff] %vm1283, %v1280
      %v1286 = vld [vmem:[#allocation3] sm:$0xff]
      %v1287 = vld [vmem:[#allocation3 + $0x8] sm:$0xff]
      %v1288 = vld [vmem:[%s1 + $0xa0] sm:$0xff]
      %v1289 = vld [vmem:[%s1 + $0xa8] sm:$0xff]
      %1291 = vset.pattern.permute.xlu0 0
      %1292 = vperm.xlu0 %1291, %v1288
      %v1293 = vpop.permute.xlu0 %1292
      %1296 = vset.pattern.permute.xlu0 0
      %1297 = vperm.xlu0 %1296, %v1289
      %v1298 = vpop.permute.xlu0 %1297
      %v1300 = vmul.f32 %v1286, %v1293
      %v1301 = vmul.f32 %v1287, %v1298
      %1302 = vset.pattern.permute.xlu0 1
      %1303 = vperm.xlu0 %1302, %v1288
      %v1304 = vpop.permute.xlu0 %1303
      %1306 = vset.pattern.permute.xlu0 1
      %1307 = vperm.xlu0 %1306, %v1289
      %v1308 = vpop.permute.xlu0 %1307
      %v1310 = vmul.f32 %v1286, %v1304
      %v1311 = vmul.f32 %v1287, %v1308
      %1314 = vrot.lane.b32.xlu0 %v1310, 127
      %v1315 = vpop.permute.xlu0 %1314
      %1316 = vrot.lane.b32.xlu0 %v1311, 127
      %v1317 = vpop.permute.xlu0 %1316
      %v1320 = vadd.f32 %v1300, %v1315
      %v1321 = vadd.f32 %v1301, %v1317
      %1322 = vset.pattern.permute.xlu0 2
      %1323 = vperm.xlu0 %1322, %v1288
      %v1324 = vpop.permute.xlu0 %1323
      %1326 = vset.pattern.permute.xlu0 2
      %1327 = vperm.xlu0 %1326, %v1289
      %v1328 = vpop.permute.xlu0 %1327
      %v1330 = vmul.f32 %v1286, %v1324
      %v1331 = vmul.f32 %v1287, %v1328
      %1334 = vrot.lane.b32.xlu0 %v1330, 126
      %v1335 = vpop.permute.xlu0 %1334
      %1336 = vrot.lane.b32.xlu0 %v1331, 126
      %v1337 = vpop.permute.xlu0 %1336
      %v1340 = vadd.f32 %v1320, %v1335
      %v1341 = vadd.f32 %v1321, %v1337
      %1342 = vset.pattern.permute.xlu0 3
      %1343 = vperm.xlu0 %1342, %v1288
      %v1344 = vpop.permute.xlu0 %1343
      %1346 = vset.pattern.permute.xlu0 3
      %1347 = vperm.xlu0 %1346, %v1289
      %v1348 = vpop.permute.xlu0 %1347
      %v1350 = vmul.f32 %v1286, %v1344
      %v1351 = vmul.f32 %v1287, %v1348
      %1354 = vrot.lane.b32.xlu0 %v1350, 125
      %v1355 = vpop.permute.xlu0 %1354
      %1356 = vrot.lane.b32.xlu0 %v1351, 125
      %v1357 = vpop.permute.xlu0 %1356
      %v1360 = vadd.f32 %v1340, %v1355
      %v1361 = vadd.f32 %v1341, %v1357
      %1362 = vset.pattern.permute.xlu0 4
      %1363 = vperm.xlu0 %1362, %v1288
      %v1364 = vpop.permute.xlu0 %1363
      %1366 = vset.pattern.permute.xlu0 4
      %1367 = vperm.xlu0 %1366, %v1289
      %v1368 = vpop.permute.xlu0 %1367
      %v1370 = vmul.f32 %v1286, %v1364
      %v1371 = vmul.f32 %v1287, %v1368
      %1374 = vrot.lane.b32.xlu0 %v1370, 124
      %v1375 = vpop.permute.xlu0 %1374
      %1376 = vrot.lane.b32.xlu0 %v1371, 124
      %v1377 = vpop.permute.xlu0 %1376
      %v1380 = vadd.f32 %v1360, %v1375
      %v1381 = vadd.f32 %v1361, %v1377
      %v1382 = vld [vmem:[%s1 + $0xb0] sm:$0xff]
      %v1383 = vld [vmem:[%s1 + $0xb8] sm:$0xff]
      %1385 = vset.pattern.permute.xlu0 0
      %1386 = vperm.xlu0 %1385, %v1382
      %v1387 = vpop.permute.xlu0 %1386
      %1390 = vset.pattern.permute.xlu0 0
      %1391 = vperm.xlu0 %1390, %v1383
      %v1392 = vpop.permute.xlu0 %1391
      %v1394 = vadd.f32 %v1380, %v1387
      %v1395 = vadd.f32 %v1381, %v1392
      %vm1396 = vcmp.gt.f32.partialorder %v1394, 0.0
      %vm1397 = vcmp.gt.f32.partialorder %v1395, 0.0
      %v1398 = vmin.f32 %v1394, 0.0
      %v1399 = vmin.f32 %v1395, 0.0
      %v1400 = vmul.f32 %v1398, 1.442695
      %v1401 = vpow.pop %v1400
      %v1402 = vmul.f32 %v1399, 1.442695
      %v1403 = vpow.pop %v1402
      %v1404 = vsub.f32 %v1401, 1.0
      %v1405 = vsub.f32 %v1403, 1.0
      %v1406 = vmul.f32 %v1404, 0.1
      %v1407 = vmul.f32 %v1405, 0.1
      %v1408 = vsel %vm1396, %v1394, %v1406
      %v1409 = vsel %vm1397, %v1395, %v1407
      %1412 = vrot.lane.b32.xlu0 %v1408, 2
      %v1413 = vpop.permute.xlu0 %1412
      %1414 = vrot.lane.b32.xlu0 %v1409, 2
      %v1415 = vpop.permute.xlu0 %1414
      %v1418 = vadd.f32 %v1286, %v1413
      %v1419 = vadd.f32 %v1287, %v1415
      %v1420 = vld [vmem:[%s1 + $0xc0] sm:$0xff]
      %v1421 = vld [vmem:[%s1 + $0xc8] sm:$0xff]
      %v1422 = vld [vmem:[%s1 + $0xd0] sm:$0xff]
      %v1423 = vld [vmem:[%s1 + $0xd8] sm:$0xff]
      %v1424 = vld [vmem:[%s1 + $0xe0] sm:$0xff]
      %v1425 = vld [vmem:[%s1 + $0xe8] sm:$0xff]
      %v1426 = vpack.c.bf16 %v1421, %v1420
      %v1427 = vpack.c.bf16 %v1423, %v1422
      %v1428 = vpack.c.bf16 %v1425, %v1424
      %v1429 = vpack.c.bf16 %v1419, %v1418
      %v1430 = vld [vmem:[%s1 + $0xf0] sm:$0xff]
      %v1431 = vld [vmem:[%s1 + $0xf8] sm:$0xff]
      %v1432 = vld [vmem:[%s1 + $0x100] sm:$0xff]
      %v1433 = vld [vmem:[%s1 + $0x108] sm:$0xff]
      %v1434 = vld [vmem:[%s1 + $0x110] sm:$0xff]
      %v1435 = vld [vmem:[%s1 + $0x118] sm:$0xff]
      %1437 = vset.pattern.permute.xlu0 0
      %1438 = vperm.xlu0 %1437, %v1430
      %v1439 = vpop.permute.xlu0 %1438
      %1442 = vset.pattern.permute.xlu0 0
      %1443 = vperm.xlu0 %1442, %v1431
      %v1444 = vpop.permute.xlu0 %1443
      %1447 = vset.pattern.permute.xlu0 0
      %1448 = vperm.xlu0 %1447, %v1432
      %v1449 = vpop.permute.xlu0 %1448
      %1452 = vset.pattern.permute.xlu0 0
      %1453 = vperm.xlu0 %1452, %v1433
      %v1454 = vpop.permute.xlu0 %1453
      %1457 = vset.pattern.permute.xlu0 0
      %1458 = vperm.xlu0 %1457, %v1434
      %v1459 = vpop.permute.xlu0 %1458
      %1462 = vset.pattern.permute.xlu0 0
      %1463 = vperm.xlu0 %1462, %v1435
      %v1464 = vpop.permute.xlu0 %1463
      %1467 = vrot.lane.b32.xlu0 %v1429, 126
      %v1468 = vpop.permute.xlu0 %1467
      %vm1470 = vcmask 130048
      %v1472 = vsel %vm1470, %v1426, 0
      %v1475 = vsel %vm1470, %v1427, 0
      %v1478 = vsel %vm1470, %v1428, 0
      %1480 = vmatprep.subr.bf16.mxu0 0
      %1481 = vmatpush1.bf16.msra.mxu0 %v1468
      %1482 = vmatprep.subr.bf16.mxu0 0
      %1483 = vmatpush1.bf16.msra.mxu0 0
      %1484 = vmatprep.subr.bf16.mxu0 0
      %1485 = vmatpush1.bf16.msra.mxu0 0
      %1486 = vmatprep.subr.bf16.mxu0 0
      %1487 = vmatpush1.bf16.msra.mxu0 0
      %1488 = vmatprep.subr.bf16.mxu0 0
      %1489 = vmatpush1.bf16.msra.mxu0 0
      %1490 = vmatprep.subr.bf16.mxu0 0
      %1491 = vmatpush1.bf16.msra.mxu0 0
      %1492 = vmatprep.subr.bf16.mxu0 0
      %1493 = vmatpush1.bf16.msra.mxu0 0
      %1494 = vmatprep.subr.bf16.mxu0 0
      %1495 = vmatpush1.bf16.msra.mxu0 0
      %1496 = vmatprep.subr.bf16.mxu0 0
      %1497 = vmatpush1.bf16.msra.mxu0 0
      %1498 = vmatprep.subr.bf16.mxu0 0
      %1499 = vmatpush1.bf16.msra.mxu0 0
      %1500 = vmatprep.subr.bf16.mxu0 0
      %1501 = vmatpush1.bf16.msra.mxu0 0
      %1502 = vmatprep.subr.bf16.mxu0 0
      %1503 = vmatpush1.bf16.msra.mxu0 0
      %1504 = vmatprep.subr.bf16.mxu0 0
      %1505 = vmatpush1.bf16.msra.mxu0 0
      %1506 = vmatprep.subr.bf16.mxu0 0
      %1507 = vmatpush1.bf16.msra.mxu0 0
      %1508 = vmatprep.subr.bf16.mxu0 0
      %1509 = vmatpush1.bf16.msra.mxu0 0
      %1510 = vmatprep.subr.bf16.mxu0 0
      %1511 = vmatpush1.bf16.msra.mxu0 0
      %1512 = vmatprep.mubr.bf16.mxu0 0
      %1513 = vmatmul.mubr.bf16.gmra.mrb[0].mxu0 %v1472
      %v1514 = vpop.f32.mrb[0].mxu0
      %v1515 = vadd.f32 %v1439, %v1514
      %v1516 = vpop.f32.mrb[0].mxu0
      %v1517 = vpop.f32.mrb[0].mxu0
      %v1518 = vadd.f32 %v1444, %v1517
      %v1519 = vpop.f32.mrb[0].mxu0
      %1520 = vmatprep.mubr.bf16.mxu0 0
      %1521 = vmatmul.mubr.bf16.gmra.mrb[0].mxu0 %v1475
      %v1522 = vpop.f32.mrb[0].mxu0
      %v1523 = vadd.f32 %v1449, %v1522
      %v1524 = vpop.f32.mrb[0].mxu0
      %v1525 = vpop.f32.mrb[0].mxu0
      %v1526 = vadd.f32 %v1454, %v1525
      %v1527 = vpop.f32.mrb[0].mxu0
      %1528 = vmatprep.mubr.bf16.mxu0 0
      %1529 = vmatmul.mubr.bf16.gmra.mrb[0].mxu0 %v1478
      %v1530 = vpop.f32.mrb[0].mxu0
      %v1531 = vadd.f32 %v1459, %v1530
      %v1532 = vpop.f32.mrb[0].mxu0
      %v1533 = vpop.f32.mrb[0].mxu0
      %v1534 = vadd.f32 %v1464, %v1533
      %v1535 = vpop.f32.mrb[0].mxu0
      %1536 = vdwg.mxu0
      %1537 = vxpose.xlu0.b32.start [1/16] %v1523, 128
      %1538 = vxpose.xlu0.b32.cont [2/16] %v1526, 128
      %1539 = vxpose.xlu0.b32.cont [3/16] 0.0, 128
      %1540 = vxpose.xlu0.b32.cont [4/16] 0.0, 128
      %1541 = vxpose.xlu0.b32.cont [5/16] 0.0, 128
      %1542 = vxpose.xlu0.b32.cont [6/16] 0.0, 128
      %1543 = vxpose.xlu0.b32.cont [7/16] 0.0, 128
      %1544 = vxpose.xlu0.b32.cont [8/16] 0.0, 128
      %1545 = vxpose.xlu0.b32.cont [9/16] 0.0, 128
      %1546 = vxpose.xlu0.b32.cont [10/16] 0.0, 128
      %1547 = vxpose.xlu0.b32.cont [11/16] 0.0, 128
      %1548 = vxpose.xlu0.b32.cont [12/16] 0.0, 128
      %1549 = vxpose.xlu0.b32.cont [13/16] 0.0, 128
      %1550 = vxpose.xlu0.b32.cont [14/16] 0.0, 128
      %1551 = vxpose.xlu0.b32.cont [15/16] 0.0, 128
      %1552 = vxpose.xlu0.b32.end [16/16] 0.0, 128
      %v1553 = vpop.trf.xlu0
      %v1554 = vpop.trf.xlu0
      %v1555 = vpop.trf.xlu0
      %v1556 = vpop.trf.xlu0
      %v1557 = vpop.trf.xlu0
      %v1558 = vpop.trf.xlu0
      %v1559 = vpop.trf.xlu0
      %v1560 = vpop.trf.xlu0
      %v1561 = vpop.trf.xlu0
      %v1562 = vpop.trf.xlu0
      %v1563 = vpop.trf.xlu0
      %v1564 = vpop.trf.xlu0
      %v1565 = vpop.trf.xlu0
      %v1566 = vpop.trf.xlu0
      %v1567 = vpop.trf.xlu0
      %v1568 = vpop.trf.xlu0
      %v1569 = vpack.c.bf16 %v1553, %v1553
      %v1570 = vpack.c.bf16 %v1518, %v1515
      %v1572 = vsel %vm1470, %v1569, 0
      %1574 = vmatprep.subr.bf16.mxu0 0
      %1575 = vmatpush1.bf16.msra.mxu0 %v1570
      %1576 = vmatprep.subr.bf16.mxu0 0
      %1577 = vmatpush1.bf16.msra.mxu0 0
      %1578 = vmatprep.subr.bf16.mxu0 0
      %1579 = vmatpush1.bf16.msra.mxu0 0
      %1580 = vmatprep.subr.bf16.mxu0 0
      %1581 = vmatpush1.bf16.msra.mxu0 0
      %1582 = vmatprep.subr.bf16.mxu0 0
      %1583 = vmatpush1.bf16.msra.mxu0 0
      %1584 = vmatprep.subr.bf16.mxu0 0
      %1585 = vmatpush1.bf16.msra.mxu0 0
      %1586 = vmatprep.subr.bf16.mxu0 0
      %1587 = vmatpush1.bf16.msra.mxu0 0
      %1588 = vmatprep.subr.bf16.mxu0 0
      %1589 = vmatpush1.bf16.msra.mxu0 0
      %1590 = vmatprep.subr.bf16.mxu0 0
      %1591 = vmatpush1.bf16.msra.mxu0 0
      %1592 = vmatprep.subr.bf16.mxu0 0
      %1593 = vmatpush1.bf16.msra.mxu0 0
      %1594 = vmatprep.subr.bf16.mxu0 0
      %1595 = vmatpush1.bf16.msra.mxu0 0
      %1596 = vmatprep.subr.bf16.mxu0 0
      %1597 = vmatpush1.bf16.msra.mxu0 0
      %1598 = vmatprep.subr.bf16.mxu0 0
      %1599 = vmatpush1.bf16.msra.mxu0 0
      %1600 = vmatprep.subr.bf16.mxu0 0
      %1601 = vmatpush1.bf16.msra.mxu0 0
      %1602 = vmatprep.subr.bf16.mxu0 0
      %1603 = vmatpush1.bf16.msra.mxu0 0
      %1604 = vmatprep.subr.bf16.mxu0 0
      %1605 = vmatpush1.bf16.msra.mxu0 0
      %1606 = vmatprep.mubr.bf16.mxu0 0
      %1607 = vmatmul.mubr.bf16.gmra.mrb[0].mxu0 %v1572
      %v1608 = vpop.f32.mrb[0].mxu0
      %v1609 = vadd.f32 0.0, %v1608
      %v1610 = vpop.f32.mrb[0].mxu0
      %v1611 = vpop.f32.mrb[0].mxu0
      %v1612 = vpop.f32.mrb[0].mxu0
      %1613 = vdwg.mxu0
      %v1614 = vmul.f32 %v1609, 0.25
      %vm1615 = vcmask 27648
      %v1616 = vsel %vm1615, %v1614, -inf
      %v1617 = vrot.slane %v1616, 4
      %v1618 = vmax.f32 %v1616, %v1617
      %v1619 = vrot.slane %v1618, 2
      %v1620 = vmax.f32 %v1618, %v1619
      %v1621 = vrot.slane %v1620, 1
      %v1622 = vmax.f32 %v1620, %v1621
      %v1623 = vsub.f32 %v1614, %v1622
      %v1624 = vmul.f32 %v1623, 1.442695
      %v1625 = vpow.pop %v1624
      %v1626 = vsel %vm1615, %v1625, 0.0
      %v1627 = vrot.slane %v1626, 4
      %v1628 = vadd.f32 %v1626, %v1627
      %v1629 = vrot.slane %v1628, 2
      %v1630 = vadd.f32 %v1628, %v1629
      %v1631 = vrot.slane %v1630, 1
      %v1632 = vadd.f32 %v1630, %v1631
      %v1633 = vrcp.pop %v1632
      %v1634 = vmul.f32 %v1625, %v1633
      %v1635 = vpack.c.bf16 %v1534, %v1531
      %v1636 = vpack.c.bf16 %v1634, %v1634
      %v1638 = vsel %vm170, %v1635, 0
      %v1641 = vsel %vm1196, %v1636, 0
      %1643 = vmatprep.subr.bf16.mxu0 0
      %1644 = vmatpush1.bf16.msra.mxu0 %v1641
      %1645 = vmatprep.subr.bf16.mxu0 0
      %1646 = vmatpush1.bf16.msra.mxu0 0
      %1647 = vmatprep.subr.bf16.mxu0 0
      %1648 = vmatpush1.bf16.msra.mxu0 0
      %1649 = vmatprep.subr.bf16.mxu0 0
      %1650 = vmatpush1.bf16.msra.mxu0 0
      %1651 = vmatprep.subr.bf16.mxu0 0
      %1652 = vmatpush1.bf16.msra.mxu0 0
      %1653 = vmatprep.subr.bf16.mxu0 0
      %1654 = vmatpush1.bf16.msra.mxu0 0
      %1655 = vmatprep.subr.bf16.mxu0 0
      %1656 = vmatpush1.bf16.msra.mxu0 0
      %1657 = vmatprep.subr.bf16.mxu0 0
      %1658 = vmatpush1.bf16.msra.mxu0 0
      %1659 = vmatprep.subr.bf16.mxu0 0
      %1660 = vmatpush1.bf16.msra.mxu0 0
      %1661 = vmatprep.subr.bf16.mxu0 0
      %1662 = vmatpush1.bf16.msra.mxu0 0
      %1663 = vmatprep.subr.bf16.mxu0 0
      %1664 = vmatpush1.bf16.msra.mxu0 0
      %1665 = vmatprep.subr.bf16.mxu0 0
      %1666 = vmatpush1.bf16.msra.mxu0 0
      %1667 = vmatprep.subr.bf16.mxu0 0
      %1668 = vmatpush1.bf16.msra.mxu0 0
      %1669 = vmatprep.subr.bf16.mxu0 0
      %1670 = vmatpush1.bf16.msra.mxu0 0
      %1671 = vmatprep.subr.bf16.mxu0 0
      %1672 = vmatpush1.bf16.msra.mxu0 0
      %1673 = vmatprep.subr.bf16.mxu0 0
      %1674 = vmatpush1.bf16.msra.mxu0 0
      %1675 = vmatprep.mubr.bf16.mxu0 0
      %1676 = vmatmul.mubr.bf16.gmra.mrb[0].mxu0 %v1638
      %v1677 = vpop.f32.mrb[0].mxu0
      %v1678 = vadd.f32 0.0, %v1677
      %v1679 = vpop.f32.mrb[0].mxu0
      %v1680 = vpop.f32.mrb[0].mxu0
      %v1681 = vadd.f32 0.0, %v1680
      %v1682 = vpop.f32.mrb[0].mxu0
      %1683 = vdwg.mxu0
      %v1684 = vld [vmem:[%s1 + $0x120] sm:$0xff]
      %v1685 = vld [vmem:[%s1 + $0x128] sm:$0xff]
      %v1686 = vpack.c.bf16 %v1685, %v1684
      %v1687 = vpack.c.bf16 %v1681, %v1678
      %v1688 = vld [vmem:[%s1 + $0x130] sm:$0xff]
      %v1689 = vld [vmem:[%s1 + $0x138] sm:$0xff]
      %1691 = vset.pattern.permute.xlu0 0
      %1692 = vperm.xlu0 %1691, %v1688
      %v1693 = vpop.permute.xlu0 %1692
      %1696 = vset.pattern.permute.xlu0 0
      %1697 = vperm.xlu0 %1696, %v1689
      %v1698 = vpop.permute.xlu0 %1697
      %v1701 = vsel %vm1470, %v1686, 0
      %1703 = vmatprep.subr.bf16.mxu0 0
      %1704 = vmatpush1.bf16.msra.mxu0 %v1687
      %1705 = vmatprep.subr.bf16.mxu0 0
      %1706 = vmatpush1.bf16.msra.mxu0 0
      %1707 = vmatprep.subr.bf16.mxu0 0
      %1708 = vmatpush1.bf16.msra.mxu0 0
      %1709 = vmatprep.subr.bf16.mxu0 0
      %1710 = vmatpush1.bf16.msra.mxu0 0
      %1711 = vmatprep.subr.bf16.mxu0 0
      %1712 = vmatpush1.bf16.msra.mxu0 0
      %1713 = vmatprep.subr.bf16.mxu0 0
      %1714 = vmatpush1.bf16.msra.mxu0 0
      %1715 = vmatprep.subr.bf16.mxu0 0
      %1716 = vmatpush1.bf16.msra.mxu0 0
      %1717 = vmatprep.subr.bf16.mxu0 0
      %1718 = vmatpush1.bf16.msra.mxu0 0
      %1719 = vmatprep.subr.bf16.mxu0 0
      %1720 = vmatpush1.bf16.msra.mxu0 0
      %1721 = vmatprep.subr.bf16.mxu0 0
      %1722 = vmatpush1.bf16.msra.mxu0 0
      %1723 = vmatprep.subr.bf16.mxu0 0
      %1724 = vmatpush1.bf16.msra.mxu0 0
      %1725 = vmatprep.subr.bf16.mxu0 0
      %1726 = vmatpush1.bf16.msra.mxu0 0
      %1727 = vmatprep.subr.bf16.mxu0 0
      %1728 = vmatpush1.bf16.msra.mxu0 0
      %1729 = vmatprep.subr.bf16.mxu0 0
      %1730 = vmatpush1.bf16.msra.mxu0 0
      %1731 = vmatprep.subr.bf16.mxu0 0
      %1732 = vmatpush1.bf16.msra.mxu0 0
      %1733 = vmatprep.subr.bf16.mxu0 0
      %1734 = vmatpush1.bf16.msra.mxu0 0
      %1735 = vmatprep.mubr.bf16.mxu0 0
      %1736 = vmatmul.mubr.bf16.gmra.mrb[0].mxu0 %v1701
      %v1737 = vpop.f32.mrb[0].mxu0
      %v1738 = vadd.f32 %v1693, %v1737
      %v1739 = vpop.f32.mrb[0].mxu0
      %v1740 = vpop.f32.mrb[0].mxu0
      %v1741 = vadd.f32 %v1698, %v1740
      %v1742 = vpop.f32.mrb[0].mxu0
      %1743 = vdwg.mxu0
      %1746 = vrot.lane.b32.xlu0 %v1738, 2
      %v1747 = vpop.permute.xlu0 %1746
      %1748 = vrot.lane.b32.xlu0 %v1741, 2
      %v1749 = vpop.permute.xlu0 %1748
      %v1752 = vadd.f32 %v1418, %v1747
      %v1753 = vadd.f32 %v1419, %v1749
      %v1754 = vld [vmem:[%s1 + $0x140] sm:$0xff]
      %v1755 = vld [vmem:[%s1 + $0x148] sm:$0xff]
      %v1756 = vld [vmem:[%s1 + $0x150] sm:$0xff]
      %v1757 = vld [vmem:[%s1 + $0x158] sm:$0xff]
      %v1758 = vsel %vm1283, %v1752, 0.0
      %v1759 = vsel %vm1283, %v1753, 0.0
      %v1760 = vadd.f32 %v1758, %v1759
      %v1761 = vrot.slane %v1760, 4
      %v1762 = vadd.f32 %v1760, %v1761
      %v1763 = vrot.slane %v1762, 2
      %v1764 = vadd.f32 %v1762, %v1763
      %v1765 = vrot.slane %v1764, 1
      %v1766 = vadd.f32 %v1764, %v1765
      %v1767 = vrcp.pop 16.0
      %v1768 = vmul.f32 %v1766, %v1767
      %v1769 = vsub.f32 %v1752, %v1768
      %v1770 = vsub.f32 %v1753, %v1768
      %v1771 = vmul.f32 %v1769, %v1769
      %v1772 = vmul.f32 %v1770, %v1770
      %v1773 = vsel %vm1283, %v1771, 0.0
      %v1774 = vsel %vm1283, %v1772, 0.0
      %v1775 = vadd.f32 %v1773, %v1774
      %v1776 = vrot.slane %v1775, 4
      %v1777 = vadd.f32 %v1775, %v1776
      %v1778 = vrot.slane %v1777, 2
      %v1779 = vadd.f32 %v1777, %v1778
      %v1780 = vrot.slane %v1779, 1
      %v1781 = vadd.f32 %v1779, %v1780
      %v1782 = vmul.f32 %v1781, %v1767
      %v1783 = vadd.f32 %v1782, 1e-05
      %v1784 = vrsqrt.pop %v1783
      %v1785 = vmul.f32 %v1769, %v1784
      %v1786 = vmul.f32 %v1770, %v1784
      %1788 = vset.pattern.permute.xlu0 0
      %1789 = vperm.xlu0 %1788, %v1754
      %v1790 = vpop.permute.xlu0 %1789
      %1793 = vset.pattern.permute.xlu0 0
      %1794 = vperm.xlu0 %1793, %v1755
      %v1795 = vpop.permute.xlu0 %1794
      %v1797 = vmul.f32 %v1785, %v1790
      %v1798 = vmul.f32 %v1786, %v1795
      %1800 = vset.pattern.permute.xlu0 0
      %1801 = vperm.xlu0 %1800, %v1756
      %v1802 = vpop.permute.xlu0 %1801
      %1805 = vset.pattern.permute.xlu0 0
      %1806 = vperm.xlu0 %1805, %v1757
      %v1807 = vpop.permute.xlu0 %1806
      %v1809 = vadd.f32 %v1797, %v1802
      %v1810 = vadd.f32 %v1798, %v1807
      %v1811 = vld [vmem:[%s1 + $0x160] sm:$0xff]
      %v1812 = vld [vmem:[%s1 + $0x168] sm:$0xff]
      %v1813 = vpack.c.bf16 %v1812, %v1811
      %v1814 = vpack.c.bf16 %v1810, %v1809
      %v1815 = vld [vmem:[%s1 + $0x170] sm:$0xff]
      %v1816 = vld [vmem:[%s1 + $0x178] sm:$0xff]
      %1818 = vset.pattern.permute.xlu0 0
      %1819 = vperm.xlu0 %1818, %v1815
      %v1820 = vpop.permute.xlu0 %1819
      %1823 = vset.pattern.permute.xlu0 0
      %1824 = vperm.xlu0 %1823, %v1816
      %v1825 = vpop.permute.xlu0 %1824
      %1828 = vrot.lane.b32.xlu0 %v1814, 126
      %v1829 = vpop.permute.xlu0 %1828
      %v1832 = vsel %vm1470, %v1813, 0
      %1834 = vmatprep.subr.bf16.mxu0 0
      %1835 = vmatpush1.bf16.msra.mxu0 %v1829
      %1836 = vmatprep.subr.bf16.mxu0 0
      %1837 = vmatpush1.bf16.msra.mxu0 0
      %1838 = vmatprep.subr.bf16.mxu0 0
      %1839 = vmatpush1.bf16.msra.mxu0 0
      %1840 = vmatprep.subr.bf16.mxu0 0
      %1841 = vmatpush1.bf16.msra.mxu0 0
      %1842 = vmatprep.subr.bf16.mxu0 0
      %1843 = vmatpush1.bf16.msra.mxu0 0
      %1844 = vmatprep.subr.bf16.mxu0 0
      %1845 = vmatpush1.bf16.msra.mxu0 0
      %1846 = vmatprep.subr.bf16.mxu0 0
      %1847 = vmatpush1.bf16.msra.mxu0 0
      %1848 = vmatprep.subr.bf16.mxu0 0
      %1849 = vmatpush1.bf16.msra.mxu0 0
      %1850 = vmatprep.subr.bf16.mxu0 0
      %1851 = vmatpush1.bf16.msra.mxu0 0
      %1852 = vmatprep.subr.bf16.mxu0 0
      %1853 = vmatpush1.bf16.msra.mxu0 0
      %1854 = vmatprep.subr.bf16.mxu0 0
      %1855 = vmatpush1.bf16.msra.mxu0 0
      %1856 = vmatprep.subr.bf16.mxu0 0
      %1857 = vmatpush1.bf16.msra.mxu0 0
      %1858 = vmatprep.subr.bf16.mxu0 0
      %1859 = vmatpush1.bf16.msra.mxu0 0
      %1860 = vmatprep.subr.bf16.mxu0 0
      %1861 = vmatpush1.bf16.msra.mxu0 0
      %1862 = vmatprep.subr.bf16.mxu0 0
      %1863 = vmatpush1.bf16.msra.mxu0 0
      %1864 = vmatprep.subr.bf16.mxu0 0
      %1865 = vmatpush1.bf16.msra.mxu0 0
      %1866 = vmatprep.mubr.bf16.mxu0 0
      %1867 = vmatmul.mubr.bf16.gmra.mrb[0].mxu0 %v1832
      %v1868 = vpop.f32.mrb[0].mxu0
      %v1869 = vadd.f32 %v1820, %v1868
      %v1870 = vpop.f32.mrb[0].mxu0
      %v1871 = vpop.f32.mrb[0].mxu0
      %v1872 = vadd.f32 %v1825, %v1871
      %v1873 = vpop.f32.mrb[0].mxu0
      %1874 = vdwg.mxu0
      %v1875 = vadd.f32 %v1869, 3.0
      %v1876 = vadd.f32 %v1872, 3.0
      %v1877 = vmax.f32 %v1875, 0.0
      %v1878 = vmax.f32 %v1876, 0.0
      %v1879 = vmin.f32 %v1877, 6.0
      %v1880 = vmin.f32 %v1878, 6.0
      %v1881 = vmul.f32 %v1869, %v1879
      %v1882 = vmul.f32 %v1872, %v1880
      %v1883 = vmul.f32 %v1881, 0.16666667
      %v1884 = vmul.f32 %v1882, 0.16666667
      %v1885 = vld [vmem:[%s1 + $0x180] sm:$0xff]
      %v1886 = vld [vmem:[%s1 + $0x188] sm:$0xff]
      %v1887 = vpack.c.bf16 %v1886, %v1885
      %v1888 = vpack.c.bf16 %v1884, %v1883
      %v1890 = vsel %vm1470, %v1887, 0
      %1892 = vmatprep.subr.bf16.mxu0 0
      %1893 = vmatpush1.bf16.msra.mxu0 %v1888
      %1894 = vmatprep.subr.bf16.mxu0 0
      %1895 = vmatpush1.bf16.msra.mxu0 0
      %1896 = vmatprep.subr.bf16.mxu0 0
      %1897 = vmatpush1.bf16.msra.mxu0 0
      %1898 = vmatprep.subr.bf16.mxu0 0
      %1899 = vmatpush1.bf16.msra.mxu0 0
      %1900 = vmatprep.subr.bf16.mxu0 0
      %1901 = vmatpush1.bf16.msra.mxu0 0
      %1902 = vmatprep.subr.bf16.mxu0 0
      %1903 = vmatpush1.bf16.msra.mxu0 0
      %1904 = vmatprep.subr.bf16.mxu0 0
      %1905 = vmatpush1.bf16.msra.mxu0 0
      %1906 = vmatprep.subr.bf16.mxu0 0
      %1907 = vmatpush1.bf16.msra.mxu0 0
      %1908 = vmatprep.subr.bf16.mxu0 0
      %1909 = vmatpush1.bf16.msra.mxu0 0
      %1910 = vmatprep.subr.bf16.mxu0 0
      %1911 = vmatpush1.bf16.msra.mxu0 0
      %1912 = vmatprep.subr.bf16.mxu0 0
      %1913 = vmatpush1.bf16.msra.mxu0 0
      %1914 = vmatprep.subr.bf16.mxu0 0
      %1915 = vmatpush1.bf16.msra.mxu0 0
      %1916 = vmatprep.subr.bf16.mxu0 0
      %1917 = vmatpush1.bf16.msra.mxu0 0
      %1918 = vmatprep.subr.bf16.mxu0 0
      %1919 = vmatpush1.bf16.msra.mxu0 0
      %1920 = vmatprep.subr.bf16.mxu0 0
      %1921 = vmatpush1.bf16.msra.mxu0 0
      %1922 = vmatprep.subr.bf16.mxu0 0
      %1923 = vmatpush1.bf16.msra.mxu0 0
      %1924 = vmatprep.mubr.bf16.mxu0 0
      %1925 = vmatmul.mubr.bf16.gmra.mrb[0].mxu0 %v1890
      %v1926 = vpop.f32.mrb[0].mxu0
      %v1927 = vadd.f32 0.0, %v1926
      %v1928 = vpop.f32.mrb[0].mxu0
      %v1929 = vpop.f32.mrb[0].mxu0
      %v1930 = vadd.f32 0.0, %v1929
      %v1931 = vpop.f32.mrb[0].mxu0
      %1932 = vdwg.mxu0
      %1935 = vrot.lane.b32.xlu0 %v1927, 2
      %v1936 = vpop.permute.xlu0 %1935
      %1937 = vrot.lane.b32.xlu0 %v1930, 2
      %v1938 = vpop.permute.xlu0 %1937
      %v1941 = vadd.f32 %v1809, %v1936
      %v1942 = vadd.f32 %v1810, %v1938
      %v1943 = vld [vmem:[%s1 + $0x190] sm:$0xff]
      %v1944 = vld [vmem:[%s1 + $0x198] sm:$0xff]
      %1946 = vset.pattern.permute.xlu0 0
      %1947 = vperm.xlu0 %1946, %v1943
      %v1948 = vpop.permute.xlu0 %1947
      %1951 = vset.pattern.permute.xlu0 0
      %1952 = vperm.xlu0 %1951, %v1944
      %v1953 = vpop.permute.xlu0 %1952
      %v1955 = vadd.f32 %v1941, %v1948
      %v1956 = vadd.f32 %v1942, %v1953
      %v1957 = vld [vmem:[%s1 + $0x1a0] sm:$0xff]
      %v1958 = vld [vmem:[%s1 + $0x1a8] sm:$0xff]
      %v1959 = vld [vmem:[%s1 + $0x1b0] sm:$0xff]
      %v1960 = vld [vmem:[%s1 + $0x1b8] sm:$0xff]
      %v1961 = vsel %vm1283, %v1955, 0.0
      %v1962 = vsel %vm1283, %v1956, 0.0
      %v1963 = vadd.f32 %v1961, %v1962
      %v1964 = vrot.slane %v1963, 4
      %v1965 = vadd.f32 %v1963, %v1964
      %v1966 = vrot.slane %v1965, 2
      %v1967 = vadd.f32 %v1965, %v1966
      %v1968 = vrot.slane %v1967, 1
      %v1969 = vadd.f32 %v1967, %v1968
      %v1970 = vmul.f32 %v1969, %v1767
      %v1971 = vsub.f32 %v1955, %v1970
      %v1972 = vsub.f32 %v1956, %v1970
      %v1973 = vmul.f32 %v1971, %v1971
      %v1974 = vmul.f32 %v1972, %v1972
      %v1975 = vsel %vm1283, %v1973, 0.0
      %v1976 = vsel %vm1283, %v1974, 0.0
      %v1977 = vadd.f32 %v1975, %v1976
      %v1978 = vrot.slane %v1977, 4
      %v1979 = vadd.f32 %v1977, %v1978
      %v1980 = vrot.slane %v1979, 2
      %v1981 = vadd.f32 %v1979, %v1980
      %v1982 = vrot.slane %v1981, 1
      %v1983 = vadd.f32 %v1981, %v1982
      %v1984 = vmul.f32 %v1983, %v1767
      %v1985 = vadd.f32 %v1984, 1e-05
      %v1986 = vrsqrt.pop %v1985
      %v1987 = vmul.f32 %v1971, %v1986
      %v1988 = vmul.f32 %v1972, %v1986
      %1990 = vset.pattern.permute.xlu0 0
      %1991 = vperm.xlu0 %1990, %v1957
      %v1992 = vpop.permute.xlu0 %1991
      %1995 = vset.pattern.permute.xlu0 0
      %1996 = vperm.xlu0 %1995, %v1958
      %v1997 = vpop.permute.xlu0 %1996
      %v1999 = vmul.f32 %v1987, %v1992
      %v2000 = vmul.f32 %v1988, %v1997
      %2002 = vset.pattern.permute.xlu0 0
      %2003 = vperm.xlu0 %2002, %v1959
      %v2004 = vpop.permute.xlu0 %2003
      %2007 = vset.pattern.permute.xlu0 0
      %2008 = vperm.xlu0 %2007, %v1960
      %v2009 = vpop.permute.xlu0 %2008
      %v2011 = vadd.f32 %v1999, %v2004
      %v2012 = vadd.f32 %v2000, %v2009
      %v2013 = vld [vmem:[%s1 + $0x1c0] sm:$0xff]
      %v2014 = vld [vmem:[%s1 + $0x1c8] sm:$0xff]
      %v2015 = vld [vmem:[%s1 + $0x1d0] sm:$0xff]
      %v2016 = vld [vmem:[%s1 + $0x1d8] sm:$0xff]
      %v2017 = vld [vmem:[%s1 + $0x1e0] sm:$0xff]
      %v2018 = vld [vmem:[%s1 + $0x1e8] sm:$0xff]
      %v2019 = vpack.c.bf16 %v2014, %v2013
      %v2020 = vpack.c.bf16 %v2016, %v2015
      %v2021 = vpack.c.bf16 %v2018, %v2017
      %v2022 = vpack.c.bf16 %v2012, %v2011
      %v2023 = vld [vmem:[%s1 + $0x1f0] sm:$0xff]
      %v2024 = vld [vmem:[%s1 + $0x1f8] sm:$0xff]
      %v2025 = vld [vmem:[%s1 + $0x200] sm:$0xff]
      %v2026 = vld [vmem:[%s1 + $0x208] sm:$0xff]
      %v2027 = vld [vmem:[%s1 + $0x210] sm:$0xff]
      %v2028 = vld [vmem:[%s1 + $0x218] sm:$0xff]
      %2030 = vset.pattern.permute.xlu0 0
      %2031 = vperm.xlu0 %2030, %v2023
      %v2032 = vpop.permute.xlu0 %2031
      %2035 = vset.pattern.permute.xlu0 0
      %2036 = vperm.xlu0 %2035, %v2024
      %v2037 = vpop.permute.xlu0 %2036
      %2040 = vset.pattern.permute.xlu0 0
      %2041 = vperm.xlu0 %2040, %v2025
      %v2042 = vpop.permute.xlu0 %2041
      %2045 = vset.pattern.permute.xlu0 0
      %2046 = vperm.xlu0 %2045, %v2026
      %v2047 = vpop.permute.xlu0 %2046
      %2050 = vset.pattern.permute.xlu0 0
      %2051 = vperm.xlu0 %2050, %v2027
      %v2052 = vpop.permute.xlu0 %2051
      %2055 = vset.pattern.permute.xlu0 0
      %2056 = vperm.xlu0 %2055, %v2028
      %v2057 = vpop.permute.xlu0 %2056
      %2060 = vrot.lane.b32.xlu0 %v2022, 126
      %v2061 = vpop.permute.xlu0 %2060
      %v2064 = vsel %vm1470, %v2019, 0
      %v2067 = vsel %vm1470, %v2020, 0
      %v2070 = vsel %vm1470, %v2021, 0
      %2072 = vmatprep.subr.bf16.mxu0 0
      %2073 = vmatpush1.bf16.msra.mxu0 %v2061
      %2074 = vmatprep.subr.bf16.mxu0 0
      %2075 = vmatpush1.bf16.msra.mxu0 0
      %2076 = vmatprep.subr.bf16.mxu0 0
      %2077 = vmatpush1.bf16.msra.mxu0 0
      %2078 = vmatprep.subr.bf16.mxu0 0
      %2079 = vmatpush1.bf16.msra.mxu0 0
      %2080 = vmatprep.subr.bf16.mxu0 0
      %2081 = vmatpush1.bf16.msra.mxu0 0
      %2082 = vmatprep.subr.bf16.mxu0 0
      %2083 = vmatpush1.bf16.msra.mxu0 0
      %2084 = vmatprep.subr.bf16.mxu0 0
      %2085 = vmatpush1.bf16.msra.mxu0 0
      %2086 = vmatprep.subr.bf16.mxu0 0
      %2087 = vmatpush1.bf16.msra.mxu0 0
      %2088 = vmatprep.subr.bf16.mxu0 0
      %2089 = vmatpush1.bf16.msra.mxu0 0
      %2090 = vmatprep.subr.bf16.mxu0 0
      %2091 = vmatpush1.bf16.msra.mxu0 0
      %2092 = vmatprep.subr.bf16.mxu0 0
      %2093 = vmatpush1.bf16.msra.mxu0 0
      %2094 = vmatprep.subr.bf16.mxu0 0
      %2095 = vmatpush1.bf16.msra.mxu0 0
      %2096 = vmatprep.subr.bf16.mxu0 0
      %2097 = vmatpush1.bf16.msra.mxu0 0
      %2098 = vmatprep.subr.bf16.mxu0 0
      %2099 = vmatpush1.bf16.msra.mxu0 0
      %2100 = vmatprep.subr.bf16.mxu0 0
      %2101 = vmatpush1.bf16.msra.mxu0 0
      %2102 = vmatprep.subr.bf16.mxu0 0
      %2103 = vmatpush1.bf16.msra.mxu0 0
      %2104 = vmatprep.mubr.bf16.mxu0 0
      %2105 = vmatmul.mubr.bf16.gmra.mrb[0].mxu0 %v2064
      %v2106 = vpop.f32.mrb[0].mxu0
      %v2107 = vadd.f32 %v2032, %v2106
      %v2108 = vpop.f32.mrb[0].mxu0
      %v2109 = vpop.f32.mrb[0].mxu0
      %v2110 = vadd.f32 %v2037, %v2109
      %v2111 = vpop.f32.mrb[0].mxu0
      %2112 = vmatprep.mubr.bf16.mxu0 0
      %2113 = vmatmul.mubr.bf16.gmra.mrb[0].mxu0 %v2067
      %v2114 = vpop.f32.mrb[0].mxu0
      %v2115 = vadd.f32 %v2042, %v2114
      %v2116 = vpop.f32.mrb[0].mxu0
      %v2117 = vpop.f32.mrb[0].mxu0
      %v2118 = vadd.f32 %v2047, %v2117
      %v2119 = vpop.f32.mrb[0].mxu0
      %2120 = vmatprep.mubr.bf16.mxu0 0
      %2121 = vmatmul.mubr.bf16.gmra.mrb[0].mxu0 %v2070
      %v2122 = vpop.f32.mrb[0].mxu0
      %v2123 = vadd.f32 %v2052, %v2122
      %v2124 = vpop.f32.mrb[0].mxu0
      %v2125 = vpop.f32.mrb[0].mxu0
      %v2126 = vadd.f32 %v2057, %v2125
      %v2127 = vpop.f32.mrb[0].mxu0
      %2128 = vdwg.mxu0
      %2129 = vxpose.xlu0.b32.start [1/16] %v2115, 128
      %2130 = vxpose.xlu0.b32.cont [2/16] %v2118, 128
      %2131 = vxpose.xlu0.b32.cont [3/16] 0.0, 128
      %2132 = vxpose.xlu0.b32.cont [4/16] 0.0, 128
      %2133 = vxpose.xlu0.b32.cont [5/16] 0.0, 128
      %2134 = vxpose.xlu0.b32.cont [6/16] 0.0, 128
      %2135 = vxpose.xlu0.b32.cont [7/16] 0.0, 128
      %2136 = vxpose.xlu0.b32.cont [8/16] 0.0, 128
      %2137 = vxpose.xlu0.b32.cont [9/16] 0.0, 128
      %2138 = vxpose.xlu0.b32.cont [10/16] 0.0, 128
      %2139 = vxpose.xlu0.b32.cont [11/16] 0.0, 128
      %2140 = vxpose.xlu0.b32.cont [12/16] 0.0, 128
      %2141 = vxpose.xlu0.b32.cont [13/16] 0.0, 128
      %2142 = vxpose.xlu0.b32.cont [14/16] 0.0, 128
      %2143 = vxpose.xlu0.b32.cont [15/16] 0.0, 128
      %2144 = vxpose.xlu0.b32.end [16/16] 0.0, 128
      %v2145 = vpop.trf.xlu0
      %v2146 = vpop.trf.xlu0
      %v2147 = vpop.trf.xlu0
      %v2148 = vpop.trf.xlu0
      %v2149 = vpop.trf.xlu0
      %v2150 = vpop.trf.xlu0
      %v2151 = vpop.trf.xlu0
      %v2152 = vpop.trf.xlu0
      %v2153 = vpop.trf.xlu0
      %v2154 = vpop.trf.xlu0
      %v2155 = vpop.trf.xlu0
      %v2156 = vpop.trf.xlu0
      %v2157 = vpop.trf.xlu0
      %v2158 = vpop.trf.xlu0
      %v2159 = vpop.trf.xlu0
      %v2160 = vpop.trf.xlu0
      %v2161 = vpack.c.bf16 %v2145, %v2145
      %v2162 = vpack.c.bf16 %v2110, %v2107
      %v2164 = vsel %vm1470, %v2161, 0
      %2166 = vmatprep.subr.bf16.mxu0 0
      %2167 = vmatpush1.bf16.msra.mxu0 %v2162
      %2168 = vmatprep.subr.bf16.mxu0 0
      %2169 = vmatpush1.bf16.msra.mxu0 0
      %2170 = vmatprep.subr.bf16.mxu0 0
      %2171 = vmatpush1.bf16.msra.mxu0 0
      %2172 = vmatprep.subr.bf16.mxu0 0
      %2173 = vmatpush1.bf16.msra.mxu0 0
      %2174 = vmatprep.subr.bf16.mxu0 0
      %2175 = vmatpush1.bf16.msra.mxu0 0
      %2176 = vmatprep.subr.bf16.mxu0 0
      %2177 = vmatpush1.bf16.msra.mxu0 0
      %2178 = vmatprep.subr.bf16.mxu0 0
      %2179 = vmatpush1.bf16.msra.mxu0 0
      %2180 = vmatprep.subr.bf16.mxu0 0
      %2181 = vmatpush1.bf16.msra.mxu0 0
      %2182 = vmatprep.subr.bf16.mxu0 0
      %2183 = vmatpush1.bf16.msra.mxu0 0
      %2184 = vmatprep.subr.bf16.mxu0 0
      %2185 = vmatpush1.bf16.msra.mxu0 0
      %2186 = vmatprep.subr.bf16.mxu0 0
      %2187 = vmatpush1.bf16.msra.mxu0 0
      %2188 = vmatprep.subr.bf16.mxu0 0
      %2189 = vmatpush1.bf16.msra.mxu0 0
      %2190 = vmatprep.subr.bf16.mxu0 0
      %2191 = vmatpush1.bf16.msra.mxu0 0
      %2192 = vmatprep.subr.bf16.mxu0 0
      %2193 = vmatpush1.bf16.msra.mxu0 0
      %2194 = vmatprep.subr.bf16.mxu0 0
      %2195 = vmatpush1.bf16.msra.mxu0 0
      %2196 = vmatprep.subr.bf16.mxu0 0
      %2197 = vmatpush1.bf16.msra.mxu0 0
      %2198 = vmatprep.mubr.bf16.mxu0 0
      %2199 = vmatmul.mubr.bf16.gmra.mrb[0].mxu0 %v2164
      %v2200 = vpop.f32.mrb[0].mxu0
      %v2201 = vadd.f32 0.0, %v2200
      %v2202 = vpop.f32.mrb[0].mxu0
      %v2203 = vpop.f32.mrb[0].mxu0
      %v2204 = vpop.f32.mrb[0].mxu0
      %2205 = vdwg.mxu0
      %v2206 = vmul.f32 %v2201, 0.25
      %v2207 = vsel %vm1615, %v2206, -inf
      %v2208 = vrot.slane %v2207, 4
      %v2209 = vmax.f32 %v2207, %v2208
      %v2210 = vrot.slane %v2209, 2
      %v2211 = vmax.f32 %v2209, %v2210
      %v2212 = vrot.slane %v2211, 1
      %v2213 = vmax.f32 %v2211, %v2212
      %v2214 = vsub.f32 %v2206, %v2213
      %v2215 = vmul.f32 %v2214, 1.442695
      %v2216 = vpow.pop %v2215
      %v2217 = vsel %vm1615, %v2216, 0.0
      %v2218 = vrot.slane %v2217, 4
      %v2219 = vadd.f32 %v2217, %v2218
      %v2220 = vrot.slane %v2219, 2
      %v2221 = vadd.f32 %v2219, %v2220
      %v2222 = vrot.slane %v2221, 1
      %v2223 = vadd.f32 %v2221, %v2222
      %v2224 = vrcp.pop %v2223
      %v2225 = vmul.f32 %v2216, %v2224
      %v2226 = vpack.c.bf16 %v2126, %v2123
      %v2227 = vpack.c.bf16 %v2225, %v2225
      %v2229 = vsel %vm170, %v2226, 0
      %v2232 = vsel %vm1196, %v2227, 0
      %2234 = vmatprep.subr.bf16.mxu0 0
      %2235 = vmatpush1.bf16.msra.mxu0 %v2232
      %2236 = vmatprep.subr.bf16.mxu0 0
      %2237 = vmatpush1.bf16.msra.mxu0 0
      %2238 = vmatprep.subr.bf16.mxu0 0
      %2239 = vmatpush1.bf16.msra.mxu0 0
      %2240 = vmatprep.subr.bf16.mxu0 0
      %2241 = vmatpush1.bf16.msra.mxu0 0
      %2242 = vmatprep.subr.bf16.mxu0 0
      %2243 = vmatpush1.bf16.msra.mxu0 0
      %2244 = vmatprep.subr.bf16.mxu0 0
      %2245 = vmatpush1.bf16.msra.mxu0 0
      %2246 = vmatprep.subr.bf16.mxu0 0
      %2247 = vmatpush1.bf16.msra.mxu0 0
      %2248 = vmatprep.subr.bf16.mxu0 0
      %2249 = vmatpush1.bf16.msra.mxu0 0
      %2250 = vmatprep.subr.bf16.mxu0 0
      %2251 = vmatpush1.bf16.msra.mxu0 0
      %2252 = vmatprep.subr.bf16.mxu0 0
      %2253 = vmatpush1.bf16.msra.mxu0 0
      %2254 = vmatprep.subr.bf16.mxu0 0
      %2255 = vmatpush1.bf16.msra.mxu0 0
      %2256 = vmatprep.subr.bf16.mxu0 0
      %2257 = vmatpush1.bf16.msra.mxu0 0
      %2258 = vmatprep.subr.bf16.mxu0 0
      %2259 = vmatpush1.bf16.msra.mxu0 0
      %2260 = vmatprep.subr.bf16.mxu0 0
      %2261 = vmatpush1.bf16.msra.mxu0 0
      %2262 = vmatprep.subr.bf16.mxu0 0
      %2263 = vmatpush1.bf16.msra.mxu0 0
      %2264 = vmatprep.subr.bf16.mxu0 0
      %2265 = vmatpush1.bf16.msra.mxu0 0
      %2266 = vmatprep.mubr.bf16.mxu0 0
      %2267 = vmatmul.mubr.bf16.gmra.mrb[0].mxu0 %v2229
      %v2268 = vpop.f32.mrb[0].mxu0
      %v2269 = vadd.f32 0.0, %v2268
      %v2270 = vpop.f32.mrb[0].mxu0
      %v2271 = vpop.f32.mrb[0].mxu0
      %v2272 = vadd.f32 0.0, %v2271
      %v2273 = vpop.f32.mrb[0].mxu0
      %2274 = vdwg.mxu0
      %v2275 = vld [vmem:[%s1 + $0x220] sm:$0xff]
      %v2276 = vld [vmem:[%s1 + $0x228] sm:$0xff]
      %v2277 = vpack.c.bf16 %v2276, %v2275
      %v2278 = vpack.c.bf16 %v2272, %v2269
      %v2279 = vld [vmem:[%s1 + $0x230] sm:$0xff]
      %v2280 = vld [vmem:[%s1 + $0x238] sm:$0xff]
      %2282 = vset.pattern.permute.xlu0 0
      %2283 = vperm.xlu0 %2282, %v2279
      %v2284 = vpop.permute.xlu0 %2283
      %2287 = vset.pattern.permute.xlu0 0
      %2288 = vperm.xlu0 %2287, %v2280
      %v2289 = vpop.permute.xlu0 %2288
      %v2292 = vsel %vm1470, %v2277, 0
      %2294 = vmatprep.subr.bf16.mxu0 0
      %2295 = vmatpush1.bf16.msra.mxu0 %v2278
      %2296 = vmatprep.subr.bf16.mxu0 0
      %2297 = vmatpush1.bf16.msra.mxu0 0
      %2298 = vmatprep.subr.bf16.mxu0 0
      %2299 = vmatpush1.bf16.msra.mxu0 0
      %2300 = vmatprep.subr.bf16.mxu0 0
      %2301 = vmatpush1.bf16.msra.mxu0 0
      %2302 = vmatprep.subr.bf16.mxu0 0
      %2303 = vmatpush1.bf16.msra.mxu0 0
      %2304 = vmatprep.subr.bf16.mxu0 0
      %2305 = vmatpush1.bf16.msra.mxu0 0
      %2306 = vmatprep.subr.bf16.mxu0 0
      %2307 = vmatpush1.bf16.msra.mxu0 0
      %2308 = vmatprep.subr.bf16.mxu0 0
      %2309 = vmatpush1.bf16.msra.mxu0 0
      %2310 = vmatprep.subr.bf16.mxu0 0
      %2311 = vmatpush1.bf16.msra.mxu0 0
      %2312 = vmatprep.subr.bf16.mxu0 0
      %2313 = vmatpush1.bf16.msra.mxu0 0
      %2314 = vmatprep.subr.bf16.mxu0 0
      %2315 = vmatpush1.bf16.msra.mxu0 0
      %2316 = vmatprep.subr.bf16.mxu0 0
      %2317 = vmatpush1.bf16.msra.mxu0 0
      %2318 = vmatprep.subr.bf16.mxu0 0
      %2319 = vmatpush1.bf16.msra.mxu0 0
      %2320 = vmatprep.subr.bf16.mxu0 0
      %2321 = vmatpush1.bf16.msra.mxu0 0
      %2322 = vmatprep.subr.bf16.mxu0 0
      %2323 = vmatpush1.bf16.msra.mxu0 0
      %2324 = vmatprep.subr.bf16.mxu0 0
      %2325 = vmatpush1.bf16.msra.mxu0 0
      %2326 = vmatprep.mubr.bf16.mxu0 0
      %2327 = vmatmul.mubr.bf16.gmra.mrb[0].mxu0 %v2292
      %v2328 = vpop.f32.mrb[0].mxu0
      %v2329 = vadd.f32 %v2284, %v2328
      %v2330 = vpop.f32.mrb[0].mxu0
      %v2331 = vpop.f32.mrb[0].mxu0
      %v2332 = vadd.f32 %v2289, %v2331
      %v2333 = vpop.f32.mrb[0].mxu0
      %2334 = vdwg.mxu0
      %2337 = vrot.lane.b32.xlu0 %v2329, 2
      %v2338 = vpop.permute.xlu0 %2337
      %2339 = vrot.lane.b32.xlu0 %v2332, 2
      %v2340 = vpop.permute.xlu0 %2339
      %v2343 = vadd.f32 %v2011, %v2338
      %v2344 = vadd.f32 %v2012, %v2340
      %v2345 = vld [vmem:[%s1 + $0x240] sm:$0xff]
      %v2346 = vld [vmem:[%s1 + $0x248] sm:$0xff]
      %v2347 = vld [vmem:[%s1 + $0x250] sm:$0xff]
      %v2348 = vld [vmem:[%s1 + $0x258] sm:$0xff]
      %v2349 = vsel %vm1283, %v2343, 0.0
      %v2350 = vsel %vm1283, %v2344, 0.0
      %v2351 = vadd.f32 %v2349, %v2350
      %v2352 = vrot.slane %v2351, 4
      %v2353 = vadd.f32 %v2351, %v2352
      %v2354 = vrot.slane %v2353, 2
      %v2355 = vadd.f32 %v2353, %v2354
      %v2356 = vrot.slane %v2355, 1
      %v2357 = vadd.f32 %v2355, %v2356
      %v2358 = vmul.f32 %v2357, %v1767
      %v2359 = vsub.f32 %v2343, %v2358
      %v2360 = vsub.f32 %v2344, %v2358
      %v2361 = vmul.f32 %v2359, %v2359
      %v2362 = vmul.f32 %v2360, %v2360
      %v2363 = vsel %vm1283, %v2361, 0.0
      %v2364 = vsel %vm1283, %v2362, 0.0
      %v2365 = vadd.f32 %v2363, %v2364
      %v2366 = vrot.slane %v2365, 4
      %v2367 = vadd.f32 %v2365, %v2366
      %v2368 = vrot.slane %v2367, 2
      %v2369 = vadd.f32 %v2367, %v2368
      %v2370 = vrot.slane %v2369, 1
      %v2371 = vadd.f32 %v2369, %v2370
      %v2372 = vmul.f32 %v2371, %v1767
      %v2373 = vadd.f32 %v2372, 1e-05
      %v2374 = vrsqrt.pop %v2373
      %v2375 = vmul.f32 %v2359, %v2374
      %v2376 = vmul.f32 %v2360, %v2374
      %2378 = vset.pattern.permute.xlu0 0
      %2379 = vperm.xlu0 %2378, %v2345
      %v2380 = vpop.permute.xlu0 %2379
      %2383 = vset.pattern.permute.xlu0 0
      %2384 = vperm.xlu0 %2383, %v2346
      %v2385 = vpop.permute.xlu0 %2384
      %v2387 = vmul.f32 %v2375, %v2380
      %v2388 = vmul.f32 %v2376, %v2385
      %2390 = vset.pattern.permute.xlu0 0
      %2391 = vperm.xlu0 %2390, %v2347
      %v2392 = vpop.permute.xlu0 %2391
      %2395 = vset.pattern.permute.xlu0 0
      %2396 = vperm.xlu0 %2395, %v2348
      %v2397 = vpop.permute.xlu0 %2396
      %v2399 = vadd.f32 %v2387, %v2392
      %v2400 = vadd.f32 %v2388, %v2397
      %v2401 = vld [vmem:[%s1 + $0x260] sm:$0xff]
      %v2402 = vld [vmem:[%s1 + $0x268] sm:$0xff]
      %v2403 = vpack.c.bf16 %v2402, %v2401
      %v2404 = vpack.c.bf16 %v2400, %v2399
      %v2405 = vld [vmem:[%s1 + $0x270] sm:$0xff]
      %v2406 = vld [vmem:[%s1 + $0x278] sm:$0xff]
      %2408 = vset.pattern.permute.xlu0 0
      %2409 = vperm.xlu0 %2408, %v2405
      %v2410 = vpop.permute.xlu0 %2409
      %2413 = vset.pattern.permute.xlu0 0
      %2414 = vperm.xlu0 %2413, %v2406
      %v2415 = vpop.permute.xlu0 %2414
      %2418 = vrot.lane.b32.xlu0 %v2404, 126
      %v2419 = vpop.permute.xlu0 %2418
      %v2422 = vsel %vm1470, %v2403, 0
      %2424 = vmatprep.subr.bf16.mxu0 0
      %2425 = vmatpush1.bf16.msra.mxu0 %v2419
      %2426 = vmatprep.subr.bf16.mxu0 0
      %2427 = vmatpush1.bf16.msra.mxu0 0
      %2428 = vmatprep.subr.bf16.mxu0 0
      %2429 = vmatpush1.bf16.msra.mxu0 0
      %2430 = vmatprep.subr.bf16.mxu0 0
      %2431 = vmatpush1.bf16.msra.mxu0 0
      %2432 = vmatprep.subr.bf16.mxu0 0
      %2433 = vmatpush1.bf16.msra.mxu0 0
      %2434 = vmatprep.subr.bf16.mxu0 0
      %2435 = vmatpush1.bf16.msra.mxu0 0
      %2436 = vmatprep.subr.bf16.mxu0 0
      %2437 = vmatpush1.bf16.msra.mxu0 0
      %2438 = vmatprep.subr.bf16.mxu0 0
      %2439 = vmatpush1.bf16.msra.mxu0 0
      %2440 = vmatprep.subr.bf16.mxu0 0
      %2441 = vmatpush1.bf16.msra.mxu0 0
      %2442 = vmatprep.subr.bf16.mxu0 0
      %2443 = vmatpush1.bf16.msra.mxu0 0
      %2444 = vmatprep.subr.bf16.mxu0 0
      %2445 = vmatpush1.bf16.msra.mxu0 0
      %2446 = vmatprep.subr.bf16.mxu0 0
      %2447 = vmatpush1.bf16.msra.mxu0 0
      %2448 = vmatprep.subr.bf16.mxu0 0
      %2449 = vmatpush1.bf16.msra.mxu0 0
      %2450 = vmatprep.subr.bf16.mxu0 0
      %2451 = vmatpush1.bf16.msra.mxu0 0
      %2452 = vmatprep.subr.bf16.mxu0 0
      %2453 = vmatpush1.bf16.msra.mxu0 0
      %2454 = vmatprep.subr.bf16.mxu0 0
      %2455 = vmatpush1.bf16.msra.mxu0 0
      %2456 = vmatprep.mubr.bf16.mxu0 0
      %2457 = vmatmul.mubr.bf16.gmra.mrb[0].mxu0 %v2422
      %v2458 = vpop.f32.mrb[0].mxu0
      %v2459 = vadd.f32 %v2410, %v2458
      %v2460 = vpop.f32.mrb[0].mxu0
      %v2461 = vpop.f32.mrb[0].mxu0
      %v2462 = vadd.f32 %v2415, %v2461
      %v2463 = vpop.f32.mrb[0].mxu0
      %2464 = vdwg.mxu0
      %v2465 = vadd.f32 %v2459, 3.0
      %v2466 = vadd.f32 %v2462, 3.0
      %v2467 = vmax.f32 %v2465, 0.0
      %v2468 = vmax.f32 %v2466, 0.0
      %v2469 = vmin.f32 %v2467, 6.0
      %v2470 = vmin.f32 %v2468, 6.0
      %v2471 = vmul.f32 %v2459, %v2469
      %v2472 = vmul.f32 %v2462, %v2470
      %v2473 = vmul.f32 %v2471, 0.16666667
      %v2474 = vmul.f32 %v2472, 0.16666667
      %v2475 = vld [vmem:[%s1 + $0x280] sm:$0xff]
      %v2476 = vld [vmem:[%s1 + $0x288] sm:$0xff]
      %v2477 = vpack.c.bf16 %v2476, %v2475
      %v2478 = vpack.c.bf16 %v2474, %v2473
      %v2480 = vsel %vm1470, %v2477, 0
      %2482 = vmatprep.subr.bf16.mxu0 0
      %2483 = vmatpush1.bf16.msra.mxu0 %v2478
      %2484 = vmatprep.subr.bf16.mxu0 0
      %2485 = vmatpush1.bf16.msra.mxu0 0
      %2486 = vmatprep.subr.bf16.mxu0 0
      %2487 = vmatpush1.bf16.msra.mxu0 0
      %2488 = vmatprep.subr.bf16.mxu0 0
      %2489 = vmatpush1.bf16.msra.mxu0 0
      %2490 = vmatprep.subr.bf16.mxu0 0
      %2491 = vmatpush1.bf16.msra.mxu0 0
      %2492 = vmatprep.subr.bf16.mxu0 0
      %2493 = vmatpush1.bf16.msra.mxu0 0
      %2494 = vmatprep.subr.bf16.mxu0 0
      %2495 = vmatpush1.bf16.msra.mxu0 0
      %2496 = vmatprep.subr.bf16.mxu0 0
      %2497 = vmatpush1.bf16.msra.mxu0 0
      %2498 = vmatprep.subr.bf16.mxu0 0
      %2499 = vmatpush1.bf16.msra.mxu0 0
      %2500 = vmatprep.subr.bf16.mxu0 0
      %2501 = vmatpush1.bf16.msra.mxu0 0
      %2502 = vmatprep.subr.bf16.mxu0 0
      %2503 = vmatpush1.bf16.msra.mxu0 0
      %2504 = vmatprep.subr.bf16.mxu0 0
      %2505 = vmatpush1.bf16.msra.mxu0 0
      %2506 = vmatprep.subr.bf16.mxu0 0
      %2507 = vmatpush1.bf16.msra.mxu0 0
      %2508 = vmatprep.subr.bf16.mxu0 0
      %2509 = vmatpush1.bf16.msra.mxu0 0
      %2510 = vmatprep.subr.bf16.mxu0 0
      %2511 = vmatpush1.bf16.msra.mxu0 0
      %2512 = vmatprep.subr.bf16.mxu0 0
      %2513 = vmatpush1.bf16.msra.mxu0 0
      %2514 = vmatprep.mubr.bf16.mxu0 0
      %2515 = vmatmul.mubr.bf16.gmra.mrb[0].mxu0 %v2480
      %v2516 = vpop.f32.mrb[0].mxu0
      %v2517 = vadd.f32 0.0, %v2516
      %v2518 = vpop.f32.mrb[0].mxu0
      %v2519 = vpop.f32.mrb[0].mxu0
      %v2520 = vadd.f32 0.0, %v2519
      %v2521 = vpop.f32.mrb[0].mxu0
      %2522 = vdwg.mxu0
      %2525 = vrot.lane.b32.xlu0 %v2517, 2
      %v2526 = vpop.permute.xlu0 %2525
      %2527 = vrot.lane.b32.xlu0 %v2520, 2
      %v2528 = vpop.permute.xlu0 %2527
      %v2531 = vadd.f32 %v2399, %v2526
      %v2532 = vadd.f32 %v2400, %v2528
      %v2533 = vld [vmem:[%s1 + $0x290] sm:$0xff]
      %v2534 = vld [vmem:[%s1 + $0x298] sm:$0xff]
      %2536 = vset.pattern.permute.xlu0 0
      %2537 = vperm.xlu0 %2536, %v2533
      %v2538 = vpop.permute.xlu0 %2537
      %2541 = vset.pattern.permute.xlu0 0
      %2542 = vperm.xlu0 %2541, %v2534
      %v2543 = vpop.permute.xlu0 %2542
      %v2545 = vadd.f32 %v2531, %v2538
      %v2546 = vadd.f32 %v2532, %v2543
      %v2547 = vld [vmem:[%s1 + $0x2a0] sm:$0xff]
      %v2548 = vld [vmem:[%s1 + $0x2a8] sm:$0xff]
      %v2549 = vld [vmem:[%s1 + $0x2b0] sm:$0xff]
      %v2550 = vld [vmem:[%s1 + $0x2b8] sm:$0xff]
      %v2551 = vsel %vm1283, %v2545, 0.0
      %v2552 = vsel %vm1283, %v2546, 0.0
      %v2553 = vadd.f32 %v2551, %v2552
      %v2554 = vrot.slane %v2553, 4
      %v2555 = vadd.f32 %v2553, %v2554
      %v2556 = vrot.slane %v2555, 2
      %v2557 = vadd.f32 %v2555, %v2556
      %v2558 = vrot.slane %v2557, 1
      %v2559 = vadd.f32 %v2557, %v2558
      %v2560 = vmul.f32 %v2559, %v1767
      %v2561 = vsub.f32 %v2545, %v2560
      %v2562 = vsub.f32 %v2546, %v2560
      %v2563 = vmul.f32 %v2561, %v2561
      %v2564 = vmul.f32 %v2562, %v2562
      %v2565 = vsel %vm1283, %v2563, 0.0
      %v2566 = vsel %vm1283, %v2564, 0.0
      %v2567 = vadd.f32 %v2565, %v2566
      %v2568 = vrot.slane %v2567, 4
      %v2569 = vadd.f32 %v2567, %v2568
      %v2570 = vrot.slane %v2569, 2
      %v2571 = vadd.f32 %v2569, %v2570
      %v2572 = vrot.slane %v2571, 1
      %v2573 = vadd.f32 %v2571, %v2572
      %v2574 = vmul.f32 %v2573, %v1767
      %v2575 = vadd.f32 %v2574, 1e-05
      %v2576 = vrsqrt.pop %v2575
      %v2577 = vmul.f32 %v2561, %v2576
      %v2578 = vmul.f32 %v2562, %v2576
      %2580 = vset.pattern.permute.xlu0 0
      %2581 = vperm.xlu0 %2580, %v2547
      %v2582 = vpop.permute.xlu0 %2581
      %2585 = vset.pattern.permute.xlu0 0
      %2586 = vperm.xlu0 %2585, %v2548
      %v2587 = vpop.permute.xlu0 %2586
      %v2589 = vmul.f32 %v2577, %v2582
      %v2590 = vmul.f32 %v2578, %v2587
      %2592 = vset.pattern.permute.xlu0 0
      %2593 = vperm.xlu0 %2592, %v2549
      %v2594 = vpop.permute.xlu0 %2593
      %2597 = vset.pattern.permute.xlu0 0
      %2598 = vperm.xlu0 %2597, %v2550
      %v2599 = vpop.permute.xlu0 %2598
      %v2601 = vadd.f32 %v2589, %v2594
      %v2602 = vadd.f32 %v2590, %v2599
      %2605 = vrot.lane.b32.xlu0 %v2601, 126
      %v2606 = vpop.permute.xlu0 %2605
      %2607 = vrot.lane.b32.xlu0 %v2602, 126
      %v2608 = vpop.permute.xlu0 %2607
      %v2611 = vsel %vm170, %v2606, 0.0
      %2612 = vadd.xlane.f32.xlu0 %v2611
      %v2613 = vpop.xlane.xlu0 %2612
      %v2614 = vsel %vm170, %v2608, 0.0
      %2615 = vadd.xlane.f32.xlu0 %v2614
      %v2616 = vpop.xlane.xlu0 %2615
      %v2617 = vrcp.pop 4.0
      %v2618 = vmul.f32 %v2613, %v2617
      %v2619 = vmul.f32 %v2616, %v2617
      %vm2620 = vcmask 7168
      %2621 = vst.msk [vmem:[%s140] sm:$0xff] %vm2620, %v2618
      %2622 = vst.msk [vmem:[%s140 + $0x8] sm:$0xff] %vm2620, %v2619
      %p2623 = scmp.lt.s32.totalorder %s13, 1
      %s2624 = scalar_select %p2623, %s13, 1
      %s2625 = smul.addr %s2624, 2
      %s2626 = smul.addr %s2625, 8
      %s2627 = scalar_lea.vmem %s2, %s2626
      // Predicated region
      $region29: #{psdnet_forward.3} parent=27 // pred_check
        %p2628 = pneg %p78
      $region30: #{psdnet_forward.3} parent=27 // pred_check_branch
        %2630 = sbr.rel (%p2628) target = $region32
      $region31: #{psdnet_forward.3} parent=27 // pred_region
        _
      $region32: #{psdnet_forward.3} parent=27 // pred_fallthru
        _
    $region28: #{psdnet_forward.3} parent=5 // pred_fallthru
      _
    %p2631 = scmp.le.s32.totalorder 2, %s8
    // Predicated region
    $region33: #{psdnet_forward.3} parent=5 // pred_check
      %p2632 = pneg %p2631
    $region34: #{psdnet_forward.3} parent=5 // pred_check_branch
      %2634 = sbr.rel (%p2632) target = $region36
    $region35: #{psdnet_forward.3} parent=5 // pred_region
      %s2635 = ssub.s32 %s8, 2
      // Predicated region
      $region37: #{psdnet_forward.3} parent=35 // pred_check
        %p2636 = pneg %p84
      $region38: #{psdnet_forward.3} parent=35 // pred_check_branch
        %2638 = sbr.rel (%p2636) target = $region40
      $region39: #{psdnet_forward.3} parent=35 // pred_region
        %p2639 = scmp.lt.s32.totalorder %s14, 1
        %s2640 = scalar_select %p2639, %s14, 1
        %s2641 = smul.addr %s2640, 2
        %s2642 = smul.addr %s2641, 8
        %s2643 = scalar_lea.vmem %s2, %s2642
      $region40: #{psdnet_forward.3} parent=35 // pred_fallthru
        _
    $region36: #{psdnet_forward.3} parent=5 // pred_fallthru
      _
  $region6: #{psdnet_forward.3} parent=0 // loop_footer
    %s12 = sadd.s32 1, %s8
  $region7: #{psdnet_forward.3} parent=0 // loop_footer_branch
    %7 = sbr.rel target = $region3
  $region8: #{psdnet_forward.3} parent=0 // loop_exit
    _

// kernel: psdnet_forward.2
$region0: #{psdnet_forward.2}
  #allocation0 [shape = 'u32[]', space=smem, size = 0x4, offset = 0x4, fixed_abs, tag = 'smem constant byte address 0x4 - core index']
  #allocation1 [shape = 'u32[144,128]{1,0:T(1,128)}', space=vmem, size = 0x12000, scoped, tag = 'internal scratch']
  #allocation2 [shape = 'f32[8,23]{1,0:T(8,128)}', space=vmem, size = 0x1000, scoped, tag = 'scratch operand']
  #allocation3 [shape = 'f32[16,12]{1,0:T(8,128)}', space=vmem, size = 0x2000, scoped, tag = 'scratch operand']
  %s0 = inlined_call_operand.vmem [shape: f32[2,4,44], index: 0, kind: input, shape index: {}]
  %s1 = inlined_call_operand.vmem [shape: f32[704,16], index: 1, kind: input, shape index: {}]
  %s2 = inlined_call_operand.vmem [shape: f32[2,16,1], index: 2, kind: output, shape index: {}]
  %s3 = sld [smem:[#allocation0]]
  $region41: #{psdnet_forward.2} parent=0
    _
  %s5 = ssub.s32 1, %s3
  %s6 = scalar_select 0, %s5, %s3
  loop: start=0, step=1, limit=4
  $region2: #{psdnet_forward.2} parent=0 // loop_pre_header
    _
  $region3: #{psdnet_forward.2} parent=0 // loop_header
    %s8 = sphi 0, %s12
    %p9 = scmp.ge.s32.totalorder %s8, 4
    %s18 = sphi 0, %s20
    %s21 = sphi 0, %s18
    %s22 = sphi 0, %s21
    %s38 = sphi 0, %s22
    %s42 = sphi 0, %s42
    %s44 = sphi 0, %s42
    %s45 = sphi 0, %s44
    %s59 = sphi 0, %s45
    %s65 = sphi 0, %s67
    %s68 = sphi 0, %s65
    %s69 = sphi 0, %s68
    %s85 = sphi 0, %s69
  $region4: #{psdnet_forward.2} parent=0 // loop_header_branch
    %11 = sbr.rel (%p9) target = $region8
  $region5: #{psdnet_forward.2} parent=0 // loop_body
    %s13 = ssub.s32 %s8, 1
    %s14 = ssub.s32 %s8, 2
    %s15 = sadd.s32 %s8, 1
    %s16 = ssub.s32 %s8, %s15
    %p17 = scmp.eq.s32.totalorder %s16, 0
    %s19 = sadd.s32 %s18, 1
    %s20 = scalar_select %p17, %s18, %s19
    %p23 = pneg %p17
    %p24 = scmp.eq.s32.totalorder %s8, 1
    %p25 = por %p23, %p24
    %p26 = scmp.ne.s32.totalorder %s18, %s21
    %p27 = scmp.eq.s32.totalorder %s8, 0
    %p28 = por %p26, %p27
    %p29 = scmp.ne.s32.totalorder %s18, %s21
    %p30 = scmp.eq.s32.totalorder %s13, 1
    %p31 = por %p29, %p30
    %p32 = scmp.ne.s32.totalorder %s21, %s22
    %p33 = scmp.eq.s32.totalorder %s13, 0
    %p34 = por %p32, %p33
    %p35 = scmp.ne.s32.totalorder %s21, %s22
    %p36 = scmp.eq.s32.totalorder %s14, 1
    %p37 = por %p35, %p36
    %p39 = scmp.ne.s32.totalorder %s22, %s38
    %p40 = scmp.eq.s32.totalorder %s14, 0
    %p41 = por %p39, %p40
    %s43 = sadd.s32 %s42, 1
    %p46 = scmp.eq.s32.totalorder %s8, 1
    %p47 = scmp.ne.s32.totalorder %s42, %s44
    %p48 = scmp.eq.s32.totalorder %s8, 0
    %p49 = por %p47, %p48
    %p50 = scmp.ne.s32.totalorder %s42, %s44
    %p51 = scmp.eq.s32.totalorder %s13, 1
    %p52 = por %p50, %p51
    %p53 = scmp.ne.s32.totalorder %s44, %s45
    %p54 = scmp.eq.s32.totalorder %s13, 0
    %p55 = por %p53, %p54
    %p56 = scmp.ne.s32.totalorder %s44, %s45
    %p57 = scmp.eq.s32.totalorder %s14, 1
    %p58 = por %p56, %p57
    %p60 = scmp.ne.s32.totalorder %s45, %s59
    %p61 = scmp.eq.s32.totalorder %s14, 0
    %p62 = por %p60, %p61
    %s63 = ssub.s32 %s8, %s15
    %p64 = scmp.eq.s32.totalorder %s63, 0
    %s66 = sadd.s32 %s65, 1
    %s67 = scalar_select %p64, %s65, %s66
    %p70 = pneg %p64
    %p71 = scmp.eq.s32.totalorder %s8, 1
    %p72 = por %p70, %p71
    %p73 = scmp.ne.s32.totalorder %s65, %s68
    %p74 = scmp.eq.s32.totalorder %s8, 0
    %p75 = por %p73, %p74
    %p76 = scmp.ne.s32.totalorder %s65, %s68
    %p77 = scmp.eq.s32.totalorder %s13, 1
    %p78 = por %p76, %p77
    %p79 = scmp.ne.s32.totalorder %s68, %s69
    %p80 = scmp.eq.s32.totalorder %s13, 0
    %p81 = por %p79, %p80
    %p82 = scmp.ne.s32.totalorder %s68, %s69
    %p83 = scmp.eq.s32.totalorder %s14, 1
    %p84 = por %p82, %p83
    %p86 = scmp.ne.s32.totalorder %s69, %s85
    %p87 = scmp.eq.s32.totalorder %s14, 0
    %p88 = por %p86, %p87
    %p89 = scmp.le.s32.totalorder 1, %s8
    %p90 = scmp.lt.s32.totalorder %s8, 3
    %p91 = pnand %p89, %p90
    %p92 = pneg %p91
    // Predicated region
    $region9: #{psdnet_forward.2} parent=5 // pred_check
      _
    $region10: #{psdnet_forward.2} parent=5 // pred_check_branch
      %94 = sbr.rel (%p91) target = $region12
    $region11: #{psdnet_forward.2} parent=5 // pred_region
      %s95 = ssub.s32 %s8, 1
      // Predicated region
      $region13: #{psdnet_forward.2} parent=11 // pred_check
        %p96 = pneg %p55
      $region14: #{psdnet_forward.2} parent=11 // pred_check_branch
        %98 = sbr.rel (%p96) target = $region16
      $region15: #{psdnet_forward.2} parent=11 // pred_region
        _
      $region16: #{psdnet_forward.2} parent=11 // pred_fallthru
        _
    $region12: #{psdnet_forward.2} parent=5 // pred_fallthru
      _
    %p99 = scmp.lt.s32.totalorder %s8, 2
    // Predicated region
    $region17: #{psdnet_forward.2} parent=5 // pred_check
      %p100 = pneg %p99
    $region18: #{psdnet_forward.2} parent=5 // pred_check_branch
      %102 = sbr.rel (%p100) target = $region20
    $region19: #{psdnet_forward.2} parent=5 // pred_region
      // Predicated region
      $region21: #{psdnet_forward.2} parent=19 // pred_check
        %p103 = pneg %p28
      $region22: #{psdnet_forward.2} parent=19 // pred_check_branch
        %105 = sbr.rel (%p103) target = $region24
      $region23: #{psdnet_forward.2} parent=19 // pred_region
        %p106 = scmp.lt.s32.totalorder %s8, 1
        %s107 = scalar_select %p106, %s8, 1
        %s108 = smul.addr %s107, 4
        %s109 = scalar_lea.vmem %s0, %s108
      $region24: #{psdnet_forward.2} parent=19 // pred_fallthru
        _
    $region20: #{psdnet_forward.2} parent=5 // pred_fallthru
      _
    %p110 = scmp.le.s32.totalorder 1, %s8
    %p111 = scmp.lt.s32.totalorder %s8, 3
    %p112 = pnand %p110, %p111
    %p113 = pneg %p112
    // Predicated region
    $region25: #{psdnet_forward.2} parent=5 // pred_check
      _
    $region26: #{psdnet_forward.2} parent=5 // pred_check_branch
      %115 = sbr.rel (%p112) target = $region28
    $region27: #{psdnet_forward.2} parent=5 // pred_region
      %s116 = ssub.s32 %s8, 1
      %p117 = scmp.lt.s32.totalorder %s13, 1
      %s118 = scalar_select %p117, %s13, 1
      %s119 = smul.addr %s118, 4
      %s120 = scalar_lea.vmem %s0, %s119
      %p121 = pneg %p34
      %p122 = pneg %p31
      %p123 = pneg %p55
      %p124 = pneg %p52
      %p125 = pneg %p81
      %p126 = pneg %p78
      %p127 = scmp.lt.s32.totalorder %s13, 1
      %s128 = scalar_select %p127, %s13, 1
      %s129 = smul.addr %s128, 2
      %s130 = smul.addr %s129, 8
      %s131 = scalar_lea.vmem %s2, %s130
      %p132 = scmp.lt.s32.totalorder %s13, 1
      %s133 = scalar_select %p132, %s13, 1
      %s134 = smul.addr %s133, 4
      %s135 = scalar_lea.vmem %s0, %s134
      %p136 = scmp.lt.s32.totalorder %s13, 1
      %s137 = scalar_select %p136, %s13, 1
      %s138 = smul.addr %s137, 2
      %s139 = smul.addr %s138, 8
      %s140 = scalar_lea.vmem %s2, %s139
      %v142 = vlaneseq
      %v143 = vshrl.u32 %v142, 7
      %v144 = vadd.s32 %v143, 8
      %v145 = vadd.s32 %v143, 16
      %v146 = vadd.s32 %v143, 24
      %v147 = vadd.s32 %v143, 32
      %v148 = vlaneseq
      %v149 = vand.u32 %v148, 127
      %v150 = vmul.u32 %v149, 2
      %v151 = vsub.s32 %v143, %v150
      %v152 = vsub.s32 %v144, %v150
      %v153 = vsub.s32 %v145, %v150
      %v154 = vsub.s32 %v146, %v150
      %v155 = vsub.s32 %v147, %v150
      %vm156 = vcmp.ge.s32.totalorder %v151, 0
      %vm157 = vcmp.ge.s32.totalorder %v152, 0
      %vm158 = vcmp.ge.s32.totalorder %v153, 0
      %vm159 = vcmp.ge.s32.totalorder %v154, 0
      %vm160 = vcmp.ge.s32.totalorder %v155, 0
      %vm161 = vcmp.lt.s32.totalorder %v151, 4
      %vm162 = vcmp.lt.s32.totalorder %v152, 4
      %vm163 = vcmp.lt.s32.totalorder %v153, 4
      %vm164 = vcmp.lt.s32.totalorder %v154, 4
      %vm165 = vcmp.lt.s32.totalorder %v155, 4
      %vm166 = vmand %vm156, %vm161
      %vm167 = vmand %vm157, %vm162
      %vm168 = vmand %vm158, %vm163
      %vm169 = vmand %vm159, %vm164
      %vm170 = vmand %vm160, %vm165
      %v171 = vsel %vm166, 0.25, 0.0
      %v172 = vsel %vm167, 0.25, 0.0
      %v173 = vsel %vm168, 0.25, 0.0
      %v174 = vsel %vm169, 0.25, 0.0
      %v175 = vsel %vm170, 0.25, 0.0
      %v176 = vld [vmem:[%s135] sm:$0xf]
      %v177 = vld [vmem:[%s1] sm:$0xff]
      %v178 = vld [vmem:[%s1 + $0x8] sm:$0xff]
      %180 = vrot.lane.b32.xlu0 %v176, 127
      %v181 = vpop.permute.xlu0 %180
      %vm182 = vcmask 31744
      %v184 = vsel %vm182, %v178, 0
      %vm186 = vcmask 1043456
      %v187 = vsel %vm186, %v181, 0
      %189 = vmatprep.subr.mxu0 0.0
      %190 = vmatpush1.msra.mxu0 %v187
      %191 = vmatprep.subr.mxu0 0.0
      %192 = vmatpush1.msra.mxu0 0.0
      %193 = vmatprep.subr.mxu0 0.0
      %194 = vmatpush1.msra.mxu0 0.0
      %195 = vmatprep.subr.mxu0 0.0
      %196 = vmatpush1.msra.mxu0 0.0
      %197 = vmatprep.subr.mxu0 0.0
      %198 = vmatpush1.msra.mxu0 0.0
      %199 = vmatprep.subr.mxu0 0.0
      %200 = vmatpush1.msra.mxu0 0.0
      %201 = vmatprep.subr.mxu0 0.0
      %202 = vmatpush1.msra.mxu0 0.0
      %203 = vmatprep.subr.mxu0 0.0
      %204 = vmatpush1.msra.mxu0 0.0
      %205 = vmatprep.subr.mxu0 0.0
      %206 = vmatpush1.msra.mxu0 0.0
      %207 = vmatprep.subr.mxu0 0.0
      %208 = vmatpush1.msra.mxu0 0.0
      %209 = vmatprep.subr.mxu0 0.0
      %210 = vmatpush1.msra.mxu0 0.0
      %211 = vmatprep.subr.mxu0 0.0
      %212 = vmatpush1.msra.mxu0 0.0
      %213 = vmatprep.subr.mxu0 0.0
      %214 = vmatpush1.msra.mxu0 0.0
      %215 = vmatprep.subr.mxu0 0.0
      %216 = vmatpush1.msra.mxu0 0.0
      %217 = vmatprep.subr.mxu0 0.0
      %218 = vmatpush1.msra.mxu0 0.0
      %219 = vmatprep.subr.mxu0 0.0
      %220 = vmatpush1.msra.mxu0 0.0
      %221 = vmatprep.subr.mxu0 0.0
      %222 = vmatpush1.msra.mxu0 0.0
      %223 = vmatprep.subr.mxu0 0.0
      %224 = vmatpush1.msra.mxu0 0.0
      %225 = vmatprep.subr.mxu0 0.0
      %226 = vmatpush1.msra.mxu0 0.0
      %227 = vmatprep.subr.mxu0 0.0
      %228 = vmatpush1.msra.mxu0 0.0
      %229 = vmatprep.subr.mxu0 0.0
      %230 = vmatpush1.msra.mxu0 0.0
      %231 = vmatprep.subr.mxu0 0.0
      %232 = vmatpush1.msra.mxu0 0.0
      %233 = vmatprep.subr.mxu0 0.0
      %234 = vmatpush1.msra.mxu0 0.0
      %235 = vmatprep.subr.mxu0 0.0
      %236 = vmatpush1.msra.mxu0 0.0
      %237 = vmatprep.subr.mxu0 0.0
      %238 = vmatpush1.msra.mxu0 0.0
      %239 = vmatprep.subr.mxu0 0.0
      %240 = vmatpush1.msra.mxu0 0.0
      %241 = vmatprep.subr.mxu0 0.0
      %242 = vmatpush1.msra.mxu0 0.0
      %243 = vmatprep.subr.mxu0 0.0
      %244 = vmatpush1.msra.mxu0 0.0
      %245 = vmatprep.subr.mxu0 0.0
      %246 = vmatpush1.msra.mxu0 0.0
      %247 = vmatprep.subr.mxu0 0.0
      %248 = vmatpush1.msra.mxu0 0.0
      %249 = vmatprep.subr.mxu0 0.0
      %250 = vmatpush1.msra.mxu0 0.0
      %251 = vmatprep.subr.mxu0 0.0
      %252 = vmatpush1.msra.mxu0 0.0
      %253 = vmatprep.mubr.f32.mxu0 0.0
      %254 = vmatmul.mubr.f32.gmra.mrb[0].mxu0 %v184
      %v255 = vpop.f32.mrb[0].mxu0
      %v256 = vadd.f32 0.0, %v255
      %v257 = vpop.f32.mrb[0].mxu0
      %258 = vdwg.mxu0
      %v260 = vsel %vm182, %v177, 0
      %v262 = vsel %vm186, %v176, 0
      %264 = vmatprep.subr.mxu0 0.0
      %265 = vmatpush1.msra.mxu0 %v262
      %266 = vmatprep.subr.mxu0 0.0
      %267 = vmatpush1.msra.mxu0 0.0
      %268 = vmatprep.subr.mxu0 0.0
      %269 = vmatpush1.msra.mxu0 0.0
      %270 = vmatprep.subr.mxu0 0.0
      %271 = vmatpush1.msra.mxu0 0.0
      %272 = vmatprep.subr.mxu0 0.0
      %273 = vmatpush1.msra.mxu0 0.0
      %274 = vmatprep.subr.mxu0 0.0
      %275 = vmatpush1.msra.mxu0 0.0
      %276 = vmatprep.subr.mxu0 0.0
      %277 = vmatpush1.msra.mxu0 0.0
      %278 = vmatprep.subr.mxu0 0.0
      %279 = vmatpush1.msra.mxu0 0.0
      %280 = vmatprep.subr.mxu0 0.0
      %281 = vmatpush1.msra.mxu0 0.0
      %282 = vmatprep.subr.mxu0 0.0
      %283 = vmatpush1.msra.mxu0 0.0
      %284 = vmatprep.subr.mxu0 0.0
      %285 = vmatpush1.msra.mxu0 0.0
      %286 = vmatprep.subr.mxu0 0.0
      %287 = vmatpush1.msra.mxu0 0.0
      %288 = vmatprep.subr.mxu0 0.0
      %289 = vmatpush1.msra.mxu0 0.0
      %290 = vmatprep.subr.mxu0 0.0
      %291 = vmatpush1.msra.mxu0 0.0
      %292 = vmatprep.subr.mxu0 0.0
      %293 = vmatpush1.msra.mxu0 0.0
      %294 = vmatprep.subr.mxu0 0.0
      %295 = vmatpush1.msra.mxu0 0.0
      %296 = vmatprep.subr.mxu0 0.0
      %297 = vmatpush1.msra.mxu0 0.0
      %298 = vmatprep.subr.mxu0 0.0
      %299 = vmatpush1.msra.mxu0 0.0
      %300 = vmatprep.subr.mxu0 0.0
      %301 = vmatpush1.msra.mxu0 0.0
      %302 = vmatprep.subr.mxu0 0.0
      %303 = vmatpush1.msra.mxu0 0.0
      %304 = vmatprep.subr.mxu0 0.0
      %305 = vmatpush1.msra.mxu0 0.0
      %306 = vmatprep.subr.mxu0 0.0
      %307 = vmatpush1.msra.mxu0 0.0
      %308 = vmatprep.subr.mxu0 0.0
      %309 = vmatpush1.msra.mxu0 0.0
      %310 = vmatprep.subr.mxu0 0.0
      %311 = vmatpush1.msra.mxu0 0.0
      %312 = vmatprep.subr.mxu0 0.0
      %313 = vmatpush1.msra.mxu0 0.0
      %314 = vmatprep.subr.mxu0 0.0
      %315 = vmatpush1.msra.mxu0 0.0
      %316 = vmatprep.subr.mxu0 0.0
      %317 = vmatpush1.msra.mxu0 0.0
      %318 = vmatprep.subr.mxu0 0.0
      %319 = vmatpush1.msra.mxu0 0.0
      %320 = vmatprep.subr.mxu0 0.0
      %321 = vmatpush1.msra.mxu0 0.0
      %322 = vmatprep.subr.mxu0 0.0
      %323 = vmatpush1.msra.mxu0 0.0
      %324 = vmatprep.subr.mxu0 0.0
      %325 = vmatpush1.msra.mxu0 0.0
      %326 = vmatprep.subr.mxu0 0.0
      %327 = vmatpush1.msra.mxu0 0.0
      %328 = vmatprep.mubr.f32.mxu0 0.0
      %329 = vmatmul.mubr.f32.gmra.mrb[0].mxu0 %v260
      %v330 = vpop.f32.mrb[0].mxu0
      %v331 = vadd.f32 %v256, %v330
      %v332 = vpop.f32.mrb[0].mxu0
      %333 = vdwg.mxu0
      %v334 = vld [vmem:[%s1 + $0x10] sm:$0xff]
      %335 = vrot.lane.b32.xlu0 %v176, 126
      %v336 = vpop.permute.xlu0 %335
      %v338 = vsel %vm182, %v334, 0
      %v340 = vsel %vm186, %v336, 0
      %342 = vmatprep.subr.mxu0 0.0
      %343 = vmatpush1.msra.mxu0 %v340
      %344 = vmatprep.subr.mxu0 0.0
      %345 = vmatpush1.msra.mxu0 0.0
      %346 = vmatprep.subr.mxu0 0.0
      %347 = vmatpush1.msra.mxu0 0.0
      %348 = vmatprep.subr.mxu0 0.0
      %349 = vmatpush1.msra.mxu0 0.0
      %350 = vmatprep.subr.mxu0 0.0
      %351 = vmatpush1.msra.mxu0 0.0
      %352 = vmatprep.subr.mxu0 0.0
      %353 = vmatpush1.msra.mxu0 0.0
      %354 = vmatprep.subr.mxu0 0.0
      %355 = vmatpush1.msra.mxu0 0.0
      %356 = vmatprep.subr.mxu0 0.0
      %357 = vmatpush1.msra.mxu0 0.0
      %358 = vmatprep.subr.mxu0 0.0
      %359 = vmatpush1.msra.mxu0 0.0
      %360 = vmatprep.subr.mxu0 0.0
      %361 = vmatpush1.msra.mxu0 0.0
      %362 = vmatprep.subr.mxu0 0.0
      %363 = vmatpush1.msra.mxu0 0.0
      %364 = vmatprep.subr.mxu0 0.0
      %365 = vmatpush1.msra.mxu0 0.0
      %366 = vmatprep.subr.mxu0 0.0
      %367 = vmatpush1.msra.mxu0 0.0
      %368 = vmatprep.subr.mxu0 0.0
      %369 = vmatpush1.msra.mxu0 0.0
      %370 = vmatprep.subr.mxu0 0.0
      %371 = vmatpush1.msra.mxu0 0.0
      %372 = vmatprep.subr.mxu0 0.0
      %373 = vmatpush1.msra.mxu0 0.0
      %374 = vmatprep.subr.mxu0 0.0
      %375 = vmatpush1.msra.mxu0 0.0
      %376 = vmatprep.subr.mxu0 0.0
      %377 = vmatpush1.msra.mxu0 0.0
      %378 = vmatprep.subr.mxu0 0.0
      %379 = vmatpush1.msra.mxu0 0.0
      %380 = vmatprep.subr.mxu0 0.0
      %381 = vmatpush1.msra.mxu0 0.0
      %382 = vmatprep.subr.mxu0 0.0
      %383 = vmatpush1.msra.mxu0 0.0
      %384 = vmatprep.subr.mxu0 0.0
      %385 = vmatpush1.msra.mxu0 0.0
      %386 = vmatprep.subr.mxu0 0.0
      %387 = vmatpush1.msra.mxu0 0.0
      %388 = vmatprep.subr.mxu0 0.0
      %389 = vmatpush1.msra.mxu0 0.0
      %390 = vmatprep.subr.mxu0 0.0
      %391 = vmatpush1.msra.mxu0 0.0
      %392 = vmatprep.subr.mxu0 0.0
      %393 = vmatpush1.msra.mxu0 0.0
      %394 = vmatprep.subr.mxu0 0.0
      %395 = vmatpush1.msra.mxu0 0.0
      %396 = vmatprep.subr.mxu0 0.0
      %397 = vmatpush1.msra.mxu0 0.0
      %398 = vmatprep.subr.mxu0 0.0
      %399 = vmatpush1.msra.mxu0 0.0
      %400 = vmatprep.subr.mxu0 0.0
      %401 = vmatpush1.msra.mxu0 0.0
      %402 = vmatprep.subr.mxu0 0.0
      %403 = vmatpush1.msra.mxu0 0.0
      %404 = vmatprep.subr.mxu0 0.0
      %405 = vmatpush1.msra.mxu0 0.0
      %406 = vmatprep.mubr.f32.mxu0 0.0
      %407 = vmatmul.mubr.f32.gmra.mrb[0].mxu0 %v338
      %v408 = vpop.f32.mrb[0].mxu0
      %v409 = vadd.f32 0.0, %v408
      %v410 = vpop.f32.mrb[0].mxu0
      %411 = vdwg.mxu0
      %v412 = vadd.f32 %v331, %v409
      %v413 = vld [vmem:[%s1 + $0x18] sm:$0xff]
      %414 = vrot.lane.b32.xlu0 %v176, 125
      %v415 = vpop.permute.xlu0 %414
      %v417 = vsel %vm182, %v413, 0
      %v419 = vsel %vm186, %v415, 0
      %421 = vmatprep.subr.mxu0 0.0
      %422 = vmatpush1.msra.mxu0 %v419
      %423 = vmatprep.subr.mxu0 0.0
      %424 = vmatpush1.msra.mxu0 0.0
      %425 = vmatprep.subr.mxu0 0.0
      %426 = vmatpush1.msra.mxu0 0.0
      %427 = vmatprep.subr.mxu0 0.0
      %428 = vmatpush1.msra.mxu0 0.0
      %429 = vmatprep.subr.mxu0 0.0
      %430 = vmatpush1.msra.mxu0 0.0
      %431 = vmatprep.subr.mxu0 0.0
      %432 = vmatpush1.msra.mxu0 0.0
      %433 = vmatprep.subr.mxu0 0.0
      %434 = vmatpush1.msra.mxu0 0.0
      %435 = vmatprep.subr.mxu0 0.0
      %436 = vmatpush1.msra.mxu0 0.0
      %437 = vmatprep.subr.mxu0 0.0
      %438 = vmatpush1.msra.mxu0 0.0
      %439 = vmatprep.subr.mxu0 0.0
      %440 = vmatpush1.msra.mxu0 0.0
      %441 = vmatprep.subr.mxu0 0.0
      %442 = vmatpush1.msra.mxu0 0.0
      %443 = vmatprep.subr.mxu0 0.0
      %444 = vmatpush1.msra.mxu0 0.0
      %445 = vmatprep.subr.mxu0 0.0
      %446 = vmatpush1.msra.mxu0 0.0
      %447 = vmatprep.subr.mxu0 0.0
      %448 = vmatpush1.msra.mxu0 0.0
      %449 = vmatprep.subr.mxu0 0.0
      %450 = vmatpush1.msra.mxu0 0.0
      %451 = vmatprep.subr.mxu0 0.0
      %452 = vmatpush1.msra.mxu0 0.0
      %453 = vmatprep.subr.mxu0 0.0
      %454 = vmatpush1.msra.mxu0 0.0
      %455 = vmatprep.subr.mxu0 0.0
      %456 = vmatpush1.msra.mxu0 0.0
      %457 = vmatprep.subr.mxu0 0.0
      %458 = vmatpush1.msra.mxu0 0.0
      %459 = vmatprep.subr.mxu0 0.0
      %460 = vmatpush1.msra.mxu0 0.0
      %461 = vmatprep.subr.mxu0 0.0
      %462 = vmatpush1.msra.mxu0 0.0
      %463 = vmatprep.subr.mxu0 0.0
      %464 = vmatpush1.msra.mxu0 0.0
      %465 = vmatprep.subr.mxu0 0.0
      %466 = vmatpush1.msra.mxu0 0.0
      %467 = vmatprep.subr.mxu0 0.0
      %468 = vmatpush1.msra.mxu0 0.0
      %469 = vmatprep.subr.mxu0 0.0
      %470 = vmatpush1.msra.mxu0 0.0
      %471 = vmatprep.subr.mxu0 0.0
      %472 = vmatpush1.msra.mxu0 0.0
      %473 = vmatprep.subr.mxu0 0.0
      %474 = vmatpush1.msra.mxu0 0.0
      %475 = vmatprep.subr.mxu0 0.0
      %476 = vmatpush1.msra.mxu0 0.0
      %477 = vmatprep.subr.mxu0 0.0
      %478 = vmatpush1.msra.mxu0 0.0
      %479 = vmatprep.subr.mxu0 0.0
      %480 = vmatpush1.msra.mxu0 0.0
      %481 = vmatprep.subr.mxu0 0.0
      %482 = vmatpush1.msra.mxu0 0.0
      %483 = vmatprep.subr.mxu0 0.0
      %484 = vmatpush1.msra.mxu0 0.0
      %485 = vmatprep.mubr.f32.mxu0 0.0
      %486 = vmatmul.mubr.f32.gmra.mrb[0].mxu0 %v417
      %v487 = vpop.f32.mrb[0].mxu0
      %v488 = vadd.f32 0.0, %v487
      %v489 = vpop.f32.mrb[0].mxu0
      %490 = vdwg.mxu0
      %v491 = vadd.f32 %v412, %v488
      %v492 = vld [vmem:[%s1 + $0x20] sm:$0xff]
      %493 = vrot.lane.b32.xlu0 %v176, 124
      %v494 = vpop.permute.xlu0 %493
      %v496 = vsel %vm182, %v492, 0
      %v498 = vsel %vm186, %v494, 0
      %500 = vmatprep.subr.mxu0 0.0
      %501 = vmatpush1.msra.mxu0 %v498
      %502 = vmatprep.subr.mxu0 0.0
      %503 = vmatpush1.msra.mxu0 0.0
      %504 = vmatprep.subr.mxu0 0.0
      %505 = vmatpush1.msra.mxu0 0.0
      %506 = vmatprep.subr.mxu0 0.0
      %507 = vmatpush1.msra.mxu0 0.0
      %508 = vmatprep.subr.mxu0 0.0
      %509 = vmatpush1.msra.mxu0 0.0
      %510 = vmatprep.subr.mxu0 0.0
      %511 = vmatpush1.msra.mxu0 0.0
      %512 = vmatprep.subr.mxu0 0.0
      %513 = vmatpush1.msra.mxu0 0.0
      %514 = vmatprep.subr.mxu0 0.0
      %515 = vmatpush1.msra.mxu0 0.0
      %516 = vmatprep.subr.mxu0 0.0
      %517 = vmatpush1.msra.mxu0 0.0
      %518 = vmatprep.subr.mxu0 0.0
      %519 = vmatpush1.msra.mxu0 0.0
      %520 = vmatprep.subr.mxu0 0.0
      %521 = vmatpush1.msra.mxu0 0.0
      %522 = vmatprep.subr.mxu0 0.0
      %523 = vmatpush1.msra.mxu0 0.0
      %524 = vmatprep.subr.mxu0 0.0
      %525 = vmatpush1.msra.mxu0 0.0
      %526 = vmatprep.subr.mxu0 0.0
      %527 = vmatpush1.msra.mxu0 0.0
      %528 = vmatprep.subr.mxu0 0.0
      %529 = vmatpush1.msra.mxu0 0.0
      %530 = vmatprep.subr.mxu0 0.0
      %531 = vmatpush1.msra.mxu0 0.0
      %532 = vmatprep.subr.mxu0 0.0
      %533 = vmatpush1.msra.mxu0 0.0
      %534 = vmatprep.subr.mxu0 0.0
      %535 = vmatpush1.msra.mxu0 0.0
      %536 = vmatprep.subr.mxu0 0.0
      %537 = vmatpush1.msra.mxu0 0.0
      %538 = vmatprep.subr.mxu0 0.0
      %539 = vmatpush1.msra.mxu0 0.0
      %540 = vmatprep.subr.mxu0 0.0
      %541 = vmatpush1.msra.mxu0 0.0
      %542 = vmatprep.subr.mxu0 0.0
      %543 = vmatpush1.msra.mxu0 0.0
      %544 = vmatprep.subr.mxu0 0.0
      %545 = vmatpush1.msra.mxu0 0.0
      %546 = vmatprep.subr.mxu0 0.0
      %547 = vmatpush1.msra.mxu0 0.0
      %548 = vmatprep.subr.mxu0 0.0
      %549 = vmatpush1.msra.mxu0 0.0
      %550 = vmatprep.subr.mxu0 0.0
      %551 = vmatpush1.msra.mxu0 0.0
      %552 = vmatprep.subr.mxu0 0.0
      %553 = vmatpush1.msra.mxu0 0.0
      %554 = vmatprep.subr.mxu0 0.0
      %555 = vmatpush1.msra.mxu0 0.0
      %556 = vmatprep.subr.mxu0 0.0
      %557 = vmatpush1.msra.mxu0 0.0
      %558 = vmatprep.subr.mxu0 0.0
      %559 = vmatpush1.msra.mxu0 0.0
      %560 = vmatprep.subr.mxu0 0.0
      %561 = vmatpush1.msra.mxu0 0.0
      %562 = vmatprep.subr.mxu0 0.0
      %563 = vmatpush1.msra.mxu0 0.0
      %564 = vmatprep.mubr.f32.mxu0 0.0
      %565 = vmatmul.mubr.f32.gmra.mrb[0].mxu0 %v496
      %v566 = vpop.f32.mrb[0].mxu0
      %v567 = vadd.f32 0.0, %v566
      %v568 = vpop.f32.mrb[0].mxu0
      %569 = vdwg.mxu0
      %v570 = vadd.f32 %v491, %v567
      %v571 = vld [vmem:[%s1 + $0x28] sm:$0xff]
      %573 = vset.pattern.permute.xlu0 0
      %574 = vperm.xlu0 %573, %v571
      %v575 = vpop.permute.xlu0 %574
      %v577 = vadd.f32 %v570, %v575
      %vm578 = vcmp.gt.f32.partialorder %v577, 0.0
      %v579 = vmin.f32 %v577, 0.0
      %v580 = vmul.f32 %v579, 1.442695
      %v581 = vpow.pop %v580
      %v582 = vsub.f32 %v581, 1.0
      %v583 = vmul.f32 %v582, 0.1
      %v584 = vsel %vm578, %v577, %v583
      %vm585 = vcmask 187392
      %586 = vst.msk [vmem:[#allocation2] sm:$0xff] %vm585, 0.0
      %vm587 = vcmask 326656
      %v589 = vsel %vm587, %v584, 0
      %591 = vmatprep.subr.mxu0 0.0
      %592 = vmatpush1.msra.mxu0 %v171
      %593 = vmatprep.subr.mxu0 0.0
      %594 = vmatpush1.msra.mxu0 %v172
      %595 = vmatprep.subr.mxu0 0.0
      %596 = vmatpush1.msra.mxu0 %v173
      %597 = vmatprep.subr.mxu0 0.0
      %598 = vmatpush1.msra.mxu0 %v174
      %599 = vmatprep.subr.mxu0 0.0
      %600 = vmatpush1.msra.mxu0 %v175
      %601 = vmatprep.subr.mxu0 0.0
      %602 = vmatpush1.msra.mxu0 0.0
      %603 = vmatprep.subr.mxu0 0.0
      %604 = vmatpush1.msra.mxu0 0.0
      %605 = vmatprep.subr.mxu0 0.0
      %606 = vmatpush1.msra.mxu0 0.0
      %607 = vmatprep.subr.mxu0 0.0
      %608 = vmatpush1.msra.mxu0 0.0
      %609 = vmatprep.subr.mxu0 0.0
      %610 = vmatpush1.msra.mxu0 0.0
      %611 = vmatprep.subr.mxu0 0.0
      %612 = vmatpush1.msra.mxu0 0.0
      %613 = vmatprep.subr.mxu0 0.0
      %614 = vmatpush1.msra.mxu0 0.0
      %615 = vmatprep.subr.mxu0 0.0
      %616 = vmatpush1.msra.mxu0 0.0
      %617 = vmatprep.subr.mxu0 0.0
      %618 = vmatpush1.msra.mxu0 0.0
      %619 = vmatprep.subr.mxu0 0.0
      %620 = vmatpush1.msra.mxu0 0.0
      %621 = vmatprep.subr.mxu0 0.0
      %622 = vmatpush1.msra.mxu0 0.0
      %623 = vmatprep.subr.mxu0 0.0
      %624 = vmatpush1.msra.mxu0 0.0
      %625 = vmatprep.subr.mxu0 0.0
      %626 = vmatpush1.msra.mxu0 0.0
      %627 = vmatprep.subr.mxu0 0.0
      %628 = vmatpush1.msra.mxu0 0.0
      %629 = vmatprep.subr.mxu0 0.0
      %630 = vmatpush1.msra.mxu0 0.0
      %631 = vmatprep.subr.mxu0 0.0
      %632 = vmatpush1.msra.mxu0 0.0
      %633 = vmatprep.subr.mxu0 0.0
      %634 = vmatpush1.msra.mxu0 0.0
      %635 = vmatprep.subr.mxu0 0.0
      %636 = vmatpush1.msra.mxu0 0.0
      %637 = vmatprep.subr.mxu0 0.0
      %638 = vmatpush1.msra.mxu0 0.0
      %639 = vmatprep.subr.mxu0 0.0
      %640 = vmatpush1.msra.mxu0 0.0
      %641 = vmatprep.subr.mxu0 0.0
      %642 = vmatpush1.msra.mxu0 0.0
      %643 = vmatprep.subr.mxu0 0.0
      %644 = vmatpush1.msra.mxu0 0.0
      %645 = vmatprep.subr.mxu0 0.0
      %646 = vmatpush1.msra.mxu0 0.0
      %647 = vmatprep.subr.mxu0 0.0
      %648 = vmatpush1.msra.mxu0 0.0
      %649 = vmatprep.subr.mxu0 0.0
      %650 = vmatpush1.msra.mxu0 0.0
      %651 = vmatprep.subr.mxu0 0.0
      %652 = vmatpush1.msra.mxu0 0.0
      %653 = vmatprep.subr.mxu0 0.0
      %654 = vmatpush1.msra.mxu0 0.0
      %655 = vmatprep.mubr.f32.mxu0 0.0
      %656 = vmatmul.mubr.f32.gmra.mrb[0].mxu0 %v589
      %v657 = vpop.f32.mrb[0].mxu0
      %v658 = vadd.f32 0.0, %v657
      %v659 = vpop.f32.mrb[0].mxu0
      %660 = vdwg.mxu0
      %662 = vrot.lane.b32.xlu0 %v658, 2
      %v663 = vpop.permute.xlu0 %662
      %vm665 = vcmask 171024
      %666 = vst.msk [vmem:[#allocation2] sm:$0xff] %vm665, %v663
      %v667 = vld [vmem:[#allocation2] sm:$0xff]
      %v668 = vld [vmem:[%s1 + $0x30] sm:$0xff]
      %670 = vset.pattern.permute.xlu0 0
      %671 = vperm.xlu0 %670, %v668
      %v672 = vpop.permute.xlu0 %671
      %v674 = vmul.f32 %v667, %v672
      %675 = vset.pattern.permute.xlu0 1
      %676 = vperm.xlu0 %675, %v668
      %v677 = vpop.permute.xlu0 %676
      %v679 = vmul.f32 %v667, %v677
      %681 = vrot.lane.b32.xlu0 %v679, 127
      %v682 = vpop.permute.xlu0 %681
      %v684 = vadd.f32 %v674, %v682
      %685 = vset.pattern.permute.xlu0 2
      %686 = vperm.xlu0 %685, %v668
      %v687 = vpop.permute.xlu0 %686
      %v689 = vmul.f32 %v667, %v687
      %691 = vrot.lane.b32.xlu0 %v689, 126
      %v692 = vpop.permute.xlu0 %691
      %v694 = vadd.f32 %v684, %v692
      %695 = vset.pattern.permute.xlu0 3
      %696 = vperm.xlu0 %695, %v668
      %v697 = vpop.permute.xlu0 %696
      %v699 = vmul.f32 %v667, %v697
      %701 = vrot.lane.b32.xlu0 %v699, 125
      %v702 = vpop.permute.xlu0 %701
      %v704 = vadd.f32 %v694, %v702
      %705 = vset.pattern.permute.xlu0 4
      %706 = vperm.xlu0 %705, %v668
      %v707 = vpop.permute.xlu0 %706
      %v709 = vmul.f32 %v667, %v707
      %711 = vrot.lane.b32.xlu0 %v709, 124
      %v712 = vpop.permute.xlu0 %711
      %v714 = vadd.f32 %v704, %v712
      %v715 = vld [vmem:[%s1 + $0x38] sm:$0xff]
      %717 = vset.pattern.permute.xlu0 0
      %718 = vperm.xlu0 %717, %v715
      %v719 = vpop.permute.xlu0 %718
      %v721 = vadd.f32 %v714, %v719
      %vm722 = vcmp.gt.f32.partialorder %v721, 0.0
      %v723 = vmin.f32 %v721, 0.0
      %v724 = vmul.f32 %v723, 1.442695
      %v725 = vpow.pop %v724
      %v726 = vsub.f32 %v725, 1.0
      %v727 = vmul.f32 %v726, 0.1
      %v728 = vsel %vm722, %v721, %v727
      %730 = vrot.lane.b32.xlu0 %v728, 2
      %v731 = vpop.permute.xlu0 %730
      %v733 = vadd.f32 %v667, %v731
      %734 = vst.msk [vmem:[#allocation2] sm:$0xff] %vm665, %v733
      %v735 = vld [vmem:[#allocation2] sm:$0xff]
      %v736 = vld [vmem:[%s1 + $0x40] sm:$0xff]
      %v737 = vld [vmem:[%s1 + $0x48] sm:$0xff]
      %v738 = vld [vmem:[%s1 + $0x50] sm:$0xff]
      %v739 = vld [vmem:[%s1 + $0x58] sm:$0xff]
      %741 = vrot.lane.b32.xlu0 %v735, 127
      %v742 = vpop.permute.xlu0 %741
      %vm744 = vcmask 64512
      %v746 = vsel %vm744, %v738, 0
      %v749 = vsel %vm744, %v739, 0
      %751 = vmatprep.subr.mxu0 0.0
      %752 = vmatpush1.msra.mxu0 %v742
      %753 = vmatprep.subr.mxu0 0.0
      %754 = vmatpush1.msra.mxu0 0.0
      %755 = vmatprep.subr.mxu0 0.0
      %756 = vmatpush1.msra.mxu0 0.0
      %757 = vmatprep.subr.mxu0 0.0
      %758 = vmatpush1.msra.mxu0 0.0
      %759 = vmatprep.subr.mxu0 0.0
      %760 = vmatpush1.msra.mxu0 0.0
      %761 = vmatprep.subr.mxu0 0.0
      %762 = vmatpush1.msra.mxu0 0.0
      %763 = vmatprep.subr.mxu0 0.0
      %764 = vmatpush1.msra.mxu0 0.0
      %765 = vmatprep.subr.mxu0 0.0
      %766 = vmatpush1.msra.mxu0 0.0
      %767 = vmatprep.subr.mxu0 0.0
      %768 = vmatpush1.msra.mxu0 0.0
      %769 = vmatprep.subr.mxu0 0.0
      %770 = vmatpush1.msra.mxu0 0.0
      %771 = vmatprep.subr.mxu0 0.0
      %772 = vmatpush1.msra.mxu0 0.0
      %773 = vmatprep.subr.mxu0 0.0
      %774 = vmatpush1.msra.mxu0 0.0
      %775 = vmatprep.subr.mxu0 0.0
      %776 = vmatpush1.msra.mxu0 0.0
      %777 = vmatprep.subr.mxu0 0.0
      %778 = vmatpush1.msra.mxu0 0.0
      %779 = vmatprep.subr.mxu0 0.0
      %780 = vmatpush1.msra.mxu0 0.0
      %781 = vmatprep.subr.mxu0 0.0
      %782 = vmatpush1.msra.mxu0 0.0
      %783 = vmatprep.subr.mxu0 0.0
      %784 = vmatpush1.msra.mxu0 0.0
      %785 = vmatprep.subr.mxu0 0.0
      %786 = vmatpush1.msra.mxu0 0.0
      %787 = vmatprep.subr.mxu0 0.0
      %788 = vmatpush1.msra.mxu0 0.0
      %789 = vmatprep.subr.mxu0 0.0
      %790 = vmatpush1.msra.mxu0 0.0
      %791 = vmatprep.subr.mxu0 0.0
      %792 = vmatpush1.msra.mxu0 0.0
      %793 = vmatprep.subr.mxu0 0.0
      %794 = vmatpush1.msra.mxu0 0.0
      %795 = vmatprep.subr.mxu0 0.0
      %796 = vmatpush1.msra.mxu0 0.0
      %797 = vmatprep.subr.mxu0 0.0
      %798 = vmatpush1.msra.mxu0 0.0
      %799 = vmatprep.subr.mxu0 0.0
      %800 = vmatpush1.msra.mxu0 0.0
      %801 = vmatprep.subr.mxu0 0.0
      %802 = vmatpush1.msra.mxu0 0.0
      %803 = vmatprep.subr.mxu0 0.0
      %804 = vmatpush1.msra.mxu0 0.0
      %805 = vmatprep.subr.mxu0 0.0
      %806 = vmatpush1.msra.mxu0 0.0
      %807 = vmatprep.subr.mxu0 0.0
      %808 = vmatpush1.msra.mxu0 0.0
      %809 = vmatprep.subr.mxu0 0.0
      %810 = vmatpush1.msra.mxu0 0.0
      %811 = vmatprep.subr.mxu0 0.0
      %812 = vmatpush1.msra.mxu0 0.0
      %813 = vmatprep.subr.mxu0 0.0
      %814 = vmatpush1.msra.mxu0 0.0
      %815 = vmatprep.mubr.f32.mxu0 0.0
      %816 = vmatmul.mubr.f32.gmra.mrb[0].mxu0 %v746
      %v817 = vpop.f32.mrb[0].mxu0
      %v818 = vadd.f32 0.0, %v817
      %v819 = vpop.f32.mrb[0].mxu0
      %820 = vmatprep.mubr.f32.mxu0 0.0
      %821 = vmatmul.mubr.f32.gmra.mrb[0].mxu0 %v749
      %v822 = vpop.f32.mrb[0].mxu0
      %v823 = vadd.f32 0.0, %v822
      %v824 = vpop.f32.mrb[0].mxu0
      %825 = vdwg.mxu0
      %v827 = vsel %vm744, %v736, 0
      %v830 = vsel %vm744, %v737, 0
      %832 = vmatprep.subr.mxu0 0.0
      %833 = vmatpush1.msra.mxu0 %v735
      %834 = vmatprep.subr.mxu0 0.0
      %835 = vmatpush1.msra.mxu0 0.0
      %836 = vmatprep.subr.mxu0 0.0
      %837 = vmatpush1.msra.mxu0 0.0
      %838 = vmatprep.subr.mxu0 0.0
      %839 = vmatpush1.msra.mxu0 0.0
      %840 = vmatprep.subr.mxu0 0.0
      %841 = vmatpush1.msra.mxu0 0.0
      %842 = vmatprep.subr.mxu0 0.0
      %843 = vmatpush1.msra.mxu0 0.0
      %844 = vmatprep.subr.mxu0 0.0
      %845 = vmatpush1.msra.mxu0 0.0
      %846 = vmatprep.subr.mxu0 0.0
      %847 = vmatpush1.msra.mxu0 0.0
      %848 = vmatprep.subr.mxu0 0.0
      %849 = vmatpush1.msra.mxu0 0.0
      %850 = vmatprep.subr.mxu0 0.0
      %851 = vmatpush1.msra.mxu0 0.0
      %852 = vmatprep.subr.mxu0 0.0
      %853 = vmatpush1.msra.mxu0 0.0
      %854 = vmatprep.subr.mxu0 0.0
      %855 = vmatpush1.msra.mxu0 0.0
      %856 = vmatprep.subr.mxu0 0.0
      %857 = vmatpush1.msra.mxu0 0.0
      %858 = vmatprep.subr.mxu0 0.0
      %859 = vmatpush1.msra.mxu0 0.0
      %860 = vmatprep.subr.mxu0 0.0
      %861 = vmatpush1.msra.mxu0 0.0
      %862 = vmatprep.subr.mxu0 0.0
      %863 = vmatpush1.msra.mxu0 0.0
      %864 = vmatprep.subr.mxu0 0.0
      %865 = vmatpush1.msra.mxu0 0.0
      %866 = vmatprep.subr.mxu0 0.0
      %867 = vmatpush1.msra.mxu0 0.0
      %868 = vmatprep.subr.mxu0 0.0
      %869 = vmatpush1.msra.mxu0 0.0
      %870 = vmatprep.subr.mxu0 0.0
      %871 = vmatpush1.msra.mxu0 0.0
      %872 = vmatprep.subr.mxu0 0.0
      %873 = vmatpush1.msra.mxu0 0.0
      %874 = vmatprep.subr.mxu0 0.0
      %875 = vmatpush1.msra.mxu0 0.0
      %876 = vmatprep.subr.mxu0 0.0
      %877 = vmatpush1.msra.mxu0 0.0
      %878 = vmatprep.subr.mxu0 0.0
      %879 = vmatpush1.msra.mxu0 0.0
      %880 = vmatprep.subr.mxu0 0.0
      %881 = vmatpush1.msra.mxu0 0.0
      %882 = vmatprep.subr.mxu0 0.0
      %883 = vmatpush1.msra.mxu0 0.0
      %884 = vmatprep.subr.mxu0 0.0
      %885 = vmatpush1.msra.mxu0 0.0
      %886 = vmatprep.subr.mxu0 0.0
      %887 = vmatpush1.msra.mxu0 0.0
      %888 = vmatprep.subr.mxu0 0.0
      %889 = vmatpush1.msra.mxu0 0.0
      %890 = vmatprep.subr.mxu0 0.0
      %891 = vmatpush1.msra.mxu0 0.0
      %892 = vmatprep.subr.mxu0 0.0
      %893 = vmatpush1.msra.mxu0 0.0
      %894 = vmatprep.subr.mxu0 0.0
      %895 = vmatpush1.msra.mxu0 0.0
      %896 = vmatprep.mubr.f32.mxu0 0.0
      %897 = vmatmul.mubr.f32.gmra.mrb[0].mxu0 %v827
      %v898 = vpop.f32.mrb[0].mxu0
      %v899 = vadd.f32 %v818, %v898
      %v900 = vpop.f32.mrb[0].mxu0
      %901 = vmatprep.mubr.f32.mxu0 0.0
      %902 = vmatmul.mubr.f32.gmra.mrb[0].mxu0 %v830
      %v903 = vpop.f32.mrb[0].mxu0
      %v904 = vadd.f32 %v823, %v903
      %v905 = vpop.f32.mrb[0].mxu0
      %906 = vdwg.mxu0
      %v907 = vld [vmem:[%s1 + $0x60] sm:$0xff]
      %v908 = vld [vmem:[%s1 + $0x68] sm:$0xff]
      %909 = vrot.lane.b32.xlu0 %v735, 126
      %v910 = vpop.permute.xlu0 %909
      %v913 = vsel %vm744, %v907, 0
      %v916 = vsel %vm744, %v908, 0
      %918 = vmatprep.subr.mxu0 0.0
      %919 = vmatpush1.msra.mxu0 %v910
      %920 = vmatprep.subr.mxu0 0.0
      %921 = vmatpush1.msra.mxu0 0.0
      %922 = vmatprep.subr.mxu0 0.0
      %923 = vmatpush1.msra.mxu0 0.0
      %924 = vmatprep.subr.mxu0 0.0
      %925 = vmatpush1.msra.mxu0 0.0
      %926 = vmatprep.subr.mxu0 0.0
      %927 = vmatpush1.msra.mxu0 0.0
      %928 = vmatprep.subr.mxu0 0.0
      %929 = vmatpush1.msra.mxu0 0.0
      %930 = vmatprep.subr.mxu0 0.0
      %931 = vmatpush1.msra.mxu0 0.0
      %932 = vmatprep.subr.mxu0 0.0
      %933 = vmatpush1.msra.mxu0 0.0
      %934 = vmatprep.subr.mxu0 0.0
      %935 = vmatpush1.msra.mxu0 0.0
      %936 = vmatprep.subr.mxu0 0.0
      %937 = vmatpush1.msra.mxu0 0.0
      %938 = vmatprep.subr.mxu0 0.0
      %939 = vmatpush1.msra.mxu0 0.0
      %940 = vmatprep.subr.mxu0 0.0
      %941 = vmatpush1.msra.mxu0 0.0
      %942 = vmatprep.subr.mxu0 0.0
      %943 = vmatpush1.msra.mxu0 0.0
      %944 = vmatprep.subr.mxu0 0.0
      %945 = vmatpush1.msra.mxu0 0.0
      %946 = vmatprep.subr.mxu0 0.0
      %947 = vmatpush1.msra.mxu0 0.0
      %948 = vmatprep.subr.mxu0 0.0
      %949 = vmatpush1.msra.mxu0 0.0
      %950 = vmatprep.subr.mxu0 0.0
      %951 = vmatpush1.msra.mxu0 0.0
      %952 = vmatprep.subr.mxu0 0.0
      %953 = vmatpush1.msra.mxu0 0.0
      %954 = vmatprep.subr.mxu0 0.0
      %955 = vmatpush1.msra.mxu0 0.0
      %956 = vmatprep.subr.mxu0 0.0
      %957 = vmatpush1.msra.mxu0 0.0
      %958 = vmatprep.subr.mxu0 0.0
      %959 = vmatpush1.msra.mxu0 0.0
      %960 = vmatprep.subr.mxu0 0.0
      %961 = vmatpush1.msra.mxu0 0.0
      %962 = vmatprep.subr.mxu0 0.0
      %963 = vmatpush1.msra.mxu0 0.0
      %964 = vmatprep.subr.mxu0 0.0
      %965 = vmatpush1.msra.mxu0 0.0
      %966 = vmatprep.subr.mxu0 0.0
      %967 = vmatpush1.msra.mxu0 0.0
      %968 = vmatprep.subr.mxu0 0.0
      %969 = vmatpush1.msra.mxu0 0.0
      %970 = vmatprep.subr.mxu0 0.0
      %971 = vmatpush1.msra.mxu0 0.0
      %972 = vmatprep.subr.mxu0 0.0
      %973 = vmatpush1.msra.mxu0 0.0
      %974 = vmatprep.subr.mxu0 0.0
      %975 = vmatpush1.msra.mxu0 0.0
      %976 = vmatprep.subr.mxu0 0.0
      %977 = vmatpush1.msra.mxu0 0.0
      %978 = vmatprep.subr.mxu0 0.0
      %979 = vmatpush1.msra.mxu0 0.0
      %980 = vmatprep.subr.mxu0 0.0
      %981 = vmatpush1.msra.mxu0 0.0
      %982 = vmatprep.mubr.f32.mxu0 0.0
      %983 = vmatmul.mubr.f32.gmra.mrb[0].mxu0 %v913
      %v984 = vpop.f32.mrb[0].mxu0
      %v985 = vadd.f32 0.0, %v984
      %v986 = vpop.f32.mrb[0].mxu0
      %987 = vmatprep.mubr.f32.mxu0 0.0
      %988 = vmatmul.mubr.f32.gmra.mrb[0].mxu0 %v916
      %v989 = vpop.f32.mrb[0].mxu0
      %v990 = vadd.f32 0.0, %v989
      %v991 = vpop.f32.mrb[0].mxu0
      %992 = vdwg.mxu0
      %v993 = vadd.f32 %v899, %v985
      %v994 = vadd.f32 %v904, %v990
      %v995 = vld [vmem:[%s1 + $0x70] sm:$0xff]
      %v996 = vld [vmem:[%s1 + $0x78] sm:$0xff]
      %997 = vrot.lane.b32.xlu0 %v735, 125
      %v998 = vpop.permute.xlu0 %997
      %v1001 = vsel %vm744, %v995, 0
      %v1004 = vsel %vm744, %v996, 0
      %1006 = vmatprep.subr.mxu0 0.0
      %1007 = vmatpush1.msra.mxu0 %v998
      %1008 = vmatprep.subr.mxu0 0.0
      %1009 = vmatpush1.msra.mxu0 0.0
      %1010 = vmatprep.subr.mxu0 0.0
      %1011 = vmatpush1.msra.mxu0 0.0
      %1012 = vmatprep.subr.mxu0 0.0
      %1013 = vmatpush1.msra.mxu0 0.0
      %1014 = vmatprep.subr.mxu0 0.0
      %1015 = vmatpush1.msra.mxu0 0.0
      %1016 = vmatprep.subr.mxu0 0.0
      %1017 = vmatpush1.msra.mxu0 0.0
      %1018 = vmatprep.subr.mxu0 0.0
      %1019 = vmatpush1.msra.mxu0 0.0
      %1020 = vmatprep.subr.mxu0 0.0
      %1021 = vmatpush1.msra.mxu0 0.0
      %1022 = vmatprep.subr.mxu0 0.0
      %1023 = vmatpush1.msra.mxu0 0.0
      %1024 = vmatprep.subr.mxu0 0.0
      %1025 = vmatpush1.msra.mxu0 0.0
      %1026 = vmatprep.subr.mxu0 0.0
      %1027 = vmatpush1.msra.mxu0 0.0
      %1028 = vmatprep.subr.mxu0 0.0
      %1029 = vmatpush1.msra.mxu0 0.0
      %1030 = vmatprep.subr.mxu0 0.0
      %1031 = vmatpush1.msra.mxu0 0.0
      %1032 = vmatprep.subr.mxu0 0.0
      %1033 = vmatpush1.msra.mxu0 0.0
      %1034 = vmatprep.subr.mxu0 0.0
      %1035 = vmatpush1.msra.mxu0 0.0
      %1036 = vmatprep.subr.mxu0 0.0
      %1037 = vmatpush1.msra.mxu0 0.0
      %1038 = vmatprep.subr.mxu0 0.0
      %1039 = vmatpush1.msra.mxu0 0.0
      %1040 = vmatprep.subr.mxu0 0.0
      %1041 = vmatpush1.msra.mxu0 0.0
      %1042 = vmatprep.subr.mxu0 0.0
      %1043 = vmatpush1.msra.mxu0 0.0
      %1044 = vmatprep.subr.mxu0 0.0
      %1045 = vmatpush1.msra.mxu0 0.0
      %1046 = vmatprep.subr.mxu0 0.0
      %1047 = vmatpush1.msra.mxu0 0.0
      %1048 = vmatprep.subr.mxu0 0.0
      %1049 = vmatpush1.msra.mxu0 0.0
      %1050 = vmatprep.subr.mxu0 0.0
      %1051 = vmatpush1.msra.mxu0 0.0
      %1052 = vmatprep.subr.mxu0 0.0
      %1053 = vmatpush1.msra.mxu0 0.0
      %1054 = vmatprep.subr.mxu0 0.0
      %1055 = vmatpush1.msra.mxu0 0.0
      %1056 = vmatprep.subr.mxu0 0.0
      %1057 = vmatpush1.msra.mxu0 0.0
      %1058 = vmatprep.subr.mxu0 0.0
      %1059 = vmatpush1.msra.mxu0 0.0
      %1060 = vmatprep.subr.mxu0 0.0
      %1061 = vmatpush1.msra.mxu0 0.0
      %1062 = vmatprep.subr.mxu0 0.0
      %1063 = vmatpush1.msra.mxu0 0.0
      %1064 = vmatprep.subr.mxu0 0.0
      %1065 = vmatpush1.msra.mxu0 0.0
      %1066 = vmatprep.subr.mxu0 0.0
      %1067 = vmatpush1.msra.mxu0 0.0
      %1068 = vmatprep.subr.mxu0 0.0
      %1069 = vmatpush1.msra.mxu0 0.0
      %1070 = vmatprep.mubr.f32.mxu0 0.0
      %1071 = vmatmul.mubr.f32.gmra.mrb[0].mxu0 %v1001
      %v1072 = vpop.f32.mrb[0].mxu0
      %v1073 = vadd.f32 0.0, %v1072
      %v1074 = vpop.f32.mrb[0].mxu0
      %1075 = vmatprep.mubr.f32.mxu0 0.0
      %1076 = vmatmul.mubr.f32.gmra.mrb[0].mxu0 %v1004
      %v1077 = vpop.f32.mrb[0].mxu0
      %v1078 = vadd.f32 0.0, %v1077
      %v1079 = vpop.f32.mrb[0].mxu0
      %1080 = vdwg.mxu0
      %v1081 = vadd.f32 %v993, %v1073
      %v1082 = vadd.f32 %v994, %v1078
      %v1083 = vld [vmem:[%s1 + $0x80] sm:$0xff]
      %v1084 = vld [vmem:[%s1 + $0x88] sm:$0xff]
      %1085 = vrot.lane.b32.xlu0 %v735, 124
      %v1086 = vpop.permute.xlu0 %1085
      %v1089 = vsel %vm744, %v1083, 0
      %v1092 = vsel %vm744, %v1084, 0
      %1094 = vmatprep.subr.mxu0 0.0
      %1095 = vmatpush1.msra.mxu0 %v1086
      %1096 = vmatprep.subr.mxu0 0.0
      %1097 = vmatpush1.msra.mxu0 0.0
      %1098 = vmatprep.subr.mxu0 0.0
      %1099 = vmatpush1.msra.mxu0 0.0
      %1100 = vmatprep.subr.mxu0 0.0
      %1101 = vmatpush1.msra.mxu0 0.0
      %1102 = vmatprep.subr.mxu0 0.0
      %1103 = vmatpush1.msra.mxu0 0.0
      %1104 = vmatprep.subr.mxu0 0.0
      %1105 = vmatpush1.msra.mxu0 0.0
      %1106 = vmatprep.subr.mxu0 0.0
      %1107 = vmatpush1.msra.mxu0 0.0
      %1108 = vmatprep.subr.mxu0 0.0
      %1109 = vmatpush1.msra.mxu0 0.0
      %1110 = vmatprep.subr.mxu0 0.0
      %1111 = vmatpush1.msra.mxu0 0.0
      %1112 = vmatprep.subr.mxu0 0.0
      %1113 = vmatpush1.msra.mxu0 0.0
      %1114 = vmatprep.subr.mxu0 0.0
      %1115 = vmatpush1.msra.mxu0 0.0
      %1116 = vmatprep.subr.mxu0 0.0
      %1117 = vmatpush1.msra.mxu0 0.0
      %1118 = vmatprep.subr.mxu0 0.0
      %1119 = vmatpush1.msra.mxu0 0.0
      %1120 = vmatprep.subr.mxu0 0.0
      %1121 = vmatpush1.msra.mxu0 0.0
      %1122 = vmatprep.subr.mxu0 0.0
      %1123 = vmatpush1.msra.mxu0 0.0
      %1124 = vmatprep.subr.mxu0 0.0
      %1125 = vmatpush1.msra.mxu0 0.0
      %1126 = vmatprep.subr.mxu0 0.0
      %1127 = vmatpush1.msra.mxu0 0.0
      %1128 = vmatprep.subr.mxu0 0.0
      %1129 = vmatpush1.msra.mxu0 0.0
      %1130 = vmatprep.subr.mxu0 0.0
      %1131 = vmatpush1.msra.mxu0 0.0
      %1132 = vmatprep.subr.mxu0 0.0
      %1133 = vmatpush1.msra.mxu0 0.0
      %1134 = vmatprep.subr.mxu0 0.0
      %1135 = vmatpush1.msra.mxu0 0.0
      %1136 = vmatprep.subr.mxu0 0.0
      %1137 = vmatpush1.msra.mxu0 0.0
      %1138 = vmatprep.subr.mxu0 0.0
      %1139 = vmatpush1.msra.mxu0 0.0
      %1140 = vmatprep.subr.mxu0 0.0
      %1141 = vmatpush1.msra.mxu0 0.0
      %1142 = vmatprep.subr.mxu0 0.0
      %1143 = vmatpush1.msra.mxu0 0.0
      %1144 = vmatprep.subr.mxu0 0.0
      %1145 = vmatpush1.msra.mxu0 0.0
      %1146 = vmatprep.subr.mxu0 0.0
      %1147 = vmatpush1.msra.mxu0 0.0
      %1148 = vmatprep.subr.mxu0 0.0
      %1149 = vmatpush1.msra.mxu0 0.0
      %1150 = vmatprep.subr.mxu0 0.0
      %1151 = vmatpush1.msra.mxu0 0.0
      %1152 = vmatprep.subr.mxu0 0.0
      %1153 = vmatpush1.msra.mxu0 0.0
      %1154 = vmatprep.subr.mxu0 0.0
      %1155 = vmatpush1.msra.mxu0 0.0
      %1156 = vmatprep.subr.mxu0 0.0
      %1157 = vmatpush1.msra.mxu0 0.0
      %1158 = vmatprep.mubr.f32.mxu0 0.0
      %1159 = vmatmul.mubr.f32.gmra.mrb[0].mxu0 %v1089
      %v1160 = vpop.f32.mrb[0].mxu0
      %v1161 = vadd.f32 0.0, %v1160
      %v1162 = vpop.f32.mrb[0].mxu0
      %1163 = vmatprep.mubr.f32.mxu0 0.0
      %1164 = vmatmul.mubr.f32.gmra.mrb[0].mxu0 %v1092
      %v1165 = vpop.f32.mrb[0].mxu0
      %v1166 = vadd.f32 0.0, %v1165
      %v1167 = vpop.f32.mrb[0].mxu0
      %1168 = vdwg.mxu0
      %v1169 = vadd.f32 %v1081, %v1161
      %v1170 = vadd.f32 %v1082, %v1166
      %v1171 = vld [vmem:[%s1 + $0x90] sm:$0xff]
      %v1172 = vld [vmem:[%s1 + $0x98] sm:$0xff]
      %1174 = vset.pattern.permute.xlu0 0
      %1175 = vperm.xlu0 %1174, %v1171
      %v1176 = vpop.permute.xlu0 %1175
      %1179 = vset.pattern.permute.xlu0 0
      %1180 = vperm.xlu0 %1179, %v1172
      %v1181 = vpop.permute.xlu0 %1180
      %v1183 = vadd.f32 %v1169, %v1176
      %v1184 = vadd.f32 %v1170, %v1181
      %vm1185 = vcmp.gt.f32.partialorder %v1183, 0.0
      %vm1186 = vcmp.gt.f32.partialorder %v1184, 0.0
      %v1187 = vmin.f32 %v1183, 0.0
      %v1188 = vmin.f32 %v1184, 0.0
      %v1189 = vmul.f32 %v1187, 1.442695
      %v1190 = vpow.pop %v1189
      %v1191 = vmul.f32 %v1188, 1.442695
      %v1192 = vpow.pop %v1191
      %v1193 = vsub.f32 %v1190, 1.0
      %v1194 = vsub.f32 %v1192, 1.0
      %v1195 = vmul.f32 %v1193, 0.1
      %v1196 = vmul.f32 %v1194, 0.1
      %v1197 = vsel %vm1185, %v1183, %v1195
      %v1198 = vsel %vm1186, %v1184, %v1196
      %vm1199 = vcmask 97280
      %1200 = vst.msk [vmem:[#allocation3] sm:$0xff] %vm1199, 0.0
      %1201 = vst.msk [vmem:[#allocation3 + $0x8] sm:$0xff] %vm1199, 0.0
      %vm1202 = vcmask 146432
      %v1204 = vsel %vm1202, %v1197, 0
      %v1207 = vsel %vm1202, %v1198, 0
      %vm1209 = vcmask 1041408
      %v1211 = vsel %vm1209, %v173, 0
      %1213 = vmatprep.subr.mxu0 0.0
      %1214 = vmatpush1.msra.mxu0 %v171
      %1215 = vmatprep.subr.mxu0 0.0
      %1216 = vmatpush1.msra.mxu0 %v172
      %1217 = vmatprep.subr.mxu0 0.0
      %1218 = vmatpush1.msra.mxu0 %v1211
      %1219 = vmatprep.subr.mxu0 0.0
      %1220 = vmatpush1.msra.mxu0 0.0
      %1221 = vmatprep.subr.mxu0 0.0
      %1222 = vmatpush1.msra.mxu0 0.0
      %1223 = vmatprep.subr.mxu0 0.0
      %1224 = vmatpush1.msra.mxu0 0.0
      %1225 = vmatprep.subr.mxu0 0.0
      %1226 = vmatpush1.msra.mxu0 0.0
      %1227 = vmatprep.subr.mxu0 0.0
      %1228 = vmatpush1.msra.mxu0 0.0
      %1229 = vmatprep.subr.mxu0 0.0
      %1230 = vmatpush1.msra.mxu0 0.0
      %1231 = vmatprep.subr.mxu0 0.0
      %1232 = vmatpush1.msra.mxu0 0.0
      %1233 = vmatprep.subr.mxu0 0.0
      %1234 = vmatpush1.msra.mxu0 0.0
      %1235 = vmatprep.subr.mxu0 0.0
      %1236 = vmatpush1.msra.mxu0 0.0
      %1237 = vmatprep.subr.mxu0 0.0
      %1238 = vmatpush1.msra.mxu0 0.0
      %1239 = vmatprep.subr.mxu0 0.0
      %1240 = vmatpush1.msra.mxu0 0.0
      %1241 = vmatprep.subr.mxu0 0.0
      %1242 = vmatpush1.msra.mxu0 0.0
      %1243 = vmatprep.subr.mxu0 0.0
      %1244 = vmatpush1.msra.mxu0 0.0
      %1245 = vmatprep.subr.mxu0 0.0
      %1246 = vmatpush1.msra.mxu0 0.0
      %1247 = vmatprep.subr.mxu0 0.0
      %1248 = vmatpush1.msra.mxu0 0.0
      %1249 = vmatprep.subr.mxu0 0.0
      %1250 = vmatpush1.msra.mxu0 0.0
      %1251 = vmatprep.subr.mxu0 0.0
      %1252 = vmatpush1.msra.mxu0 0.0
      %1253 = vmatprep.subr.mxu0 0.0
      %1254 = vmatpush1.msra.mxu0 0.0
      %1255 = vmatprep.subr.mxu0 0.0
      %1256 = vmatpush1.msra.mxu0 0.0
      %1257 = vmatprep.subr.mxu0 0.0
      %1258 = vmatpush1.msra.mxu0 0.0
      %1259 = vmatprep.subr.mxu0 0.0
      %1260 = vmatpush1.msra.mxu0 0.0
      %1261 = vmatprep.subr.mxu0 0.0
      %1262 = vmatpush1.msra.mxu0 0.0
      %1263 = vmatprep.subr.mxu0 0.0
      %1264 = vmatpush1.msra.mxu0 0.0
      %1265 = vmatprep.subr.mxu0 0.0
      %1266 = vmatpush1.msra.mxu0 0.0
      %1267 = vmatprep.subr.mxu0 0.0
      %1268 = vmatpush1.msra.mxu0 0.0
      %1269 = vmatprep.subr.mxu0 0.0
      %1270 = vmatpush1.msra.mxu0 0.0
      %1271 = vmatprep.subr.mxu0 0.0
      %1272 = vmatpush1.msra.mxu0 0.0
      %1273 = vmatprep.subr.mxu0 0.0
      %1274 = vmatpush1.msra.mxu0 0.0
      %1275 = vmatprep.subr.mxu0 0.0
      %1276 = vmatpush1.msra.mxu0 0.0
      %1277 = vmatprep.mubr.f32.mxu0 0.0
      %1278 = vmatmul.mubr.f32.gmra.mrb[0].mxu0 %v1204
      %v1279 = vpop.f32.mrb[0].mxu0
      %v1280 = vadd.f32 0.0, %v1279
      %v1281 = vpop.f32.mrb[0].mxu0
      %1282 = vmatprep.mubr.f32.mxu0 0.0
      %1283 = vmatmul.mubr.f32.gmra.mrb[0].mxu0 %v1207
      %v1284 = vpop.f32.mrb[0].mxu0
      %v1285 = vadd.f32 0.0, %v1284
      %v1286 = vpop.f32.mrb[0].mxu0
      %1287 = vdwg.mxu0
      %1290 = vrot.lane.b32.xlu0 %v1280, 2
      %v1291 = vpop.permute.xlu0 %1290
      %1292 = vrot.lane.b32.xlu0 %v1285, 2
      %v1293 = vpop.permute.xlu0 %1292
      %vm1296 = vcmask 80912
      %1297 = vst.msk [vmem:[#allocation3] sm:$0xff] %vm1296, %v1291
      %1298 = vst.msk [vmem:[#allocation3 + $0x8] sm:$0xff] %vm1296, %v1293
      %v1299 = vld [vmem:[#allocation3] sm:$0xff]
      %v1300 = vld [vmem:[#allocation3 + $0x8] sm:$0xff]
      %v1301 = vld [vmem:[%s1 + $0xa0] sm:$0xff]
      %v1302 = vld [vmem:[%s1 + $0xa8] sm:$0xff]
      %1304 = vset.pattern.permute.xlu0 0
      %1305 = vperm.xlu0 %1304, %v1301
      %v1306 = vpop.permute.xlu0 %1305
      %1309 = vset.pattern.permute.xlu0 0
      %1310 = vperm.xlu0 %1309, %v1302
      %v1311 = vpop.permute.xlu0 %1310
      %v1313 = vmul.f32 %v1299, %v1306
      %v1314 = vmul.f32 %v1300, %v1311
      %1315 = vset.pattern.permute.xlu0 1
      %1316 = vperm.xlu0 %1315, %v1301
      %v1317 = vpop.permute.xlu0 %1316
      %1319 = vset.pattern.permute.xlu0 1
      %1320 = vperm.xlu0 %1319, %v1302
      %v1321 = vpop.permute.xlu0 %1320
      %v1323 = vmul.f32 %v1299, %v1317
      %v1324 = vmul.f32 %v1300, %v1321
      %1327 = vrot.lane.b32.xlu0 %v1323, 127
      %v1328 = vpop.permute.xlu0 %1327
      %1329 = vrot.lane.b32.xlu0 %v1324, 127
      %v1330 = vpop.permute.xlu0 %1329
      %v1333 = vadd.f32 %v1313, %v1328
      %v1334 = vadd.f32 %v1314, %v1330
      %1335 = vset.pattern.permute.xlu0 2
      %1336 = vperm.xlu0 %1335, %v1301
      %v1337 = vpop.permute.xlu0 %1336
      %1339 = vset.pattern.permute.xlu0 2
      %1340 = vperm.xlu0 %1339, %v1302
      %v1341 = vpop.permute.xlu0 %1340
      %v1343 = vmul.f32 %v1299, %v1337
      %v1344 = vmul.f32 %v1300, %v1341
      %1347 = vrot.lane.b32.xlu0 %v1343, 126
      %v1348 = vpop.permute.xlu0 %1347
      %1349 = vrot.lane.b32.xlu0 %v1344, 126
      %v1350 = vpop.permute.xlu0 %1349
      %v1353 = vadd.f32 %v1333, %v1348
      %v1354 = vadd.f32 %v1334, %v1350
      %1355 = vset.pattern.permute.xlu0 3
      %1356 = vperm.xlu0 %1355, %v1301
      %v1357 = vpop.permute.xlu0 %1356
      %1359 = vset.pattern.permute.xlu0 3
      %1360 = vperm.xlu0 %1359, %v1302
      %v1361 = vpop.permute.xlu0 %1360
      %v1363 = vmul.f32 %v1299, %v1357
      %v1364 = vmul.f32 %v1300, %v1361
      %1367 = vrot.lane.b32.xlu0 %v1363, 125
      %v1368 = vpop.permute.xlu0 %1367
      %1369 = vrot.lane.b32.xlu0 %v1364, 125
      %v1370 = vpop.permute.xlu0 %1369
      %v1373 = vadd.f32 %v1353, %v1368
      %v1374 = vadd.f32 %v1354, %v1370
      %1375 = vset.pattern.permute.xlu0 4
      %1376 = vperm.xlu0 %1375, %v1301
      %v1377 = vpop.permute.xlu0 %1376
      %1379 = vset.pattern.permute.xlu0 4
      %1380 = vperm.xlu0 %1379, %v1302
      %v1381 = vpop.permute.xlu0 %1380
      %v1383 = vmul.f32 %v1299, %v1377
      %v1384 = vmul.f32 %v1300, %v1381
      %1387 = vrot.lane.b32.xlu0 %v1383, 124
      %v1388 = vpop.permute.xlu0 %1387
      %1389 = vrot.lane.b32.xlu0 %v1384, 124
      %v1390 = vpop.permute.xlu0 %1389
      %v1393 = vadd.f32 %v1373, %v1388
      %v1394 = vadd.f32 %v1374, %v1390
      %v1395 = vld [vmem:[%s1 + $0xb0] sm:$0xff]
      %v1396 = vld [vmem:[%s1 + $0xb8] sm:$0xff]
      %1398 = vset.pattern.permute.xlu0 0
      %1399 = vperm.xlu0 %1398, %v1395
      %v1400 = vpop.permute.xlu0 %1399
      %1403 = vset.pattern.permute.xlu0 0
      %1404 = vperm.xlu0 %1403, %v1396
      %v1405 = vpop.permute.xlu0 %1404
      %v1407 = vadd.f32 %v1393, %v1400
      %v1408 = vadd.f32 %v1394, %v1405
      %vm1409 = vcmp.gt.f32.partialorder %v1407, 0.0
      %vm1410 = vcmp.gt.f32.partialorder %v1408, 0.0
      %v1411 = vmin.f32 %v1407, 0.0
      %v1412 = vmin.f32 %v1408, 0.0
      %v1413 = vmul.f32 %v1411, 1.442695
      %v1414 = vpow.pop %v1413
      %v1415 = vmul.f32 %v1412, 1.442695
      %v1416 = vpow.pop %v1415
      %v1417 = vsub.f32 %v1414, 1.0
      %v1418 = vsub.f32 %v1416, 1.0
      %v1419 = vmul.f32 %v1417, 0.1
      %v1420 = vmul.f32 %v1418, 0.1
      %v1421 = vsel %vm1409, %v1407, %v1419
      %v1422 = vsel %vm1410, %v1408, %v1420
      %1425 = vrot.lane.b32.xlu0 %v1421, 2
      %v1426 = vpop.permute.xlu0 %1425
      %1427 = vrot.lane.b32.xlu0 %v1422, 2
      %v1428 = vpop.permute.xlu0 %1427
      %v1431 = vadd.f32 %v1299, %v1426
      %v1432 = vadd.f32 %v1300, %v1428
      %v1433 = vld [vmem:[%s1 + $0xc0] sm:$0xff]
      %v1434 = vld [vmem:[%s1 + $0xc8] sm:$0xff]
      %v1435 = vld [vmem:[%s1 + $0xd0] sm:$0xff]
      %v1436 = vld [vmem:[%s1 + $0xd8] sm:$0xff]
      %v1437 = vld [vmem:[%s1 + $0xe0] sm:$0xff]
      %v1438 = vld [vmem:[%s1 + $0xe8] sm:$0xff]
      %v1439 = vpack.c.bf16 %v1434, %v1433
      %v1440 = vpack.c.bf16 %v1436, %v1435
      %v1441 = vpack.c.bf16 %v1438, %v1437
      %v1442 = vpack.c.bf16 %v1432, %v1431
      %v1443 = vld [vmem:[%s1 + $0xf0] sm:$0xff]
      %v1444 = vld [vmem:[%s1 + $0xf8] sm:$0xff]
      %v1445 = vld [vmem:[%s1 + $0x100] sm:$0xff]
      %v1446 = vld [vmem:[%s1 + $0x108] sm:$0xff]
      %v1447 = vld [vmem:[%s1 + $0x110] sm:$0xff]
      %v1448 = vld [vmem:[%s1 + $0x118] sm:$0xff]
      %1450 = vset.pattern.permute.xlu0 0
      %1451 = vperm.xlu0 %1450, %v1443
      %v1452 = vpop.permute.xlu0 %1451
      %1455 = vset.pattern.permute.xlu0 0
      %1456 = vperm.xlu0 %1455, %v1444
      %v1457 = vpop.permute.xlu0 %1456
      %1460 = vset.pattern.permute.xlu0 0
      %1461 = vperm.xlu0 %1460, %v1445
      %v1462 = vpop.permute.xlu0 %1461
      %1465 = vset.pattern.permute.xlu0 0
      %1466 = vperm.xlu0 %1465, %v1446
      %v1467 = vpop.permute.xlu0 %1466
      %1470 = vset.pattern.permute.xlu0 0
      %1471 = vperm.xlu0 %1470, %v1447
      %v1472 = vpop.permute.xlu0 %1471
      %1475 = vset.pattern.permute.xlu0 0
      %1476 = vperm.xlu0 %1475, %v1448
      %v1477 = vpop.permute.xlu0 %1476
      %1480 = vrot.lane.b32.xlu0 %v1442, 126
      %v1481 = vpop.permute.xlu0 %1480
      %vm1483 = vcmask 130048
      %v1485 = vsel %vm1483, %v1439, 0
      %v1488 = vsel %vm1483, %v1440, 0
      %v1491 = vsel %vm1483, %v1441, 0
      %1493 = vmatprep.subr.bf16.mxu0 0
      %1494 = vmatpush1.bf16.msra.mxu0 %v1481
      %1495 = vmatprep.subr.bf16.mxu0 0
      %1496 = vmatpush1.bf16.msra.mxu0 0
      %1497 = vmatprep.subr.bf16.mxu0 0
      %1498 = vmatpush1.bf16.msra.mxu0 0
      %1499 = vmatprep.subr.bf16.mxu0 0
      %1500 = vmatpush1.bf16.msra.mxu0 0
      %1501 = vmatprep.subr.bf16.mxu0 0
      %1502 = vmatpush1.bf16.msra.mxu0 0
      %1503 = vmatprep.subr.bf16.mxu0 0
      %1504 = vmatpush1.bf16.msra.mxu0 0
      %1505 = vmatprep.subr.bf16.mxu0 0
      %1506 = vmatpush1.bf16.msra.mxu0 0
      %1507 = vmatprep.subr.bf16.mxu0 0
      %1508 = vmatpush1.bf16.msra.mxu0 0
      %1509 = vmatprep.subr.bf16.mxu0 0
      %1510 = vmatpush1.bf16.msra.mxu0 0
      %1511 = vmatprep.subr.bf16.mxu0 0
      %1512 = vmatpush1.bf16.msra.mxu0 0
      %1513 = vmatprep.subr.bf16.mxu0 0
      %1514 = vmatpush1.bf16.msra.mxu0 0
      %1515 = vmatprep.subr.bf16.mxu0 0
      %1516 = vmatpush1.bf16.msra.mxu0 0
      %1517 = vmatprep.subr.bf16.mxu0 0
      %1518 = vmatpush1.bf16.msra.mxu0 0
      %1519 = vmatprep.subr.bf16.mxu0 0
      %1520 = vmatpush1.bf16.msra.mxu0 0
      %1521 = vmatprep.subr.bf16.mxu0 0
      %1522 = vmatpush1.bf16.msra.mxu0 0
      %1523 = vmatprep.subr.bf16.mxu0 0
      %1524 = vmatpush1.bf16.msra.mxu0 0
      %1525 = vmatprep.mubr.bf16.mxu0 0
      %1526 = vmatmul.mubr.bf16.gmra.mrb[0].mxu0 %v1485
      %v1527 = vpop.f32.mrb[0].mxu0
      %v1528 = vadd.f32 %v1452, %v1527
      %v1529 = vpop.f32.mrb[0].mxu0
      %v1530 = vpop.f32.mrb[0].mxu0
      %v1531 = vadd.f32 %v1457, %v1530
      %v1532 = vpop.f32.mrb[0].mxu0
      %1533 = vmatprep.mubr.bf16.mxu0 0
      %1534 = vmatmul.mubr.bf16.gmra.mrb[0].mxu0 %v1488
      %v1535 = vpop.f32.mrb[0].mxu0
      %v1536 = vadd.f32 %v1462, %v1535
      %v1537 = vpop.f32.mrb[0].mxu0
      %v1538 = vpop.f32.mrb[0].mxu0
      %v1539 = vadd.f32 %v1467, %v1538
      %v1540 = vpop.f32.mrb[0].mxu0
      %1541 = vmatprep.mubr.bf16.mxu0 0
      %1542 = vmatmul.mubr.bf16.gmra.mrb[0].mxu0 %v1491
      %v1543 = vpop.f32.mrb[0].mxu0
      %v1544 = vadd.f32 %v1472, %v1543
      %v1545 = vpop.f32.mrb[0].mxu0
      %v1546 = vpop.f32.mrb[0].mxu0
      %v1547 = vadd.f32 %v1477, %v1546
      %v1548 = vpop.f32.mrb[0].mxu0
      %1549 = vdwg.mxu0
      %1550 = vxpose.xlu0.b32.start [1/16] %v1536, 128
      %1551 = vxpose.xlu0.b32.cont [2/16] %v1539, 128
      %1552 = vxpose.xlu0.b32.cont [3/16] 0.0, 128
      %1553 = vxpose.xlu0.b32.cont [4/16] 0.0, 128
      %1554 = vxpose.xlu0.b32.cont [5/16] 0.0, 128
      %1555 = vxpose.xlu0.b32.cont [6/16] 0.0, 128
      %1556 = vxpose.xlu0.b32.cont [7/16] 0.0, 128
      %1557 = vxpose.xlu0.b32.cont [8/16] 0.0, 128
      %1558 = vxpose.xlu0.b32.cont [9/16] 0.0, 128
      %1559 = vxpose.xlu0.b32.cont [10/16] 0.0, 128
      %1560 = vxpose.xlu0.b32.cont [11/16] 0.0, 128
      %1561 = vxpose.xlu0.b32.cont [12/16] 0.0, 128
      %1562 = vxpose.xlu0.b32.cont [13/16] 0.0, 128
      %1563 = vxpose.xlu0.b32.cont [14/16] 0.0, 128
      %1564 = vxpose.xlu0.b32.cont [15/16] 0.0, 128
      %1565 = vxpose.xlu0.b32.end [16/16] 0.0, 128
      %v1566 = vpop.trf.xlu0
      %v1567 = vpop.trf.xlu0
      %v1568 = vpop.trf.xlu0
      %v1569 = vpop.trf.xlu0
      %v1570 = vpop.trf.xlu0
      %v1571 = vpop.trf.xlu0
      %v1572 = vpop.trf.xlu0
      %v1573 = vpop.trf.xlu0
      %v1574 = vpop.trf.xlu0
      %v1575 = vpop.trf.xlu0
      %v1576 = vpop.trf.xlu0
      %v1577 = vpop.trf.xlu0
      %v1578 = vpop.trf.xlu0
      %v1579 = vpop.trf.xlu0
      %v1580 = vpop.trf.xlu0
      %v1581 = vpop.trf.xlu0
      %v1582 = vpack.c.bf16 %v1566, %v1566
      %v1583 = vpack.c.bf16 %v1531, %v1528
      %v1585 = vsel %vm1483, %v1582, 0
      %1587 = vmatprep.subr.bf16.mxu0 0
      %1588 = vmatpush1.bf16.msra.mxu0 %v1583
      %1589 = vmatprep.subr.bf16.mxu0 0
      %1590 = vmatpush1.bf16.msra.mxu0 0
      %1591 = vmatprep.subr.bf16.mxu0 0
      %1592 = vmatpush1.bf16.msra.mxu0 0
      %1593 = vmatprep.subr.bf16.mxu0 0
      %1594 = vmatpush1.bf16.msra.mxu0 0
      %1595 = vmatprep.subr.bf16.mxu0 0
      %1596 = vmatpush1.bf16.msra.mxu0 0
      %1597 = vmatprep.subr.bf16.mxu0 0
      %1598 = vmatpush1.bf16.msra.mxu0 0
      %1599 = vmatprep.subr.bf16.mxu0 0
      %1600 = vmatpush1.bf16.msra.mxu0 0
      %1601 = vmatprep.subr.bf16.mxu0 0
      %1602 = vmatpush1.bf16.msra.mxu0 0
      %1603 = vmatprep.subr.bf16.mxu0 0
      %1604 = vmatpush1.bf16.msra.mxu0 0
      %1605 = vmatprep.subr.bf16.mxu0 0
      %1606 = vmatpush1.bf16.msra.mxu0 0
      %1607 = vmatprep.subr.bf16.mxu0 0
      %1608 = vmatpush1.bf16.msra.mxu0 0
      %1609 = vmatprep.subr.bf16.mxu0 0
      %1610 = vmatpush1.bf16.msra.mxu0 0
      %1611 = vmatprep.subr.bf16.mxu0 0
      %1612 = vmatpush1.bf16.msra.mxu0 0
      %1613 = vmatprep.subr.bf16.mxu0 0
      %1614 = vmatpush1.bf16.msra.mxu0 0
      %1615 = vmatprep.subr.bf16.mxu0 0
      %1616 = vmatpush1.bf16.msra.mxu0 0
      %1617 = vmatprep.subr.bf16.mxu0 0
      %1618 = vmatpush1.bf16.msra.mxu0 0
      %1619 = vmatprep.mubr.bf16.mxu0 0
      %1620 = vmatmul.mubr.bf16.gmra.mrb[0].mxu0 %v1585
      %v1621 = vpop.f32.mrb[0].mxu0
      %v1622 = vadd.f32 0.0, %v1621
      %v1623 = vpop.f32.mrb[0].mxu0
      %v1624 = vpop.f32.mrb[0].mxu0
      %v1625 = vpop.f32.mrb[0].mxu0
      %1626 = vdwg.mxu0
      %v1627 = vmul.f32 %v1622, 0.25
      %v1628 = vsel %vm744, %v1627, -inf
      %v1629 = vrot.slane %v1628, 4
      %v1630 = vmax.f32 %v1628, %v1629
      %v1631 = vrot.slane %v1630, 2
      %v1632 = vmax.f32 %v1630, %v1631
      %v1633 = vrot.slane %v1632, 1
      %v1634 = vmax.f32 %v1632, %v1633
      %v1635 = vsub.f32 %v1627, %v1634
      %v1636 = vmul.f32 %v1635, 1.442695
      %v1637 = vpow.pop %v1636
      %v1638 = vsel %vm744, %v1637, 0.0
      %v1639 = vrot.slane %v1638, 4
      %v1640 = vadd.f32 %v1638, %v1639
      %v1641 = vrot.slane %v1640, 2
      %v1642 = vadd.f32 %v1640, %v1641
      %v1643 = vrot.slane %v1642, 1
      %v1644 = vadd.f32 %v1642, %v1643
      %v1645 = vrcp.pop %v1644
      %v1646 = vmul.f32 %v1637, %v1645
      %v1647 = vpack.c.bf16 %v1547, %v1544
      %v1648 = vpack.c.bf16 %v1646, %v1646
      %v1650 = vsel %vm744, %v1647, 0
      %v1653 = vsel %vm186, %v1648, 0
      %1655 = vmatprep.subr.bf16.mxu0 0
      %1656 = vmatpush1.bf16.msra.mxu0 %v1653
      %1657 = vmatprep.subr.bf16.mxu0 0
      %1658 = vmatpush1.bf16.msra.mxu0 0
      %1659 = vmatprep.subr.bf16.mxu0 0
      %1660 = vmatpush1.bf16.msra.mxu0 0
      %1661 = vmatprep.subr.bf16.mxu0 0
      %1662 = vmatpush1.bf16.msra.mxu0 0
      %1663 = vmatprep.subr.bf16.mxu0 0
      %1664 = vmatpush1.bf16.msra.mxu0 0
      %1665 = vmatprep.subr.bf16.mxu0 0
      %1666 = vmatpush1.bf16.msra.mxu0 0
      %1667 = vmatprep.subr.bf16.mxu0 0
      %1668 = vmatpush1.bf16.msra.mxu0 0
      %1669 = vmatprep.subr.bf16.mxu0 0
      %1670 = vmatpush1.bf16.msra.mxu0 0
      %1671 = vmatprep.subr.bf16.mxu0 0
      %1672 = vmatpush1.bf16.msra.mxu0 0
      %1673 = vmatprep.subr.bf16.mxu0 0
      %1674 = vmatpush1.bf16.msra.mxu0 0
      %1675 = vmatprep.subr.bf16.mxu0 0
      %1676 = vmatpush1.bf16.msra.mxu0 0
      %1677 = vmatprep.subr.bf16.mxu0 0
      %1678 = vmatpush1.bf16.msra.mxu0 0
      %1679 = vmatprep.subr.bf16.mxu0 0
      %1680 = vmatpush1.bf16.msra.mxu0 0
      %1681 = vmatprep.subr.bf16.mxu0 0
      %1682 = vmatpush1.bf16.msra.mxu0 0
      %1683 = vmatprep.subr.bf16.mxu0 0
      %1684 = vmatpush1.bf16.msra.mxu0 0
      %1685 = vmatprep.subr.bf16.mxu0 0
      %1686 = vmatpush1.bf16.msra.mxu0 0
      %1687 = vmatprep.mubr.bf16.mxu0 0
      %1688 = vmatmul.mubr.bf16.gmra.mrb[0].mxu0 %v1650
      %v1689 = vpop.f32.mrb[0].mxu0
      %v1690 = vadd.f32 0.0, %v1689
      %v1691 = vpop.f32.mrb[0].mxu0
      %v1692 = vpop.f32.mrb[0].mxu0
      %v1693 = vadd.f32 0.0, %v1692
      %v1694 = vpop.f32.mrb[0].mxu0
      %1695 = vdwg.mxu0
      %v1696 = vld [vmem:[%s1 + $0x120] sm:$0xff]
      %v1697 = vld [vmem:[%s1 + $0x128] sm:$0xff]
      %v1698 = vpack.c.bf16 %v1697, %v1696
      %v1699 = vpack.c.bf16 %v1693, %v1690
      %v1700 = vld [vmem:[%s1 + $0x130] sm:$0xff]
      %v1701 = vld [vmem:[%s1 + $0x138] sm:$0xff]
      %1703 = vset.pattern.permute.xlu0 0
      %1704 = vperm.xlu0 %1703, %v1700
      %v1705 = vpop.permute.xlu0 %1704
      %1708 = vset.pattern.permute.xlu0 0
      %1709 = vperm.xlu0 %1708, %v1701
      %v1710 = vpop.permute.xlu0 %1709
      %v1713 = vsel %vm1483, %v1698, 0
      %1715 = vmatprep.subr.bf16.mxu0 0
      %1716 = vmatpush1.bf16.msra.mxu0 %v1699
      %1717 = vmatprep.subr.bf16.mxu0 0
      %1718 = vmatpush1.bf16.msra.mxu0 0
      %1719 = vmatprep.subr.bf16.mxu0 0
      %1720 = vmatpush1.bf16.msra.mxu0 0
      %1721 = vmatprep.subr.bf16.mxu0 0
      %1722 = vmatpush1.bf16.msra.mxu0 0
      %1723 = vmatprep.subr.bf16.mxu0 0
      %1724 = vmatpush1.bf16.msra.mxu0 0
      %1725 = vmatprep.subr.bf16.mxu0 0
      %1726 = vmatpush1.bf16.msra.mxu0 0
      %1727 = vmatprep.subr.bf16.mxu0 0
      %1728 = vmatpush1.bf16.msra.mxu0 0
      %1729 = vmatprep.subr.bf16.mxu0 0
      %1730 = vmatpush1.bf16.msra.mxu0 0
      %1731 = vmatprep.subr.bf16.mxu0 0
      %1732 = vmatpush1.bf16.msra.mxu0 0
      %1733 = vmatprep.subr.bf16.mxu0 0
      %1734 = vmatpush1.bf16.msra.mxu0 0
      %1735 = vmatprep.subr.bf16.mxu0 0
      %1736 = vmatpush1.bf16.msra.mxu0 0
      %1737 = vmatprep.subr.bf16.mxu0 0
      %1738 = vmatpush1.bf16.msra.mxu0 0
      %1739 = vmatprep.subr.bf16.mxu0 0
      %1740 = vmatpush1.bf16.msra.mxu0 0
      %1741 = vmatprep.subr.bf16.mxu0 0
      %1742 = vmatpush1.bf16.msra.mxu0 0
      %1743 = vmatprep.subr.bf16.mxu0 0
      %1744 = vmatpush1.bf16.msra.mxu0 0
      %1745 = vmatprep.subr.bf16.mxu0 0
      %1746 = vmatpush1.bf16.msra.mxu0 0
      %1747 = vmatprep.mubr.bf16.mxu0 0
      %1748 = vmatmul.mubr.bf16.gmra.mrb[0].mxu0 %v1713
      %v1749 = vpop.f32.mrb[0].mxu0
      %v1750 = vadd.f32 %v1705, %v1749
      %v1751 = vpop.f32.mrb[0].mxu0
      %v1752 = vpop.f32.mrb[0].mxu0
      %v1753 = vadd.f32 %v1710, %v1752
      %v1754 = vpop.f32.mrb[0].mxu0
      %1755 = vdwg.mxu0
      %1758 = vrot.lane.b32.xlu0 %v1750, 2
      %v1759 = vpop.permute.xlu0 %1758
      %1760 = vrot.lane.b32.xlu0 %v1753, 2
      %v1761 = vpop.permute.xlu0 %1760
      %v1764 = vadd.f32 %v1431, %v1759
      %v1765 = vadd.f32 %v1432, %v1761
      %v1766 = vld [vmem:[%s1 + $0x140] sm:$0xff]
      %v1767 = vld [vmem:[%s1 + $0x148] sm:$0xff]
      %v1768 = vld [vmem:[%s1 + $0x150] sm:$0xff]
      %v1769 = vld [vmem:[%s1 + $0x158] sm:$0xff]
      %v1770 = vsel %vm1296, %v1764, 0.0
      %v1771 = vsel %vm1296, %v1765, 0.0
      %v1772 = vadd.f32 %v1770, %v1771
      %v1773 = vrot.slane %v1772, 4
      %v1774 = vadd.f32 %v1772, %v1773
      %v1775 = vrot.slane %v1774, 2
      %v1776 = vadd.f32 %v1774, %v1775
      %v1777 = vrot.slane %v1776, 1
      %v1778 = vadd.f32 %v1776, %v1777
      %v1779 = vrcp.pop 16.0
      %v1780 = vmul.f32 %v1778, %v1779
      %v1781 = vsub.f32 %v1764, %v1780
      %v1782 = vsub.f32 %v1765, %v1780
      %v1783 = vmul.f32 %v1781, %v1781
      %v1784 = vmul.f32 %v1782, %v1782
      %v1785 = vsel %vm1296, %v1783, 0.0
      %v1786 = vsel %vm1296, %v1784, 0.0
      %v1787 = vadd.f32 %v1785, %v1786
      %v1788 = vrot.slane %v1787, 4
      %v1789 = vadd.f32 %v1787, %v1788
      %v1790 = vrot.slane %v1789, 2
      %v1791 = vadd.f32 %v1789, %v1790
      %v1792 = vrot.slane %v1791, 1
      %v1793 = vadd.f32 %v1791, %v1792
      %v1794 = vmul.f32 %v1793, %v1779
      %v1795 = vadd.f32 %v1794, 1e-05
      %v1796 = vrsqrt.pop %v1795
      %v1797 = vmul.f32 %v1781, %v1796
      %v1798 = vmul.f32 %v1782, %v1796
      %1800 = vset.pattern.permute.xlu0 0
      %1801 = vperm.xlu0 %1800, %v1766
      %v1802 = vpop.permute.xlu0 %1801
      %1805 = vset.pattern.permute.xlu0 0
      %1806 = vperm.xlu0 %1805, %v1767
      %v1807 = vpop.permute.xlu0 %1806
      %v1809 = vmul.f32 %v1797, %v1802
      %v1810 = vmul.f32 %v1798, %v1807
      %1812 = vset.pattern.permute.xlu0 0
      %1813 = vperm.xlu0 %1812, %v1768
      %v1814 = vpop.permute.xlu0 %1813
      %1817 = vset.pattern.permute.xlu0 0
      %1818 = vperm.xlu0 %1817, %v1769
      %v1819 = vpop.permute.xlu0 %1818
      %v1821 = vadd.f32 %v1809, %v1814
      %v1822 = vadd.f32 %v1810, %v1819
      %v1823 = vld [vmem:[%s1 + $0x160] sm:$0xff]
      %v1824 = vld [vmem:[%s1 + $0x168] sm:$0xff]
      %v1825 = vpack.c.bf16 %v1824, %v1823
      %v1826 = vpack.c.bf16 %v1822, %v1821
      %v1827 = vld [vmem:[%s1 + $0x170] sm:$0xff]
      %v1828 = vld [vmem:[%s1 + $0x178] sm:$0xff]
      %1830 = vset.pattern.permute.xlu0 0
      %1831 = vperm.xlu0 %1830, %v1827
      %v1832 = vpop.permute.xlu0 %1831
      %1835 = vset.pattern.permute.xlu0 0
      %1836 = vperm.xlu0 %1835, %v1828
      %v1837 = vpop.permute.xlu0 %1836
      %1840 = vrot.lane.b32.xlu0 %v1826, 126
      %v1841 = vpop.permute.xlu0 %1840
      %v1844 = vsel %vm1483, %v1825, 0
      %1846 = vmatprep.subr.bf16.mxu0 0
      %1847 = vmatpush1.bf16.msra.mxu0 %v1841
      %1848 = vmatprep.subr.bf16.mxu0 0
      %1849 = vmatpush1.bf16.msra.mxu0 0
      %1850 = vmatprep.subr.bf16.mxu0 0
      %1851 = vmatpush1.bf16.msra.mxu0 0
      %1852 = vmatprep.subr.bf16.mxu0 0
      %1853 = vmatpush1.bf16.msra.mxu0 0
      %1854 = vmatprep.subr.bf16.mxu0 0
      %1855 = vmatpush1.bf16.msra.mxu0 0
      %1856 = vmatprep.subr.bf16.mxu0 0
      %1857 = vmatpush1.bf16.msra.mxu0 0
      %1858 = vmatprep.subr.bf16.mxu0 0
      %1859 = vmatpush1.bf16.msra.mxu0 0
      %1860 = vmatprep.subr.bf16.mxu0 0
      %1861 = vmatpush1.bf16.msra.mxu0 0
      %1862 = vmatprep.subr.bf16.mxu0 0
      %1863 = vmatpush1.bf16.msra.mxu0 0
      %1864 = vmatprep.subr.bf16.mxu0 0
      %1865 = vmatpush1.bf16.msra.mxu0 0
      %1866 = vmatprep.subr.bf16.mxu0 0
      %1867 = vmatpush1.bf16.msra.mxu0 0
      %1868 = vmatprep.subr.bf16.mxu0 0
      %1869 = vmatpush1.bf16.msra.mxu0 0
      %1870 = vmatprep.subr.bf16.mxu0 0
      %1871 = vmatpush1.bf16.msra.mxu0 0
      %1872 = vmatprep.subr.bf16.mxu0 0
      %1873 = vmatpush1.bf16.msra.mxu0 0
      %1874 = vmatprep.subr.bf16.mxu0 0
      %1875 = vmatpush1.bf16.msra.mxu0 0
      %1876 = vmatprep.subr.bf16.mxu0 0
      %1877 = vmatpush1.bf16.msra.mxu0 0
      %1878 = vmatprep.mubr.bf16.mxu0 0
      %1879 = vmatmul.mubr.bf16.gmra.mrb[0].mxu0 %v1844
      %v1880 = vpop.f32.mrb[0].mxu0
      %v1881 = vadd.f32 %v1832, %v1880
      %v1882 = vpop.f32.mrb[0].mxu0
      %v1883 = vpop.f32.mrb[0].mxu0
      %v1884 = vadd.f32 %v1837, %v1883
      %v1885 = vpop.f32.mrb[0].mxu0
      %1886 = vdwg.mxu0
      %v1887 = vadd.f32 %v1881, 3.0
      %v1888 = vadd.f32 %v1884, 3.0
      %v1889 = vmax.f32 %v1887, 0.0
      %v1890 = vmax.f32 %v1888, 0.0
      %v1891 = vmin.f32 %v1889, 6.0
      %v1892 = vmin.f32 %v1890, 6.0
      %v1893 = vmul.f32 %v1881, %v1891
      %v1894 = vmul.f32 %v1884, %v1892
      %v1895 = vmul.f32 %v1893, 0.16666667
      %v1896 = vmul.f32 %v1894, 0.16666667
      %v1897 = vld [vmem:[%s1 + $0x180] sm:$0xff]
      %v1898 = vld [vmem:[%s1 + $0x188] sm:$0xff]
      %v1899 = vpack.c.bf16 %v1898, %v1897
      %v1900 = vpack.c.bf16 %v1896, %v1895
      %v1902 = vsel %vm1483, %v1899, 0
      %1904 = vmatprep.subr.bf16.mxu0 0
      %1905 = vmatpush1.bf16.msra.mxu0 %v1900
      %1906 = vmatprep.subr.bf16.mxu0 0
      %1907 = vmatpush1.bf16.msra.mxu0 0
      %1908 = vmatprep.subr.bf16.mxu0 0
      %1909 = vmatpush1.bf16.msra.mxu0 0
      %1910 = vmatprep.subr.bf16.mxu0 0
      %1911 = vmatpush1.bf16.msra.mxu0 0
      %1912 = vmatprep.subr.bf16.mxu0 0
      %1913 = vmatpush1.bf16.msra.mxu0 0
      %1914 = vmatprep.subr.bf16.mxu0 0
      %1915 = vmatpush1.bf16.msra.mxu0 0
      %1916 = vmatprep.subr.bf16.mxu0 0
      %1917 = vmatpush1.bf16.msra.mxu0 0
      %1918 = vmatprep.subr.bf16.mxu0 0
      %1919 = vmatpush1.bf16.msra.mxu0 0
      %1920 = vmatprep.subr.bf16.mxu0 0
      %1921 = vmatpush1.bf16.msra.mxu0 0
      %1922 = vmatprep.subr.bf16.mxu0 0
      %1923 = vmatpush1.bf16.msra.mxu0 0
      %1924 = vmatprep.subr.bf16.mxu0 0
      %1925 = vmatpush1.bf16.msra.mxu0 0
      %1926 = vmatprep.subr.bf16.mxu0 0
      %1927 = vmatpush1.bf16.msra.mxu0 0
      %1928 = vmatprep.subr.bf16.mxu0 0
      %1929 = vmatpush1.bf16.msra.mxu0 0
      %1930 = vmatprep.subr.bf16.mxu0 0
      %1931 = vmatpush1.bf16.msra.mxu0 0
      %1932 = vmatprep.subr.bf16.mxu0 0
      %1933 = vmatpush1.bf16.msra.mxu0 0
      %1934 = vmatprep.subr.bf16.mxu0 0
      %1935 = vmatpush1.bf16.msra.mxu0 0
      %1936 = vmatprep.mubr.bf16.mxu0 0
      %1937 = vmatmul.mubr.bf16.gmra.mrb[0].mxu0 %v1902
      %v1938 = vpop.f32.mrb[0].mxu0
      %v1939 = vadd.f32 0.0, %v1938
      %v1940 = vpop.f32.mrb[0].mxu0
      %v1941 = vpop.f32.mrb[0].mxu0
      %v1942 = vadd.f32 0.0, %v1941
      %v1943 = vpop.f32.mrb[0].mxu0
      %1944 = vdwg.mxu0
      %1947 = vrot.lane.b32.xlu0 %v1939, 2
      %v1948 = vpop.permute.xlu0 %1947
      %1949 = vrot.lane.b32.xlu0 %v1942, 2
      %v1950 = vpop.permute.xlu0 %1949
      %v1953 = vadd.f32 %v1821, %v1948
      %v1954 = vadd.f32 %v1822, %v1950
      %v1955 = vld [vmem:[%s1 + $0x190] sm:$0xff]
      %v1956 = vld [vmem:[%s1 + $0x198] sm:$0xff]
      %1958 = vset.pattern.permute.xlu0 0
      %1959 = vperm.xlu0 %1958, %v1955
      %v1960 = vpop.permute.xlu0 %1959
      %1963 = vset.pattern.permute.xlu0 0
      %1964 = vperm.xlu0 %1963, %v1956
      %v1965 = vpop.permute.xlu0 %1964
      %v1967 = vadd.f32 %v1953, %v1960
      %v1968 = vadd.f32 %v1954, %v1965
      %v1969 = vld [vmem:[%s1 + $0x1a0] sm:$0xff]
      %v1970 = vld [vmem:[%s1 + $0x1a8] sm:$0xff]
      %v1971 = vld [vmem:[%s1 + $0x1b0] sm:$0xff]
      %v1972 = vld [vmem:[%s1 + $0x1b8] sm:$0xff]
      %v1973 = vsel %vm1296, %v1967, 0.0
      %v1974 = vsel %vm1296, %v1968, 0.0
      %v1975 = vadd.f32 %v1973, %v1974
      %v1976 = vrot.slane %v1975, 4
      %v1977 = vadd.f32 %v1975, %v1976
      %v1978 = vrot.slane %v1977, 2
      %v1979 = vadd.f32 %v1977, %v1978
      %v1980 = vrot.slane %v1979, 1
      %v1981 = vadd.f32 %v1979, %v1980
      %v1982 = vmul.f32 %v1981, %v1779
      %v1983 = vsub.f32 %v1967, %v1982
      %v1984 = vsub.f32 %v1968, %v1982
      %v1985 = vmul.f32 %v1983, %v1983
      %v1986 = vmul.f32 %v1984, %v1984
      %v1987 = vsel %vm1296, %v1985, 0.0
      %v1988 = vsel %vm1296, %v1986, 0.0
      %v1989 = vadd.f32 %v1987, %v1988
      %v1990 = vrot.slane %v1989, 4
      %v1991 = vadd.f32 %v1989, %v1990
      %v1992 = vrot.slane %v1991, 2
      %v1993 = vadd.f32 %v1991, %v1992
      %v1994 = vrot.slane %v1993, 1
      %v1995 = vadd.f32 %v1993, %v1994
      %v1996 = vmul.f32 %v1995, %v1779
      %v1997 = vadd.f32 %v1996, 1e-05
      %v1998 = vrsqrt.pop %v1997
      %v1999 = vmul.f32 %v1983, %v1998
      %v2000 = vmul.f32 %v1984, %v1998
      %2002 = vset.pattern.permute.xlu0 0
      %2003 = vperm.xlu0 %2002, %v1969
      %v2004 = vpop.permute.xlu0 %2003
      %2007 = vset.pattern.permute.xlu0 0
      %2008 = vperm.xlu0 %2007, %v1970
      %v2009 = vpop.permute.xlu0 %2008
      %v2011 = vmul.f32 %v1999, %v2004
      %v2012 = vmul.f32 %v2000, %v2009
      %2014 = vset.pattern.permute.xlu0 0
      %2015 = vperm.xlu0 %2014, %v1971
      %v2016 = vpop.permute.xlu0 %2015
      %2019 = vset.pattern.permute.xlu0 0
      %2020 = vperm.xlu0 %2019, %v1972
      %v2021 = vpop.permute.xlu0 %2020
      %v2023 = vadd.f32 %v2011, %v2016
      %v2024 = vadd.f32 %v2012, %v2021
      %v2025 = vld [vmem:[%s1 + $0x1c0] sm:$0xff]
      %v2026 = vld [vmem:[%s1 + $0x1c8] sm:$0xff]
      %v2027 = vld [vmem:[%s1 + $0x1d0] sm:$0xff]
      %v2028 = vld [vmem:[%s1 + $0x1d8] sm:$0xff]
      %v2029 = vld [vmem:[%s1 + $0x1e0] sm:$0xff]
      %v2030 = vld [vmem:[%s1 + $0x1e8] sm:$0xff]
      %v2031 = vpack.c.bf16 %v2026, %v2025
      %v2032 = vpack.c.bf16 %v2028, %v2027
      %v2033 = vpack.c.bf16 %v2030, %v2029
      %v2034 = vpack.c.bf16 %v2024, %v2023
      %v2035 = vld [vmem:[%s1 + $0x1f0] sm:$0xff]
      %v2036 = vld [vmem:[%s1 + $0x1f8] sm:$0xff]
      %v2037 = vld [vmem:[%s1 + $0x200] sm:$0xff]
      %v2038 = vld [vmem:[%s1 + $0x208] sm:$0xff]
      %v2039 = vld [vmem:[%s1 + $0x210] sm:$0xff]
      %v2040 = vld [vmem:[%s1 + $0x218] sm:$0xff]
      %2042 = vset.pattern.permute.xlu0 0
      %2043 = vperm.xlu0 %2042, %v2035
      %v2044 = vpop.permute.xlu0 %2043
      %2047 = vset.pattern.permute.xlu0 0
      %2048 = vperm.xlu0 %2047, %v2036
      %v2049 = vpop.permute.xlu0 %2048
      %2052 = vset.pattern.permute.xlu0 0
      %2053 = vperm.xlu0 %2052, %v2037
      %v2054 = vpop.permute.xlu0 %2053
      %2057 = vset.pattern.permute.xlu0 0
      %2058 = vperm.xlu0 %2057, %v2038
      %v2059 = vpop.permute.xlu0 %2058
      %2062 = vset.pattern.permute.xlu0 0
      %2063 = vperm.xlu0 %2062, %v2039
      %v2064 = vpop.permute.xlu0 %2063
      %2067 = vset.pattern.permute.xlu0 0
      %2068 = vperm.xlu0 %2067, %v2040
      %v2069 = vpop.permute.xlu0 %2068
      %2072 = vrot.lane.b32.xlu0 %v2034, 126
      %v2073 = vpop.permute.xlu0 %2072
      %v2076 = vsel %vm1483, %v2031, 0
      %v2079 = vsel %vm1483, %v2032, 0
      %v2082 = vsel %vm1483, %v2033, 0
      %2084 = vmatprep.subr.bf16.mxu0 0
      %2085 = vmatpush1.bf16.msra.mxu0 %v2073
      %2086 = vmatprep.subr.bf16.mxu0 0
      %2087 = vmatpush1.bf16.msra.mxu0 0
      %2088 = vmatprep.subr.bf16.mxu0 0
      %2089 = vmatpush1.bf16.msra.mxu0 0
      %2090 = vmatprep.subr.bf16.mxu0 0
      %2091 = vmatpush1.bf16.msra.mxu0 0
      %2092 = vmatprep.subr.bf16.mxu0 0
      %2093 = vmatpush1.bf16.msra.mxu0 0
      %2094 = vmatprep.subr.bf16.mxu0 0
      %2095 = vmatpush1.bf16.msra.mxu0 0
      %2096 = vmatprep.subr.bf16.mxu0 0
      %2097 = vmatpush1.bf16.msra.mxu0 0
      %2098 = vmatprep.subr.bf16.mxu0 0
      %2099 = vmatpush1.bf16.msra.mxu0 0
      %2100 = vmatprep.subr.bf16.mxu0 0
      %2101 = vmatpush1.bf16.msra.mxu0 0
      %2102 = vmatprep.subr.bf16.mxu0 0
      %2103 = vmatpush1.bf16.msra.mxu0 0
      %2104 = vmatprep.subr.bf16.mxu0 0
      %2105 = vmatpush1.bf16.msra.mxu0 0
      %2106 = vmatprep.subr.bf16.mxu0 0
      %2107 = vmatpush1.bf16.msra.mxu0 0
      %2108 = vmatprep.subr.bf16.mxu0 0
      %2109 = vmatpush1.bf16.msra.mxu0 0
      %2110 = vmatprep.subr.bf16.mxu0 0
      %2111 = vmatpush1.bf16.msra.mxu0 0
      %2112 = vmatprep.subr.bf16.mxu0 0
      %2113 = vmatpush1.bf16.msra.mxu0 0
      %2114 = vmatprep.subr.bf16.mxu0 0
      %2115 = vmatpush1.bf16.msra.mxu0 0
      %2116 = vmatprep.mubr.bf16.mxu0 0
      %2117 = vmatmul.mubr.bf16.gmra.mrb[0].mxu0 %v2076
      %v2118 = vpop.f32.mrb[0].mxu0
      %v2119 = vadd.f32 %v2044, %v2118
      %v2120 = vpop.f32.mrb[0].mxu0
      %v2121 = vpop.f32.mrb[0].mxu0
      %v2122 = vadd.f32 %v2049, %v2121
      %v2123 = vpop.f32.mrb[0].mxu0
      %2124 = vmatprep.mubr.bf16.mxu0 0
      %2125 = vmatmul.mubr.bf16.gmra.mrb[0].mxu0 %v2079
      %v2126 = vpop.f32.mrb[0].mxu0
      %v2127 = vadd.f32 %v2054, %v2126
      %v2128 = vpop.f32.mrb[0].mxu0
      %v2129 = vpop.f32.mrb[0].mxu0
      %v2130 = vadd.f32 %v2059, %v2129
      %v2131 = vpop.f32.mrb[0].mxu0
      %2132 = vmatprep.mubr.bf16.mxu0 0
      %2133 = vmatmul.mubr.bf16.gmra.mrb[0].mxu0 %v2082
      %v2134 = vpop.f32.mrb[0].mxu0
      %v2135 = vadd.f32 %v2064, %v2134
      %v2136 = vpop.f32.mrb[0].mxu0
      %v2137 = vpop.f32.mrb[0].mxu0
      %v2138 = vadd.f32 %v2069, %v2137
      %v2139 = vpop.f32.mrb[0].mxu0
      %2140 = vdwg.mxu0
      %2141 = vxpose.xlu0.b32.start [1/16] %v2127, 128
      %2142 = vxpose.xlu0.b32.cont [2/16] %v2130, 128
      %2143 = vxpose.xlu0.b32.cont [3/16] 0.0, 128
      %2144 = vxpose.xlu0.b32.cont [4/16] 0.0, 128
      %2145 = vxpose.xlu0.b32.cont [5/16] 0.0, 128
      %2146 = vxpose.xlu0.b32.cont [6/16] 0.0, 128
      %2147 = vxpose.xlu0.b32.cont [7/16] 0.0, 128
      %2148 = vxpose.xlu0.b32.cont [8/16] 0.0, 128
      %2149 = vxpose.xlu0.b32.cont [9/16] 0.0, 128
      %2150 = vxpose.xlu0.b32.cont [10/16] 0.0, 128
      %2151 = vxpose.xlu0.b32.cont [11/16] 0.0, 128
      %2152 = vxpose.xlu0.b32.cont [12/16] 0.0, 128
      %2153 = vxpose.xlu0.b32.cont [13/16] 0.0, 128
      %2154 = vxpose.xlu0.b32.cont [14/16] 0.0, 128
      %2155 = vxpose.xlu0.b32.cont [15/16] 0.0, 128
      %2156 = vxpose.xlu0.b32.end [16/16] 0.0, 128
      %v2157 = vpop.trf.xlu0
      %v2158 = vpop.trf.xlu0
      %v2159 = vpop.trf.xlu0
      %v2160 = vpop.trf.xlu0
      %v2161 = vpop.trf.xlu0
      %v2162 = vpop.trf.xlu0
      %v2163 = vpop.trf.xlu0
      %v2164 = vpop.trf.xlu0
      %v2165 = vpop.trf.xlu0
      %v2166 = vpop.trf.xlu0
      %v2167 = vpop.trf.xlu0
      %v2168 = vpop.trf.xlu0
      %v2169 = vpop.trf.xlu0
      %v2170 = vpop.trf.xlu0
      %v2171 = vpop.trf.xlu0
      %v2172 = vpop.trf.xlu0
      %v2173 = vpack.c.bf16 %v2157, %v2157
      %v2174 = vpack.c.bf16 %v2122, %v2119
      %v2176 = vsel %vm1483, %v2173, 0
      %2178 = vmatprep.subr.bf16.mxu0 0
      %2179 = vmatpush1.bf16.msra.mxu0 %v2174
      %2180 = vmatprep.subr.bf16.mxu0 0
      %2181 = vmatpush1.bf16.msra.mxu0 0
      %2182 = vmatprep.subr.bf16.mxu0 0
      %2183 = vmatpush1.bf16.msra.mxu0 0
      %2184 = vmatprep.subr.bf16.mxu0 0
      %2185 = vmatpush1.bf16.msra.mxu0 0
      %2186 = vmatprep.subr.bf16.mxu0 0
      %2187 = vmatpush1.bf16.msra.mxu0 0
      %2188 = vmatprep.subr.bf16.mxu0 0
      %2189 = vmatpush1.bf16.msra.mxu0 0
      %2190 = vmatprep.subr.bf16.mxu0 0
      %2191 = vmatpush1.bf16.msra.mxu0 0
      %2192 = vmatprep.subr.bf16.mxu0 0
      %2193 = vmatpush1.bf16.msra.mxu0 0
      %2194 = vmatprep.subr.bf16.mxu0 0
      %2195 = vmatpush1.bf16.msra.mxu0 0
      %2196 = vmatprep.subr.bf16.mxu0 0
      %2197 = vmatpush1.bf16.msra.mxu0 0
      %2198 = vmatprep.subr.bf16.mxu0 0
      %2199 = vmatpush1.bf16.msra.mxu0 0
      %2200 = vmatprep.subr.bf16.mxu0 0
      %2201 = vmatpush1.bf16.msra.mxu0 0
      %2202 = vmatprep.subr.bf16.mxu0 0
      %2203 = vmatpush1.bf16.msra.mxu0 0
      %2204 = vmatprep.subr.bf16.mxu0 0
      %2205 = vmatpush1.bf16.msra.mxu0 0
      %2206 = vmatprep.subr.bf16.mxu0 0
      %2207 = vmatpush1.bf16.msra.mxu0 0
      %2208 = vmatprep.subr.bf16.mxu0 0
      %2209 = vmatpush1.bf16.msra.mxu0 0
      %2210 = vmatprep.mubr.bf16.mxu0 0
      %2211 = vmatmul.mubr.bf16.gmra.mrb[0].mxu0 %v2176
      %v2212 = vpop.f32.mrb[0].mxu0
      %v2213 = vadd.f32 0.0, %v2212
      %v2214 = vpop.f32.mrb[0].mxu0
      %v2215 = vpop.f32.mrb[0].mxu0
      %v2216 = vpop.f32.mrb[0].mxu0
      %2217 = vdwg.mxu0
      %v2218 = vmul.f32 %v2213, 0.25
      %v2219 = vsel %vm744, %v2218, -inf
      %v2220 = vrot.slane %v2219, 4
      %v2221 = vmax.f32 %v2219, %v2220
      %v2222 = vrot.slane %v2221, 2
      %v2223 = vmax.f32 %v2221, %v2222
      %v2224 = vrot.slane %v2223, 1
      %v2225 = vmax.f32 %v2223, %v2224
      %v2226 = vsub.f32 %v2218, %v2225
      %v2227 = vmul.f32 %v2226, 1.442695
      %v2228 = vpow.pop %v2227
      %v2229 = vsel %vm744, %v2228, 0.0
      %v2230 = vrot.slane %v2229, 4
      %v2231 = vadd.f32 %v2229, %v2230
      %v2232 = vrot.slane %v2231, 2
      %v2233 = vadd.f32 %v2231, %v2232
      %v2234 = vrot.slane %v2233, 1
      %v2235 = vadd.f32 %v2233, %v2234
      %v2236 = vrcp.pop %v2235
      %v2237 = vmul.f32 %v2228, %v2236
      %v2238 = vpack.c.bf16 %v2138, %v2135
      %v2239 = vpack.c.bf16 %v2237, %v2237
      %v2241 = vsel %vm744, %v2238, 0
      %v2244 = vsel %vm186, %v2239, 0
      %2246 = vmatprep.subr.bf16.mxu0 0
      %2247 = vmatpush1.bf16.msra.mxu0 %v2244
      %2248 = vmatprep.subr.bf16.mxu0 0
      %2249 = vmatpush1.bf16.msra.mxu0 0
      %2250 = vmatprep.subr.bf16.mxu0 0
      %2251 = vmatpush1.bf16.msra.mxu0 0
      %2252 = vmatprep.subr.bf16.mxu0 0
      %2253 = vmatpush1.bf16.msra.mxu0 0
      %2254 = vmatprep.subr.bf16.mxu0 0
      %2255 = vmatpush1.bf16.msra.mxu0 0
      %2256 = vmatprep.subr.bf16.mxu0 0
      %2257 = vmatpush1.bf16.msra.mxu0 0
      %2258 = vmatprep.subr.bf16.mxu0 0
      %2259 = vmatpush1.bf16.msra.mxu0 0
      %2260 = vmatprep.subr.bf16.mxu0 0
      %2261 = vmatpush1.bf16.msra.mxu0 0
      %2262 = vmatprep.subr.bf16.mxu0 0
      %2263 = vmatpush1.bf16.msra.mxu0 0
      %2264 = vmatprep.subr.bf16.mxu0 0
      %2265 = vmatpush1.bf16.msra.mxu0 0
      %2266 = vmatprep.subr.bf16.mxu0 0
      %2267 = vmatpush1.bf16.msra.mxu0 0
      %2268 = vmatprep.subr.bf16.mxu0 0
      %2269 = vmatpush1.bf16.msra.mxu0 0
      %2270 = vmatprep.subr.bf16.mxu0 0
      %2271 = vmatpush1.bf16.msra.mxu0 0
      %2272 = vmatprep.subr.bf16.mxu0 0
      %2273 = vmatpush1.bf16.msra.mxu0 0
      %2274 = vmatprep.subr.bf16.mxu0 0
      %2275 = vmatpush1.bf16.msra.mxu0 0
      %2276 = vmatprep.subr.bf16.mxu0 0
      %2277 = vmatpush1.bf16.msra.mxu0 0
      %2278 = vmatprep.mubr.bf16.mxu0 0
      %2279 = vmatmul.mubr.bf16.gmra.mrb[0].mxu0 %v2241
      %v2280 = vpop.f32.mrb[0].mxu0
      %v2281 = vadd.f32 0.0, %v2280
      %v2282 = vpop.f32.mrb[0].mxu0
      %v2283 = vpop.f32.mrb[0].mxu0
      %v2284 = vadd.f32 0.0, %v2283
      %v2285 = vpop.f32.mrb[0].mxu0
      %2286 = vdwg.mxu0
      %v2287 = vld [vmem:[%s1 + $0x220] sm:$0xff]
      %v2288 = vld [vmem:[%s1 + $0x228] sm:$0xff]
      %v2289 = vpack.c.bf16 %v2288, %v2287
      %v2290 = vpack.c.bf16 %v2284, %v2281
      %v2291 = vld [vmem:[%s1 + $0x230] sm:$0xff]
      %v2292 = vld [vmem:[%s1 + $0x238] sm:$0xff]
      %2294 = vset.pattern.permute.xlu0 0
      %2295 = vperm.xlu0 %2294, %v2291
      %v2296 = vpop.permute.xlu0 %2295
      %2299 = vset.pattern.permute.xlu0 0
      %2300 = vperm.xlu0 %2299, %v2292
      %v2301 = vpop.permute.xlu0 %2300
      %v2304 = vsel %vm1483, %v2289, 0
      %2306 = vmatprep.subr.bf16.mxu0 0
      %2307 = vmatpush1.bf16.msra.mxu0 %v2290
      %2308 = vmatprep.subr.bf16.mxu0 0
      %2309 = vmatpush1.bf16.msra.mxu0 0
      %2310 = vmatprep.subr.bf16.mxu0 0
      %2311 = vmatpush1.bf16.msra.mxu0 0
      %2312 = vmatprep.subr.bf16.mxu0 0
      %2313 = vmatpush1.bf16.msra.mxu0 0
      %2314 = vmatprep.subr.bf16.mxu0 0
      %2315 = vmatpush1.bf16.msra.mxu0 0
      %2316 = vmatprep.subr.bf16.mxu0 0
      %2317 = vmatpush1.bf16.msra.mxu0 0
      %2318 = vmatprep.subr.bf16.mxu0 0
      %2319 = vmatpush1.bf16.msra.mxu0 0
      %2320 = vmatprep.subr.bf16.mxu0 0
      %2321 = vmatpush1.bf16.msra.mxu0 0
      %2322 = vmatprep.subr.bf16.mxu0 0
      %2323 = vmatpush1.bf16.msra.mxu0 0
      %2324 = vmatprep.subr.bf16.mxu0 0
      %2325 = vmatpush1.bf16.msra.mxu0 0
      %2326 = vmatprep.subr.bf16.mxu0 0
      %2327 = vmatpush1.bf16.msra.mxu0 0
      %2328 = vmatprep.subr.bf16.mxu0 0
      %2329 = vmatpush1.bf16.msra.mxu0 0
      %2330 = vmatprep.subr.bf16.mxu0 0
      %2331 = vmatpush1.bf16.msra.mxu0 0
      %2332 = vmatprep.subr.bf16.mxu0 0
      %2333 = vmatpush1.bf16.msra.mxu0 0
      %2334 = vmatprep.subr.bf16.mxu0 0
      %2335 = vmatpush1.bf16.msra.mxu0 0
      %2336 = vmatprep.subr.bf16.mxu0 0
      %2337 = vmatpush1.bf16.msra.mxu0 0
      %2338 = vmatprep.mubr.bf16.mxu0 0
      %2339 = vmatmul.mubr.bf16.gmra.mrb[0].mxu0 %v2304
      %v2340 = vpop.f32.mrb[0].mxu0
      %v2341 = vadd.f32 %v2296, %v2340
      %v2342 = vpop.f32.mrb[0].mxu0
      %v2343 = vpop.f32.mrb[0].mxu0
      %v2344 = vadd.f32 %v2301, %v2343
      %v2345 = vpop.f32.mrb[0].mxu0
      %2346 = vdwg.mxu0
      %2349 = vrot.lane.b32.xlu0 %v2341, 2
      %v2350 = vpop.permute.xlu0 %2349
      %2351 = vrot.lane.b32.xlu0 %v2344, 2
      %v2352 = vpop.permute.xlu0 %2351
      %v2355 = vadd.f32 %v2023, %v2350
      %v2356 = vadd.f32 %v2024, %v2352
      %v2357 = vld [vmem:[%s1 + $0x240] sm:$0xff]
      %v2358 = vld [vmem:[%s1 + $0x248] sm:$0xff]
      %v2359 = vld [vmem:[%s1 + $0x250] sm:$0xff]
      %v2360 = vld [vmem:[%s1 + $0x258] sm:$0xff]
      %v2361 = vsel %vm1296, %v2355, 0.0
      %v2362 = vsel %vm1296, %v2356, 0.0
      %v2363 = vadd.f32 %v2361, %v2362
      %v2364 = vrot.slane %v2363, 4
      %v2365 = vadd.f32 %v2363, %v2364
      %v2366 = vrot.slane %v2365, 2
      %v2367 = vadd.f32 %v2365, %v2366
      %v2368 = vrot.slane %v2367, 1
      %v2369 = vadd.f32 %v2367, %v2368
      %v2370 = vmul.f32 %v2369, %v1779
      %v2371 = vsub.f32 %v2355, %v2370
      %v2372 = vsub.f32 %v2356, %v2370
      %v2373 = vmul.f32 %v2371, %v2371
      %v2374 = vmul.f32 %v2372, %v2372
      %v2375 = vsel %vm1296, %v2373, 0.0
      %v2376 = vsel %vm1296, %v2374, 0.0
      %v2377 = vadd.f32 %v2375, %v2376
      %v2378 = vrot.slane %v2377, 4
      %v2379 = vadd.f32 %v2377, %v2378
      %v2380 = vrot.slane %v2379, 2
      %v2381 = vadd.f32 %v2379, %v2380
      %v2382 = vrot.slane %v2381, 1
      %v2383 = vadd.f32 %v2381, %v2382
      %v2384 = vmul.f32 %v2383, %v1779
      %v2385 = vadd.f32 %v2384, 1e-05
      %v2386 = vrsqrt.pop %v2385
      %v2387 = vmul.f32 %v2371, %v2386
      %v2388 = vmul.f32 %v2372, %v2386
      %2390 = vset.pattern.permute.xlu0 0
      %2391 = vperm.xlu0 %2390, %v2357
      %v2392 = vpop.permute.xlu0 %2391
      %2395 = vset.pattern.permute.xlu0 0
      %2396 = vperm.xlu0 %2395, %v2358
      %v2397 = vpop.permute.xlu0 %2396
      %v2399 = vmul.f32 %v2387, %v2392
      %v2400 = vmul.f32 %v2388, %v2397
      %2402 = vset.pattern.permute.xlu0 0
      %2403 = vperm.xlu0 %2402, %v2359
      %v2404 = vpop.permute.xlu0 %2403
      %2407 = vset.pattern.permute.xlu0 0
      %2408 = vperm.xlu0 %2407, %v2360
      %v2409 = vpop.permute.xlu0 %2408
      %v2411 = vadd.f32 %v2399, %v2404
      %v2412 = vadd.f32 %v2400, %v2409
      %v2413 = vld [vmem:[%s1 + $0x260] sm:$0xff]
      %v2414 = vld [vmem:[%s1 + $0x268] sm:$0xff]
      %v2415 = vpack.c.bf16 %v2414, %v2413
      %v2416 = vpack.c.bf16 %v2412, %v2411
      %v2417 = vld [vmem:[%s1 + $0x270] sm:$0xff]
      %v2418 = vld [vmem:[%s1 + $0x278] sm:$0xff]
      %2420 = vset.pattern.permute.xlu0 0
      %2421 = vperm.xlu0 %2420, %v2417
      %v2422 = vpop.permute.xlu0 %2421
      %2425 = vset.pattern.permute.xlu0 0
      %2426 = vperm.xlu0 %2425, %v2418
      %v2427 = vpop.permute.xlu0 %2426
      %2430 = vrot.lane.b32.xlu0 %v2416, 126
      %v2431 = vpop.permute.xlu0 %2430
      %v2434 = vsel %vm1483, %v2415, 0
      %2436 = vmatprep.subr.bf16.mxu0 0
      %2437 = vmatpush1.bf16.msra.mxu0 %v2431
      %2438 = vmatprep.subr.bf16.mxu0 0
      %2439 = vmatpush1.bf16.msra.mxu0 0
      %2440 = vmatprep.subr.bf16.mxu0 0
      %2441 = vmatpush1.bf16.msra.mxu0 0
      %2442 = vmatprep.subr.bf16.mxu0 0
      %2443 = vmatpush1.bf16.msra.mxu0 0
      %2444 = vmatprep.subr.bf16.mxu0 0
      %2445 = vmatpush1.bf16.msra.mxu0 0
      %2446 = vmatprep.subr.bf16.mxu0 0
      %2447 = vmatpush1.bf16.msra.mxu0 0
      %2448 = vmatprep.subr.bf16.mxu0 0
      %2449 = vmatpush1.bf16.msra.mxu0 0
      %2450 = vmatprep.subr.bf16.mxu0 0
      %2451 = vmatpush1.bf16.msra.mxu0 0
      %2452 = vmatprep.subr.bf16.mxu0 0
      %2453 = vmatpush1.bf16.msra.mxu0 0
      %2454 = vmatprep.subr.bf16.mxu0 0
      %2455 = vmatpush1.bf16.msra.mxu0 0
      %2456 = vmatprep.subr.bf16.mxu0 0
      %2457 = vmatpush1.bf16.msra.mxu0 0
      %2458 = vmatprep.subr.bf16.mxu0 0
      %2459 = vmatpush1.bf16.msra.mxu0 0
      %2460 = vmatprep.subr.bf16.mxu0 0
      %2461 = vmatpush1.bf16.msra.mxu0 0
      %2462 = vmatprep.subr.bf16.mxu0 0
      %2463 = vmatpush1.bf16.msra.mxu0 0
      %2464 = vmatprep.subr.bf16.mxu0 0
      %2465 = vmatpush1.bf16.msra.mxu0 0
      %2466 = vmatprep.subr.bf16.mxu0 0
      %2467 = vmatpush1.bf16.msra.mxu0 0
      %2468 = vmatprep.mubr.bf16.mxu0 0
      %2469 = vmatmul.mubr.bf16.gmra.mrb[0].mxu0 %v2434
      %v2470 = vpop.f32.mrb[0].mxu0
      %v2471 = vadd.f32 %v2422, %v2470
      %v2472 = vpop.f32.mrb[0].mxu0
      %v2473 = vpop.f32.mrb[0].mxu0
      %v2474 = vadd.f32 %v2427, %v2473
      %v2475 = vpop.f32.mrb[0].mxu0
      %2476 = vdwg.mxu0
      %v2477 = vadd.f32 %v2471, 3.0
      %v2478 = vadd.f32 %v2474, 3.0
      %v2479 = vmax.f32 %v2477, 0.0
      %v2480 = vmax.f32 %v2478, 0.0
      %v2481 = vmin.f32 %v2479, 6.0
      %v2482 = vmin.f32 %v2480, 6.0
      %v2483 = vmul.f32 %v2471, %v2481
      %v2484 = vmul.f32 %v2474, %v2482
      %v2485 = vmul.f32 %v2483, 0.16666667
      %v2486 = vmul.f32 %v2484, 0.16666667
      %v2487 = vld [vmem:[%s1 + $0x280] sm:$0xff]
      %v2488 = vld [vmem:[%s1 + $0x288] sm:$0xff]
      %v2489 = vpack.c.bf16 %v2488, %v2487
      %v2490 = vpack.c.bf16 %v2486, %v2485
      %v2492 = vsel %vm1483, %v2489, 0
      %2494 = vmatprep.subr.bf16.mxu0 0
      %2495 = vmatpush1.bf16.msra.mxu0 %v2490
      %2496 = vmatprep.subr.bf16.mxu0 0
      %2497 = vmatpush1.bf16.msra.mxu0 0
      %2498 = vmatprep.subr.bf16.mxu0 0
      %2499 = vmatpush1.bf16.msra.mxu0 0
      %2500 = vmatprep.subr.bf16.mxu0 0
      %2501 = vmatpush1.bf16.msra.mxu0 0
      %2502 = vmatprep.subr.bf16.mxu0 0
      %2503 = vmatpush1.bf16.msra.mxu0 0
      %2504 = vmatprep.subr.bf16.mxu0 0
      %2505 = vmatpush1.bf16.msra.mxu0 0
      %2506 = vmatprep.subr.bf16.mxu0 0
      %2507 = vmatpush1.bf16.msra.mxu0 0
      %2508 = vmatprep.subr.bf16.mxu0 0
      %2509 = vmatpush1.bf16.msra.mxu0 0
      %2510 = vmatprep.subr.bf16.mxu0 0
      %2511 = vmatpush1.bf16.msra.mxu0 0
      %2512 = vmatprep.subr.bf16.mxu0 0
      %2513 = vmatpush1.bf16.msra.mxu0 0
      %2514 = vmatprep.subr.bf16.mxu0 0
      %2515 = vmatpush1.bf16.msra.mxu0 0
      %2516 = vmatprep.subr.bf16.mxu0 0
      %2517 = vmatpush1.bf16.msra.mxu0 0
      %2518 = vmatprep.subr.bf16.mxu0 0
      %2519 = vmatpush1.bf16.msra.mxu0 0
      %2520 = vmatprep.subr.bf16.mxu0 0
      %2521 = vmatpush1.bf16.msra.mxu0 0
      %2522 = vmatprep.subr.bf16.mxu0 0
      %2523 = vmatpush1.bf16.msra.mxu0 0
      %2524 = vmatprep.subr.bf16.mxu0 0
      %2525 = vmatpush1.bf16.msra.mxu0 0
      %2526 = vmatprep.mubr.bf16.mxu0 0
      %2527 = vmatmul.mubr.bf16.gmra.mrb[0].mxu0 %v2492
      %v2528 = vpop.f32.mrb[0].mxu0
      %v2529 = vadd.f32 0.0, %v2528
      %v2530 = vpop.f32.mrb[0].mxu0
      %v2531 = vpop.f32.mrb[0].mxu0
      %v2532 = vadd.f32 0.0, %v2531
      %v2533 = vpop.f32.mrb[0].mxu0
      %2534 = vdwg.mxu0
      %2537 = vrot.lane.b32.xlu0 %v2529, 2
      %v2538 = vpop.permute.xlu0 %2537
      %2539 = vrot.lane.b32.xlu0 %v2532, 2
      %v2540 = vpop.permute.xlu0 %2539
      %v2543 = vadd.f32 %v2411, %v2538
      %v2544 = vadd.f32 %v2412, %v2540
      %v2545 = vld [vmem:[%s1 + $0x290] sm:$0xff]
      %v2546 = vld [vmem:[%s1 + $0x298] sm:$0xff]
      %2548 = vset.pattern.permute.xlu0 0
      %2549 = vperm.xlu0 %2548, %v2545
      %v2550 = vpop.permute.xlu0 %2549
      %2553 = vset.pattern.permute.xlu0 0
      %2554 = vperm.xlu0 %2553, %v2546
      %v2555 = vpop.permute.xlu0 %2554
      %v2557 = vadd.f32 %v2543, %v2550
      %v2558 = vadd.f32 %v2544, %v2555
      %v2559 = vld [vmem:[%s1 + $0x2a0] sm:$0xff]
      %v2560 = vld [vmem:[%s1 + $0x2a8] sm:$0xff]
      %v2561 = vld [vmem:[%s1 + $0x2b0] sm:$0xff]
      %v2562 = vld [vmem:[%s1 + $0x2b8] sm:$0xff]
      %v2563 = vsel %vm1296, %v2557, 0.0
      %v2564 = vsel %vm1296, %v2558, 0.0
      %v2565 = vadd.f32 %v2563, %v2564
      %v2566 = vrot.slane %v2565, 4
      %v2567 = vadd.f32 %v2565, %v2566
      %v2568 = vrot.slane %v2567, 2
      %v2569 = vadd.f32 %v2567, %v2568
      %v2570 = vrot.slane %v2569, 1
      %v2571 = vadd.f32 %v2569, %v2570
      %v2572 = vmul.f32 %v2571, %v1779
      %v2573 = vsub.f32 %v2557, %v2572
      %v2574 = vsub.f32 %v2558, %v2572
      %v2575 = vmul.f32 %v2573, %v2573
      %v2576 = vmul.f32 %v2574, %v2574
      %v2577 = vsel %vm1296, %v2575, 0.0
      %v2578 = vsel %vm1296, %v2576, 0.0
      %v2579 = vadd.f32 %v2577, %v2578
      %v2580 = vrot.slane %v2579, 4
      %v2581 = vadd.f32 %v2579, %v2580
      %v2582 = vrot.slane %v2581, 2
      %v2583 = vadd.f32 %v2581, %v2582
      %v2584 = vrot.slane %v2583, 1
      %v2585 = vadd.f32 %v2583, %v2584
      %v2586 = vmul.f32 %v2585, %v1779
      %v2587 = vadd.f32 %v2586, 1e-05
      %v2588 = vrsqrt.pop %v2587
      %v2589 = vmul.f32 %v2573, %v2588
      %v2590 = vmul.f32 %v2574, %v2588
      %2592 = vset.pattern.permute.xlu0 0
      %2593 = vperm.xlu0 %2592, %v2559
      %v2594 = vpop.permute.xlu0 %2593
      %2597 = vset.pattern.permute.xlu0 0
      %2598 = vperm.xlu0 %2597, %v2560
      %v2599 = vpop.permute.xlu0 %2598
      %v2601 = vmul.f32 %v2589, %v2594
      %v2602 = vmul.f32 %v2590, %v2599
      %2604 = vset.pattern.permute.xlu0 0
      %2605 = vperm.xlu0 %2604, %v2561
      %v2606 = vpop.permute.xlu0 %2605
      %2609 = vset.pattern.permute.xlu0 0
      %2610 = vperm.xlu0 %2609, %v2562
      %v2611 = vpop.permute.xlu0 %2610
      %v2613 = vadd.f32 %v2601, %v2606
      %v2614 = vadd.f32 %v2602, %v2611
      %2617 = vrot.lane.b32.xlu0 %v2613, 126
      %v2618 = vpop.permute.xlu0 %2617
      %2619 = vrot.lane.b32.xlu0 %v2614, 126
      %v2620 = vpop.permute.xlu0 %2619
      %v2623 = vsel %vm744, %v2618, 0.0
      %2624 = vadd.xlane.f32.xlu0 %v2623
      %v2625 = vpop.xlane.xlu0 %2624
      %v2626 = vsel %vm744, %v2620, 0.0
      %2627 = vadd.xlane.f32.xlu0 %v2626
      %v2628 = vpop.xlane.xlu0 %2627
      %v2629 = vrcp.pop 8.0
      %v2630 = vmul.f32 %v2625, %v2629
      %v2631 = vmul.f32 %v2628, %v2629
      %vm2632 = vcmask 7168
      %2633 = vst.msk [vmem:[%s140] sm:$0xff] %vm2632, %v2630
      %2634 = vst.msk [vmem:[%s140 + $0x8] sm:$0xff] %vm2632, %v2631
      %p2635 = scmp.lt.s32.totalorder %s13, 1
      %s2636 = scalar_select %p2635, %s13, 1
      %s2637 = smul.addr %s2636, 2
      %s2638 = smul.addr %s2637, 8
      %s2639 = scalar_lea.vmem %s2, %s2638
      // Predicated region
      $region29: #{psdnet_forward.2} parent=27 // pred_check
        %p2640 = pneg %p78
      $region30: #{psdnet_forward.2} parent=27 // pred_check_branch
        %2642 = sbr.rel (%p2640) target = $region32
      $region31: #{psdnet_forward.2} parent=27 // pred_region
        _
      $region32: #{psdnet_forward.2} parent=27 // pred_fallthru
        _
    $region28: #{psdnet_forward.2} parent=5 // pred_fallthru
      _
    %p2643 = scmp.le.s32.totalorder 2, %s8
    // Predicated region
    $region33: #{psdnet_forward.2} parent=5 // pred_check
      %p2644 = pneg %p2643
    $region34: #{psdnet_forward.2} parent=5 // pred_check_branch
      %2646 = sbr.rel (%p2644) target = $region36
    $region35: #{psdnet_forward.2} parent=5 // pred_region
      %s2647 = ssub.s32 %s8, 2
      // Predicated region
      $region37: #{psdnet_forward.2} parent=35 // pred_check
        %p2648 = pneg %p84
      $region38: #{psdnet_forward.2} parent=35 // pred_check_branch
        %2650 = sbr.rel (%p2648) target = $region40
      $region39: #{psdnet_forward.2} parent=35 // pred_region
        %p2651 = scmp.lt.s32.totalorder %s14, 1
        %s2652 = scalar_select %p2651, %s14, 1
        %s2653 = smul.addr %s2652, 2
        %s2654 = smul.addr %s2653, 8
        %s2655 = scalar_lea.vmem %s2, %s2654
      $region40: #{psdnet_forward.2} parent=35 // pred_fallthru
        _
    $region36: #{psdnet_forward.2} parent=5 // pred_fallthru
      _
  $region6: #{psdnet_forward.2} parent=0 // loop_footer
    %s12 = sadd.s32 1, %s8
  $region7: #{psdnet_forward.2} parent=0 // loop_footer_branch
    %7 = sbr.rel target = $region3
  $region8: #{psdnet_forward.2} parent=0 // loop_exit
    _

</llo_original>
